<compile_context>
chip_gen: v7x
topology: tpu7x:2x2x1
jax: 0.10.0
libtpu: 0.0.40
codegen_flags: <defaults>
</compile_context>

<pallas_src>
import jax
import jax.numpy as jnp
from jax.experimental import pallas as pl
from jax.experimental.pallas import tpu as pltpu

TIME_STEP = 4          # torch global `time_step`
DECAY = 0.2            # TODO(synk): sbl.BoundMemUpdate exact decay unknown; STBP default used
THRESH = 0.5           # TODO(synk): sbl.BoundMemUpdate exact threshold unknown; STBP default used
# TODO(synk): sbl.BoundConv2d kernel_size/padding are defaults hidden in sbl; k=3, pad=1 chosen
#             (the only standard choice consistent with fc1 = 7*7*128 for 28x28 MNIST inputs).


def _round_up(x, m):
    return ((x + m - 1) // m) * m


# ----------------------------------------------------------------------------
# Pallas kernel 1: matmul + fused bias (MXU hot path for conv-as-im2col and linears)
#   bf16 inputs, f32 accumulation, bias added in the epilogue (no extra HBM round trip).
# ----------------------------------------------------------------------------
def _mm_bias_kernel(a_ref, b_ref, bias_ref, o_ref):
    # Single full-K block: no accumulator scratch needed; bias fused into the store.
    o_ref[...] = (jnp.dot(a_ref[...], b_ref[...], preferred_element_type=jnp.float32)
                  + bias_ref[...]).astype(o_ref.dtype)


def _mm_bias_acc_kernel(a_ref, b_ref, bias_ref, o_ref, acc_ref):
    k = pl.program_id(2)

    @pl.when(k == 0)
    def _():
        acc_ref[...] = jnp.zeros_like(acc_ref)

    acc_ref[...] += jnp.dot(a_ref[...], b_ref[...], preferred_element_type=jnp.float32)

    # Only cast + store the output tile on the final K step (saves vst slot pressure).
    @pl.when(k == pl.num_programs(2) - 1)
    def _():
        o_ref[...] = (acc_ref[...] + bias_ref[...]).astype(o_ref.dtype)


def pallas_matmul_bias(a, b, bias):
    """a: (M, K), b: (K, N), bias: (N,) -> (M, N) f32.  a/b cast to bf16, f32 accumulate."""
    M, K = a.shape
    K2, N = b.shape
    assert K == K2 and bias.shape == (N,)

    # ---- tile selection (avoid padding small dims up to 128) ----
    Np = _round_up(N, 128)               # output lane dim must be 128-dense
    tn = min(Np, 256)
    if Np % tn:
        Np = _round_up(Np, tn)

    Kp = _round_up(K, 16)                # bf16 sublane packing; full-K block exempt from 128 rule
    Mp = _round_up(M, 8)
    tm = Mp if Mp <= 2048 else 256       # single M tile when small (no 128-row padding for fc)
    Mp = _round_up(M, tm)

    def _vmem(tm_, tk_, tn_):            # double-buffered A/B (bf16) + out (f32) + bias
        return 2 * (tm_ * tk_ + tk_ * tn_) * 2 + 2 * tm_ * tn_ * 4 + 2 * tn_ * 4

    budget = 24 * 1024 * 1024            # stays below the scoped VMEM default on all generations
    if _vmem(tm, Kp, tn) <= budget:
        tk = Kp                          # full-K single block: no K grid axis, no accumulator
    else:
        tk = 512
        Kp = _round_up(K, tk)
        if tm > 256:
            tm = 256
            Mp = _round_up(M, tm)

    a_p = a.astype(jnp.bfloat16)         # spikes are exactly 0/1 -> lossless cast
    b_p = b.astype(jnp.bfloat16)
    if (Mp, Kp) != (M, K):
        a_p = jnp.pad(a_p, ((0, Mp - M), (0, Kp - K)))
    if (Kp, Np) != (K, N):
        b_p = jnp.pad(b_p, ((0, Kp - K), (0, Np - N)))
    bias_p = bias.astype(jnp.float32).reshape(1, N)
    if Np != N:
        bias_p = jnp.pad(bias_p, ((0, 0), (0, Np - N)))

    gm, gn, gk = Mp // tm, Np // tn, Kp // tk

    if gk == 1:
        out = pl.pallas_call(
            _mm_bias_kernel,
            out_shape=jax.ShapeDtypeStruct((Mp, Np), jnp.float32),
            grid_spec=pltpu.PrefetchScalarGridSpec(
                num_scalar_prefetch=0,
                grid=(gm, gn),
                in_specs=[pl.BlockSpec((tm, tk), lambda i, j: (i, 0)),
                          pl.BlockSpec((tk, tn), lambda i, j: (0, j)),
                          pl.BlockSpec((1, tn), lambda i, j: (0, j))],
                out_specs=pl.BlockSpec((tm, tn), lambda i, j: (i, j))),
            compiler_params=pltpu.CompilerParams(
                dimension_semantics=("parallel", "parallel")),
        )(a_p, b_p, bias_p)
    else:
        out = pl.pallas_call(
            _mm_bias_acc_kernel,
            out_shape=jax.ShapeDtypeStruct((Mp, Np), jnp.float32),
            grid_spec=pltpu.PrefetchScalarGridSpec(
                num_scalar_prefetch=0,
                grid=(gm, gn, gk),
                in_specs=[pl.BlockSpec((tm, tk), lambda i, j, k: (i, k)),
                          pl.BlockSpec((tk, tn), lambda i, j, k: (k, j)),
                          pl.BlockSpec((1, tn), lambda i, j, k: (0, j))],
                out_specs=pl.BlockSpec((tm, tn), lambda i, j, k: (i, j)),
                scratch_shapes=[pltpu.VMEM((tm, tn), jnp.float32)]),
            compiler_params=pltpu.CompilerParams(
                dimension_semantics=("parallel", "parallel", "arbitrary")),
        )(a_p, b_p, bias_p)

    if (Mp, Np) != (M, N):
        out = out[:M, :N]
    return out


# ----------------------------------------------------------------------------
# Pallas kernel 2: membrane update over time (sbl.BoundMemUpdate forward)
#   mem_t   = carry_{t-1} + pre_t
#   spike_t = (mem_t > thresh)
#   carry_t = mem_t * decay * (1 - spike_t)      (pre-decayed carry -> single scratch buffer)
# Grid: (F tiles "parallel", T "arbitrary") so the feature dim can use both v7x TensorCores
# and per-tile VMEM stays bounded at large batch.
# ----------------------------------------------------------------------------
def _mem_update_kernel(pre_ref, spike_ref, carry_ref):
    t = pl.program_id(1)

    @pl.when(t == 0)
    def _():
        carry_ref[...] = jnp.zeros_like(carry_ref)

    mem = carry_ref[...] + pre_ref[0]                       # (N, tf)
    spike = (mem > THRESH).astype(jnp.float32)
    spike_ref[0] = spike
    carry_ref[...] = mem * (DECAY * (1.0 - spike))          # decayed & gated carry for t+1


def mem_update(pre):
    """pre: (T, N, F) f32 pre-activations -> spikes (T, N, F) f32."""
    T, N, F = pre.shape
    Fp = _round_up(F, 128)
    if Fp != F:
        pre = jnp.pad(pre, ((0, 0), (0, 0), (0, Fp - F)))

    # Choose the F tile: largest 128-multiple divisor of Fp whose working set
    # (2x in + 2x out double-buffered + carry scratch ~= 5 blocks) stays small.
    q = Fp // 128
    tf_max = max(128, ((6 * 1024 * 1024) // (5 * N * 4) // 128) * 128)
    d = max(dd for dd in range(1, q + 1) if q % dd == 0 and 128 * dd <= tf_max)
    tf = 128 * d

    out = pl.pallas_call(
        _mem_update_kernel,
        out_shape=jax.ShapeDtypeStruct((T, N, Fp), jnp.float32),
        grid_spec=pltpu.PrefetchScalarGridSpec(
            num_scalar_prefetch=0,
            grid=(Fp // tf, T),                      # T innermost: recurrence; F parallel
            in_specs=[pl.BlockSpec((1, N, tf), lambda f, t: (t, 0, f))],
            out_specs=pl.BlockSpec((1, N, tf), lambda f, t: (t, 0, f)),
            scratch_shapes=[pltpu.VMEM((N, tf), jnp.float32)]),
        compiler_params=pltpu.CompilerParams(
            dimension_semantics=("parallel", "arbitrary")),
    )(pre)
    if Fp != F:
        out = out[:, :, :F]
    return out


# ----------------------------------------------------------------------------
# Conv2d (stride 2, pad 1, k 3) via im2col + Pallas matmul (bias fused in the kernel)
# ----------------------------------------------------------------------------
def conv2d(x, w, b, *, stride=2, pad=1):
    """x: (N, Cin, H, W), w: (Cout, Cin, k, k), b: (Cout,) -> (N, Cout, Ho, Wo)."""
    N, Cin, H, W = x.shape
    Cout, _, k, _ = w.shape
    xp = jnp.pad(x, ((0, 0), (0, 0), (pad, pad), (pad, pad)))
    Hp, Wp = H + 2 * pad, W + 2 * pad
    Ho = (Hp - k) // stride + 1
    Wo = (Wp - k) // stride + 1

    # TODO(synk): im2col is still XLA data movement; fusing it into the matmul index_map
    #             would remove one HBM round-trip of the spike tensor per conv layer.
    cols = []
    for i in range(k):
        for j in range(k):
            cols.append(xp[:, :, i:i + stride * Ho:stride, j:j + stride * Wo:stride])
    patches = jnp.stack(cols, axis=2)                    # (N, Cin, k*k, Ho, Wo)
    patches = patches.reshape(N, Cin * k * k, Ho * Wo)   # C-major then (kh,kw): torch order
    patches = patches.transpose(0, 2, 1).reshape(N * Ho * Wo, Cin * k * k)

    wmat = w.reshape(Cout, Cin * k * k).T                # (Cin*k*k, Cout)
    out = pallas_matmul_bias(patches, wmat, b)
    out = out.reshape(N, Ho, Wo, Cout).transpose(0, 3, 1, 2)
    return out


def linear(x, w, b):
    """x: (M, in), w: (out, in) torch-layout, b: (out,) -> (M, out)."""
    return pallas_matmul_bias(x, w.T, b)


# ----------------------------------------------------------------------------
# MNIST_CONV forward
# ----------------------------------------------------------------------------
def mnist_conv_forward(params, x, key):
    B = x.shape[0]
    # x = stack([x_]*T); x = (x > rand(x.size())).float()   -- Bernoulli rate encoding
    x_rep = jnp.broadcast_to(x[None], (TIME_STEP,) + x.shape)
    u = jax.random.uniform(key, x_rep.shape, jnp.float32)
    spikes_in = (x_rep > u).astype(jnp.float32)              # (T, B, 1, 28, 28)

    # conv1 + mem_c1
    s = spikes_in.reshape(TIME_STEP * B, 1, 28, 28)
    pre = conv2d(s, params['conv1_w'], params['conv1_b'])    # (T*B, 64, 14, 14)
    s1 = mem_update(pre.reshape(TIME_STEP, B, -1))           # (T, B, 64*14*14)

    # conv2 + mem_c2
    s = s1.reshape(TIME_STEP * B, 64, 14, 14)
    pre = conv2d(s, params['conv2_w'], params['conv2_b'])    # (T*B, 128, 7, 7)
    s2 = mem_update(pre.reshape(TIME_STEP, B, -1))           # (T, B, 6272) == BoundFlatten output

    # fc1 + mem_f1
    pre = linear(s2.reshape(TIME_STEP * B, -1), params['fc1_w'], params['fc1_b'])
    s3 = mem_update(pre.reshape(TIME_STEP, B, 256))

    # fc2 + mem_f2
    pre = linear(s3.reshape(TIME_STEP * B, -1), params['fc2_w'], params['fc2_b'])
    s4 = mem_update(pre.reshape(TIME_STEP, B, 10))

    # BoundLast / classify: rate decode of the last layer's spikes over time
    # TODO(synk): sbl.BoundLast exact aggregation unknown; mean-over-time rate decoding used.
    return jnp.mean(s4, axis=0)                              # (B, 10)


# ----------------------------------------------------------------------------
# Deterministic parameter init (shapes from MNIST_CONV.__init__)
# ----------------------------------------------------------------------------
def init_params(key):
    ks = jax.random.split(key, 8)

    def unif(k, shape, fan_in):
        bound = 1.0 / (fan_in ** 0.5)
        return jax.random.uniform(k, shape, jnp.float32, -bound, bound)

    return {
        'conv1_w': unif(ks[0], (64, 1, 3, 3), 1 * 3 * 3),
        'conv1_b': unif(ks[1], (64,), 1 * 3 * 3),
        'conv2_w': unif(ks[2], (128, 64, 3, 3), 64 * 3 * 3),
        'conv2_b': unif(ks[3], (128,), 64 * 3 * 3),
        'fc1_w':   unif(ks[4], (256, 7 * 7 * 128), 7 * 7 * 128),
        'fc1_b':   unif(ks[5], (256,), 7 * 7 * 128),
        'fc2_w':   unif(ks[6], (10, 256), 256),
        'fc2_b':   unif(ks[7], (10,), 256),
    }


if __name__ == "__main__":
    key = jax.random.PRNGKey(0)
    pkey, xkey, ekey = jax.random.split(key, 3)
    params = init_params(pkey)
    # MNIST-like input: batch=2, 1 channel, 28x28 pixel intensities in [0, 1)
    x = jax.random.uniform(xkey, (2, 1, 28, 28), jnp.float32)

    fwd = jax.jit(mnist_conv_forward)
    out = fwd(params, x, ekey)
    out = jax.block_until_ready(out)
    assert out.shape == (2, 10) and out.dtype == jnp.float32
    print("KERNEL_OK")
</pallas_src>

<mosaic_0001>
module attributes {stable_mosaic.version = 11 : i64} {
  func.func @_mm_bias_kernel(%arg0: i32, %arg1: i32, %arg2: memref<1568x16xbf16, #tpu.memory_space<vmem>>, %arg3: memref<16x128xbf16, #tpu.memory_space<vmem>>, %arg4: memref<1x128xf32, #tpu.memory_space<vmem>>, %arg5: memref<1568x128xf32, #tpu.memory_space<vmem>>) attributes {dimension_semantics = [#tpu.dimension_semantics<parallel>, #tpu.dimension_semantics<parallel>], iteration_bounds = array<i64: 1, 1>, scalar_prefetch = 0 : i64, scratch_operands = 0 : i64, tpu.core_type = #tpu.core_type<tc>, window_params = [{transform_indices = @transform_0, window_bounds = array<i64: 1568, 16>}, {transform_indices = @transform_1, window_bounds = array<i64: 16, 128>}, {transform_indices = @transform_2, window_bounds = array<i64: 1, 128>}, {transform_indices = @transform_3, window_bounds = array<i64: 1568, 128>}]} {
    %c0 = arith.constant 0 : index
    %c0_0 = arith.constant 0 : index
    %0 = vector.load %arg2[%c0, %c0_0] : memref<1568x16xbf16, #tpu.memory_space<vmem>>, vector<1568x16xbf16>
    %c0_1 = arith.constant 0 : index
    %c0_2 = arith.constant 0 : index
    %1 = vector.load %arg3[%c0_1, %c0_2] : memref<16x128xbf16, #tpu.memory_space<vmem>>, vector<16x128xbf16>
    %cst = arith.constant dense<0.000000e+00> : vector<1568x128xf32>
    %2 = tpu.matmul %0, %1, %cst {dimension_numbers = #tpu.dot_dimension_numbers<[1], [0], [0], [1], [0, 0, 1, 1], [], []>} : vector<1568x16xbf16>, vector<16x128xbf16>, vector<1568x128xf32> -> vector<1568x128xf32>
    %c0_3 = arith.constant 0 : index
    %c0_4 = arith.constant 0 : index
    %3 = vector.load %arg4[%c0_3, %c0_4] : memref<1x128xf32, #tpu.memory_space<vmem>>, vector<1x128xf32>
    %4 = vector.broadcast %3 : vector<1x128xf32> to vector<1568x128xf32>
    %5 = arith.addf %2, %4 : vector<1568x128xf32>
    %c0_5 = arith.constant 0 : index
    %c0_6 = arith.constant 0 : index
    %6 = vector.load %arg5[%c0_5, %c0_6] : memref<1568x128xf32, #tpu.memory_space<vmem>>, vector<1568x128xf32>
    tpu.vector_store %arg5[%c0_5, %c0_6], %5 {strides = array<i32>} : memref<1568x128xf32, #tpu.memory_space<vmem>>, vector<1568x128xf32>,
    return
  }
  func.func @transform_0(%arg0: i32, %arg1: i32) -> (i32, i32) {
    %c0_i32 = arith.constant 0 : i32
    %c0_i32_0 = arith.constant 0 : i32
    return %arg0, %c0_i32 : i32, i32
  }
  func.func @transform_1(%arg0: i32, %arg1: i32) -> (i32, i32) {
    %c0_i32 = arith.constant 0 : i32
    %c0_i32_0 = arith.constant 0 : i32
    return %c0_i32, %arg1 : i32, i32
  }
  func.func @transform_2(%arg0: i32, %arg1: i32) -> (i32, i32) {
    %c0_i32 = arith.constant 0 : i32
    %c0_i32_0 = arith.constant 0 : i32
    return %c0_i32, %arg1 : i32, i32
  }
  func.func @transform_3(%arg0: i32, %arg1: i32) -> (i32, i32) {
    %c0_i32 = arith.constant 0 : i32
    return %arg0, %arg1 : i32, i32
  }
}

module attributes {stable_mosaic.version = 11 : i64} {
  func.func @_mem_update_kernel(%arg0: i32, %arg1: i32, %arg2: memref<1x2x12544xf32, #tpu.memory_space<vmem>>, %arg3: memref<1x2x12544xf32, #tpu.memory_space<vmem>>, %arg4: memref<2x12544xf32, #tpu.memory_space<vmem>>) attributes {dimension_semantics = [#tpu.dimension_semantics<parallel>, #tpu.dimension_semantics<arbitrary>], iteration_bounds = array<i64: 1, 4>, scalar_prefetch = 0 : i64, scratch_operands = 1 : i64, tpu.core_type = #tpu.core_type<tc>, window_params = [{transform_indices = @transform_0, window_bounds = array<i64: 1, 2, 12544>}, {transform_indices = @transform_1, window_bounds = array<i64: 1, 2, 12544>}]} {
    %c0_i32 = arith.constant 0 : i32
    %0 = arith.cmpi eq, %arg1, %c0_i32 : i32
    %1 = arith.extui %0 : i1 to i32
    %c0_i32_0 = arith.constant 0 : i32
    %2 = arith.cmpi ne, %1, %c0_i32_0 : i32
    scf.if %2 {
      %cst_12 = arith.constant 0.000000e+00 : f32
      %20 = vector.broadcast %cst_12 : f32 to vector<2x12544xf32>
      %c0_13 = arith.constant 0 : index
      %c0_14 = arith.constant 0 : index
      %21 = vector.load %arg4[%c0_13, %c0_14] : memref<2x12544xf32, #tpu.memory_space<vmem>>, vector<2x12544xf32>
      tpu.vector_store %arg4[%c0_13, %c0_14], %20 {strides = array<i32>} : memref<2x12544xf32, #tpu.memory_space<vmem>>, vector<2x12544xf32>,
    } else {
    }
    %c0 = arith.constant 0 : index
    %c0_1 = arith.constant 0 : index
    %3 = vector.load %arg4[%c0, %c0_1] : memref<2x12544xf32, #tpu.memory_space<vmem>>, vector<2x12544xf32>
    %c0_2 = arith.constant 0 : index
    %c0_3 = arith.constant 0 : index
    %c0_4 = arith.constant 0 : index
    %4 = vector.load %arg2[%c0_2, %c0_3, %c0_4] : memref<1x2x12544xf32, #tpu.memory_space<vmem>>, vector<1x2x12544xf32>
    %5 = vector.shape_cast %4 : vector<1x2x12544xf32> to vector<2x12544xf32>
    %6 = arith.addf %3, %5 : vector<2x12544xf32>
    %cst = arith.constant 5.000000e-01 : f32
    %7 = vector.broadcast %cst : f32 to vector<2x12544xf32>
    %8 = arith.cmpf ogt, %6, %7 : vector<2x12544xf32>
    %9 = arith.extui %8 : vector<2x12544xi1> to vector<2x12544xi32>
    %10 = arith.sitofp %9 : vector<2x12544xi32> to vector<2x12544xf32>
    %c0_5 = arith.constant 0 : index
    %c0_6 = arith.constant 0 : index
    %c0_7 = arith.constant 0 : index
    %11 = vector.load %arg3[%c0_5, %c0_6, %c0_7] : memref<1x2x12544xf32, #tpu.memory_space<vmem>>, vector<1x2x12544xf32>
    %12 = vector.shape_cast %11 : vector<1x2x12544xf32> to vector<2x12544xf32>
    %13 = vector.shape_cast %10 : vector<2x12544xf32> to vector<1x2x12544xf32>
    tpu.vector_store %arg3[%c0_5, %c0_6, %c0_7], %13 {strides = array<i32>} : memref<1x2x12544xf32, #tpu.memory_space<vmem>>, vector<1x2x12544xf32>,
    %cst_8 = arith.constant 1.000000e+00 : f32
    %14 = vector.broadcast %cst_8 : f32 to vector<2x12544xf32>
    %15 = arith.subf %14, %10 : vector<2x12544xf32>
    %cst_9 = arith.constant 2.000000e-01 : f32
    %16 = vector.broadcast %cst_9 : f32 to vector<2x12544xf32>
    %17 = arith.mulf %16, %15 : vector<2x12544xf32>
    %18 = arith.mulf %6, %17 : vector<2x12544xf32>
    %c0_10 = arith.constant 0 : index
    %c0_11 = arith.constant 0 : index
    %19 = vector.load %arg4[%c0_10, %c0_11] : memref<2x12544xf32, #tpu.memory_space<vmem>>, vector<2x12544xf32>
    tpu.vector_store %arg4[%c0_10, %c0_11], %18 {strides = array<i32>} : memref<2x12544xf32, #tpu.memory_space<vmem>>, vector<2x12544xf32>,
    return
  }
  func.func @transform_0(%arg0: i32, %arg1: i32) -> (i32, i32, i32) {
    %c0_i32 = arith.constant 0 : i32
    %c0_i32_0 = arith.constant 0 : i32
    return %arg1, %c0_i32, %arg0 : i32, i32, i32
  }
  func.func @transform_1(%arg0: i32, %arg1: i32) -> (i32, i32, i32) {
    %c0_i32 = arith.constant 0 : i32
    %c0_i32_0 = arith.constant 0 : i32
    return %arg1, %c0_i32, %arg0 : i32, i32, i32
  }
}

module attributes {stable_mosaic.version = 11 : i64} {
  func.func @_mm_bias_kernel(%arg0: i32, %arg1: i32, %arg2: memref<392x576xbf16, #tpu.memory_space<vmem>>, %arg3: memref<576x128xbf16, #tpu.memory_space<vmem>>, %arg4: memref<1x128xf32, #tpu.memory_space<vmem>>, %arg5: memref<392x128xf32, #tpu.memory_space<vmem>>) attributes {dimension_semantics = [#tpu.dimension_semantics<parallel>, #tpu.dimension_semantics<parallel>], iteration_bounds = array<i64: 1, 1>, scalar_prefetch = 0 : i64, scratch_operands = 0 : i64, tpu.core_type = #tpu.core_type<tc>, window_params = [{transform_indices = @transform_0, window_bounds = array<i64: 392, 576>}, {transform_indices = @transform_1, window_bounds = array<i64: 576, 128>}, {transform_indices = @transform_2, window_bounds = array<i64: 1, 128>}, {transform_indices = @transform_3, window_bounds = array<i64: 392, 128>}]} {
    %c0 = arith.constant 0 : index
    %c0_0 = arith.constant 0 : index
    %0 = vector.load %arg2[%c0, %c0_0] : memref<392x576xbf16, #tpu.memory_space<vmem>>, vector<392x576xbf16>
    %c0_1 = arith.constant 0 : index
    %c0_2 = arith.constant 0 : index
    %1 = vector.load %arg3[%c0_1, %c0_2] : memref<576x128xbf16, #tpu.memory_space<vmem>>, vector<576x128xbf16>
    %cst = arith.constant dense<0.000000e+00> : vector<392x128xf32>
    %2 = tpu.matmul %0, %1, %cst {dimension_numbers = #tpu.dot_dimension_numbers<[1], [0], [0], [1], [0, 0, 1, 1], [], []>} : vector<392x576xbf16>, vector<576x128xbf16>, vector<392x128xf32> -> vector<392x128xf32>
    %c0_3 = arith.constant 0 : index
    %c0_4 = arith.constant 0 : index
    %3 = vector.load %arg4[%c0_3, %c0_4] : memref<1x128xf32, #tpu.memory_space<vmem>>, vector<1x128xf32>
    %4 = vector.broadcast %3 : vector<1x128xf32> to vector<392x128xf32>
    %5 = arith.addf %2, %4 : vector<392x128xf32>
    %c0_5 = arith.constant 0 : index
    %c0_6 = arith.constant 0 : index
    %6 = vector.load %arg5[%c0_5, %c0_6] : memref<392x128xf32, #tpu.memory_space<vmem>>, vector<392x128xf32>
    tpu.vector_store %arg5[%c0_5, %c0_6], %5 {strides = array<i32>} : memref<392x128xf32, #tpu.memory_space<vmem>>, vector<392x128xf32>,
    return
  }
  func.func @transform_0(%arg0: i32, %arg1: i32) -> (i32, i32) {
    %c0_i32 = arith.constant 0 : i32
    %c0_i32_0 = arith.constant 0 : i32
    return %arg0, %c0_i32 : i32, i32
  }
  func.func @transform_1(%arg0: i32, %arg1: i32) -> (i32, i32) {
    %c0_i32 = arith.constant 0 : i32
    %c0_i32_0 = arith.constant 0 : i32
    return %c0_i32, %arg1 : i32, i32
  }
  func.func @transform_2(%arg0: i32, %arg1: i32) -> (i32, i32) {
    %c0_i32 = arith.constant 0 : i32
    %c0_i32_0 = arith.constant 0 : i32
    return %c0_i32, %arg1 : i32, i32
  }
  func.func @transform_3(%arg0: i32, %arg1: i32) -> (i32, i32) {
    %c0_i32 = arith.constant 0 : i32
    return %arg0, %arg1 : i32, i32
  }
}

module attributes {stable_mosaic.version = 11 : i64} {
  func.func @_mem_update_kernel(%arg0: i32, %arg1: i32, %arg2: memref<1x2x6272xf32, #tpu.memory_space<vmem>>, %arg3: memref<1x2x6272xf32, #tpu.memory_space<vmem>>, %arg4: memref<2x6272xf32, #tpu.memory_space<vmem>>) attributes {dimension_semantics = [#tpu.dimension_semantics<parallel>, #tpu.dimension_semantics<arbitrary>], iteration_bounds = array<i64: 1, 4>, scalar_prefetch = 0 : i64, scratch_operands = 1 : i64, tpu.core_type = #tpu.core_type<tc>, window_params = [{transform_indices = @transform_0, window_bounds = array<i64: 1, 2, 6272>}, {transform_indices = @transform_1, window_bounds = array<i64: 1, 2, 6272>}]} {
    %c0_i32 = arith.constant 0 : i32
    %0 = arith.cmpi eq, %arg1, %c0_i32 : i32
    %1 = arith.extui %0 : i1 to i32
    %c0_i32_0 = arith.constant 0 : i32
    %2 = arith.cmpi ne, %1, %c0_i32_0 : i32
    scf.if %2 {
      %cst_12 = arith.constant 0.000000e+00 : f32
      %20 = vector.broadcast %cst_12 : f32 to vector<2x6272xf32>
      %c0_13 = arith.constant 0 : index
      %c0_14 = arith.constant 0 : index
      %21 = vector.load %arg4[%c0_13, %c0_14] : memref<2x6272xf32, #tpu.memory_space<vmem>>, vector<2x6272xf32>
      tpu.vector_store %arg4[%c0_13, %c0_14], %20 {strides = array<i32>} : memref<2x6272xf32, #tpu.memory_space<vmem>>, vector<2x6272xf32>,
    } else {
    }
    %c0 = arith.constant 0 : index
    %c0_1 = arith.constant 0 : index
    %3 = vector.load %arg4[%c0, %c0_1] : memref<2x6272xf32, #tpu.memory_space<vmem>>, vector<2x6272xf32>
    %c0_2 = arith.constant 0 : index
    %c0_3 = arith.constant 0 : index
    %c0_4 = arith.constant 0 : index
    %4 = vector.load %arg2[%c0_2, %c0_3, %c0_4] : memref<1x2x6272xf32, #tpu.memory_space<vmem>>, vector<1x2x6272xf32>
    %5 = vector.shape_cast %4 : vector<1x2x6272xf32> to vector<2x6272xf32>
    %6 = arith.addf %3, %5 : vector<2x6272xf32>
    %cst = arith.constant 5.000000e-01 : f32
    %7 = vector.broadcast %cst : f32 to vector<2x6272xf32>
    %8 = arith.cmpf ogt, %6, %7 : vector<2x6272xf32>
    %9 = arith.extui %8 : vector<2x6272xi1> to vector<2x6272xi32>
    %10 = arith.sitofp %9 : vector<2x6272xi32> to vector<2x6272xf32>
    %c0_5 = arith.constant 0 : index
    %c0_6 = arith.constant 0 : index
    %c0_7 = arith.constant 0 : index
    %11 = vector.load %arg3[%c0_5, %c0_6, %c0_7] : memref<1x2x6272xf32, #tpu.memory_space<vmem>>, vector<1x2x6272xf32>
    %12 = vector.shape_cast %11 : vector<1x2x6272xf32> to vector<2x6272xf32>
    %13 = vector.shape_cast %10 : vector<2x6272xf32> to vector<1x2x6272xf32>
    tpu.vector_store %arg3[%c0_5, %c0_6, %c0_7], %13 {strides = array<i32>} : memref<1x2x6272xf32, #tpu.memory_space<vmem>>, vector<1x2x6272xf32>,
    %cst_8 = arith.constant 1.000000e+00 : f32
    %14 = vector.broadcast %cst_8 : f32 to vector<2x6272xf32>
    %15 = arith.subf %14, %10 : vector<2x6272xf32>
    %cst_9 = arith.constant 2.000000e-01 : f32
    %16 = vector.broadcast %cst_9 : f32 to vector<2x6272xf32>
    %17 = arith.mulf %16, %15 : vector<2x6272xf32>
    %18 = arith.mulf %6, %17 : vector<2x6272xf32>
    %c0_10 = arith.constant 0 : index
    %c0_11 = arith.constant 0 : index
    %19 = vector.load %arg4[%c0_10, %c0_11] : memref<2x6272xf32, #tpu.memory_space<vmem>>, vector<2x6272xf32>
    tpu.vector_store %arg4[%c0_10, %c0_11], %18 {strides = array<i32>} : memref<2x6272xf32, #tpu.memory_space<vmem>>, vector<2x6272xf32>,
    return
  }
  func.func @transform_0(%arg0: i32, %arg1: i32) -> (i32, i32, i32) {
    %c0_i32 = arith.constant 0 : i32
    %c0_i32_0 = arith.constant 0 : i32
    return %arg1, %c0_i32, %arg0 : i32, i32, i32
  }
  func.func @transform_1(%arg0: i32, %arg1: i32) -> (i32, i32, i32) {
    %c0_i32 = arith.constant 0 : i32
    %c0_i32_0 = arith.constant 0 : i32
    return %arg1, %c0_i32, %arg0 : i32, i32, i32
  }
}

module attributes {stable_mosaic.version = 11 : i64} {
  func.func @_mm_bias_kernel(%arg0: i32, %arg1: i32, %arg2: memref<8x6272xbf16, #tpu.memory_space<vmem>>, %arg3: memref<6272x256xbf16, #tpu.memory_space<vmem>>, %arg4: memref<1x256xf32, #tpu.memory_space<vmem>>, %arg5: memref<8x256xf32, #tpu.memory_space<vmem>>) attributes {dimension_semantics = [#tpu.dimension_semantics<parallel>, #tpu.dimension_semantics<parallel>], iteration_bounds = array<i64: 1, 1>, scalar_prefetch = 0 : i64, scratch_operands = 0 : i64, tpu.core_type = #tpu.core_type<tc>, window_params = [{transform_indices = @transform_0, window_bounds = array<i64: 8, 6272>}, {transform_indices = @transform_1, window_bounds = array<i64: 6272, 256>}, {transform_indices = @transform_2, window_bounds = array<i64: 1, 256>}, {transform_indices = @transform_3, window_bounds = array<i64: 8, 256>}]} {
    %c0 = arith.constant 0 : index
    %c0_0 = arith.constant 0 : index
    %0 = vector.load %arg2[%c0, %c0_0] : memref<8x6272xbf16, #tpu.memory_space<vmem>>, vector<8x6272xbf16>
    %c0_1 = arith.constant 0 : index
    %c0_2 = arith.constant 0 : index
    %1 = vector.load %arg3[%c0_1, %c0_2] : memref<6272x256xbf16, #tpu.memory_space<vmem>>, vector<6272x256xbf16>
    %cst = arith.constant dense<0.000000e+00> : vector<8x256xf32>
    %2 = tpu.matmul %0, %1, %cst {dimension_numbers = #tpu.dot_dimension_numbers<[1], [0], [0], [1], [0, 0, 1, 1], [], []>} : vector<8x6272xbf16>, vector<6272x256xbf16>, vector<8x256xf32> -> vector<8x256xf32>
    %c0_3 = arith.constant 0 : index
    %c0_4 = arith.constant 0 : index
    %3 = vector.load %arg4[%c0_3, %c0_4] : memref<1x256xf32, #tpu.memory_space<vmem>>, vector<1x256xf32>
    %4 = vector.broadcast %3 : vector<1x256xf32> to vector<8x256xf32>
    %5 = arith.addf %2, %4 : vector<8x256xf32>
    %c0_5 = arith.constant 0 : index
    %c0_6 = arith.constant 0 : index
    %6 = vector.load %arg5[%c0_5, %c0_6] : memref<8x256xf32, #tpu.memory_space<vmem>>, vector<8x256xf32>
    tpu.vector_store %arg5[%c0_5, %c0_6], %5 {strides = array<i32>} : memref<8x256xf32, #tpu.memory_space<vmem>>, vector<8x256xf32>,
    return
  }
  func.func @transform_0(%arg0: i32, %arg1: i32) -> (i32, i32) {
    %c0_i32 = arith.constant 0 : i32
    %c0_i32_0 = arith.constant 0 : i32
    return %arg0, %c0_i32 : i32, i32
  }
  func.func @transform_1(%arg0: i32, %arg1: i32) -> (i32, i32) {
    %c0_i32 = arith.constant 0 : i32
    %c0_i32_0 = arith.constant 0 : i32
    return %c0_i32, %arg1 : i32, i32
  }
  func.func @transform_2(%arg0: i32, %arg1: i32) -> (i32, i32) {
    %c0_i32 = arith.constant 0 : i32
    %c0_i32_0 = arith.constant 0 : i32
    return %c0_i32, %arg1 : i32, i32
  }
  func.func @transform_3(%arg0: i32, %arg1: i32) -> (i32, i32) {
    %c0_i32 = arith.constant 0 : i32
    return %arg0, %arg1 : i32, i32
  }
}

module attributes {stable_mosaic.version = 11 : i64} {
  func.func @_mem_update_kernel(%arg0: i32, %arg1: i32, %arg2: memref<1x2x256xf32, #tpu.memory_space<vmem>>, %arg3: memref<1x2x256xf32, #tpu.memory_space<vmem>>, %arg4: memref<2x256xf32, #tpu.memory_space<vmem>>) attributes {dimension_semantics = [#tpu.dimension_semantics<parallel>, #tpu.dimension_semantics<arbitrary>], iteration_bounds = array<i64: 1, 4>, scalar_prefetch = 0 : i64, scratch_operands = 1 : i64, tpu.core_type = #tpu.core_type<tc>, window_params = [{transform_indices = @transform_0, window_bounds = array<i64: 1, 2, 256>}, {transform_indices = @transform_1, window_bounds = array<i64: 1, 2, 256>}]} {
    %c0_i32 = arith.constant 0 : i32
    %0 = arith.cmpi eq, %arg1, %c0_i32 : i32
    %1 = arith.extui %0 : i1 to i32
    %c0_i32_0 = arith.constant 0 : i32
    %2 = arith.cmpi ne, %1, %c0_i32_0 : i32
    scf.if %2 {
      %cst_12 = arith.constant 0.000000e+00 : f32
      %20 = vector.broadcast %cst_12 : f32 to vector<2x256xf32>
      %c0_13 = arith.constant 0 : index
      %c0_14 = arith.constant 0 : index
      %21 = vector.load %arg4[%c0_13, %c0_14] : memref<2x256xf32, #tpu.memory_space<vmem>>, vector<2x256xf32>
      tpu.vector_store %arg4[%c0_13, %c0_14], %20 {strides = array<i32>} : memref<2x256xf32, #tpu.memory_space<vmem>>, vector<2x256xf32>,
    } else {
    }
    %c0 = arith.constant 0 : index
    %c0_1 = arith.constant 0 : index
    %3 = vector.load %arg4[%c0, %c0_1] : memref<2x256xf32, #tpu.memory_space<vmem>>, vector<2x256xf32>
    %c0_2 = arith.constant 0 : index
    %c0_3 = arith.constant 0 : index
    %c0_4 = arith.constant 0 : index
    %4 = vector.load %arg2[%c0_2, %c0_3, %c0_4] : memref<1x2x256xf32, #tpu.memory_space<vmem>>, vector<1x2x256xf32>
    %5 = vector.shape_cast %4 : vector<1x2x256xf32> to vector<2x256xf32>
    %6 = arith.addf %3, %5 : vector<2x256xf32>
    %cst = arith.constant 5.000000e-01 : f32
    %7 = vector.broadcast %cst : f32 to vector<2x256xf32>
    %8 = arith.cmpf ogt, %6, %7 : vector<2x256xf32>
    %9 = arith.extui %8 : vector<2x256xi1> to vector<2x256xi32>
    %10 = arith.sitofp %9 : vector<2x256xi32> to vector<2x256xf32>
    %c0_5 = arith.constant 0 : index
    %c0_6 = arith.constant 0 : index
    %c0_7 = arith.constant 0 : index
    %11 = vector.load %arg3[%c0_5, %c0_6, %c0_7] : memref<1x2x256xf32, #tpu.memory_space<vmem>>, vector<1x2x256xf32>
    %12 = vector.shape_cast %11 : vector<1x2x256xf32> to vector<2x256xf32>
    %13 = vector.shape_cast %10 : vector<2x256xf32> to vector<1x2x256xf32>
    tpu.vector_store %arg3[%c0_5, %c0_6, %c0_7], %13 {strides = array<i32>} : memref<1x2x256xf32, #tpu.memory_space<vmem>>, vector<1x2x256xf32>,
    %cst_8 = arith.constant 1.000000e+00 : f32
    %14 = vector.broadcast %cst_8 : f32 to vector<2x256xf32>
    %15 = arith.subf %14, %10 : vector<2x256xf32>
    %cst_9 = arith.constant 2.000000e-01 : f32
    %16 = vector.broadcast %cst_9 : f32 to vector<2x256xf32>
    %17 = arith.mulf %16, %15 : vector<2x256xf32>
    %18 = arith.mulf %6, %17 : vector<2x256xf32>
    %c0_10 = arith.constant 0 : index
    %c0_11 = arith.constant 0 : index
    %19 = vector.load %arg4[%c0_10, %c0_11] : memref<2x256xf32, #tpu.memory_space<vmem>>, vector<2x256xf32>
    tpu.vector_store %arg4[%c0_10, %c0_11], %18 {strides = array<i32>} : memref<2x256xf32, #tpu.memory_space<vmem>>, vector<2x256xf32>,
    return
  }
  func.func @transform_0(%arg0: i32, %arg1: i32) -> (i32, i32, i32) {
    %c0_i32 = arith.constant 0 : i32
    %c0_i32_0 = arith.constant 0 : i32
    return %arg1, %c0_i32, %arg0 : i32, i32, i32
  }
  func.func @transform_1(%arg0: i32, %arg1: i32) -> (i32, i32, i32) {
    %c0_i32 = arith.constant 0 : i32
    %c0_i32_0 = arith.constant 0 : i32
    return %arg1, %c0_i32, %arg0 : i32, i32, i32
  }
}

module attributes {stable_mosaic.version = 11 : i64} {
  func.func @_mm_bias_kernel(%arg0: i32, %arg1: i32, %arg2: memref<8x256xbf16, #tpu.memory_space<vmem>>, %arg3: memref<256x128xbf16, #tpu.memory_space<vmem>>, %arg4: memref<1x128xf32, #tpu.memory_space<vmem>>, %arg5: memref<8x128xf32, #tpu.memory_space<vmem>>) attributes {dimension_semantics = [#tpu.dimension_semantics<parallel>, #tpu.dimension_semantics<parallel>], iteration_bounds = array<i64: 1, 1>, scalar_prefetch = 0 : i64, scratch_operands = 0 : i64, tpu.core_type = #tpu.core_type<tc>, window_params = [{transform_indices = @transform_0, window_bounds = array<i64: 8, 256>}, {transform_indices = @transform_1, window_bounds = array<i64: 256, 128>}, {transform_indices = @transform_2, window_bounds = array<i64: 1, 128>}, {transform_indices = @transform_3, window_bounds = array<i64: 8, 128>}]} {
    %c0 = arith.constant 0 : index
    %c0_0 = arith.constant 0 : index
    %0 = vector.load %arg2[%c0, %c0_0] : memref<8x256xbf16, #tpu.memory_space<vmem>>, vector<8x256xbf16>
    %c0_1 = arith.constant 0 : index
    %c0_2 = arith.constant 0 : index
    %1 = vector.load %arg3[%c0_1, %c0_2] : memref<256x128xbf16, #tpu.memory_space<vmem>>, vector<256x128xbf16>
    %cst = arith.constant dense<0.000000e+00> : vector<8x128xf32>
    %2 = tpu.matmul %0, %1, %cst {dimension_numbers = #tpu.dot_dimension_numbers<[1], [0], [0], [1], [0, 0, 1, 1], [], []>} : vector<8x256xbf16>, vector<256x128xbf16>, vector<8x128xf32> -> vector<8x128xf32>
    %c0_3 = arith.constant 0 : index
    %c0_4 = arith.constant 0 : index
    %3 = vector.load %arg4[%c0_3, %c0_4] : memref<1x128xf32, #tpu.memory_space<vmem>>, vector<1x128xf32>
    %4 = vector.broadcast %3 : vector<1x128xf32> to vector<8x128xf32>
    %5 = arith.addf %2, %4 : vector<8x128xf32>
    %c0_5 = arith.constant 0 : index
    %c0_6 = arith.constant 0 : index
    %6 = vector.load %arg5[%c0_5, %c0_6] : memref<8x128xf32, #tpu.memory_space<vmem>>, vector<8x128xf32>
    tpu.vector_store %arg5[%c0_5, %c0_6], %5 {strides = array<i32>} : memref<8x128xf32, #tpu.memory_space<vmem>>, vector<8x128xf32>,
    return
  }
  func.func @transform_0(%arg0: i32, %arg1: i32) -> (i32, i32) {
    %c0_i32 = arith.constant 0 : i32
    %c0_i32_0 = arith.constant 0 : i32
    return %arg0, %c0_i32 : i32, i32
  }
  func.func @transform_1(%arg0: i32, %arg1: i32) -> (i32, i32) {
    %c0_i32 = arith.constant 0 : i32
    %c0_i32_0 = arith.constant 0 : i32
    return %c0_i32, %arg1 : i32, i32
  }
  func.func @transform_2(%arg0: i32, %arg1: i32) -> (i32, i32) {
    %c0_i32 = arith.constant 0 : i32
    %c0_i32_0 = arith.constant 0 : i32
    return %c0_i32, %arg1 : i32, i32
  }
  func.func @transform_3(%arg0: i32, %arg1: i32) -> (i32, i32) {
    %c0_i32 = arith.constant 0 : i32
    return %arg0, %arg1 : i32, i32
  }
}

module attributes {stable_mosaic.version = 11 : i64} {
  func.func @_mem_update_kernel(%arg0: i32, %arg1: i32, %arg2: memref<1x2x128xf32, #tpu.memory_space<vmem>>, %arg3: memref<1x2x128xf32, #tpu.memory_space<vmem>>, %arg4: memref<2x128xf32, #tpu.memory_space<vmem>>) attributes {dimension_semantics = [#tpu.dimension_semantics<parallel>, #tpu.dimension_semantics<arbitrary>], iteration_bounds = array<i64: 1, 4>, scalar_prefetch = 0 : i64, scratch_operands = 1 : i64, tpu.core_type = #tpu.core_type<tc>, window_params = [{transform_indices = @transform_0, window_bounds = array<i64: 1, 2, 128>}, {transform_indices = @transform_1, window_bounds = array<i64: 1, 2, 128>}]} {
    %c0_i32 = arith.constant 0 : i32
    %0 = arith.cmpi eq, %arg1, %c0_i32 : i32
    %1 = arith.extui %0 : i1 to i32
    %c0_i32_0 = arith.constant 0 : i32
    %2 = arith.cmpi ne, %1, %c0_i32_0 : i32
    scf.if %2 {
      %cst_12 = arith.constant 0.000000e+00 : f32
      %20 = vector.broadcast %cst_12 : f32 to vector<2x128xf32>
      %c0_13 = arith.constant 0 : index
      %c0_14 = arith.constant 0 : index
      %21 = vector.load %arg4[%c0_13, %c0_14] : memref<2x128xf32, #tpu.memory_space<vmem>>, vector<2x128xf32>
      tpu.vector_store %arg4[%c0_13, %c0_14], %20 {strides = array<i32>} : memref<2x128xf32, #tpu.memory_space<vmem>>, vector<2x128xf32>,
    } else {
    }
    %c0 = arith.constant 0 : index
    %c0_1 = arith.constant 0 : index
    %3 = vector.load %arg4[%c0, %c0_1] : memref<2x128xf32, #tpu.memory_space<vmem>>, vector<2x128xf32>
    %c0_2 = arith.constant 0 : index
    %c0_3 = arith.constant 0 : index
    %c0_4 = arith.constant 0 : index
    %4 = vector.load %arg2[%c0_2, %c0_3, %c0_4] : memref<1x2x128xf32, #tpu.memory_space<vmem>>, vector<1x2x128xf32>
    %5 = vector.shape_cast %4 : vector<1x2x128xf32> to vector<2x128xf32>
    %6 = arith.addf %3, %5 : vector<2x128xf32>
    %cst = arith.constant 5.000000e-01 : f32
    %7 = vector.broadcast %cst : f32 to vector<2x128xf32>
    %8 = arith.cmpf ogt, %6, %7 : vector<2x128xf32>
    %9 = arith.extui %8 : vector<2x128xi1> to vector<2x128xi32>
    %10 = arith.sitofp %9 : vector<2x128xi32> to vector<2x128xf32>
    %c0_5 = arith.constant 0 : index
    %c0_6 = arith.constant 0 : index
    %c0_7 = arith.constant 0 : index
    %11 = vector.load %arg3[%c0_5, %c0_6, %c0_7] : memref<1x2x128xf32, #tpu.memory_space<vmem>>, vector<1x2x128xf32>
    %12 = vector.shape_cast %11 : vector<1x2x128xf32> to vector<2x128xf32>
    %13 = vector.shape_cast %10 : vector<2x128xf32> to vector<1x2x128xf32>
    tpu.vector_store %arg3[%c0_5, %c0_6, %c0_7], %13 {strides = array<i32>} : memref<1x2x128xf32, #tpu.memory_space<vmem>>, vector<1x2x128xf32>,
    %cst_8 = arith.constant 1.000000e+00 : f32
    %14 = vector.broadcast %cst_8 : f32 to vector<2x128xf32>
    %15 = arith.subf %14, %10 : vector<2x128xf32>
    %cst_9 = arith.constant 2.000000e-01 : f32
    %16 = vector.broadcast %cst_9 : f32 to vector<2x128xf32>
    %17 = arith.mulf %16, %15 : vector<2x128xf32>
    %18 = arith.mulf %6, %17 : vector<2x128xf32>
    %c0_10 = arith.constant 0 : index
    %c0_11 = arith.constant 0 : index
    %19 = vector.load %arg4[%c0_10, %c0_11] : memref<2x128xf32, #tpu.memory_space<vmem>>, vector<2x128xf32>
    tpu.vector_store %arg4[%c0_10, %c0_11], %18 {strides = array<i32>} : memref<2x128xf32, #tpu.memory_space<vmem>>, vector<2x128xf32>,
    return
  }
  func.func @transform_0(%arg0: i32, %arg1: i32) -> (i32, i32, i32) {
    %c0_i32 = arith.constant 0 : i32
    %c0_i32_0 = arith.constant 0 : i32
    return %arg1, %c0_i32, %arg0 : i32, i32, i32
  }
  func.func @transform_1(%arg0: i32, %arg1: i32) -> (i32, i32, i32) {
    %c0_i32 = arith.constant 0 : i32
    %c0_i32_0 = arith.constant 0 : i32
    return %arg1, %c0_i32, %arg0 : i32, i32, i32
  }
}

</mosaic_0001>

<llo_original>
// kernel: mnist_conv_forward.9
$region0: #{mnist_conv_forward.9}
  #allocation0 [shape = 'u32[]', space=smem, size = 0x4, offset = 0x4, fixed_abs, tag = 'smem constant byte address 0x4 - core index']
  #allocation1 [shape = 'u32[144,128]{1,0:T(1,128)}', space=vmem, size = 0x12000, scoped, tag = 'internal scratch']
  #allocation2 [shape = 'f32[2,12544]{1,0:T(2,128)}', space=vmem, size = 0x18800, scoped, tag = 'scratch operand']
  %s0 = inlined_call_operand.vmem [shape: f32[4,2,12544], index: 0, kind: input, shape index: {}]
  %s1 = inlined_call_operand.vmem [shape: f32[4,2,12544], index: 1, kind: output, shape index: {}]
  %s2 = sld [smem:[#allocation0]]
  $region41: #{mnist_conv_forward.9} parent=0
    _
  %s4 = ssub.s32 1, %s2
  %s5 = scalar_select 0, %s4, %s2
  loop: start=0, step=1, limit=6
  $region2: #{mnist_conv_forward.9} parent=0 // loop_pre_header
    _
  $region3: #{mnist_conv_forward.9} parent=0 // loop_header
    %s7 = sphi 0, %s11
    %p8 = scmp.ge.s32.totalorder %s7, 6
    %s14 = sphi 0, %s26
    %s15 = sphi 0, %s22
    %s16 = sphi 0, %s14
    %s17 = sphi 0, %s15
    %s18 = sphi 0, %s16
    %s19 = sphi 0, %s17
    %s31 = sphi 0, %s33
    %s34 = sphi 0, %s31
    %s35 = sphi 0, %s34
    %s51 = sphi 0, %s35
    %s59 = sphi 0, %s61
    %s62 = sphi 0, %s59
    %s63 = sphi 0, %s62
    %s79 = sphi 0, %s63
  $region4: #{mnist_conv_forward.9} parent=0 // loop_header_branch
    %10 = sbr.rel (%p8) target = $region8
  $region5: #{mnist_conv_forward.9} parent=0 // loop_body
    %s12 = ssub.s32 %s7, 1
    %s13 = ssub.s32 %s7, 2
    %s20 = sadd.s32 1, %s15
    %p21 = scmp.ge.s32.totalorder %s20, 4
    %s22 = scalar_select %p21, 0, %s20
    %s23 = sadd.s32 1, %s14
    %s24 = scalar_select %p21, %s23, %s14
    %p25 = scmp.ge.s32.totalorder %s24, 1
    %s26 = scalar_select %p25, 0, %s24
    %s27 = ssub.s32 %s15, %s22
    %s28 = ssub.s32 %s14, %s26
    %s29 = sor.u32 %s27, %s28
    %p30 = scmp.eq.s32.totalorder %s29, 0
    %s32 = sadd.s32 %s31, 1
    %s33 = scalar_select %p30, %s31, %s32
    %p36 = pneg %p30
    %p37 = scmp.eq.s32.totalorder %s7, 3
    %p38 = por %p36, %p37
    %p39 = scmp.ne.s32.totalorder %s31, %s34
    %p40 = scmp.eq.s32.totalorder %s7, 0
    %p41 = por %p39, %p40
    %p42 = scmp.ne.s32.totalorder %s31, %s34
    %p43 = scmp.eq.s32.totalorder %s12, 3
    %p44 = por %p42, %p43
    %p45 = scmp.ne.s32.totalorder %s34, %s35
    %p46 = scmp.eq.s32.totalorder %s12, 0
    %p47 = por %p45, %p46
    %p48 = scmp.ne.s32.totalorder %s34, %s35
    %p49 = scmp.eq.s32.totalorder %s13, 3
    %p50 = por %p48, %p49
    %p52 = scmp.ne.s32.totalorder %s35, %s51
    %p53 = scmp.eq.s32.totalorder %s13, 0
    %p54 = por %p52, %p53
    %s55 = ssub.s32 %s15, %s22
    %s56 = ssub.s32 %s14, %s26
    %s57 = sor.u32 %s55, %s56
    %p58 = scmp.eq.s32.totalorder %s57, 0
    %s60 = sadd.s32 %s59, 1
    %s61 = scalar_select %p58, %s59, %s60
    %p64 = pneg %p58
    %p65 = scmp.eq.s32.totalorder %s7, 3
    %p66 = por %p64, %p65
    %p67 = scmp.ne.s32.totalorder %s59, %s62
    %p68 = scmp.eq.s32.totalorder %s7, 0
    %p69 = por %p67, %p68
    %p70 = scmp.ne.s32.totalorder %s59, %s62
    %p71 = scmp.eq.s32.totalorder %s12, 3
    %p72 = por %p70, %p71
    %p73 = scmp.ne.s32.totalorder %s62, %s63
    %p74 = scmp.eq.s32.totalorder %s12, 0
    %p75 = por %p73, %p74
    %p76 = scmp.ne.s32.totalorder %s62, %s63
    %p77 = scmp.eq.s32.totalorder %s13, 3
    %p78 = por %p76, %p77
    %p80 = scmp.ne.s32.totalorder %s63, %s79
    %p81 = scmp.eq.s32.totalorder %s13, 0
    %p82 = por %p80, %p81
    %p83 = scmp.le.s32.totalorder 1, %s7
    %p84 = scmp.lt.s32.totalorder %s7, 5
    %p85 = pnand %p83, %p84
    %p86 = pneg %p85
    // Predicated region
    $region9: #{mnist_conv_forward.9} parent=5 // pred_check
      _
    $region10: #{mnist_conv_forward.9} parent=5 // pred_check_branch
      %88 = sbr.rel (%p85) target = $region12
    $region11: #{mnist_conv_forward.9} parent=5 // pred_region
      %s89 = ssub.s32 %s7, 1
    $region12: #{mnist_conv_forward.9} parent=5 // pred_fallthru
      _
    %p90 = scmp.lt.s32.totalorder %s7, 4
    // Predicated region
    $region13: #{mnist_conv_forward.9} parent=5 // pred_check
      %p91 = pneg %p90
    $region14: #{mnist_conv_forward.9} parent=5 // pred_check_branch
      %93 = sbr.rel (%p91) target = $region16
    $region15: #{mnist_conv_forward.9} parent=5 // pred_region
      // Predicated region
      $region17: #{mnist_conv_forward.9} parent=15 // pred_check
        %p94 = pneg %p41
      $region18: #{mnist_conv_forward.9} parent=15 // pred_check_branch
        %96 = sbr.rel (%p94) target = $region20
      $region19: #{mnist_conv_forward.9} parent=15 // pred_region
        %s97 = smul.u32 98, %s14
        %p98 = scmp.lt.s32.totalorder %s15, 3
        %s99 = scalar_select %p98, %s15, 3
        %p100 = scmp.lt.s32.totalorder %s97, 97
        %s101 = scalar_select %p100, %s97, 97
        %s102 = smul.addr %s99, 98
        %s103 = sadd.s32 %s101, %s102
        %s104 = smul.addr %s103, 2
        %s105 = scalar_lea.vmem %s0, %s104
        %s106 = smul.u32 98, %s14
      $region20: #{mnist_conv_forward.9} parent=15 // pred_fallthru
        _
    $region16: #{mnist_conv_forward.9} parent=5 // pred_fallthru
      _
    %p107 = scmp.le.s32.totalorder 1, %s7
    %p108 = scmp.lt.s32.totalorder %s7, 5
    %p109 = pnand %p107, %p108
    %p110 = pneg %p109
    // Predicated region
    $region21: #{mnist_conv_forward.9} parent=5 // pred_check
      _
    $region22: #{mnist_conv_forward.9} parent=5 // pred_check_branch
      %112 = sbr.rel (%p109) target = $region24
    $region23: #{mnist_conv_forward.9} parent=5 // pred_region
      %s113 = ssub.s32 %s7, 1
      %s114 = smul.u32 98, %s16
      %p115 = scmp.lt.s32.totalorder %s17, 3
      %s116 = scalar_select %p115, %s17, 3
      %p117 = scmp.lt.s32.totalorder %s114, 97
      %s118 = scalar_select %p117, %s114, 97
      %s119 = smul.addr %s116, 98
      %s120 = sadd.s32 %s118, %s119
      %s121 = smul.addr %s120, 2
      %s122 = scalar_lea.vmem %s0, %s121
      %p123 = pneg %p47
      %p124 = pneg %p44
      %p125 = pneg %p75
      %p126 = pneg %p72
      %s127 = smul.u32 98, %s16
      %p128 = scmp.lt.s32.totalorder %s17, 3
      %s129 = scalar_select %p128, %s17, 3
      %p130 = scmp.lt.s32.totalorder %s127, 97
      %s131 = scalar_select %p130, %s127, 97
      %s132 = smul.addr %s129, 98
      %s133 = sadd.s32 %s131, %s132
      %s134 = smul.addr %s133, 2
      %s135 = scalar_lea.vmem %s1, %s134
      %s136 = smul.u32 98, %s16
      %p137 = scmp.lt.s32.totalorder %s17, 3
      %s138 = scalar_select %p137, %s17, 3
      %p139 = scmp.lt.s32.totalorder %s136, 97
      %s140 = scalar_select %p139, %s136, 97
      %s141 = smul.addr %s138, 98
      %s142 = sadd.s32 %s140, %s141
      %s143 = smul.addr %s142, 2
      %s144 = scalar_lea.vmem %s0, %s143
      %s145 = smul.u32 98, %s16
      %s146 = smul.u32 98, %s16
      %p147 = scmp.lt.s32.totalorder %s17, 3
      %s148 = scalar_select %p147, %s17, 3
      %p149 = scmp.lt.s32.totalorder %s146, 97
      %s150 = scalar_select %p149, %s146, 97
      %s151 = smul.addr %s148, 98
      %s152 = sadd.s32 %s150, %s151
      %s153 = smul.addr %s152, 2
      %s154 = scalar_lea.vmem %s1, %s153
      %s155 = smul.u32 98, %s16
      %p156 = scmp.eq.s32.totalorder %s17, 0
      // Predicated region
      $region25: #{mnist_conv_forward.9} parent=23 // pred_check
        %p157 = pneg %p156
      $region26: #{mnist_conv_forward.9} parent=23 // pred_check_branch
        %159 = sbr.rel (%p157) target = $region28
      $region27: #{mnist_conv_forward.9} parent=23 // pred_region
        %160 = vst [vmem:[#allocation2] sm:$0xff] 0.0
        %161 = vst [vmem:[#allocation2 + $0x8] sm:$0xff] 0.0
        %162 = vst [vmem:[#allocation2 + $0x10] sm:$0xff] 0.0
        %163 = vst [vmem:[#allocation2 + $0x18] sm:$0xff] 0.0
        %164 = vst [vmem:[#allocation2 + $0x20] sm:$0xff] 0.0
        %165 = vst [vmem:[#allocation2 + $0x28] sm:$0xff] 0.0
        %166 = vst [vmem:[#allocation2 + $0x30] sm:$0xff] 0.0
        %167 = vst [vmem:[#allocation2 + $0x38] sm:$0xff] 0.0
        %168 = vst [vmem:[#allocation2 + $0x40] sm:$0xff] 0.0
        %169 = vst [vmem:[#allocation2 + $0x48] sm:$0xff] 0.0
        %170 = vst [vmem:[#allocation2 + $0x50] sm:$0xff] 0.0
        %171 = vst [vmem:[#allocation2 + $0x58] sm:$0xff] 0.0
        %172 = vst [vmem:[#allocation2 + $0x60] sm:$0xff] 0.0
        %173 = vst [vmem:[#allocation2 + $0x68] sm:$0xff] 0.0
        %174 = vst [vmem:[#allocation2 + $0x70] sm:$0xff] 0.0
        %175 = vst [vmem:[#allocation2 + $0x78] sm:$0xff] 0.0
        %176 = vst [vmem:[#allocation2 + $0x80] sm:$0xff] 0.0
        %177 = vst [vmem:[#allocation2 + $0x88] sm:$0xff] 0.0
        %178 = vst [vmem:[#allocation2 + $0x90] sm:$0xff] 0.0
        %179 = vst [vmem:[#allocation2 + $0x98] sm:$0xff] 0.0
        %180 = vst [vmem:[#allocation2 + $0xa0] sm:$0xff] 0.0
        %181 = vst [vmem:[#allocation2 + $0xa8] sm:$0xff] 0.0
        %182 = vst [vmem:[#allocation2 + $0xb0] sm:$0xff] 0.0
        %183 = vst [vmem:[#allocation2 + $0xb8] sm:$0xff] 0.0
        %184 = vst [vmem:[#allocation2 + $0xc0] sm:$0xf] 0.0
      $region28: #{mnist_conv_forward.9} parent=23 // pred_fallthru
        _
      %v185 = vld [vmem:[#allocation2] sm:$0xff]
      %v186 = vld [vmem:[#allocation2 + $0x8] sm:$0xff]
      %v187 = vld [vmem:[#allocation2 + $0x10] sm:$0xff]
      %v188 = vld [vmem:[#allocation2 + $0x18] sm:$0xff]
      %v189 = vld [vmem:[#allocation2 + $0x20] sm:$0xff]
      %v190 = vld [vmem:[#allocation2 + $0x28] sm:$0xff]
      %v191 = vld [vmem:[#allocation2 + $0x30] sm:$0xff]
      %v192 = vld [vmem:[#allocation2 + $0x38] sm:$0xff]
      %v193 = vld [vmem:[#allocation2 + $0x40] sm:$0xff]
      %v194 = vld [vmem:[#allocation2 + $0x48] sm:$0xff]
      %v195 = vld [vmem:[#allocation2 + $0x50] sm:$0xff]
      %v196 = vld [vmem:[#allocation2 + $0x58] sm:$0xff]
      %v197 = vld [vmem:[#allocation2 + $0x60] sm:$0xff]
      %v198 = vld [vmem:[#allocation2 + $0x68] sm:$0xff]
      %v199 = vld [vmem:[#allocation2 + $0x70] sm:$0xff]
      %v200 = vld [vmem:[#allocation2 + $0x78] sm:$0xff]
      %v201 = vld [vmem:[#allocation2 + $0x80] sm:$0xff]
      %v202 = vld [vmem:[#allocation2 + $0x88] sm:$0xff]
      %v203 = vld [vmem:[#allocation2 + $0x90] sm:$0xff]
      %v204 = vld [vmem:[#allocation2 + $0x98] sm:$0xff]
      %v205 = vld [vmem:[#allocation2 + $0xa0] sm:$0xff]
      %v206 = vld [vmem:[#allocation2 + $0xa8] sm:$0xff]
      %v207 = vld [vmem:[#allocation2 + $0xb0] sm:$0xff]
      %v208 = vld [vmem:[#allocation2 + $0xb8] sm:$0xff]
      %v209 = vld [vmem:[#allocation2 + $0xc0] sm:$0xf]
      %v210 = vld [vmem:[%s144] sm:$0xff]
      %v211 = vld [vmem:[%s144 + $0x8] sm:$0xff]
      %v212 = vld [vmem:[%s144 + $0x10] sm:$0xff]
      %v213 = vld [vmem:[%s144 + $0x18] sm:$0xff]
      %v214 = vld [vmem:[%s144 + $0x20] sm:$0xff]
      %v215 = vld [vmem:[%s144 + $0x28] sm:$0xff]
      %v216 = vld [vmem:[%s144 + $0x30] sm:$0xff]
      %v217 = vld [vmem:[%s144 + $0x38] sm:$0xff]
      %v218 = vld [vmem:[%s144 + $0x40] sm:$0xff]
      %v219 = vld [vmem:[%s144 + $0x48] sm:$0xff]
      %v220 = vld [vmem:[%s144 + $0x50] sm:$0xff]
      %v221 = vld [vmem:[%s144 + $0x58] sm:$0xff]
      %v222 = vld [vmem:[%s144 + $0x60] sm:$0xff]
      %v223 = vld [vmem:[%s144 + $0x68] sm:$0xff]
      %v224 = vld [vmem:[%s144 + $0x70] sm:$0xff]
      %v225 = vld [vmem:[%s144 + $0x78] sm:$0xff]
      %v226 = vld [vmem:[%s144 + $0x80] sm:$0xff]
      %v227 = vld [vmem:[%s144 + $0x88] sm:$0xff]
      %v228 = vld [vmem:[%s144 + $0x90] sm:$0xff]
      %v229 = vld [vmem:[%s144 + $0x98] sm:$0xff]
      %v230 = vld [vmem:[%s144 + $0xa0] sm:$0xff]
      %v231 = vld [vmem:[%s144 + $0xa8] sm:$0xff]
      %v232 = vld [vmem:[%s144 + $0xb0] sm:$0xff]
      %v233 = vld [vmem:[%s144 + $0xb8] sm:$0xff]
      %v234 = vld [vmem:[%s144 + $0xc0] sm:$0xf]
      %v235 = vadd.f32 %v185, %v210
      %v236 = vadd.f32 %v186, %v211
      %v237 = vadd.f32 %v187, %v212
      %v238 = vadd.f32 %v188, %v213
      %v239 = vadd.f32 %v189, %v214
      %v240 = vadd.f32 %v190, %v215
      %v241 = vadd.f32 %v191, %v216
      %v242 = vadd.f32 %v192, %v217
      %v243 = vadd.f32 %v193, %v218
      %v244 = vadd.f32 %v194, %v219
      %v245 = vadd.f32 %v195, %v220
      %v246 = vadd.f32 %v196, %v221
      %v247 = vadd.f32 %v197, %v222
      %v248 = vadd.f32 %v198, %v223
      %v249 = vadd.f32 %v199, %v224
      %v250 = vadd.f32 %v200, %v225
      %v251 = vadd.f32 %v201, %v226
      %v252 = vadd.f32 %v202, %v227
      %v253 = vadd.f32 %v203, %v228
      %v254 = vadd.f32 %v204, %v229
      %v255 = vadd.f32 %v205, %v230
      %v256 = vadd.f32 %v206, %v231
      %v257 = vadd.f32 %v207, %v232
      %v258 = vadd.f32 %v208, %v233
      %v259 = vadd.f32 %v209, %v234
      %vm260 = vcmp.gt.f32.partialorder %v235, 0.5
      %vm261 = vcmp.gt.f32.partialorder %v236, 0.5
      %vm262 = vcmp.gt.f32.partialorder %v237, 0.5
      %vm263 = vcmp.gt.f32.partialorder %v238, 0.5
      %vm264 = vcmp.gt.f32.partialorder %v239, 0.5
      %vm265 = vcmp.gt.f32.partialorder %v240, 0.5
      %vm266 = vcmp.gt.f32.partialorder %v241, 0.5
      %vm267 = vcmp.gt.f32.partialorder %v242, 0.5
      %vm268 = vcmp.gt.f32.partialorder %v243, 0.5
      %vm269 = vcmp.gt.f32.partialorder %v244, 0.5
      %vm270 = vcmp.gt.f32.partialorder %v245, 0.5
      %vm271 = vcmp.gt.f32.partialorder %v246, 0.5
      %vm272 = vcmp.gt.f32.partialorder %v247, 0.5
      %vm273 = vcmp.gt.f32.partialorder %v248, 0.5
      %vm274 = vcmp.gt.f32.partialorder %v249, 0.5
      %vm275 = vcmp.gt.f32.partialorder %v250, 0.5
      %vm276 = vcmp.gt.f32.partialorder %v251, 0.5
      %vm277 = vcmp.gt.f32.partialorder %v252, 0.5
      %vm278 = vcmp.gt.f32.partialorder %v253, 0.5
      %vm279 = vcmp.gt.f32.partialorder %v254, 0.5
      %vm280 = vcmp.gt.f32.partialorder %v255, 0.5
      %vm281 = vcmp.gt.f32.partialorder %v256, 0.5
      %vm282 = vcmp.gt.f32.partialorder %v257, 0.5
      %vm283 = vcmp.gt.f32.partialorder %v258, 0.5
      %vm284 = vcmp.gt.f32.partialorder %v259, 0.5
      %v285 = vsel %vm260, 1, 0
      %v286 = vsel %vm261, 1, 0
      %v287 = vsel %vm262, 1, 0
      %v288 = vsel %vm263, 1, 0
      %v289 = vsel %vm264, 1, 0
      %v290 = vsel %vm265, 1, 0
      %v291 = vsel %vm266, 1, 0
      %v292 = vsel %vm267, 1, 0
      %v293 = vsel %vm268, 1, 0
      %v294 = vsel %vm269, 1, 0
      %v295 = vsel %vm270, 1, 0
      %v296 = vsel %vm271, 1, 0
      %v297 = vsel %vm272, 1, 0
      %v298 = vsel %vm273, 1, 0
      %v299 = vsel %vm274, 1, 0
      %v300 = vsel %vm275, 1, 0
      %v301 = vsel %vm276, 1, 0
      %v302 = vsel %vm277, 1, 0
      %v303 = vsel %vm278, 1, 0
      %v304 = vsel %vm279, 1, 0
      %v305 = vsel %vm280, 1, 0
      %v306 = vsel %vm281, 1, 0
      %v307 = vsel %vm282, 1, 0
      %v308 = vsel %vm283, 1, 0
      %v309 = vsel %vm284, 1, 0
      %v310 = vcvt.s32.f32 %v285
      %v311 = vcvt.s32.f32 %v286
      %v312 = vcvt.s32.f32 %v287
      %v313 = vcvt.s32.f32 %v288
      %v314 = vcvt.s32.f32 %v289
      %v315 = vcvt.s32.f32 %v290
      %v316 = vcvt.s32.f32 %v291
      %v317 = vcvt.s32.f32 %v292
      %v318 = vcvt.s32.f32 %v293
      %v319 = vcvt.s32.f32 %v294
      %v320 = vcvt.s32.f32 %v295
      %v321 = vcvt.s32.f32 %v296
      %v322 = vcvt.s32.f32 %v297
      %v323 = vcvt.s32.f32 %v298
      %v324 = vcvt.s32.f32 %v299
      %v325 = vcvt.s32.f32 %v300
      %v326 = vcvt.s32.f32 %v301
      %v327 = vcvt.s32.f32 %v302
      %v328 = vcvt.s32.f32 %v303
      %v329 = vcvt.s32.f32 %v304
      %v330 = vcvt.s32.f32 %v305
      %v331 = vcvt.s32.f32 %v306
      %v332 = vcvt.s32.f32 %v307
      %v333 = vcvt.s32.f32 %v308
      %v334 = vcvt.s32.f32 %v309
      %335 = vst [vmem:[%s154] sm:$0xff] %v310
      %336 = vst [vmem:[%s154 + $0x8] sm:$0xff] %v311
      %337 = vst [vmem:[%s154 + $0x10] sm:$0xff] %v312
      %338 = vst [vmem:[%s154 + $0x18] sm:$0xff] %v313
      %339 = vst [vmem:[%s154 + $0x20] sm:$0xff] %v314
      %340 = vst [vmem:[%s154 + $0x28] sm:$0xff] %v315
      %341 = vst [vmem:[%s154 + $0x30] sm:$0xff] %v316
      %342 = vst [vmem:[%s154 + $0x38] sm:$0xff] %v317
      %343 = vst [vmem:[%s154 + $0x40] sm:$0xff] %v318
      %344 = vst [vmem:[%s154 + $0x48] sm:$0xff] %v319
      %345 = vst [vmem:[%s154 + $0x50] sm:$0xff] %v320
      %346 = vst [vmem:[%s154 + $0x58] sm:$0xff] %v321
      %347 = vst [vmem:[%s154 + $0x60] sm:$0xff] %v322
      %348 = vst [vmem:[%s154 + $0x68] sm:$0xff] %v323
      %349 = vst [vmem:[%s154 + $0x70] sm:$0xff] %v324
      %350 = vst [vmem:[%s154 + $0x78] sm:$0xff] %v325
      %351 = vst [vmem:[%s154 + $0x80] sm:$0xff] %v326
      %352 = vst [vmem:[%s154 + $0x88] sm:$0xff] %v327
      %353 = vst [vmem:[%s154 + $0x90] sm:$0xff] %v328
      %354 = vst [vmem:[%s154 + $0x98] sm:$0xff] %v329
      %355 = vst [vmem:[%s154 + $0xa0] sm:$0xff] %v330
      %356 = vst [vmem:[%s154 + $0xa8] sm:$0xff] %v331
      %357 = vst [vmem:[%s154 + $0xb0] sm:$0xff] %v332
      %358 = vst [vmem:[%s154 + $0xb8] sm:$0xff] %v333
      %359 = vst [vmem:[%s154 + $0xc0] sm:$0xf] %v334
      %v360 = vsub.f32 1.0, %v310
      %v361 = vsub.f32 1.0, %v311
      %v362 = vsub.f32 1.0, %v312
      %v363 = vsub.f32 1.0, %v313
      %v364 = vsub.f32 1.0, %v314
      %v365 = vsub.f32 1.0, %v315
      %v366 = vsub.f32 1.0, %v316
      %v367 = vsub.f32 1.0, %v317
      %v368 = vsub.f32 1.0, %v318
      %v369 = vsub.f32 1.0, %v319
      %v370 = vsub.f32 1.0, %v320
      %v371 = vsub.f32 1.0, %v321
      %v372 = vsub.f32 1.0, %v322
      %v373 = vsub.f32 1.0, %v323
      %v374 = vsub.f32 1.0, %v324
      %v375 = vsub.f32 1.0, %v325
      %v376 = vsub.f32 1.0, %v326
      %v377 = vsub.f32 1.0, %v327
      %v378 = vsub.f32 1.0, %v328
      %v379 = vsub.f32 1.0, %v329
      %v380 = vsub.f32 1.0, %v330
      %v381 = vsub.f32 1.0, %v331
      %v382 = vsub.f32 1.0, %v332
      %v383 = vsub.f32 1.0, %v333
      %v384 = vsub.f32 1.0, %v334
      %v385 = vmul.f32 %v360, 0.2
      %v386 = vmul.f32 %v361, 0.2
      %v387 = vmul.f32 %v362, 0.2
      %v388 = vmul.f32 %v363, 0.2
      %v389 = vmul.f32 %v364, 0.2
      %v390 = vmul.f32 %v365, 0.2
      %v391 = vmul.f32 %v366, 0.2
      %v392 = vmul.f32 %v367, 0.2
      %v393 = vmul.f32 %v368, 0.2
      %v394 = vmul.f32 %v369, 0.2
      %v395 = vmul.f32 %v370, 0.2
      %v396 = vmul.f32 %v371, 0.2
      %v397 = vmul.f32 %v372, 0.2
      %v398 = vmul.f32 %v373, 0.2
      %v399 = vmul.f32 %v374, 0.2
      %v400 = vmul.f32 %v375, 0.2
      %v401 = vmul.f32 %v376, 0.2
      %v402 = vmul.f32 %v377, 0.2
      %v403 = vmul.f32 %v378, 0.2
      %v404 = vmul.f32 %v379, 0.2
      %v405 = vmul.f32 %v380, 0.2
      %v406 = vmul.f32 %v381, 0.2
      %v407 = vmul.f32 %v382, 0.2
      %v408 = vmul.f32 %v383, 0.2
      %v409 = vmul.f32 %v384, 0.2
      %v410 = vmul.f32 %v235, %v385
      %v411 = vmul.f32 %v236, %v386
      %v412 = vmul.f32 %v237, %v387
      %v413 = vmul.f32 %v238, %v388
      %v414 = vmul.f32 %v239, %v389
      %v415 = vmul.f32 %v240, %v390
      %v416 = vmul.f32 %v241, %v391
      %v417 = vmul.f32 %v242, %v392
      %v418 = vmul.f32 %v243, %v393
      %v419 = vmul.f32 %v244, %v394
      %v420 = vmul.f32 %v245, %v395
      %v421 = vmul.f32 %v246, %v396
      %v422 = vmul.f32 %v247, %v397
      %v423 = vmul.f32 %v248, %v398
      %v424 = vmul.f32 %v249, %v399
      %v425 = vmul.f32 %v250, %v400
      %v426 = vmul.f32 %v251, %v401
      %v427 = vmul.f32 %v252, %v402
      %v428 = vmul.f32 %v253, %v403
      %v429 = vmul.f32 %v254, %v404
      %v430 = vmul.f32 %v255, %v405
      %v431 = vmul.f32 %v256, %v406
      %v432 = vmul.f32 %v257, %v407
      %v433 = vmul.f32 %v258, %v408
      %v434 = vmul.f32 %v259, %v409
      %435 = vst [vmem:[#allocation2] sm:$0xff] %v410
      %436 = vst [vmem:[#allocation2 + $0x8] sm:$0xff] %v411
      %437 = vst [vmem:[#allocation2 + $0x10] sm:$0xff] %v412
      %438 = vst [vmem:[#allocation2 + $0x18] sm:$0xff] %v413
      %439 = vst [vmem:[#allocation2 + $0x20] sm:$0xff] %v414
      %440 = vst [vmem:[#allocation2 + $0x28] sm:$0xff] %v415
      %441 = vst [vmem:[#allocation2 + $0x30] sm:$0xff] %v416
      %442 = vst [vmem:[#allocation2 + $0x38] sm:$0xff] %v417
      %443 = vst [vmem:[#allocation2 + $0x40] sm:$0xff] %v418
      %444 = vst [vmem:[#allocation2 + $0x48] sm:$0xff] %v419
      %445 = vst [vmem:[#allocation2 + $0x50] sm:$0xff] %v420
      %446 = vst [vmem:[#allocation2 + $0x58] sm:$0xff] %v421
      %447 = vst [vmem:[#allocation2 + $0x60] sm:$0xff] %v422
      %448 = vst [vmem:[#allocation2 + $0x68] sm:$0xff] %v423
      %449 = vst [vmem:[#allocation2 + $0x70] sm:$0xff] %v424
      %450 = vst [vmem:[#allocation2 + $0x78] sm:$0xff] %v425
      %451 = vst [vmem:[#allocation2 + $0x80] sm:$0xff] %v426
      %452 = vst [vmem:[#allocation2 + $0x88] sm:$0xff] %v427
      %453 = vst [vmem:[#allocation2 + $0x90] sm:$0xff] %v428
      %454 = vst [vmem:[#allocation2 + $0x98] sm:$0xff] %v429
      %455 = vst [vmem:[#allocation2 + $0xa0] sm:$0xff] %v430
      %456 = vst [vmem:[#allocation2 + $0xa8] sm:$0xff] %v431
      %457 = vst [vmem:[#allocation2 + $0xb0] sm:$0xff] %v432
      %458 = vst [vmem:[#allocation2 + $0xb8] sm:$0xff] %v433
      %459 = vst [vmem:[#allocation2 + $0xc0] sm:$0xf] %v434
      %s460 = smul.u32 98, %s16
      %p461 = scmp.lt.s32.totalorder %s17, 3
      %s462 = scalar_select %p461, %s17, 3
      %p463 = scmp.lt.s32.totalorder %s460, 97
      %s464 = scalar_select %p463, %s460, 97
      %s465 = smul.addr %s462, 98
      %s466 = sadd.s32 %s464, %s465
      %s467 = smul.addr %s466, 2
      %s468 = scalar_lea.vmem %s1, %s467
      // Predicated region
      $region29: #{mnist_conv_forward.9} parent=23 // pred_check
        %p469 = pneg %p72
      $region30: #{mnist_conv_forward.9} parent=23 // pred_check_branch
        %471 = sbr.rel (%p469) target = $region32
      $region31: #{mnist_conv_forward.9} parent=23 // pred_region
        %s472 = smul.u32 98, %s16
      $region32: #{mnist_conv_forward.9} parent=23 // pred_fallthru
        _
    $region24: #{mnist_conv_forward.9} parent=5 // pred_fallthru
      _
    %p473 = scmp.le.s32.totalorder 2, %s7
    // Predicated region
    $region33: #{mnist_conv_forward.9} parent=5 // pred_check
      %p474 = pneg %p473
    $region34: #{mnist_conv_forward.9} parent=5 // pred_check_branch
      %476 = sbr.rel (%p474) target = $region36
    $region35: #{mnist_conv_forward.9} parent=5 // pred_region
      %s477 = ssub.s32 %s7, 2
      // Predicated region
      $region37: #{mnist_conv_forward.9} parent=35 // pred_check
        %p478 = pneg %p78
      $region38: #{mnist_conv_forward.9} parent=35 // pred_check_branch
        %480 = sbr.rel (%p478) target = $region40
      $region39: #{mnist_conv_forward.9} parent=35 // pred_region
        %s481 = smul.u32 98, %s18
        %p482 = scmp.lt.s32.totalorder %s19, 3
        %s483 = scalar_select %p482, %s19, 3
        %p484 = scmp.lt.s32.totalorder %s481, 97
        %s485 = scalar_select %p484, %s481, 97
        %s486 = smul.addr %s483, 98
        %s487 = sadd.s32 %s485, %s486
        %s488 = smul.addr %s487, 2
        %s489 = scalar_lea.vmem %s1, %s488
      $region40: #{mnist_conv_forward.9} parent=35 // pred_fallthru
        _
    $region36: #{mnist_conv_forward.9} parent=5 // pred_fallthru
      _
  $region6: #{mnist_conv_forward.9} parent=0 // loop_footer
    %s11 = sadd.s32 1, %s7
  $region7: #{mnist_conv_forward.9} parent=0 // loop_footer_branch
    %6 = sbr.rel target = $region3
  $region8: #{mnist_conv_forward.9} parent=0 // loop_exit
    _

// kernel: mnist_conv_forward.8
$region0: #{mnist_conv_forward.8}
  #allocation0 [shape = 'u32[]', space=smem, size = 0x4, offset = 0x4, fixed_abs, tag = 'smem constant byte address 0x4 - core index']
  #allocation1 [shape = 'u32[144,128]{1,0:T(1,128)}', space=vmem, size = 0x12000, scoped, tag = 'internal scratch']
  %s0 = inlined_call_operand.vmem [shape: bf16[1568,16], index: 0, kind: input, shape index: {}]
  %s1 = inlined_call_operand.vmem [shape: bf16[16,128], index: 1, kind: input, shape index: {}]
  %s2 = inlined_call_operand.vmem [shape: f32[1,128], index: 2, kind: input, shape index: {}]
  %s3 = inlined_call_operand.vmem [shape: f32[1568,128], index: 3, kind: output, shape index: {}]
  %s4 = sld [smem:[#allocation0]]
  $region22: #{mnist_conv_forward.8} parent=0
    _
  %s6 = ssub.s32 1, %s4
  %s7 = scalar_select 0, %s6, %s4
  // Predicated region
  $region2: #{mnist_conv_forward.8} parent=0 // pred_check
    _
  $region3: #{mnist_conv_forward.8} parent=0 // pred_check_branch
    %9 = sbr.rel (0) target = $region5
  $region4: #{mnist_conv_forward.8} parent=0 // pred_region
    _
  $region5: #{mnist_conv_forward.8} parent=0 // pred_fallthru
    _
  // Predicated region
  $region6: #{mnist_conv_forward.8} parent=0 // pred_check
    _
  $region7: #{mnist_conv_forward.8} parent=0 // pred_check_branch
    %11 = sbr.rel (0) target = $region9
  $region8: #{mnist_conv_forward.8} parent=0 // pred_region
    _
  $region9: #{mnist_conv_forward.8} parent=0 // pred_fallthru
    _
  // Predicated region
  $region10: #{mnist_conv_forward.8} parent=0 // pred_check
    _
  $region11: #{mnist_conv_forward.8} parent=0 // pred_check_branch
    %13 = sbr.rel (0) target = $region13
  $region12: #{mnist_conv_forward.8} parent=0 // pred_region
    _
  $region13: #{mnist_conv_forward.8} parent=0 // pred_fallthru
    _
  %v15 = vld [vmem:[%s0] sm:$0xf]
  %v16 = vld [vmem:[%s0 + $0x4] sm:$0xf]
  %v17 = vld [vmem:[%s0 + $0x8] sm:$0xf]
  %v18 = vld [vmem:[%s0 + $0xc] sm:$0xf]
  %v19 = vld [vmem:[%s0 + $0x10] sm:$0xf]
  %v20 = vld [vmem:[%s0 + $0x14] sm:$0xf]
  %v21 = vld [vmem:[%s0 + $0x18] sm:$0xf]
  %v22 = vld [vmem:[%s0 + $0x1c] sm:$0xf]
  %v23 = vld [vmem:[%s0 + $0x20] sm:$0xf]
  %v24 = vld [vmem:[%s0 + $0x24] sm:$0xf]
  %v25 = vld [vmem:[%s0 + $0x28] sm:$0xf]
  %v26 = vld [vmem:[%s0 + $0x2c] sm:$0xf]
  %v27 = vld [vmem:[%s0 + $0x30] sm:$0xf]
  %v28 = vld [vmem:[%s0 + $0x34] sm:$0xf]
  %v29 = vld [vmem:[%s0 + $0x38] sm:$0xf]
  %v30 = vld [vmem:[%s0 + $0x3c] sm:$0xf]
  %v31 = vld [vmem:[%s0 + $0x40] sm:$0xf]
  %v32 = vld [vmem:[%s0 + $0x44] sm:$0xf]
  %v33 = vld [vmem:[%s0 + $0x48] sm:$0xf]
  %v34 = vld [vmem:[%s0 + $0x4c] sm:$0xf]
  %v35 = vld [vmem:[%s0 + $0x50] sm:$0xf]
  %v36 = vld [vmem:[%s0 + $0x54] sm:$0xf]
  %v37 = vld [vmem:[%s0 + $0x58] sm:$0xf]
  %v38 = vld [vmem:[%s0 + $0x5c] sm:$0xf]
  %v39 = vld [vmem:[%s0 + $0x60] sm:$0xf]
  %v40 = vld [vmem:[%s0 + $0x64] sm:$0xf]
  %v41 = vld [vmem:[%s0 + $0x68] sm:$0xf]
  %v42 = vld [vmem:[%s0 + $0x6c] sm:$0xf]
  %v43 = vld [vmem:[%s0 + $0x70] sm:$0xf]
  %v44 = vld [vmem:[%s0 + $0x74] sm:$0xf]
  %v45 = vld [vmem:[%s0 + $0x78] sm:$0xf]
  %v46 = vld [vmem:[%s0 + $0x7c] sm:$0xf]
  %v47 = vld [vmem:[%s0 + $0x80] sm:$0xf]
  %v48 = vld [vmem:[%s0 + $0x84] sm:$0xf]
  %v49 = vld [vmem:[%s0 + $0x88] sm:$0xf]
  %v50 = vld [vmem:[%s0 + $0x8c] sm:$0xf]
  %v51 = vld [vmem:[%s0 + $0x90] sm:$0xf]
  %v52 = vld [vmem:[%s0 + $0x94] sm:$0xf]
  %v53 = vld [vmem:[%s0 + $0x98] sm:$0xf]
  %v54 = vld [vmem:[%s0 + $0x9c] sm:$0xf]
  %v55 = vld [vmem:[%s0 + $0xa0] sm:$0xf]
  %v56 = vld [vmem:[%s0 + $0xa4] sm:$0xf]
  %v57 = vld [vmem:[%s0 + $0xa8] sm:$0xf]
  %v58 = vld [vmem:[%s0 + $0xac] sm:$0xf]
  %v59 = vld [vmem:[%s0 + $0xb0] sm:$0xf]
  %v60 = vld [vmem:[%s0 + $0xb4] sm:$0xf]
  %v61 = vld [vmem:[%s0 + $0xb8] sm:$0xf]
  %v62 = vld [vmem:[%s0 + $0xbc] sm:$0xf]
  %v63 = vld [vmem:[%s0 + $0xc0] sm:$0xf]
  %v64 = vld [vmem:[%s0 + $0xc4] sm:$0xf]
  %v65 = vld [vmem:[%s0 + $0xc8] sm:$0xf]
  %v66 = vld [vmem:[%s0 + $0xcc] sm:$0xf]
  %v67 = vld [vmem:[%s0 + $0xd0] sm:$0xf]
  %v68 = vld [vmem:[%s0 + $0xd4] sm:$0xf]
  %v69 = vld [vmem:[%s0 + $0xd8] sm:$0xf]
  %v70 = vld [vmem:[%s0 + $0xdc] sm:$0xf]
  %v71 = vld [vmem:[%s0 + $0xe0] sm:$0xf]
  %v72 = vld [vmem:[%s0 + $0xe4] sm:$0xf]
  %v73 = vld [vmem:[%s0 + $0xe8] sm:$0xf]
  %v74 = vld [vmem:[%s0 + $0xec] sm:$0xf]
  %v75 = vld [vmem:[%s0 + $0xf0] sm:$0xf]
  %v76 = vld [vmem:[%s0 + $0xf4] sm:$0xf]
  %v77 = vld [vmem:[%s0 + $0xf8] sm:$0xf]
  %v78 = vld [vmem:[%s0 + $0xfc] sm:$0xf]
  %v79 = vld [vmem:[%s0 + $0x100] sm:$0xf]
  %v80 = vld [vmem:[%s0 + $0x104] sm:$0xf]
  %v81 = vld [vmem:[%s0 + $0x108] sm:$0xf]
  %v82 = vld [vmem:[%s0 + $0x10c] sm:$0xf]
  %v83 = vld [vmem:[%s0 + $0x110] sm:$0xf]
  %v84 = vld [vmem:[%s0 + $0x114] sm:$0xf]
  %v85 = vld [vmem:[%s0 + $0x118] sm:$0xf]
  %v86 = vld [vmem:[%s0 + $0x11c] sm:$0xf]
  %v87 = vld [vmem:[%s0 + $0x120] sm:$0xf]
  %v88 = vld [vmem:[%s0 + $0x124] sm:$0xf]
  %v89 = vld [vmem:[%s0 + $0x128] sm:$0xf]
  %v90 = vld [vmem:[%s0 + $0x12c] sm:$0xf]
  %v91 = vld [vmem:[%s0 + $0x130] sm:$0xf]
  %v92 = vld [vmem:[%s0 + $0x134] sm:$0xf]
  %v93 = vld [vmem:[%s0 + $0x138] sm:$0xf]
  %v94 = vld [vmem:[%s0 + $0x13c] sm:$0xf]
  %v95 = vld [vmem:[%s0 + $0x140] sm:$0xf]
  %v96 = vld [vmem:[%s0 + $0x144] sm:$0xf]
  %v97 = vld [vmem:[%s0 + $0x148] sm:$0xf]
  %v98 = vld [vmem:[%s0 + $0x14c] sm:$0xf]
  %v99 = vld [vmem:[%s0 + $0x150] sm:$0xf]
  %v100 = vld [vmem:[%s0 + $0x154] sm:$0xf]
  %v101 = vld [vmem:[%s0 + $0x158] sm:$0xf]
  %v102 = vld [vmem:[%s0 + $0x15c] sm:$0xf]
  %v103 = vld [vmem:[%s0 + $0x160] sm:$0xf]
  %v104 = vld [vmem:[%s0 + $0x164] sm:$0xf]
  %v105 = vld [vmem:[%s0 + $0x168] sm:$0xf]
  %v106 = vld [vmem:[%s0 + $0x16c] sm:$0xf]
  %v107 = vld [vmem:[%s0 + $0x170] sm:$0xf]
  %v108 = vld [vmem:[%s0 + $0x174] sm:$0xf]
  %v109 = vld [vmem:[%s0 + $0x178] sm:$0xf]
  %v110 = vld [vmem:[%s0 + $0x17c] sm:$0xf]
  %v111 = vld [vmem:[%s0 + $0x180] sm:$0xf]
  %v112 = vld [vmem:[%s0 + $0x184] sm:$0xf]
  %v113 = vld [vmem:[%s0 + $0x188] sm:$0xf]
  %v114 = vld [vmem:[%s0 + $0x18c] sm:$0xf]
  %v115 = vld [vmem:[%s0 + $0x190] sm:$0xf]
  %v116 = vld [vmem:[%s0 + $0x194] sm:$0xf]
  %v117 = vld [vmem:[%s0 + $0x198] sm:$0xf]
  %v118 = vld [vmem:[%s0 + $0x19c] sm:$0xf]
  %v119 = vld [vmem:[%s0 + $0x1a0] sm:$0xf]
  %v120 = vld [vmem:[%s0 + $0x1a4] sm:$0xf]
  %v121 = vld [vmem:[%s0 + $0x1a8] sm:$0xf]
  %v122 = vld [vmem:[%s0 + $0x1ac] sm:$0xf]
  %v123 = vld [vmem:[%s0 + $0x1b0] sm:$0xf]
  %v124 = vld [vmem:[%s0 + $0x1b4] sm:$0xf]
  %v125 = vld [vmem:[%s0 + $0x1b8] sm:$0xf]
  %v126 = vld [vmem:[%s0 + $0x1bc] sm:$0xf]
  %v127 = vld [vmem:[%s0 + $0x1c0] sm:$0xf]
  %v128 = vld [vmem:[%s0 + $0x1c4] sm:$0xf]
  %v129 = vld [vmem:[%s0 + $0x1c8] sm:$0xf]
  %v130 = vld [vmem:[%s0 + $0x1cc] sm:$0xf]
  %v131 = vld [vmem:[%s0 + $0x1d0] sm:$0xf]
  %v132 = vld [vmem:[%s0 + $0x1d4] sm:$0xf]
  %v133 = vld [vmem:[%s0 + $0x1d8] sm:$0xf]
  %v134 = vld [vmem:[%s0 + $0x1dc] sm:$0xf]
  %v135 = vld [vmem:[%s0 + $0x1e0] sm:$0xf]
  %v136 = vld [vmem:[%s0 + $0x1e4] sm:$0xf]
  %v137 = vld [vmem:[%s0 + $0x1e8] sm:$0xf]
  %v138 = vld [vmem:[%s0 + $0x1ec] sm:$0xf]
  %v139 = vld [vmem:[%s0 + $0x1f0] sm:$0xf]
  %v140 = vld [vmem:[%s0 + $0x1f4] sm:$0xf]
  %v141 = vld [vmem:[%s0 + $0x1f8] sm:$0xf]
  %v142 = vld [vmem:[%s0 + $0x1fc] sm:$0xf]
  %v143 = vld [vmem:[%s0 + $0x200] sm:$0xf]
  %v144 = vld [vmem:[%s0 + $0x204] sm:$0xf]
  %v145 = vld [vmem:[%s0 + $0x208] sm:$0xf]
  %v146 = vld [vmem:[%s0 + $0x20c] sm:$0xf]
  %v147 = vld [vmem:[%s0 + $0x210] sm:$0xf]
  %v148 = vld [vmem:[%s0 + $0x214] sm:$0xf]
  %v149 = vld [vmem:[%s0 + $0x218] sm:$0xf]
  %v150 = vld [vmem:[%s0 + $0x21c] sm:$0xf]
  %v151 = vld [vmem:[%s0 + $0x220] sm:$0xf]
  %v152 = vld [vmem:[%s0 + $0x224] sm:$0xf]
  %v153 = vld [vmem:[%s0 + $0x228] sm:$0xf]
  %v154 = vld [vmem:[%s0 + $0x22c] sm:$0xf]
  %v155 = vld [vmem:[%s0 + $0x230] sm:$0xf]
  %v156 = vld [vmem:[%s0 + $0x234] sm:$0xf]
  %v157 = vld [vmem:[%s0 + $0x238] sm:$0xf]
  %v158 = vld [vmem:[%s0 + $0x23c] sm:$0xf]
  %v159 = vld [vmem:[%s0 + $0x240] sm:$0xf]
  %v160 = vld [vmem:[%s0 + $0x244] sm:$0xf]
  %v161 = vld [vmem:[%s0 + $0x248] sm:$0xf]
  %v162 = vld [vmem:[%s0 + $0x24c] sm:$0xf]
  %v163 = vld [vmem:[%s0 + $0x250] sm:$0xf]
  %v164 = vld [vmem:[%s0 + $0x254] sm:$0xf]
  %v165 = vld [vmem:[%s0 + $0x258] sm:$0xf]
  %v166 = vld [vmem:[%s0 + $0x25c] sm:$0xf]
  %v167 = vld [vmem:[%s0 + $0x260] sm:$0xf]
  %v168 = vld [vmem:[%s0 + $0x264] sm:$0xf]
  %v169 = vld [vmem:[%s0 + $0x268] sm:$0xf]
  %v170 = vld [vmem:[%s0 + $0x26c] sm:$0xf]
  %v171 = vld [vmem:[%s0 + $0x270] sm:$0xf]
  %v172 = vld [vmem:[%s0 + $0x274] sm:$0xf]
  %v173 = vld [vmem:[%s0 + $0x278] sm:$0xf]
  %v174 = vld [vmem:[%s0 + $0x27c] sm:$0xf]
  %v175 = vld [vmem:[%s0 + $0x280] sm:$0xf]
  %v176 = vld [vmem:[%s0 + $0x284] sm:$0xf]
  %v177 = vld [vmem:[%s0 + $0x288] sm:$0xf]
  %v178 = vld [vmem:[%s0 + $0x28c] sm:$0xf]
  %v179 = vld [vmem:[%s0 + $0x290] sm:$0xf]
  %v180 = vld [vmem:[%s0 + $0x294] sm:$0xf]
  %v181 = vld [vmem:[%s0 + $0x298] sm:$0xf]
  %v182 = vld [vmem:[%s0 + $0x29c] sm:$0xf]
  %v183 = vld [vmem:[%s0 + $0x2a0] sm:$0xf]
  %v184 = vld [vmem:[%s0 + $0x2a4] sm:$0xf]
  %v185 = vld [vmem:[%s0 + $0x2a8] sm:$0xf]
  %v186 = vld [vmem:[%s0 + $0x2ac] sm:$0xf]
  %v187 = vld [vmem:[%s0 + $0x2b0] sm:$0xf]
  %v188 = vld [vmem:[%s0 + $0x2b4] sm:$0xf]
  %v189 = vld [vmem:[%s0 + $0x2b8] sm:$0xf]
  %v190 = vld [vmem:[%s0 + $0x2bc] sm:$0xf]
  %v191 = vld [vmem:[%s0 + $0x2c0] sm:$0xf]
  %v192 = vld [vmem:[%s0 + $0x2c4] sm:$0xf]
  %v193 = vld [vmem:[%s0 + $0x2c8] sm:$0xf]
  %v194 = vld [vmem:[%s0 + $0x2cc] sm:$0xf]
  %v195 = vld [vmem:[%s0 + $0x2d0] sm:$0xf]
  %v196 = vld [vmem:[%s0 + $0x2d4] sm:$0xf]
  %v197 = vld [vmem:[%s0 + $0x2d8] sm:$0xf]
  %v198 = vld [vmem:[%s0 + $0x2dc] sm:$0xf]
  %v199 = vld [vmem:[%s0 + $0x2e0] sm:$0xf]
  %v200 = vld [vmem:[%s0 + $0x2e4] sm:$0xf]
  %v201 = vld [vmem:[%s0 + $0x2e8] sm:$0xf]
  %v202 = vld [vmem:[%s0 + $0x2ec] sm:$0xf]
  %v203 = vld [vmem:[%s0 + $0x2f0] sm:$0xf]
  %v204 = vld [vmem:[%s0 + $0x2f4] sm:$0xf]
  %v205 = vld [vmem:[%s0 + $0x2f8] sm:$0xf]
  %v206 = vld [vmem:[%s0 + $0x2fc] sm:$0xf]
  %v207 = vld [vmem:[%s0 + $0x300] sm:$0xf]
  %v208 = vld [vmem:[%s0 + $0x304] sm:$0xf]
  %v209 = vld [vmem:[%s0 + $0x308] sm:$0xf]
  %v210 = vld [vmem:[%s0 + $0x30c] sm:$0xf]
  %v211 = vld [vmem:[%s1] sm:$0xf]
  %v212 = vld [vmem:[%s1 + $0x4] sm:$0xf]
  %v213 = vld [vmem:[%s2] sm:$0x1]
  %v215 = vlaneseq
  %v216 = vshrl.u32 %v215, 7
  %v217 = vsub.s32 0, %v216
  %v218 = vrot.slane %v213, %v217
  %v416 = vunpack.c.l.b16 %v15
  %v417 = vunpack.c.l.b16 %v16
  %v418 = vunpack.c.l.b16 %v17
  %v419 = vunpack.c.l.b16 %v18
  %v420 = vunpack.c.l.b16 %v19
  %v421 = vunpack.c.l.b16 %v20
  %v422 = vunpack.c.l.b16 %v21
  %v423 = vunpack.c.l.b16 %v22
  %v424 = vunpack.c.l.b16 %v23
  %v425 = vunpack.c.l.b16 %v24
  %v426 = vunpack.c.l.b16 %v25
  %v427 = vunpack.c.l.b16 %v26
  %v428 = vunpack.c.l.b16 %v27
  %v429 = vunpack.c.l.b16 %v28
  %v430 = vunpack.c.l.b16 %v29
  %v431 = vunpack.c.l.b16 %v30
  %v432 = vunpack.c.l.b16 %v31
  %v433 = vunpack.c.l.b16 %v32
  %v434 = vunpack.c.l.b16 %v33
  %v435 = vunpack.c.l.b16 %v34
  %v436 = vunpack.c.l.b16 %v35
  %v437 = vunpack.c.l.b16 %v36
  %v438 = vunpack.c.l.b16 %v37
  %v439 = vunpack.c.l.b16 %v38
  %v440 = vunpack.c.l.b16 %v39
  %v441 = vunpack.c.l.b16 %v40
  %v442 = vunpack.c.l.b16 %v41
  %v443 = vunpack.c.l.b16 %v42
  %v444 = vunpack.c.l.b16 %v43
  %v445 = vunpack.c.l.b16 %v44
  %v446 = vunpack.c.l.b16 %v45
  %v447 = vunpack.c.l.b16 %v46
  %v448 = vunpack.c.l.b16 %v47
  %v449 = vunpack.c.l.b16 %v48
  %v450 = vunpack.c.l.b16 %v49
  %v451 = vunpack.c.l.b16 %v50
  %v452 = vunpack.c.l.b16 %v51
  %v453 = vunpack.c.l.b16 %v52
  %v454 = vunpack.c.l.b16 %v53
  %v455 = vunpack.c.l.b16 %v54
  %v456 = vunpack.c.l.b16 %v55
  %v457 = vunpack.c.l.b16 %v56
  %v458 = vunpack.c.l.b16 %v57
  %v459 = vunpack.c.l.b16 %v58
  %v460 = vunpack.c.l.b16 %v59
  %v461 = vunpack.c.l.b16 %v60
  %v462 = vunpack.c.l.b16 %v61
  %v463 = vunpack.c.l.b16 %v62
  %v464 = vunpack.c.l.b16 %v63
  %v465 = vunpack.c.l.b16 %v64
  %v466 = vunpack.c.l.b16 %v65
  %v467 = vunpack.c.l.b16 %v66
  %v468 = vunpack.c.l.b16 %v67
  %v469 = vunpack.c.l.b16 %v68
  %v470 = vunpack.c.l.b16 %v69
  %v471 = vunpack.c.l.b16 %v70
  %v472 = vunpack.c.l.b16 %v71
  %v473 = vunpack.c.l.b16 %v72
  %v474 = vunpack.c.l.b16 %v73
  %v475 = vunpack.c.l.b16 %v74
  %v476 = vunpack.c.l.b16 %v75
  %v477 = vunpack.c.l.b16 %v76
  %v478 = vunpack.c.l.b16 %v77
  %v479 = vunpack.c.l.b16 %v78
  %v480 = vunpack.c.l.b16 %v79
  %v481 = vunpack.c.l.b16 %v80
  %v482 = vunpack.c.l.b16 %v81
  %v483 = vunpack.c.l.b16 %v82
  %v484 = vunpack.c.l.b16 %v83
  %v485 = vunpack.c.l.b16 %v84
  %v486 = vunpack.c.l.b16 %v85
  %v487 = vunpack.c.l.b16 %v86
  %v488 = vunpack.c.l.b16 %v87
  %v489 = vunpack.c.l.b16 %v88
  %v490 = vunpack.c.l.b16 %v89
  %v491 = vunpack.c.l.b16 %v90
  %v492 = vunpack.c.l.b16 %v91
  %v493 = vunpack.c.l.b16 %v92
  %v494 = vunpack.c.l.b16 %v93
  %v495 = vunpack.c.l.b16 %v94
  %v496 = vunpack.c.l.b16 %v95
  %v497 = vunpack.c.l.b16 %v96
  %v498 = vunpack.c.l.b16 %v97
  %v499 = vunpack.c.l.b16 %v98
  %v500 = vunpack.c.l.b16 %v99
  %v501 = vunpack.c.l.b16 %v100
  %v502 = vunpack.c.l.b16 %v101
  %v503 = vunpack.c.l.b16 %v102
  %v504 = vunpack.c.l.b16 %v103
  %v505 = vunpack.c.l.b16 %v104
  %v506 = vunpack.c.l.b16 %v105
  %v507 = vunpack.c.l.b16 %v106
  %v508 = vunpack.c.l.b16 %v107
  %v509 = vunpack.c.l.b16 %v108
  %v510 = vunpack.c.l.b16 %v109
  %v511 = vunpack.c.l.b16 %v110
  %v512 = vunpack.c.l.b16 %v111
  %v513 = vunpack.c.l.b16 %v112
  %v514 = vunpack.c.l.b16 %v113
  %v515 = vunpack.c.l.b16 %v114
  %v516 = vunpack.c.l.b16 %v115
  %v517 = vunpack.c.l.b16 %v116
  %v518 = vunpack.c.l.b16 %v117
  %v519 = vunpack.c.l.b16 %v118
  %v520 = vunpack.c.l.b16 %v119
  %v521 = vunpack.c.l.b16 %v120
  %v522 = vunpack.c.l.b16 %v121
  %v523 = vunpack.c.l.b16 %v122
  %v524 = vunpack.c.l.b16 %v123
  %v525 = vunpack.c.l.b16 %v124
  %v526 = vunpack.c.l.b16 %v125
  %v527 = vunpack.c.l.b16 %v126
  %v528 = vunpack.c.l.b16 %v127
  %v529 = vunpack.c.l.b16 %v128
  %v530 = vunpack.c.l.b16 %v129
  %v531 = vunpack.c.l.b16 %v130
  %v532 = vunpack.c.l.b16 %v131
  %v533 = vunpack.c.l.b16 %v132
  %v534 = vunpack.c.l.b16 %v133
  %v535 = vunpack.c.l.b16 %v134
  %v536 = vunpack.c.l.b16 %v135
  %v537 = vunpack.c.l.b16 %v136
  %v538 = vunpack.c.l.b16 %v137
  %v539 = vunpack.c.l.b16 %v138
  %v540 = vunpack.c.l.b16 %v139
  %v541 = vunpack.c.l.b16 %v140
  %v542 = vunpack.c.l.b16 %v141
  %v543 = vunpack.c.l.b16 %v142
  %v544 = vunpack.c.l.b16 %v143
  %v545 = vunpack.c.l.b16 %v144
  %v546 = vunpack.c.l.b16 %v145
  %v547 = vunpack.c.l.b16 %v146
  %v548 = vunpack.c.l.b16 %v147
  %v549 = vunpack.c.l.b16 %v148
  %v550 = vunpack.c.l.b16 %v149
  %v551 = vunpack.c.l.b16 %v150
  %v552 = vunpack.c.l.b16 %v151
  %v553 = vunpack.c.l.b16 %v152
  %v554 = vunpack.c.l.b16 %v153
  %v555 = vunpack.c.l.b16 %v154
  %v556 = vunpack.c.l.b16 %v155
  %v557 = vunpack.c.l.b16 %v156
  %v558 = vunpack.c.l.b16 %v157
  %v559 = vunpack.c.l.b16 %v158
  %v560 = vunpack.c.l.b16 %v159
  %v561 = vunpack.c.l.b16 %v160
  %v562 = vunpack.c.l.b16 %v161
  %v563 = vunpack.c.l.b16 %v162
  %v564 = vunpack.c.l.b16 %v163
  %v565 = vunpack.c.l.b16 %v164
  %v566 = vunpack.c.l.b16 %v165
  %v567 = vunpack.c.l.b16 %v166
  %v568 = vunpack.c.l.b16 %v167
  %v569 = vunpack.c.l.b16 %v168
  %v570 = vunpack.c.l.b16 %v169
  %v571 = vunpack.c.l.b16 %v170
  %v572 = vunpack.c.l.b16 %v171
  %v573 = vunpack.c.l.b16 %v172
  %v574 = vunpack.c.l.b16 %v173
  %v575 = vunpack.c.l.b16 %v174
  %v576 = vunpack.c.l.b16 %v175
  %v577 = vunpack.c.l.b16 %v176
  %v578 = vunpack.c.l.b16 %v177
  %v579 = vunpack.c.l.b16 %v178
  %v580 = vunpack.c.l.b16 %v179
  %v581 = vunpack.c.l.b16 %v180
  %v582 = vunpack.c.l.b16 %v181
  %v583 = vunpack.c.l.b16 %v182
  %v584 = vunpack.c.l.b16 %v183
  %v585 = vunpack.c.l.b16 %v184
  %v586 = vunpack.c.l.b16 %v185
  %v587 = vunpack.c.l.b16 %v186
  %v588 = vunpack.c.l.b16 %v187
  %v589 = vunpack.c.l.b16 %v188
  %v590 = vunpack.c.l.b16 %v189
  %v591 = vunpack.c.l.b16 %v190
  %v592 = vunpack.c.l.b16 %v191
  %v593 = vunpack.c.l.b16 %v192
  %v594 = vunpack.c.l.b16 %v193
  %v595 = vunpack.c.l.b16 %v194
  %v596 = vunpack.c.l.b16 %v195
  %v597 = vunpack.c.l.b16 %v196
  %v598 = vunpack.c.l.b16 %v197
  %v599 = vunpack.c.l.b16 %v198
  %v600 = vunpack.c.l.b16 %v199
  %v601 = vunpack.c.l.b16 %v200
  %v602 = vunpack.c.l.b16 %v201
  %v603 = vunpack.c.l.b16 %v202
  %v604 = vunpack.c.l.b16 %v203
  %v605 = vunpack.c.l.b16 %v204
  %v606 = vunpack.c.l.b16 %v205
  %v607 = vunpack.c.l.b16 %v206
  %v608 = vunpack.c.l.b16 %v207
  %v609 = vunpack.c.l.b16 %v208
  %v610 = vunpack.c.l.b16 %v209
  %v611 = vunpack.c.l.b16 %v210
  %v612 = vpack.c.b16 %v417, %v416
  %v613 = vpack.c.b16 %v419, %v418
  %v614 = vpack.c.b16 %v421, %v420
  %v615 = vpack.c.b16 %v423, %v422
  %v616 = vpack.c.b16 %v425, %v424
  %v617 = vpack.c.b16 %v427, %v426
  %v618 = vpack.c.b16 %v429, %v428
  %v619 = vpack.c.b16 %v431, %v430
  %v620 = vpack.c.b16 %v433, %v432
  %v621 = vpack.c.b16 %v435, %v434
  %v622 = vpack.c.b16 %v437, %v436
  %v623 = vpack.c.b16 %v439, %v438
  %v624 = vpack.c.b16 %v441, %v440
  %v625 = vpack.c.b16 %v443, %v442
  %v626 = vpack.c.b16 %v445, %v444
  %v627 = vpack.c.b16 %v447, %v446
  %v628 = vpack.c.b16 %v449, %v448
  %v629 = vpack.c.b16 %v451, %v450
  %v630 = vpack.c.b16 %v453, %v452
  %v631 = vpack.c.b16 %v455, %v454
  %v632 = vpack.c.b16 %v457, %v456
  %v633 = vpack.c.b16 %v459, %v458
  %v634 = vpack.c.b16 %v461, %v460
  %v635 = vpack.c.b16 %v463, %v462
  %v636 = vpack.c.b16 %v465, %v464
  %v637 = vpack.c.b16 %v467, %v466
  %v638 = vpack.c.b16 %v469, %v468
  %v639 = vpack.c.b16 %v471, %v470
  %v640 = vpack.c.b16 %v473, %v472
  %v641 = vpack.c.b16 %v475, %v474
  %v642 = vpack.c.b16 %v477, %v476
  %v643 = vpack.c.b16 %v479, %v478
  %v644 = vpack.c.b16 %v481, %v480
  %v645 = vpack.c.b16 %v483, %v482
  %v646 = vpack.c.b16 %v485, %v484
  %v647 = vpack.c.b16 %v487, %v486
  %v648 = vpack.c.b16 %v489, %v488
  %v649 = vpack.c.b16 %v491, %v490
  %v650 = vpack.c.b16 %v493, %v492
  %v651 = vpack.c.b16 %v495, %v494
  %v652 = vpack.c.b16 %v497, %v496
  %v653 = vpack.c.b16 %v499, %v498
  %v654 = vpack.c.b16 %v501, %v500
  %v655 = vpack.c.b16 %v503, %v502
  %v656 = vpack.c.b16 %v505, %v504
  %v657 = vpack.c.b16 %v507, %v506
  %v658 = vpack.c.b16 %v509, %v508
  %v659 = vpack.c.b16 %v511, %v510
  %v660 = vpack.c.b16 %v513, %v512
  %v661 = vpack.c.b16 %v515, %v514
  %v662 = vpack.c.b16 %v517, %v516
  %v663 = vpack.c.b16 %v519, %v518
  %v664 = vpack.c.b16 %v521, %v520
  %v665 = vpack.c.b16 %v523, %v522
  %v666 = vpack.c.b16 %v525, %v524
  %v667 = vpack.c.b16 %v527, %v526
  %v668 = vpack.c.b16 %v529, %v528
  %v669 = vpack.c.b16 %v531, %v530
  %v670 = vpack.c.b16 %v533, %v532
  %v671 = vpack.c.b16 %v535, %v534
  %v672 = vpack.c.b16 %v537, %v536
  %v673 = vpack.c.b16 %v539, %v538
  %v674 = vpack.c.b16 %v541, %v540
  %v675 = vpack.c.b16 %v543, %v542
  %v676 = vpack.c.b16 %v545, %v544
  %v677 = vpack.c.b16 %v547, %v546
  %v678 = vpack.c.b16 %v549, %v548
  %v679 = vpack.c.b16 %v551, %v550
  %v680 = vpack.c.b16 %v553, %v552
  %v681 = vpack.c.b16 %v555, %v554
  %v682 = vpack.c.b16 %v557, %v556
  %v683 = vpack.c.b16 %v559, %v558
  %v684 = vpack.c.b16 %v561, %v560
  %v685 = vpack.c.b16 %v563, %v562
  %v686 = vpack.c.b16 %v565, %v564
  %v687 = vpack.c.b16 %v567, %v566
  %v688 = vpack.c.b16 %v569, %v568
  %v689 = vpack.c.b16 %v571, %v570
  %v690 = vpack.c.b16 %v573, %v572
  %v691 = vpack.c.b16 %v575, %v574
  %v692 = vpack.c.b16 %v577, %v576
  %v693 = vpack.c.b16 %v579, %v578
  %v694 = vpack.c.b16 %v581, %v580
  %v695 = vpack.c.b16 %v583, %v582
  %v696 = vpack.c.b16 %v585, %v584
  %v697 = vpack.c.b16 %v587, %v586
  %v698 = vpack.c.b16 %v589, %v588
  %v699 = vpack.c.b16 %v591, %v590
  %v700 = vpack.c.b16 %v593, %v592
  %v701 = vpack.c.b16 %v595, %v594
  %v702 = vpack.c.b16 %v597, %v596
  %v703 = vpack.c.b16 %v599, %v598
  %v704 = vpack.c.b16 %v601, %v600
  %v705 = vpack.c.b16 %v603, %v602
  %v706 = vpack.c.b16 %v605, %v604
  %v707 = vpack.c.b16 %v607, %v606
  %v708 = vpack.c.b16 %v609, %v608
  %v709 = vpack.c.b16 %v611, %v610
  %v712 = vunpack.c.l.b16 %v211
  %v713 = vunpack.c.l.b16 %v212
  %v714 = vpack.c.b16 %v713, %v712
  %vm716 = vcmask 130048
  %v718 = vsel %vm716, %v612, 0
  %v721 = vsel %vm716, %v613, 0
  %v724 = vsel %vm716, %v614, 0
  %v727 = vsel %vm716, %v615, 0
  %v730 = vsel %vm716, %v616, 0
  %v733 = vsel %vm716, %v617, 0
  %v736 = vsel %vm716, %v618, 0
  %v739 = vsel %vm716, %v619, 0
  %v742 = vsel %vm716, %v620, 0
  %v745 = vsel %vm716, %v621, 0
  %v748 = vsel %vm716, %v622, 0
  %v751 = vsel %vm716, %v623, 0
  %v754 = vsel %vm716, %v624, 0
  %v757 = vsel %vm716, %v625, 0
  %v760 = vsel %vm716, %v626, 0
  %v763 = vsel %vm716, %v627, 0
  %v766 = vsel %vm716, %v628, 0
  %v769 = vsel %vm716, %v629, 0
  %v772 = vsel %vm716, %v630, 0
  %v775 = vsel %vm716, %v631, 0
  %v778 = vsel %vm716, %v632, 0
  %v781 = vsel %vm716, %v633, 0
  %v784 = vsel %vm716, %v634, 0
  %v787 = vsel %vm716, %v635, 0
  %v790 = vsel %vm716, %v636, 0
  %v793 = vsel %vm716, %v637, 0
  %v796 = vsel %vm716, %v638, 0
  %v799 = vsel %vm716, %v639, 0
  %v802 = vsel %vm716, %v640, 0
  %v805 = vsel %vm716, %v641, 0
  %v808 = vsel %vm716, %v642, 0
  %v811 = vsel %vm716, %v643, 0
  %v814 = vsel %vm716, %v644, 0
  %v817 = vsel %vm716, %v645, 0
  %v820 = vsel %vm716, %v646, 0
  %v823 = vsel %vm716, %v647, 0
  %v826 = vsel %vm716, %v648, 0
  %v829 = vsel %vm716, %v649, 0
  %v832 = vsel %vm716, %v650, 0
  %v835 = vsel %vm716, %v651, 0
  %v838 = vsel %vm716, %v652, 0
  %v841 = vsel %vm716, %v653, 0
  %v844 = vsel %vm716, %v654, 0
  %v847 = vsel %vm716, %v655, 0
  %v850 = vsel %vm716, %v656, 0
  %v853 = vsel %vm716, %v657, 0
  %v856 = vsel %vm716, %v658, 0
  %v859 = vsel %vm716, %v659, 0
  %v862 = vsel %vm716, %v660, 0
  %v865 = vsel %vm716, %v661, 0
  %v868 = vsel %vm716, %v662, 0
  %v871 = vsel %vm716, %v663, 0
  %v874 = vsel %vm716, %v664, 0
  %v877 = vsel %vm716, %v665, 0
  %v880 = vsel %vm716, %v666, 0
  %v883 = vsel %vm716, %v667, 0
  %v886 = vsel %vm716, %v668, 0
  %v889 = vsel %vm716, %v669, 0
  %v892 = vsel %vm716, %v670, 0
  %v895 = vsel %vm716, %v671, 0
  %v898 = vsel %vm716, %v672, 0
  %v901 = vsel %vm716, %v673, 0
  %v904 = vsel %vm716, %v674, 0
  %v907 = vsel %vm716, %v675, 0
  %v910 = vsel %vm716, %v676, 0
  %v913 = vsel %vm716, %v677, 0
  %v916 = vsel %vm716, %v678, 0
  %v919 = vsel %vm716, %v679, 0
  %v922 = vsel %vm716, %v680, 0
  %v925 = vsel %vm716, %v681, 0
  %v928 = vsel %vm716, %v682, 0
  %v931 = vsel %vm716, %v683, 0
  %v934 = vsel %vm716, %v684, 0
  %v937 = vsel %vm716, %v685, 0
  %v940 = vsel %vm716, %v686, 0
  %v943 = vsel %vm716, %v687, 0
  %v946 = vsel %vm716, %v688, 0
  %v949 = vsel %vm716, %v689, 0
  %v952 = vsel %vm716, %v690, 0
  %v955 = vsel %vm716, %v691, 0
  %v958 = vsel %vm716, %v692, 0
  %v961 = vsel %vm716, %v693, 0
  %v964 = vsel %vm716, %v694, 0
  %v967 = vsel %vm716, %v695, 0
  %v970 = vsel %vm716, %v696, 0
  %v973 = vsel %vm716, %v697, 0
  %v976 = vsel %vm716, %v698, 0
  %v979 = vsel %vm716, %v699, 0
  %v982 = vsel %vm716, %v700, 0
  %v985 = vsel %vm716, %v701, 0
  %v988 = vsel %vm716, %v702, 0
  %v991 = vsel %vm716, %v703, 0
  %v994 = vsel %vm716, %v704, 0
  %v997 = vsel %vm716, %v705, 0
  %v1000 = vsel %vm716, %v706, 0
  %v1003 = vsel %vm716, %v707, 0
  %v1006 = vsel %vm716, %v708, 0
  %v1009 = vsel %vm716, %v709, 0
  %1011 = vmatprep.subr.bf16.mxu0 0
  %1012 = vmatpush1.bf16.msra.mxu0 %v714
  %1013 = vmatprep.subr.bf16.mxu0 0
  %1014 = vmatpush1.bf16.msra.mxu0 0
  %1015 = vmatprep.subr.bf16.mxu0 0
  %1016 = vmatpush1.bf16.msra.mxu0 0
  %1017 = vmatprep.subr.bf16.mxu0 0
  %1018 = vmatpush1.bf16.msra.mxu0 0
  %1019 = vmatprep.subr.bf16.mxu0 0
  %1020 = vmatpush1.bf16.msra.mxu0 0
  %1021 = vmatprep.subr.bf16.mxu0 0
  %1022 = vmatpush1.bf16.msra.mxu0 0
  %1023 = vmatprep.subr.bf16.mxu0 0
  %1024 = vmatpush1.bf16.msra.mxu0 0
  %1025 = vmatprep.subr.bf16.mxu0 0
  %1026 = vmatpush1.bf16.msra.mxu0 0
  %1027 = vmatprep.subr.bf16.mxu0 0
  %1028 = vmatpush1.bf16.msra.mxu0 0
  %1029 = vmatprep.subr.bf16.mxu0 0
  %1030 = vmatpush1.bf16.msra.mxu0 0
  %1031 = vmatprep.subr.bf16.mxu0 0
  %1032 = vmatpush1.bf16.msra.mxu0 0
  %1033 = vmatprep.subr.bf16.mxu0 0
  %1034 = vmatpush1.bf16.msra.mxu0 0
  %1035 = vmatprep.subr.bf16.mxu0 0
  %1036 = vmatpush1.bf16.msra.mxu0 0
  %1037 = vmatprep.subr.bf16.mxu0 0
  %1038 = vmatpush1.bf16.msra.mxu0 0
  %1039 = vmatprep.subr.bf16.mxu0 0
  %1040 = vmatpush1.bf16.msra.mxu0 0
  %1041 = vmatprep.subr.bf16.mxu0 0
  %1042 = vmatpush1.bf16.msra.mxu0 0
  %1043 = vmatprep.mubr.bf16.mxu0 0
  %1044 = vmatmul.mubr.bf16.gmra.mrb[0].mxu0 %v718
  %v1045 = vpop.f32.mrb[0].mxu0
  %v1046 = vadd.f32 %v218, %v1045
  %v1047 = vpop.f32.mrb[0].mxu0
  %v1048 = vpop.f32.mrb[0].mxu0
  %v1049 = vadd.f32 %v218, %v1048
  %v1050 = vpop.f32.mrb[0].mxu0
  %1051 = vmatprep.mubr.bf16.mxu0 0
  %1052 = vmatmul.mubr.bf16.gmra.mrb[0].mxu0 %v721
  %v1053 = vpop.f32.mrb[0].mxu0
  %v1054 = vadd.f32 %v218, %v1053
  %v1055 = vpop.f32.mrb[0].mxu0
  %v1056 = vpop.f32.mrb[0].mxu0
  %v1057 = vadd.f32 %v218, %v1056
  %v1058 = vpop.f32.mrb[0].mxu0
  %1059 = vmatprep.mubr.bf16.mxu0 0
  %1060 = vmatmul.mubr.bf16.gmra.mrb[0].mxu0 %v724
  %v1061 = vpop.f32.mrb[0].mxu0
  %v1062 = vadd.f32 %v218, %v1061
  %v1063 = vpop.f32.mrb[0].mxu0
  %v1064 = vpop.f32.mrb[0].mxu0
  %v1065 = vadd.f32 %v218, %v1064
  %v1066 = vpop.f32.mrb[0].mxu0
  %1067 = vmatprep.mubr.bf16.mxu0 0
  %1068 = vmatmul.mubr.bf16.gmra.mrb[0].mxu0 %v727
  %v1069 = vpop.f32.mrb[0].mxu0
  %v1070 = vadd.f32 %v218, %v1069
  %v1071 = vpop.f32.mrb[0].mxu0
  %v1072 = vpop.f32.mrb[0].mxu0
  %v1073 = vadd.f32 %v218, %v1072
  %v1074 = vpop.f32.mrb[0].mxu0
  %1075 = vmatprep.mubr.bf16.mxu0 0
  %1076 = vmatmul.mubr.bf16.gmra.mrb[0].mxu0 %v730
  %v1077 = vpop.f32.mrb[0].mxu0
  %v1078 = vadd.f32 %v218, %v1077
  %v1079 = vpop.f32.mrb[0].mxu0
  %v1080 = vpop.f32.mrb[0].mxu0
  %v1081 = vadd.f32 %v218, %v1080
  %v1082 = vpop.f32.mrb[0].mxu0
  %1083 = vmatprep.mubr.bf16.mxu0 0
  %1084 = vmatmul.mubr.bf16.gmra.mrb[0].mxu0 %v733
  %v1085 = vpop.f32.mrb[0].mxu0
  %v1086 = vadd.f32 %v218, %v1085
  %v1087 = vpop.f32.mrb[0].mxu0
  %v1088 = vpop.f32.mrb[0].mxu0
  %v1089 = vadd.f32 %v218, %v1088
  %v1090 = vpop.f32.mrb[0].mxu0
  %1091 = vmatprep.mubr.bf16.mxu0 0
  %1092 = vmatmul.mubr.bf16.gmra.mrb[0].mxu0 %v736
  %v1093 = vpop.f32.mrb[0].mxu0
  %v1094 = vadd.f32 %v218, %v1093
  %v1095 = vpop.f32.mrb[0].mxu0
  %v1096 = vpop.f32.mrb[0].mxu0
  %v1097 = vadd.f32 %v218, %v1096
  %v1098 = vpop.f32.mrb[0].mxu0
  %1099 = vmatprep.mubr.bf16.mxu0 0
  %1100 = vmatmul.mubr.bf16.gmra.mrb[0].mxu0 %v739
  %v1101 = vpop.f32.mrb[0].mxu0
  %v1102 = vadd.f32 %v218, %v1101
  %v1103 = vpop.f32.mrb[0].mxu0
  %v1104 = vpop.f32.mrb[0].mxu0
  %v1105 = vadd.f32 %v218, %v1104
  %v1106 = vpop.f32.mrb[0].mxu0
  %1107 = vmatprep.mubr.bf16.mxu0 0
  %1108 = vmatmul.mubr.bf16.gmra.mrb[0].mxu0 %v742
  %v1109 = vpop.f32.mrb[0].mxu0
  %v1110 = vadd.f32 %v218, %v1109
  %v1111 = vpop.f32.mrb[0].mxu0
  %v1112 = vpop.f32.mrb[0].mxu0
  %v1113 = vadd.f32 %v218, %v1112
  %v1114 = vpop.f32.mrb[0].mxu0
  %1115 = vmatprep.mubr.bf16.mxu0 0
  %1116 = vmatmul.mubr.bf16.gmra.mrb[0].mxu0 %v745
  %v1117 = vpop.f32.mrb[0].mxu0
  %v1118 = vadd.f32 %v218, %v1117
  %v1119 = vpop.f32.mrb[0].mxu0
  %v1120 = vpop.f32.mrb[0].mxu0
  %v1121 = vadd.f32 %v218, %v1120
  %v1122 = vpop.f32.mrb[0].mxu0
  %1123 = vmatprep.mubr.bf16.mxu0 0
  %1124 = vmatmul.mubr.bf16.gmra.mrb[0].mxu0 %v748
  %v1125 = vpop.f32.mrb[0].mxu0
  %v1126 = vadd.f32 %v218, %v1125
  %v1127 = vpop.f32.mrb[0].mxu0
  %v1128 = vpop.f32.mrb[0].mxu0
  %v1129 = vadd.f32 %v218, %v1128
  %v1130 = vpop.f32.mrb[0].mxu0
  %1131 = vmatprep.mubr.bf16.mxu0 0
  %1132 = vmatmul.mubr.bf16.gmra.mrb[0].mxu0 %v751
  %v1133 = vpop.f32.mrb[0].mxu0
  %v1134 = vadd.f32 %v218, %v1133
  %v1135 = vpop.f32.mrb[0].mxu0
  %v1136 = vpop.f32.mrb[0].mxu0
  %v1137 = vadd.f32 %v218, %v1136
  %v1138 = vpop.f32.mrb[0].mxu0
  %1139 = vmatprep.mubr.bf16.mxu0 0
  %1140 = vmatmul.mubr.bf16.gmra.mrb[0].mxu0 %v754
  %v1141 = vpop.f32.mrb[0].mxu0
  %v1142 = vadd.f32 %v218, %v1141
  %v1143 = vpop.f32.mrb[0].mxu0
  %v1144 = vpop.f32.mrb[0].mxu0
  %v1145 = vadd.f32 %v218, %v1144
  %v1146 = vpop.f32.mrb[0].mxu0
  %1147 = vmatprep.mubr.bf16.mxu0 0
  %1148 = vmatmul.mubr.bf16.gmra.mrb[0].mxu0 %v757
  %v1149 = vpop.f32.mrb[0].mxu0
  %v1150 = vadd.f32 %v218, %v1149
  %v1151 = vpop.f32.mrb[0].mxu0
  %v1152 = vpop.f32.mrb[0].mxu0
  %v1153 = vadd.f32 %v218, %v1152
  %v1154 = vpop.f32.mrb[0].mxu0
  %1155 = vmatprep.mubr.bf16.mxu0 0
  %1156 = vmatmul.mubr.bf16.gmra.mrb[0].mxu0 %v760
  %v1157 = vpop.f32.mrb[0].mxu0
  %v1158 = vadd.f32 %v218, %v1157
  %v1159 = vpop.f32.mrb[0].mxu0
  %v1160 = vpop.f32.mrb[0].mxu0
  %v1161 = vadd.f32 %v218, %v1160
  %v1162 = vpop.f32.mrb[0].mxu0
  %1163 = vmatprep.mubr.bf16.mxu0 0
  %1164 = vmatmul.mubr.bf16.gmra.mrb[0].mxu0 %v763
  %v1165 = vpop.f32.mrb[0].mxu0
  %v1166 = vadd.f32 %v218, %v1165
  %v1167 = vpop.f32.mrb[0].mxu0
  %v1168 = vpop.f32.mrb[0].mxu0
  %v1169 = vadd.f32 %v218, %v1168
  %v1170 = vpop.f32.mrb[0].mxu0
  %1171 = vmatprep.mubr.bf16.mxu0 0
  %1172 = vmatmul.mubr.bf16.gmra.mrb[0].mxu0 %v766
  %v1173 = vpop.f32.mrb[0].mxu0
  %v1174 = vadd.f32 %v218, %v1173
  %v1175 = vpop.f32.mrb[0].mxu0
  %v1176 = vpop.f32.mrb[0].mxu0
  %v1177 = vadd.f32 %v218, %v1176
  %v1178 = vpop.f32.mrb[0].mxu0
  %1179 = vmatprep.mubr.bf16.mxu0 0
  %1180 = vmatmul.mubr.bf16.gmra.mrb[0].mxu0 %v769
  %v1181 = vpop.f32.mrb[0].mxu0
  %v1182 = vadd.f32 %v218, %v1181
  %v1183 = vpop.f32.mrb[0].mxu0
  %v1184 = vpop.f32.mrb[0].mxu0
  %v1185 = vadd.f32 %v218, %v1184
  %v1186 = vpop.f32.mrb[0].mxu0
  %1187 = vmatprep.mubr.bf16.mxu0 0
  %1188 = vmatmul.mubr.bf16.gmra.mrb[0].mxu0 %v772
  %v1189 = vpop.f32.mrb[0].mxu0
  %v1190 = vadd.f32 %v218, %v1189
  %v1191 = vpop.f32.mrb[0].mxu0
  %v1192 = vpop.f32.mrb[0].mxu0
  %v1193 = vadd.f32 %v218, %v1192
  %v1194 = vpop.f32.mrb[0].mxu0
  %1195 = vmatprep.mubr.bf16.mxu0 0
  %1196 = vmatmul.mubr.bf16.gmra.mrb[0].mxu0 %v775
  %v1197 = vpop.f32.mrb[0].mxu0
  %v1198 = vadd.f32 %v218, %v1197
  %v1199 = vpop.f32.mrb[0].mxu0
  %v1200 = vpop.f32.mrb[0].mxu0
  %v1201 = vadd.f32 %v218, %v1200
  %v1202 = vpop.f32.mrb[0].mxu0
  %1203 = vmatprep.mubr.bf16.mxu0 0
  %1204 = vmatmul.mubr.bf16.gmra.mrb[0].mxu0 %v778
  %v1205 = vpop.f32.mrb[0].mxu0
  %v1206 = vadd.f32 %v218, %v1205
  %v1207 = vpop.f32.mrb[0].mxu0
  %v1208 = vpop.f32.mrb[0].mxu0
  %v1209 = vadd.f32 %v218, %v1208
  %v1210 = vpop.f32.mrb[0].mxu0
  %1211 = vmatprep.mubr.bf16.mxu0 0
  %1212 = vmatmul.mubr.bf16.gmra.mrb[0].mxu0 %v781
  %v1213 = vpop.f32.mrb[0].mxu0
  %v1214 = vadd.f32 %v218, %v1213
  %v1215 = vpop.f32.mrb[0].mxu0
  %v1216 = vpop.f32.mrb[0].mxu0
  %v1217 = vadd.f32 %v218, %v1216
  %v1218 = vpop.f32.mrb[0].mxu0
  %1219 = vmatprep.mubr.bf16.mxu0 0
  %1220 = vmatmul.mubr.bf16.gmra.mrb[0].mxu0 %v784
  %v1221 = vpop.f32.mrb[0].mxu0
  %v1222 = vadd.f32 %v218, %v1221
  %v1223 = vpop.f32.mrb[0].mxu0
  %v1224 = vpop.f32.mrb[0].mxu0
  %v1225 = vadd.f32 %v218, %v1224
  %v1226 = vpop.f32.mrb[0].mxu0
  %1227 = vmatprep.mubr.bf16.mxu0 0
  %1228 = vmatmul.mubr.bf16.gmra.mrb[0].mxu0 %v787
  %v1229 = vpop.f32.mrb[0].mxu0
  %v1230 = vadd.f32 %v218, %v1229
  %v1231 = vpop.f32.mrb[0].mxu0
  %v1232 = vpop.f32.mrb[0].mxu0
  %v1233 = vadd.f32 %v218, %v1232
  %v1234 = vpop.f32.mrb[0].mxu0
  %1235 = vmatprep.mubr.bf16.mxu0 0
  %1236 = vmatmul.mubr.bf16.gmra.mrb[0].mxu0 %v790
  %v1237 = vpop.f32.mrb[0].mxu0
  %v1238 = vadd.f32 %v218, %v1237
  %v1239 = vpop.f32.mrb[0].mxu0
  %v1240 = vpop.f32.mrb[0].mxu0
  %v1241 = vadd.f32 %v218, %v1240
  %v1242 = vpop.f32.mrb[0].mxu0
  %1243 = vmatprep.mubr.bf16.mxu0 0
  %1244 = vmatmul.mubr.bf16.gmra.mrb[0].mxu0 %v793
  %v1245 = vpop.f32.mrb[0].mxu0
  %v1246 = vadd.f32 %v218, %v1245
  %v1247 = vpop.f32.mrb[0].mxu0
  %v1248 = vpop.f32.mrb[0].mxu0
  %v1249 = vadd.f32 %v218, %v1248
  %v1250 = vpop.f32.mrb[0].mxu0
  %1251 = vmatprep.mubr.bf16.mxu0 0
  %1252 = vmatmul.mubr.bf16.gmra.mrb[0].mxu0 %v796
  %v1253 = vpop.f32.mrb[0].mxu0
  %v1254 = vadd.f32 %v218, %v1253
  %v1255 = vpop.f32.mrb[0].mxu0
  %v1256 = vpop.f32.mrb[0].mxu0
  %v1257 = vadd.f32 %v218, %v1256
  %v1258 = vpop.f32.mrb[0].mxu0
  %1259 = vmatprep.mubr.bf16.mxu0 0
  %1260 = vmatmul.mubr.bf16.gmra.mrb[0].mxu0 %v799
  %v1261 = vpop.f32.mrb[0].mxu0
  %v1262 = vadd.f32 %v218, %v1261
  %v1263 = vpop.f32.mrb[0].mxu0
  %v1264 = vpop.f32.mrb[0].mxu0
  %v1265 = vadd.f32 %v218, %v1264
  %v1266 = vpop.f32.mrb[0].mxu0
  %1267 = vmatprep.mubr.bf16.mxu0 0
  %1268 = vmatmul.mubr.bf16.gmra.mrb[0].mxu0 %v802
  %v1269 = vpop.f32.mrb[0].mxu0
  %v1270 = vadd.f32 %v218, %v1269
  %v1271 = vpop.f32.mrb[0].mxu0
  %v1272 = vpop.f32.mrb[0].mxu0
  %v1273 = vadd.f32 %v218, %v1272
  %v1274 = vpop.f32.mrb[0].mxu0
  %1275 = vmatprep.mubr.bf16.mxu0 0
  %1276 = vmatmul.mubr.bf16.gmra.mrb[0].mxu0 %v805
  %v1277 = vpop.f32.mrb[0].mxu0
  %v1278 = vadd.f32 %v218, %v1277
  %v1279 = vpop.f32.mrb[0].mxu0
  %v1280 = vpop.f32.mrb[0].mxu0
  %v1281 = vadd.f32 %v218, %v1280
  %v1282 = vpop.f32.mrb[0].mxu0
  %1283 = vmatprep.mubr.bf16.mxu0 0
  %1284 = vmatmul.mubr.bf16.gmra.mrb[0].mxu0 %v808
  %v1285 = vpop.f32.mrb[0].mxu0
  %v1286 = vadd.f32 %v218, %v1285
  %v1287 = vpop.f32.mrb[0].mxu0
  %v1288 = vpop.f32.mrb[0].mxu0
  %v1289 = vadd.f32 %v218, %v1288
  %v1290 = vpop.f32.mrb[0].mxu0
  %1291 = vmatprep.mubr.bf16.mxu0 0
  %1292 = vmatmul.mubr.bf16.gmra.mrb[0].mxu0 %v811
  %v1293 = vpop.f32.mrb[0].mxu0
  %v1294 = vadd.f32 %v218, %v1293
  %v1295 = vpop.f32.mrb[0].mxu0
  %v1296 = vpop.f32.mrb[0].mxu0
  %v1297 = vadd.f32 %v218, %v1296
  %v1298 = vpop.f32.mrb[0].mxu0
  %1299 = vmatprep.mubr.bf16.mxu0 0
  %1300 = vmatmul.mubr.bf16.gmra.mrb[0].mxu0 %v814
  %v1301 = vpop.f32.mrb[0].mxu0
  %v1302 = vadd.f32 %v218, %v1301
  %v1303 = vpop.f32.mrb[0].mxu0
  %v1304 = vpop.f32.mrb[0].mxu0
  %v1305 = vadd.f32 %v218, %v1304
  %v1306 = vpop.f32.mrb[0].mxu0
  %1307 = vmatprep.mubr.bf16.mxu0 0
  %1308 = vmatmul.mubr.bf16.gmra.mrb[0].mxu0 %v817
  %v1309 = vpop.f32.mrb[0].mxu0
  %v1310 = vadd.f32 %v218, %v1309
  %v1311 = vpop.f32.mrb[0].mxu0
  %v1312 = vpop.f32.mrb[0].mxu0
  %v1313 = vadd.f32 %v218, %v1312
  %v1314 = vpop.f32.mrb[0].mxu0
  %1315 = vmatprep.mubr.bf16.mxu0 0
  %1316 = vmatmul.mubr.bf16.gmra.mrb[0].mxu0 %v820
  %v1317 = vpop.f32.mrb[0].mxu0
  %v1318 = vadd.f32 %v218, %v1317
  %v1319 = vpop.f32.mrb[0].mxu0
  %v1320 = vpop.f32.mrb[0].mxu0
  %v1321 = vadd.f32 %v218, %v1320
  %v1322 = vpop.f32.mrb[0].mxu0
  %1323 = vmatprep.mubr.bf16.mxu0 0
  %1324 = vmatmul.mubr.bf16.gmra.mrb[0].mxu0 %v823
  %v1325 = vpop.f32.mrb[0].mxu0
  %v1326 = vadd.f32 %v218, %v1325
  %v1327 = vpop.f32.mrb[0].mxu0
  %v1328 = vpop.f32.mrb[0].mxu0
  %v1329 = vadd.f32 %v218, %v1328
  %v1330 = vpop.f32.mrb[0].mxu0
  %1331 = vmatprep.mubr.bf16.mxu0 0
  %1332 = vmatmul.mubr.bf16.gmra.mrb[0].mxu0 %v826
  %v1333 = vpop.f32.mrb[0].mxu0
  %v1334 = vadd.f32 %v218, %v1333
  %v1335 = vpop.f32.mrb[0].mxu0
  %v1336 = vpop.f32.mrb[0].mxu0
  %v1337 = vadd.f32 %v218, %v1336
  %v1338 = vpop.f32.mrb[0].mxu0
  %1339 = vmatprep.mubr.bf16.mxu0 0
  %1340 = vmatmul.mubr.bf16.gmra.mrb[0].mxu0 %v829
  %v1341 = vpop.f32.mrb[0].mxu0
  %v1342 = vadd.f32 %v218, %v1341
  %v1343 = vpop.f32.mrb[0].mxu0
  %v1344 = vpop.f32.mrb[0].mxu0
  %v1345 = vadd.f32 %v218, %v1344
  %v1346 = vpop.f32.mrb[0].mxu0
  %1347 = vmatprep.mubr.bf16.mxu0 0
  %1348 = vmatmul.mubr.bf16.gmra.mrb[0].mxu0 %v832
  %v1349 = vpop.f32.mrb[0].mxu0
  %v1350 = vadd.f32 %v218, %v1349
  %v1351 = vpop.f32.mrb[0].mxu0
  %v1352 = vpop.f32.mrb[0].mxu0
  %v1353 = vadd.f32 %v218, %v1352
  %v1354 = vpop.f32.mrb[0].mxu0
  %1355 = vmatprep.mubr.bf16.mxu0 0
  %1356 = vmatmul.mubr.bf16.gmra.mrb[0].mxu0 %v835
  %v1357 = vpop.f32.mrb[0].mxu0
  %v1358 = vadd.f32 %v218, %v1357
  %v1359 = vpop.f32.mrb[0].mxu0
  %v1360 = vpop.f32.mrb[0].mxu0
  %v1361 = vadd.f32 %v218, %v1360
  %v1362 = vpop.f32.mrb[0].mxu0
  %1363 = vmatprep.mubr.bf16.mxu0 0
  %1364 = vmatmul.mubr.bf16.gmra.mrb[0].mxu0 %v838
  %v1365 = vpop.f32.mrb[0].mxu0
  %v1366 = vadd.f32 %v218, %v1365
  %v1367 = vpop.f32.mrb[0].mxu0
  %v1368 = vpop.f32.mrb[0].mxu0
  %v1369 = vadd.f32 %v218, %v1368
  %v1370 = vpop.f32.mrb[0].mxu0
  %1371 = vmatprep.mubr.bf16.mxu0 0
  %1372 = vmatmul.mubr.bf16.gmra.mrb[0].mxu0 %v841
  %v1373 = vpop.f32.mrb[0].mxu0
  %v1374 = vadd.f32 %v218, %v1373
  %v1375 = vpop.f32.mrb[0].mxu0
  %v1376 = vpop.f32.mrb[0].mxu0
  %v1377 = vadd.f32 %v218, %v1376
  %v1378 = vpop.f32.mrb[0].mxu0
  %1379 = vmatprep.mubr.bf16.mxu0 0
  %1380 = vmatmul.mubr.bf16.gmra.mrb[0].mxu0 %v844
  %v1381 = vpop.f32.mrb[0].mxu0
  %v1382 = vadd.f32 %v218, %v1381
  %v1383 = vpop.f32.mrb[0].mxu0
  %v1384 = vpop.f32.mrb[0].mxu0
  %v1385 = vadd.f32 %v218, %v1384
  %v1386 = vpop.f32.mrb[0].mxu0
  %1387 = vmatprep.mubr.bf16.mxu0 0
  %1388 = vmatmul.mubr.bf16.gmra.mrb[0].mxu0 %v847
  %v1389 = vpop.f32.mrb[0].mxu0
  %v1390 = vadd.f32 %v218, %v1389
  %v1391 = vpop.f32.mrb[0].mxu0
  %v1392 = vpop.f32.mrb[0].mxu0
  %v1393 = vadd.f32 %v218, %v1392
  %v1394 = vpop.f32.mrb[0].mxu0
  %1395 = vmatprep.mubr.bf16.mxu0 0
  %1396 = vmatmul.mubr.bf16.gmra.mrb[0].mxu0 %v850
  %v1397 = vpop.f32.mrb[0].mxu0
  %v1398 = vadd.f32 %v218, %v1397
  %v1399 = vpop.f32.mrb[0].mxu0
  %v1400 = vpop.f32.mrb[0].mxu0
  %v1401 = vadd.f32 %v218, %v1400
  %v1402 = vpop.f32.mrb[0].mxu0
  %1403 = vmatprep.mubr.bf16.mxu0 0
  %1404 = vmatmul.mubr.bf16.gmra.mrb[0].mxu0 %v853
  %v1405 = vpop.f32.mrb[0].mxu0
  %v1406 = vadd.f32 %v218, %v1405
  %v1407 = vpop.f32.mrb[0].mxu0
  %v1408 = vpop.f32.mrb[0].mxu0
  %v1409 = vadd.f32 %v218, %v1408
  %v1410 = vpop.f32.mrb[0].mxu0
  %1411 = vmatprep.mubr.bf16.mxu0 0
  %1412 = vmatmul.mubr.bf16.gmra.mrb[0].mxu0 %v856
  %v1413 = vpop.f32.mrb[0].mxu0
  %v1414 = vadd.f32 %v218, %v1413
  %v1415 = vpop.f32.mrb[0].mxu0
  %v1416 = vpop.f32.mrb[0].mxu0
  %v1417 = vadd.f32 %v218, %v1416
  %v1418 = vpop.f32.mrb[0].mxu0
  %1419 = vmatprep.mubr.bf16.mxu0 0
  %1420 = vmatmul.mubr.bf16.gmra.mrb[0].mxu0 %v859
  %v1421 = vpop.f32.mrb[0].mxu0
  %v1422 = vadd.f32 %v218, %v1421
  %v1423 = vpop.f32.mrb[0].mxu0
  %v1424 = vpop.f32.mrb[0].mxu0
  %v1425 = vadd.f32 %v218, %v1424
  %v1426 = vpop.f32.mrb[0].mxu0
  %1427 = vmatprep.mubr.bf16.mxu0 0
  %1428 = vmatmul.mubr.bf16.gmra.mrb[0].mxu0 %v862
  %v1429 = vpop.f32.mrb[0].mxu0
  %v1430 = vadd.f32 %v218, %v1429
  %v1431 = vpop.f32.mrb[0].mxu0
  %v1432 = vpop.f32.mrb[0].mxu0
  %v1433 = vadd.f32 %v218, %v1432
  %v1434 = vpop.f32.mrb[0].mxu0
  %1435 = vmatprep.mubr.bf16.mxu0 0
  %1436 = vmatmul.mubr.bf16.gmra.mrb[0].mxu0 %v865
  %v1437 = vpop.f32.mrb[0].mxu0
  %v1438 = vadd.f32 %v218, %v1437
  %v1439 = vpop.f32.mrb[0].mxu0
  %v1440 = vpop.f32.mrb[0].mxu0
  %v1441 = vadd.f32 %v218, %v1440
  %v1442 = vpop.f32.mrb[0].mxu0
  %1443 = vmatprep.mubr.bf16.mxu0 0
  %1444 = vmatmul.mubr.bf16.gmra.mrb[0].mxu0 %v868
  %v1445 = vpop.f32.mrb[0].mxu0
  %v1446 = vadd.f32 %v218, %v1445
  %v1447 = vpop.f32.mrb[0].mxu0
  %v1448 = vpop.f32.mrb[0].mxu0
  %v1449 = vadd.f32 %v218, %v1448
  %v1450 = vpop.f32.mrb[0].mxu0
  %1451 = vmatprep.mubr.bf16.mxu0 0
  %1452 = vmatmul.mubr.bf16.gmra.mrb[0].mxu0 %v871
  %v1453 = vpop.f32.mrb[0].mxu0
  %v1454 = vadd.f32 %v218, %v1453
  %v1455 = vpop.f32.mrb[0].mxu0
  %v1456 = vpop.f32.mrb[0].mxu0
  %v1457 = vadd.f32 %v218, %v1456
  %v1458 = vpop.f32.mrb[0].mxu0
  %1459 = vmatprep.mubr.bf16.mxu0 0
  %1460 = vmatmul.mubr.bf16.gmra.mrb[0].mxu0 %v874
  %v1461 = vpop.f32.mrb[0].mxu0
  %v1462 = vadd.f32 %v218, %v1461
  %v1463 = vpop.f32.mrb[0].mxu0
  %v1464 = vpop.f32.mrb[0].mxu0
  %v1465 = vadd.f32 %v218, %v1464
  %v1466 = vpop.f32.mrb[0].mxu0
  %1467 = vmatprep.mubr.bf16.mxu0 0
  %1468 = vmatmul.mubr.bf16.gmra.mrb[0].mxu0 %v877
  %v1469 = vpop.f32.mrb[0].mxu0
  %v1470 = vadd.f32 %v218, %v1469
  %v1471 = vpop.f32.mrb[0].mxu0
  %v1472 = vpop.f32.mrb[0].mxu0
  %v1473 = vadd.f32 %v218, %v1472
  %v1474 = vpop.f32.mrb[0].mxu0
  %1475 = vmatprep.mubr.bf16.mxu0 0
  %1476 = vmatmul.mubr.bf16.gmra.mrb[0].mxu0 %v880
  %v1477 = vpop.f32.mrb[0].mxu0
  %v1478 = vadd.f32 %v218, %v1477
  %v1479 = vpop.f32.mrb[0].mxu0
  %v1480 = vpop.f32.mrb[0].mxu0
  %v1481 = vadd.f32 %v218, %v1480
  %v1482 = vpop.f32.mrb[0].mxu0
  %1483 = vmatprep.mubr.bf16.mxu0 0
  %1484 = vmatmul.mubr.bf16.gmra.mrb[0].mxu0 %v883
  %v1485 = vpop.f32.mrb[0].mxu0
  %v1486 = vadd.f32 %v218, %v1485
  %v1487 = vpop.f32.mrb[0].mxu0
  %v1488 = vpop.f32.mrb[0].mxu0
  %v1489 = vadd.f32 %v218, %v1488
  %v1490 = vpop.f32.mrb[0].mxu0
  %1491 = vmatprep.mubr.bf16.mxu0 0
  %1492 = vmatmul.mubr.bf16.gmra.mrb[0].mxu0 %v886
  %v1493 = vpop.f32.mrb[0].mxu0
  %v1494 = vadd.f32 %v218, %v1493
  %v1495 = vpop.f32.mrb[0].mxu0
  %v1496 = vpop.f32.mrb[0].mxu0
  %v1497 = vadd.f32 %v218, %v1496
  %v1498 = vpop.f32.mrb[0].mxu0
  %1499 = vmatprep.mubr.bf16.mxu0 0
  %1500 = vmatmul.mubr.bf16.gmra.mrb[0].mxu0 %v889
  %v1501 = vpop.f32.mrb[0].mxu0
  %v1502 = vadd.f32 %v218, %v1501
  %v1503 = vpop.f32.mrb[0].mxu0
  %v1504 = vpop.f32.mrb[0].mxu0
  %v1505 = vadd.f32 %v218, %v1504
  %v1506 = vpop.f32.mrb[0].mxu0
  %1507 = vmatprep.mubr.bf16.mxu0 0
  %1508 = vmatmul.mubr.bf16.gmra.mrb[0].mxu0 %v892
  %v1509 = vpop.f32.mrb[0].mxu0
  %v1510 = vadd.f32 %v218, %v1509
  %v1511 = vpop.f32.mrb[0].mxu0
  %v1512 = vpop.f32.mrb[0].mxu0
  %v1513 = vadd.f32 %v218, %v1512
  %v1514 = vpop.f32.mrb[0].mxu0
  %1515 = vmatprep.mubr.bf16.mxu0 0
  %1516 = vmatmul.mubr.bf16.gmra.mrb[0].mxu0 %v895
  %v1517 = vpop.f32.mrb[0].mxu0
  %v1518 = vadd.f32 %v218, %v1517
  %v1519 = vpop.f32.mrb[0].mxu0
  %v1520 = vpop.f32.mrb[0].mxu0
  %v1521 = vadd.f32 %v218, %v1520
  %v1522 = vpop.f32.mrb[0].mxu0
  %1523 = vmatprep.mubr.bf16.mxu0 0
  %1524 = vmatmul.mubr.bf16.gmra.mrb[0].mxu0 %v898
  %v1525 = vpop.f32.mrb[0].mxu0
  %v1526 = vadd.f32 %v218, %v1525
  %v1527 = vpop.f32.mrb[0].mxu0
  %v1528 = vpop.f32.mrb[0].mxu0
  %v1529 = vadd.f32 %v218, %v1528
  %v1530 = vpop.f32.mrb[0].mxu0
  %1531 = vmatprep.mubr.bf16.mxu0 0
  %1532 = vmatmul.mubr.bf16.gmra.mrb[0].mxu0 %v901
  %v1533 = vpop.f32.mrb[0].mxu0
  %v1534 = vadd.f32 %v218, %v1533
  %v1535 = vpop.f32.mrb[0].mxu0
  %v1536 = vpop.f32.mrb[0].mxu0
  %v1537 = vadd.f32 %v218, %v1536
  %v1538 = vpop.f32.mrb[0].mxu0
  %1539 = vmatprep.mubr.bf16.mxu0 0
  %1540 = vmatmul.mubr.bf16.gmra.mrb[0].mxu0 %v904
  %v1541 = vpop.f32.mrb[0].mxu0
  %v1542 = vadd.f32 %v218, %v1541
  %v1543 = vpop.f32.mrb[0].mxu0
  %v1544 = vpop.f32.mrb[0].mxu0
  %v1545 = vadd.f32 %v218, %v1544
  %v1546 = vpop.f32.mrb[0].mxu0
  %1547 = vmatprep.mubr.bf16.mxu0 0
  %1548 = vmatmul.mubr.bf16.gmra.mrb[0].mxu0 %v907
  %v1549 = vpop.f32.mrb[0].mxu0
  %v1550 = vadd.f32 %v218, %v1549
  %v1551 = vpop.f32.mrb[0].mxu0
  %v1552 = vpop.f32.mrb[0].mxu0
  %v1553 = vadd.f32 %v218, %v1552
  %v1554 = vpop.f32.mrb[0].mxu0
  %1555 = vmatprep.mubr.bf16.mxu0 0
  %1556 = vmatmul.mubr.bf16.gmra.mrb[0].mxu0 %v910
  %v1557 = vpop.f32.mrb[0].mxu0
  %v1558 = vadd.f32 %v218, %v1557
  %v1559 = vpop.f32.mrb[0].mxu0
  %v1560 = vpop.f32.mrb[0].mxu0
  %v1561 = vadd.f32 %v218, %v1560
  %v1562 = vpop.f32.mrb[0].mxu0
  %1563 = vmatprep.mubr.bf16.mxu0 0
  %1564 = vmatmul.mubr.bf16.gmra.mrb[0].mxu0 %v913
  %v1565 = vpop.f32.mrb[0].mxu0
  %v1566 = vadd.f32 %v218, %v1565
  %v1567 = vpop.f32.mrb[0].mxu0
  %v1568 = vpop.f32.mrb[0].mxu0
  %v1569 = vadd.f32 %v218, %v1568
  %v1570 = vpop.f32.mrb[0].mxu0
  %1571 = vmatprep.mubr.bf16.mxu0 0
  %1572 = vmatmul.mubr.bf16.gmra.mrb[0].mxu0 %v916
  %v1573 = vpop.f32.mrb[0].mxu0
  %v1574 = vadd.f32 %v218, %v1573
  %v1575 = vpop.f32.mrb[0].mxu0
  %v1576 = vpop.f32.mrb[0].mxu0
  %v1577 = vadd.f32 %v218, %v1576
  %v1578 = vpop.f32.mrb[0].mxu0
  %1579 = vmatprep.mubr.bf16.mxu0 0
  %1580 = vmatmul.mubr.bf16.gmra.mrb[0].mxu0 %v919
  %v1581 = vpop.f32.mrb[0].mxu0
  %v1582 = vadd.f32 %v218, %v1581
  %v1583 = vpop.f32.mrb[0].mxu0
  %v1584 = vpop.f32.mrb[0].mxu0
  %v1585 = vadd.f32 %v218, %v1584
  %v1586 = vpop.f32.mrb[0].mxu0
  %1587 = vmatprep.mubr.bf16.mxu0 0
  %1588 = vmatmul.mubr.bf16.gmra.mrb[0].mxu0 %v922
  %v1589 = vpop.f32.mrb[0].mxu0
  %v1590 = vadd.f32 %v218, %v1589
  %v1591 = vpop.f32.mrb[0].mxu0
  %v1592 = vpop.f32.mrb[0].mxu0
  %v1593 = vadd.f32 %v218, %v1592
  %v1594 = vpop.f32.mrb[0].mxu0
  %1595 = vmatprep.mubr.bf16.mxu0 0
  %1596 = vmatmul.mubr.bf16.gmra.mrb[0].mxu0 %v925
  %v1597 = vpop.f32.mrb[0].mxu0
  %v1598 = vadd.f32 %v218, %v1597
  %v1599 = vpop.f32.mrb[0].mxu0
  %v1600 = vpop.f32.mrb[0].mxu0
  %v1601 = vadd.f32 %v218, %v1600
  %v1602 = vpop.f32.mrb[0].mxu0
  %1603 = vmatprep.mubr.bf16.mxu0 0
  %1604 = vmatmul.mubr.bf16.gmra.mrb[0].mxu0 %v928
  %v1605 = vpop.f32.mrb[0].mxu0
  %v1606 = vadd.f32 %v218, %v1605
  %v1607 = vpop.f32.mrb[0].mxu0
  %v1608 = vpop.f32.mrb[0].mxu0
  %v1609 = vadd.f32 %v218, %v1608
  %v1610 = vpop.f32.mrb[0].mxu0
  %1611 = vmatprep.mubr.bf16.mxu0 0
  %1612 = vmatmul.mubr.bf16.gmra.mrb[0].mxu0 %v931
  %v1613 = vpop.f32.mrb[0].mxu0
  %v1614 = vadd.f32 %v218, %v1613
  %v1615 = vpop.f32.mrb[0].mxu0
  %v1616 = vpop.f32.mrb[0].mxu0
  %v1617 = vadd.f32 %v218, %v1616
  %v1618 = vpop.f32.mrb[0].mxu0
  %1619 = vmatprep.mubr.bf16.mxu0 0
  %1620 = vmatmul.mubr.bf16.gmra.mrb[0].mxu0 %v934
  %v1621 = vpop.f32.mrb[0].mxu0
  %v1622 = vadd.f32 %v218, %v1621
  %v1623 = vpop.f32.mrb[0].mxu0
  %v1624 = vpop.f32.mrb[0].mxu0
  %v1625 = vadd.f32 %v218, %v1624
  %v1626 = vpop.f32.mrb[0].mxu0
  %1627 = vmatprep.mubr.bf16.mxu0 0
  %1628 = vmatmul.mubr.bf16.gmra.mrb[0].mxu0 %v937
  %v1629 = vpop.f32.mrb[0].mxu0
  %v1630 = vadd.f32 %v218, %v1629
  %v1631 = vpop.f32.mrb[0].mxu0
  %v1632 = vpop.f32.mrb[0].mxu0
  %v1633 = vadd.f32 %v218, %v1632
  %v1634 = vpop.f32.mrb[0].mxu0
  %1635 = vmatprep.mubr.bf16.mxu0 0
  %1636 = vmatmul.mubr.bf16.gmra.mrb[0].mxu0 %v940
  %v1637 = vpop.f32.mrb[0].mxu0
  %v1638 = vadd.f32 %v218, %v1637
  %v1639 = vpop.f32.mrb[0].mxu0
  %v1640 = vpop.f32.mrb[0].mxu0
  %v1641 = vadd.f32 %v218, %v1640
  %v1642 = vpop.f32.mrb[0].mxu0
  %1643 = vmatprep.mubr.bf16.mxu0 0
  %1644 = vmatmul.mubr.bf16.gmra.mrb[0].mxu0 %v943
  %v1645 = vpop.f32.mrb[0].mxu0
  %v1646 = vadd.f32 %v218, %v1645
  %v1647 = vpop.f32.mrb[0].mxu0
  %v1648 = vpop.f32.mrb[0].mxu0
  %v1649 = vadd.f32 %v218, %v1648
  %v1650 = vpop.f32.mrb[0].mxu0
  %1651 = vmatprep.mubr.bf16.mxu0 0
  %1652 = vmatmul.mubr.bf16.gmra.mrb[0].mxu0 %v946
  %v1653 = vpop.f32.mrb[0].mxu0
  %v1654 = vadd.f32 %v218, %v1653
  %v1655 = vpop.f32.mrb[0].mxu0
  %v1656 = vpop.f32.mrb[0].mxu0
  %v1657 = vadd.f32 %v218, %v1656
  %v1658 = vpop.f32.mrb[0].mxu0
  %1659 = vmatprep.mubr.bf16.mxu0 0
  %1660 = vmatmul.mubr.bf16.gmra.mrb[0].mxu0 %v949
  %v1661 = vpop.f32.mrb[0].mxu0
  %v1662 = vadd.f32 %v218, %v1661
  %v1663 = vpop.f32.mrb[0].mxu0
  %v1664 = vpop.f32.mrb[0].mxu0
  %v1665 = vadd.f32 %v218, %v1664
  %v1666 = vpop.f32.mrb[0].mxu0
  %1667 = vmatprep.mubr.bf16.mxu0 0
  %1668 = vmatmul.mubr.bf16.gmra.mrb[0].mxu0 %v952
  %v1669 = vpop.f32.mrb[0].mxu0
  %v1670 = vadd.f32 %v218, %v1669
  %v1671 = vpop.f32.mrb[0].mxu0
  %v1672 = vpop.f32.mrb[0].mxu0
  %v1673 = vadd.f32 %v218, %v1672
  %v1674 = vpop.f32.mrb[0].mxu0
  %1675 = vmatprep.mubr.bf16.mxu0 0
  %1676 = vmatmul.mubr.bf16.gmra.mrb[0].mxu0 %v955
  %v1677 = vpop.f32.mrb[0].mxu0
  %v1678 = vadd.f32 %v218, %v1677
  %v1679 = vpop.f32.mrb[0].mxu0
  %v1680 = vpop.f32.mrb[0].mxu0
  %v1681 = vadd.f32 %v218, %v1680
  %v1682 = vpop.f32.mrb[0].mxu0
  %1683 = vmatprep.mubr.bf16.mxu0 0
  %1684 = vmatmul.mubr.bf16.gmra.mrb[0].mxu0 %v958
  %v1685 = vpop.f32.mrb[0].mxu0
  %v1686 = vadd.f32 %v218, %v1685
  %v1687 = vpop.f32.mrb[0].mxu0
  %v1688 = vpop.f32.mrb[0].mxu0
  %v1689 = vadd.f32 %v218, %v1688
  %v1690 = vpop.f32.mrb[0].mxu0
  %1691 = vmatprep.mubr.bf16.mxu0 0
  %1692 = vmatmul.mubr.bf16.gmra.mrb[0].mxu0 %v961
  %v1693 = vpop.f32.mrb[0].mxu0
  %v1694 = vadd.f32 %v218, %v1693
  %v1695 = vpop.f32.mrb[0].mxu0
  %v1696 = vpop.f32.mrb[0].mxu0
  %v1697 = vadd.f32 %v218, %v1696
  %v1698 = vpop.f32.mrb[0].mxu0
  %1699 = vmatprep.mubr.bf16.mxu0 0
  %1700 = vmatmul.mubr.bf16.gmra.mrb[0].mxu0 %v964
  %v1701 = vpop.f32.mrb[0].mxu0
  %v1702 = vadd.f32 %v218, %v1701
  %v1703 = vpop.f32.mrb[0].mxu0
  %v1704 = vpop.f32.mrb[0].mxu0
  %v1705 = vadd.f32 %v218, %v1704
  %v1706 = vpop.f32.mrb[0].mxu0
  %1707 = vmatprep.mubr.bf16.mxu0 0
  %1708 = vmatmul.mubr.bf16.gmra.mrb[0].mxu0 %v967
  %v1709 = vpop.f32.mrb[0].mxu0
  %v1710 = vadd.f32 %v218, %v1709
  %v1711 = vpop.f32.mrb[0].mxu0
  %v1712 = vpop.f32.mrb[0].mxu0
  %v1713 = vadd.f32 %v218, %v1712
  %v1714 = vpop.f32.mrb[0].mxu0
  %1715 = vmatprep.mubr.bf16.mxu0 0
  %1716 = vmatmul.mubr.bf16.gmra.mrb[0].mxu0 %v970
  %v1717 = vpop.f32.mrb[0].mxu0
  %v1718 = vadd.f32 %v218, %v1717
  %v1719 = vpop.f32.mrb[0].mxu0
  %v1720 = vpop.f32.mrb[0].mxu0
  %v1721 = vadd.f32 %v218, %v1720
  %v1722 = vpop.f32.mrb[0].mxu0
  %1723 = vmatprep.mubr.bf16.mxu0 0
  %1724 = vmatmul.mubr.bf16.gmra.mrb[0].mxu0 %v973
  %v1725 = vpop.f32.mrb[0].mxu0
  %v1726 = vadd.f32 %v218, %v1725
  %v1727 = vpop.f32.mrb[0].mxu0
  %v1728 = vpop.f32.mrb[0].mxu0
  %v1729 = vadd.f32 %v218, %v1728
  %v1730 = vpop.f32.mrb[0].mxu0
  %1731 = vmatprep.mubr.bf16.mxu0 0
  %1732 = vmatmul.mubr.bf16.gmra.mrb[0].mxu0 %v976
  %v1733 = vpop.f32.mrb[0].mxu0
  %v1734 = vadd.f32 %v218, %v1733
  %v1735 = vpop.f32.mrb[0].mxu0
  %v1736 = vpop.f32.mrb[0].mxu0
  %v1737 = vadd.f32 %v218, %v1736
  %v1738 = vpop.f32.mrb[0].mxu0
  %1739 = vmatprep.mubr.bf16.mxu0 0
  %1740 = vmatmul.mubr.bf16.gmra.mrb[0].mxu0 %v979
  %v1741 = vpop.f32.mrb[0].mxu0
  %v1742 = vadd.f32 %v218, %v1741
  %v1743 = vpop.f32.mrb[0].mxu0
  %v1744 = vpop.f32.mrb[0].mxu0
  %v1745 = vadd.f32 %v218, %v1744
  %v1746 = vpop.f32.mrb[0].mxu0
  %1747 = vmatprep.mubr.bf16.mxu0 0
  %1748 = vmatmul.mubr.bf16.gmra.mrb[0].mxu0 %v982
  %v1749 = vpop.f32.mrb[0].mxu0
  %v1750 = vadd.f32 %v218, %v1749
  %v1751 = vpop.f32.mrb[0].mxu0
  %v1752 = vpop.f32.mrb[0].mxu0
  %v1753 = vadd.f32 %v218, %v1752
  %v1754 = vpop.f32.mrb[0].mxu0
  %1755 = vmatprep.mubr.bf16.mxu0 0
  %1756 = vmatmul.mubr.bf16.gmra.mrb[0].mxu0 %v985
  %v1757 = vpop.f32.mrb[0].mxu0
  %v1758 = vadd.f32 %v218, %v1757
  %v1759 = vpop.f32.mrb[0].mxu0
  %v1760 = vpop.f32.mrb[0].mxu0
  %v1761 = vadd.f32 %v218, %v1760
  %v1762 = vpop.f32.mrb[0].mxu0
  %1763 = vmatprep.mubr.bf16.mxu0 0
  %1764 = vmatmul.mubr.bf16.gmra.mrb[0].mxu0 %v988
  %v1765 = vpop.f32.mrb[0].mxu0
  %v1766 = vadd.f32 %v218, %v1765
  %v1767 = vpop.f32.mrb[0].mxu0
  %v1768 = vpop.f32.mrb[0].mxu0
  %v1769 = vadd.f32 %v218, %v1768
  %v1770 = vpop.f32.mrb[0].mxu0
  %1771 = vmatprep.mubr.bf16.mxu0 0
  %1772 = vmatmul.mubr.bf16.gmra.mrb[0].mxu0 %v991
  %v1773 = vpop.f32.mrb[0].mxu0
  %v1774 = vadd.f32 %v218, %v1773
  %v1775 = vpop.f32.mrb[0].mxu0
  %v1776 = vpop.f32.mrb[0].mxu0
  %v1777 = vadd.f32 %v218, %v1776
  %v1778 = vpop.f32.mrb[0].mxu0
  %1779 = vmatprep.mubr.bf16.mxu0 0
  %1780 = vmatmul.mubr.bf16.gmra.mrb[0].mxu0 %v994
  %v1781 = vpop.f32.mrb[0].mxu0
  %v1782 = vadd.f32 %v218, %v1781
  %v1783 = vpop.f32.mrb[0].mxu0
  %v1784 = vpop.f32.mrb[0].mxu0
  %v1785 = vadd.f32 %v218, %v1784
  %v1786 = vpop.f32.mrb[0].mxu0
  %1787 = vmatprep.mubr.bf16.mxu0 0
  %1788 = vmatmul.mubr.bf16.gmra.mrb[0].mxu0 %v997
  %v1789 = vpop.f32.mrb[0].mxu0
  %v1790 = vadd.f32 %v218, %v1789
  %v1791 = vpop.f32.mrb[0].mxu0
  %v1792 = vpop.f32.mrb[0].mxu0
  %v1793 = vadd.f32 %v218, %v1792
  %v1794 = vpop.f32.mrb[0].mxu0
  %1795 = vmatprep.mubr.bf16.mxu0 0
  %1796 = vmatmul.mubr.bf16.gmra.mrb[0].mxu0 %v1000
  %v1797 = vpop.f32.mrb[0].mxu0
  %v1798 = vadd.f32 %v218, %v1797
  %v1799 = vpop.f32.mrb[0].mxu0
  %v1800 = vpop.f32.mrb[0].mxu0
  %v1801 = vadd.f32 %v218, %v1800
  %v1802 = vpop.f32.mrb[0].mxu0
  %1803 = vmatprep.mubr.bf16.mxu0 0
  %1804 = vmatmul.mubr.bf16.gmra.mrb[0].mxu0 %v1003
  %v1805 = vpop.f32.mrb[0].mxu0
  %v1806 = vadd.f32 %v218, %v1805
  %v1807 = vpop.f32.mrb[0].mxu0
  %v1808 = vpop.f32.mrb[0].mxu0
  %v1809 = vadd.f32 %v218, %v1808
  %v1810 = vpop.f32.mrb[0].mxu0
  %1811 = vmatprep.mubr.bf16.mxu0 0
  %1812 = vmatmul.mubr.bf16.gmra.mrb[0].mxu0 %v1006
  %v1813 = vpop.f32.mrb[0].mxu0
  %v1814 = vadd.f32 %v218, %v1813
  %v1815 = vpop.f32.mrb[0].mxu0
  %v1816 = vpop.f32.mrb[0].mxu0
  %v1817 = vadd.f32 %v218, %v1816
  %v1818 = vpop.f32.mrb[0].mxu0
  %1819 = vmatprep.mubr.bf16.mxu0 0
  %1820 = vmatmul.mubr.bf16.gmra.mrb[0].mxu0 %v1009
  %v1821 = vpop.f32.mrb[0].mxu0
  %v1822 = vadd.f32 %v218, %v1821
  %v1823 = vpop.f32.mrb[0].mxu0
  %v1824 = vpop.f32.mrb[0].mxu0
  %v1825 = vadd.f32 %v218, %v1824
  %v1826 = vpop.f32.mrb[0].mxu0
  %1827 = vdwg.mxu0
  %1828 = vst [vmem:[%s3] sm:$0xff] %v1046
  %1829 = vst [vmem:[%s3 + $0x8] sm:$0xff] %v1049
  %1830 = vst [vmem:[%s3 + $0x10] sm:$0xff] %v1054
  %1831 = vst [vmem:[%s3 + $0x18] sm:$0xff] %v1057
  %1832 = vst [vmem:[%s3 + $0x20] sm:$0xff] %v1062
  %1833 = vst [vmem:[%s3 + $0x28] sm:$0xff] %v1065
  %1834 = vst [vmem:[%s3 + $0x30] sm:$0xff] %v1070
  %1835 = vst [vmem:[%s3 + $0x38] sm:$0xff] %v1073
  %1836 = vst [vmem:[%s3 + $0x40] sm:$0xff] %v1078
  %1837 = vst [vmem:[%s3 + $0x48] sm:$0xff] %v1081
  %1838 = vst [vmem:[%s3 + $0x50] sm:$0xff] %v1086
  %1839 = vst [vmem:[%s3 + $0x58] sm:$0xff] %v1089
  %1840 = vst [vmem:[%s3 + $0x60] sm:$0xff] %v1094
  %1841 = vst [vmem:[%s3 + $0x68] sm:$0xff] %v1097
  %1842 = vst [vmem:[%s3 + $0x70] sm:$0xff] %v1102
  %1843 = vst [vmem:[%s3 + $0x78] sm:$0xff] %v1105
  %1844 = vst [vmem:[%s3 + $0x80] sm:$0xff] %v1110
  %1845 = vst [vmem:[%s3 + $0x88] sm:$0xff] %v1113
  %1846 = vst [vmem:[%s3 + $0x90] sm:$0xff] %v1118
  %1847 = vst [vmem:[%s3 + $0x98] sm:$0xff] %v1121
  %1848 = vst [vmem:[%s3 + $0xa0] sm:$0xff] %v1126
  %1849 = vst [vmem:[%s3 + $0xa8] sm:$0xff] %v1129
  %1850 = vst [vmem:[%s3 + $0xb0] sm:$0xff] %v1134
  %1851 = vst [vmem:[%s3 + $0xb8] sm:$0xff] %v1137
  %1852 = vst [vmem:[%s3 + $0xc0] sm:$0xff] %v1142
  %1853 = vst [vmem:[%s3 + $0xc8] sm:$0xff] %v1145
  %1854 = vst [vmem:[%s3 + $0xd0] sm:$0xff] %v1150
  %1855 = vst [vmem:[%s3 + $0xd8] sm:$0xff] %v1153
  %1856 = vst [vmem:[%s3 + $0xe0] sm:$0xff] %v1158
  %1857 = vst [vmem:[%s3 + $0xe8] sm:$0xff] %v1161
  %1858 = vst [vmem:[%s3 + $0xf0] sm:$0xff] %v1166
  %1859 = vst [vmem:[%s3 + $0xf8] sm:$0xff] %v1169
  %1860 = vst [vmem:[%s3 + $0x100] sm:$0xff] %v1174
  %1861 = vst [vmem:[%s3 + $0x108] sm:$0xff] %v1177
  %1862 = vst [vmem:[%s3 + $0x110] sm:$0xff] %v1182
  %1863 = vst [vmem:[%s3 + $0x118] sm:$0xff] %v1185
  %1864 = vst [vmem:[%s3 + $0x120] sm:$0xff] %v1190
  %1865 = vst [vmem:[%s3 + $0x128] sm:$0xff] %v1193
  %1866 = vst [vmem:[%s3 + $0x130] sm:$0xff] %v1198
  %1867 = vst [vmem:[%s3 + $0x138] sm:$0xff] %v1201
  %1868 = vst [vmem:[%s3 + $0x140] sm:$0xff] %v1206
  %1869 = vst [vmem:[%s3 + $0x148] sm:$0xff] %v1209
  %1870 = vst [vmem:[%s3 + $0x150] sm:$0xff] %v1214
  %1871 = vst [vmem:[%s3 + $0x158] sm:$0xff] %v1217
  %1872 = vst [vmem:[%s3 + $0x160] sm:$0xff] %v1222
  %1873 = vst [vmem:[%s3 + $0x168] sm:$0xff] %v1225
  %1874 = vst [vmem:[%s3 + $0x170] sm:$0xff] %v1230
  %1875 = vst [vmem:[%s3 + $0x178] sm:$0xff] %v1233
  %1876 = vst [vmem:[%s3 + $0x180] sm:$0xff] %v1238
  %1877 = vst [vmem:[%s3 + $0x188] sm:$0xff] %v1241
  %1878 = vst [vmem:[%s3 + $0x190] sm:$0xff] %v1246
  %1879 = vst [vmem:[%s3 + $0x198] sm:$0xff] %v1249
  %1880 = vst [vmem:[%s3 + $0x1a0] sm:$0xff] %v1254
  %1881 = vst [vmem:[%s3 + $0x1a8] sm:$0xff] %v1257
  %1882 = vst [vmem:[%s3 + $0x1b0] sm:$0xff] %v1262
  %1883 = vst [vmem:[%s3 + $0x1b8] sm:$0xff] %v1265
  %1884 = vst [vmem:[%s3 + $0x1c0] sm:$0xff] %v1270
  %1885 = vst [vmem:[%s3 + $0x1c8] sm:$0xff] %v1273
  %1886 = vst [vmem:[%s3 + $0x1d0] sm:$0xff] %v1278
  %1887 = vst [vmem:[%s3 + $0x1d8] sm:$0xff] %v1281
  %1888 = vst [vmem:[%s3 + $0x1e0] sm:$0xff] %v1286
  %1889 = vst [vmem:[%s3 + $0x1e8] sm:$0xff] %v1289
  %1890 = vst [vmem:[%s3 + $0x1f0] sm:$0xff] %v1294
  %1891 = vst [vmem:[%s3 + $0x1f8] sm:$0xff] %v1297
  %1892 = vst [vmem:[%s3 + $0x200] sm:$0xff] %v1302
  %1893 = vst [vmem:[%s3 + $0x208] sm:$0xff] %v1305
  %1894 = vst [vmem:[%s3 + $0x210] sm:$0xff] %v1310
  %1895 = vst [vmem:[%s3 + $0x218] sm:$0xff] %v1313
  %1896 = vst [vmem:[%s3 + $0x220] sm:$0xff] %v1318
  %1897 = vst [vmem:[%s3 + $0x228] sm:$0xff] %v1321
  %1898 = vst [vmem:[%s3 + $0x230] sm:$0xff] %v1326
  %1899 = vst [vmem:[%s3 + $0x238] sm:$0xff] %v1329
  %1900 = vst [vmem:[%s3 + $0x240] sm:$0xff] %v1334
  %1901 = vst [vmem:[%s3 + $0x248] sm:$0xff] %v1337
  %1902 = vst [vmem:[%s3 + $0x250] sm:$0xff] %v1342
  %1903 = vst [vmem:[%s3 + $0x258] sm:$0xff] %v1345
  %1904 = vst [vmem:[%s3 + $0x260] sm:$0xff] %v1350
  %1905 = vst [vmem:[%s3 + $0x268] sm:$0xff] %v1353
  %1906 = vst [vmem:[%s3 + $0x270] sm:$0xff] %v1358
  %1907 = vst [vmem:[%s3 + $0x278] sm:$0xff] %v1361
  %1908 = vst [vmem:[%s3 + $0x280] sm:$0xff] %v1366
  %1909 = vst [vmem:[%s3 + $0x288] sm:$0xff] %v1369
  %1910 = vst [vmem:[%s3 + $0x290] sm:$0xff] %v1374
  %1911 = vst [vmem:[%s3 + $0x298] sm:$0xff] %v1377
  %1912 = vst [vmem:[%s3 + $0x2a0] sm:$0xff] %v1382
  %1913 = vst [vmem:[%s3 + $0x2a8] sm:$0xff] %v1385
  %1914 = vst [vmem:[%s3 + $0x2b0] sm:$0xff] %v1390
  %1915 = vst [vmem:[%s3 + $0x2b8] sm:$0xff] %v1393
  %1916 = vst [vmem:[%s3 + $0x2c0] sm:$0xff] %v1398
  %1917 = vst [vmem:[%s3 + $0x2c8] sm:$0xff] %v1401
  %1918 = vst [vmem:[%s3 + $0x2d0] sm:$0xff] %v1406
  %1919 = vst [vmem:[%s3 + $0x2d8] sm:$0xff] %v1409
  %1920 = vst [vmem:[%s3 + $0x2e0] sm:$0xff] %v1414
  %1921 = vst [vmem:[%s3 + $0x2e8] sm:$0xff] %v1417
  %1922 = vst [vmem:[%s3 + $0x2f0] sm:$0xff] %v1422
  %1923 = vst [vmem:[%s3 + $0x2f8] sm:$0xff] %v1425
  %1924 = vst [vmem:[%s3 + $0x300] sm:$0xff] %v1430
  %1925 = vst [vmem:[%s3 + $0x308] sm:$0xff] %v1433
  %1926 = vst [vmem:[%s3 + $0x310] sm:$0xff] %v1438
  %1927 = vst [vmem:[%s3 + $0x318] sm:$0xff] %v1441
  %1928 = vst [vmem:[%s3 + $0x320] sm:$0xff] %v1446
  %1929 = vst [vmem:[%s3 + $0x328] sm:$0xff] %v1449
  %1930 = vst [vmem:[%s3 + $0x330] sm:$0xff] %v1454
  %1931 = vst [vmem:[%s3 + $0x338] sm:$0xff] %v1457
  %1932 = vst [vmem:[%s3 + $0x340] sm:$0xff] %v1462
  %1933 = vst [vmem:[%s3 + $0x348] sm:$0xff] %v1465
  %1934 = vst [vmem:[%s3 + $0x350] sm:$0xff] %v1470
  %1935 = vst [vmem:[%s3 + $0x358] sm:$0xff] %v1473
  %1936 = vst [vmem:[%s3 + $0x360] sm:$0xff] %v1478
  %1937 = vst [vmem:[%s3 + $0x368] sm:$0xff] %v1481
  %1938 = vst [vmem:[%s3 + $0x370] sm:$0xff] %v1486
  %1939 = vst [vmem:[%s3 + $0x378] sm:$0xff] %v1489
  %1940 = vst [vmem:[%s3 + $0x380] sm:$0xff] %v1494
  %1941 = vst [vmem:[%s3 + $0x388] sm:$0xff] %v1497
  %1942 = vst [vmem:[%s3 + $0x390] sm:$0xff] %v1502
  %1943 = vst [vmem:[%s3 + $0x398] sm:$0xff] %v1505
  %1944 = vst [vmem:[%s3 + $0x3a0] sm:$0xff] %v1510
  %1945 = vst [vmem:[%s3 + $0x3a8] sm:$0xff] %v1513
  %1946 = vst [vmem:[%s3 + $0x3b0] sm:$0xff] %v1518
  %1947 = vst [vmem:[%s3 + $0x3b8] sm:$0xff] %v1521
  %1948 = vst [vmem:[%s3 + $0x3c0] sm:$0xff] %v1526
  %1949 = vst [vmem:[%s3 + $0x3c8] sm:$0xff] %v1529
  %1950 = vst [vmem:[%s3 + $0x3d0] sm:$0xff] %v1534
  %1951 = vst [vmem:[%s3 + $0x3d8] sm:$0xff] %v1537
  %1952 = vst [vmem:[%s3 + $0x3e0] sm:$0xff] %v1542
  %1953 = vst [vmem:[%s3 + $0x3e8] sm:$0xff] %v1545
  %1954 = vst [vmem:[%s3 + $0x3f0] sm:$0xff] %v1550
  %1955 = vst [vmem:[%s3 + $0x3f8] sm:$0xff] %v1553
  %1956 = vst [vmem:[%s3 + $0x400] sm:$0xff] %v1558
  %1957 = vst [vmem:[%s3 + $0x408] sm:$0xff] %v1561
  %1958 = vst [vmem:[%s3 + $0x410] sm:$0xff] %v1566
  %1959 = vst [vmem:[%s3 + $0x418] sm:$0xff] %v1569
  %1960 = vst [vmem:[%s3 + $0x420] sm:$0xff] %v1574
  %1961 = vst [vmem:[%s3 + $0x428] sm:$0xff] %v1577
  %1962 = vst [vmem:[%s3 + $0x430] sm:$0xff] %v1582
  %1963 = vst [vmem:[%s3 + $0x438] sm:$0xff] %v1585
  %1964 = vst [vmem:[%s3 + $0x440] sm:$0xff] %v1590
  %1965 = vst [vmem:[%s3 + $0x448] sm:$0xff] %v1593
  %1966 = vst [vmem:[%s3 + $0x450] sm:$0xff] %v1598
  %1967 = vst [vmem:[%s3 + $0x458] sm:$0xff] %v1601
  %1968 = vst [vmem:[%s3 + $0x460] sm:$0xff] %v1606
  %1969 = vst [vmem:[%s3 + $0x468] sm:$0xff] %v1609
  %1970 = vst [vmem:[%s3 + $0x470] sm:$0xff] %v1614
  %1971 = vst [vmem:[%s3 + $0x478] sm:$0xff] %v1617
  %1972 = vst [vmem:[%s3 + $0x480] sm:$0xff] %v1622
  %1973 = vst [vmem:[%s3 + $0x488] sm:$0xff] %v1625
  %1974 = vst [vmem:[%s3 + $0x490] sm:$0xff] %v1630
  %1975 = vst [vmem:[%s3 + $0x498] sm:$0xff] %v1633
  %1976 = vst [vmem:[%s3 + $0x4a0] sm:$0xff] %v1638
  %1977 = vst [vmem:[%s3 + $0x4a8] sm:$0xff] %v1641
  %1978 = vst [vmem:[%s3 + $0x4b0] sm:$0xff] %v1646
  %1979 = vst [vmem:[%s3 + $0x4b8] sm:$0xff] %v1649
  %1980 = vst [vmem:[%s3 + $0x4c0] sm:$0xff] %v1654
  %1981 = vst [vmem:[%s3 + $0x4c8] sm:$0xff] %v1657
  %1982 = vst [vmem:[%s3 + $0x4d0] sm:$0xff] %v1662
  %1983 = vst [vmem:[%s3 + $0x4d8] sm:$0xff] %v1665
  %1984 = vst [vmem:[%s3 + $0x4e0] sm:$0xff] %v1670
  %1985 = vst [vmem:[%s3 + $0x4e8] sm:$0xff] %v1673
  %1986 = vst [vmem:[%s3 + $0x4f0] sm:$0xff] %v1678
  %1987 = vst [vmem:[%s3 + $0x4f8] sm:$0xff] %v1681
  %1988 = vst [vmem:[%s3 + $0x500] sm:$0xff] %v1686
  %1989 = vst [vmem:[%s3 + $0x508] sm:$0xff] %v1689
  %1990 = vst [vmem:[%s3 + $0x510] sm:$0xff] %v1694
  %1991 = vst [vmem:[%s3 + $0x518] sm:$0xff] %v1697
  %1992 = vst [vmem:[%s3 + $0x520] sm:$0xff] %v1702
  %1993 = vst [vmem:[%s3 + $0x528] sm:$0xff] %v1705
  %1994 = vst [vmem:[%s3 + $0x530] sm:$0xff] %v1710
  %1995 = vst [vmem:[%s3 + $0x538] sm:$0xff] %v1713
  %1996 = vst [vmem:[%s3 + $0x540] sm:$0xff] %v1718
  %1997 = vst [vmem:[%s3 + $0x548] sm:$0xff] %v1721
  %1998 = vst [vmem:[%s3 + $0x550] sm:$0xff] %v1726
  %1999 = vst [vmem:[%s3 + $0x558] sm:$0xff] %v1729
  %2000 = vst [vmem:[%s3 + $0x560] sm:$0xff] %v1734
  %2001 = vst [vmem:[%s3 + $0x568] sm:$0xff] %v1737
  %2002 = vst [vmem:[%s3 + $0x570] sm:$0xff] %v1742
  %2003 = vst [vmem:[%s3 + $0x578] sm:$0xff] %v1745
  %2004 = vst [vmem:[%s3 + $0x580] sm:$0xff] %v1750
  %2005 = vst [vmem:[%s3 + $0x588] sm:$0xff] %v1753
  %2006 = vst [vmem:[%s3 + $0x590] sm:$0xff] %v1758
  %2007 = vst [vmem:[%s3 + $0x598] sm:$0xff] %v1761
  %2008 = vst [vmem:[%s3 + $0x5a0] sm:$0xff] %v1766
  %2009 = vst [vmem:[%s3 + $0x5a8] sm:$0xff] %v1769
  %2010 = vst [vmem:[%s3 + $0x5b0] sm:$0xff] %v1774
  %2011 = vst [vmem:[%s3 + $0x5b8] sm:$0xff] %v1777
  %2012 = vst [vmem:[%s3 + $0x5c0] sm:$0xff] %v1782
  %2013 = vst [vmem:[%s3 + $0x5c8] sm:$0xff] %v1785
  %2014 = vst [vmem:[%s3 + $0x5d0] sm:$0xff] %v1790
  %2015 = vst [vmem:[%s3 + $0x5d8] sm:$0xff] %v1793
  %2016 = vst [vmem:[%s3 + $0x5e0] sm:$0xff] %v1798
  %2017 = vst [vmem:[%s3 + $0x5e8] sm:$0xff] %v1801
  %2018 = vst [vmem:[%s3 + $0x5f0] sm:$0xff] %v1806
  %2019 = vst [vmem:[%s3 + $0x5f8] sm:$0xff] %v1809
  %2020 = vst [vmem:[%s3 + $0x600] sm:$0xff] %v1814
  %2021 = vst [vmem:[%s3 + $0x608] sm:$0xff] %v1817
  %2022 = vst [vmem:[%s3 + $0x610] sm:$0xff] %v1822
  %2023 = vst [vmem:[%s3 + $0x618] sm:$0xff] %v1825
  // Predicated region
  $region14: #{mnist_conv_forward.8} parent=0 // pred_check
    _
  $region15: #{mnist_conv_forward.8} parent=0 // pred_check_branch
    %2025 = sbr.rel (0) target = $region17
  $region16: #{mnist_conv_forward.8} parent=0 // pred_region
    _
  $region17: #{mnist_conv_forward.8} parent=0 // pred_fallthru
    _
  // Predicated region
  $region18: #{mnist_conv_forward.8} parent=0 // pred_check
    _
  $region19: #{mnist_conv_forward.8} parent=0 // pred_check_branch
    %2027 = sbr.rel (0) target = $region21
  $region20: #{mnist_conv_forward.8} parent=0 // pred_region
    _
  $region21: #{mnist_conv_forward.8} parent=0 // pred_fallthru
    _

// kernel: mnist_conv_forward.10
$region0: #{mnist_conv_forward.10}
  #allocation0 [shape = 'u32[]', space=smem, size = 0x4, offset = 0x4, fixed_abs, tag = 'smem constant byte address 0x4 - core index']
  #allocation1 [shape = 'u32[144,128]{1,0:T(1,128)}', space=vmem, size = 0x12000, scoped, tag = 'internal scratch']
  %s0 = inlined_call_operand.vmem [shape: bf16[392,576], index: 0, kind: input, shape index: {}]
  %s1 = inlined_call_operand.vmem [shape: bf16[576,128], index: 1, kind: input, shape index: {}]
  %s2 = inlined_call_operand.vmem [shape: f32[1,128], index: 2, kind: input, shape index: {}]
  %s3 = inlined_call_operand.vmem [shape: f32[392,128], index: 3, kind: output, shape index: {}]
  %s4 = sld [smem:[#allocation0]]
  $region22: #{mnist_conv_forward.10} parent=0
    _
  %s6 = ssub.s32 1, %s4
  %s7 = scalar_select 0, %s6, %s4
  // Predicated region
  $region2: #{mnist_conv_forward.10} parent=0 // pred_check
    _
  $region3: #{mnist_conv_forward.10} parent=0 // pred_check_branch
    %9 = sbr.rel (0) target = $region5
  $region4: #{mnist_conv_forward.10} parent=0 // pred_region
    _
  $region5: #{mnist_conv_forward.10} parent=0 // pred_fallthru
    _
  // Predicated region
  $region6: #{mnist_conv_forward.10} parent=0 // pred_check
    _
  $region7: #{mnist_conv_forward.10} parent=0 // pred_check_branch
    %11 = sbr.rel (0) target = $region9
  $region8: #{mnist_conv_forward.10} parent=0 // pred_region
    _
  $region9: #{mnist_conv_forward.10} parent=0 // pred_fallthru
    _
  // Predicated region
  $region10: #{mnist_conv_forward.10} parent=0 // pred_check
    _
  $region11: #{mnist_conv_forward.10} parent=0 // pred_check_branch
    %13 = sbr.rel (0) target = $region13
  $region12: #{mnist_conv_forward.10} parent=0 // pred_region
    _
  $region13: #{mnist_conv_forward.10} parent=0 // pred_fallthru
    _
  %v15 = vld [vmem:[%s0] sm:$0xff]
  %v16 = vld [vmem:[%s0 + $0x8] sm:$0xff]
  %v17 = vld [vmem:[%s0 + $0x10] sm:$0xf]
  %v18 = vld [vmem:[%s0 + $0x14] sm:$0xff]
  %v19 = vld [vmem:[%s0 + $0x1c] sm:$0xff]
  %v20 = vld [vmem:[%s0 + $0x24] sm:$0xf]
  %v21 = vld [vmem:[%s0 + $0x28] sm:$0xff]
  %v22 = vld [vmem:[%s0 + $0x30] sm:$0xff]
  %v23 = vld [vmem:[%s0 + $0x38] sm:$0xf]
  %v24 = vld [vmem:[%s0 + $0x3c] sm:$0xff]
  %v25 = vld [vmem:[%s0 + $0x44] sm:$0xff]
  %v26 = vld [vmem:[%s0 + $0x4c] sm:$0xf]
  %v27 = vld [vmem:[%s0 + $0x50] sm:$0xff]
  %v28 = vld [vmem:[%s0 + $0x58] sm:$0xff]
  %v29 = vld [vmem:[%s0 + $0x60] sm:$0xf]
  %v30 = vld [vmem:[%s0 + $0x64] sm:$0xff]
  %v31 = vld [vmem:[%s0 + $0x6c] sm:$0xff]
  %v32 = vld [vmem:[%s0 + $0x74] sm:$0xf]
  %v33 = vld [vmem:[%s0 + $0x78] sm:$0xff]
  %v34 = vld [vmem:[%s0 + $0x80] sm:$0xff]
  %v35 = vld [vmem:[%s0 + $0x88] sm:$0xf]
  %v36 = vld [vmem:[%s0 + $0x8c] sm:$0xff]
  %v37 = vld [vmem:[%s0 + $0x94] sm:$0xff]
  %v38 = vld [vmem:[%s0 + $0x9c] sm:$0xf]
  %v39 = vld [vmem:[%s0 + $0xa0] sm:$0xff]
  %v40 = vld [vmem:[%s0 + $0xa8] sm:$0xff]
  %v41 = vld [vmem:[%s0 + $0xb0] sm:$0xf]
  %v42 = vld [vmem:[%s0 + $0xb4] sm:$0xff]
  %v43 = vld [vmem:[%s0 + $0xbc] sm:$0xff]
  %v44 = vld [vmem:[%s0 + $0xc4] sm:$0xf]
  %v45 = vld [vmem:[%s0 + $0xc8] sm:$0xff]
  %v46 = vld [vmem:[%s0 + $0xd0] sm:$0xff]
  %v47 = vld [vmem:[%s0 + $0xd8] sm:$0xf]
  %v48 = vld [vmem:[%s0 + $0xdc] sm:$0xff]
  %v49 = vld [vmem:[%s0 + $0xe4] sm:$0xff]
  %v50 = vld [vmem:[%s0 + $0xec] sm:$0xf]
  %v51 = vld [vmem:[%s0 + $0xf0] sm:$0xff]
  %v52 = vld [vmem:[%s0 + $0xf8] sm:$0xff]
  %v53 = vld [vmem:[%s0 + $0x100] sm:$0xf]
  %v54 = vld [vmem:[%s0 + $0x104] sm:$0xff]
  %v55 = vld [vmem:[%s0 + $0x10c] sm:$0xff]
  %v56 = vld [vmem:[%s0 + $0x114] sm:$0xf]
  %v57 = vld [vmem:[%s0 + $0x118] sm:$0xff]
  %v58 = vld [vmem:[%s0 + $0x120] sm:$0xff]
  %v59 = vld [vmem:[%s0 + $0x128] sm:$0xf]
  %v60 = vld [vmem:[%s0 + $0x12c] sm:$0xff]
  %v61 = vld [vmem:[%s0 + $0x134] sm:$0xff]
  %v62 = vld [vmem:[%s0 + $0x13c] sm:$0xf]
  %v63 = vld [vmem:[%s0 + $0x140] sm:$0xff]
  %v64 = vld [vmem:[%s0 + $0x148] sm:$0xff]
  %v65 = vld [vmem:[%s0 + $0x150] sm:$0xf]
  %v66 = vld [vmem:[%s0 + $0x154] sm:$0xff]
  %v67 = vld [vmem:[%s0 + $0x15c] sm:$0xff]
  %v68 = vld [vmem:[%s0 + $0x164] sm:$0xf]
  %v69 = vld [vmem:[%s0 + $0x168] sm:$0xff]
  %v70 = vld [vmem:[%s0 + $0x170] sm:$0xff]
  %v71 = vld [vmem:[%s0 + $0x178] sm:$0xf]
  %v72 = vld [vmem:[%s0 + $0x17c] sm:$0xff]
  %v73 = vld [vmem:[%s0 + $0x184] sm:$0xff]
  %v74 = vld [vmem:[%s0 + $0x18c] sm:$0xf]
  %v75 = vld [vmem:[%s0 + $0x190] sm:$0xff]
  %v76 = vld [vmem:[%s0 + $0x198] sm:$0xff]
  %v77 = vld [vmem:[%s0 + $0x1a0] sm:$0xf]
  %v78 = vld [vmem:[%s0 + $0x1a4] sm:$0xff]
  %v79 = vld [vmem:[%s0 + $0x1ac] sm:$0xff]
  %v80 = vld [vmem:[%s0 + $0x1b4] sm:$0xf]
  %v81 = vld [vmem:[%s0 + $0x1b8] sm:$0xff]
  %v82 = vld [vmem:[%s0 + $0x1c0] sm:$0xff]
  %v83 = vld [vmem:[%s0 + $0x1c8] sm:$0xf]
  %v84 = vld [vmem:[%s0 + $0x1cc] sm:$0xff]
  %v85 = vld [vmem:[%s0 + $0x1d4] sm:$0xff]
  %v86 = vld [vmem:[%s0 + $0x1dc] sm:$0xf]
  %v87 = vld [vmem:[%s0 + $0x1e0] sm:$0xff]
  %v88 = vld [vmem:[%s0 + $0x1e8] sm:$0xff]
  %v89 = vld [vmem:[%s0 + $0x1f0] sm:$0xf]
  %v90 = vld [vmem:[%s0 + $0x1f4] sm:$0xff]
  %v91 = vld [vmem:[%s0 + $0x1fc] sm:$0xff]
  %v92 = vld [vmem:[%s0 + $0x204] sm:$0xf]
  %v93 = vld [vmem:[%s0 + $0x208] sm:$0xff]
  %v94 = vld [vmem:[%s0 + $0x210] sm:$0xff]
  %v95 = vld [vmem:[%s0 + $0x218] sm:$0xf]
  %v96 = vld [vmem:[%s0 + $0x21c] sm:$0xff]
  %v97 = vld [vmem:[%s0 + $0x224] sm:$0xff]
  %v98 = vld [vmem:[%s0 + $0x22c] sm:$0xf]
  %v99 = vld [vmem:[%s0 + $0x230] sm:$0xff]
  %v100 = vld [vmem:[%s0 + $0x238] sm:$0xff]
  %v101 = vld [vmem:[%s0 + $0x240] sm:$0xf]
  %v102 = vld [vmem:[%s0 + $0x244] sm:$0xff]
  %v103 = vld [vmem:[%s0 + $0x24c] sm:$0xff]
  %v104 = vld [vmem:[%s0 + $0x254] sm:$0xf]
  %v105 = vld [vmem:[%s0 + $0x258] sm:$0xff]
  %v106 = vld [vmem:[%s0 + $0x260] sm:$0xff]
  %v107 = vld [vmem:[%s0 + $0x268] sm:$0xf]
  %v108 = vld [vmem:[%s0 + $0x26c] sm:$0xff]
  %v109 = vld [vmem:[%s0 + $0x274] sm:$0xff]
  %v110 = vld [vmem:[%s0 + $0x27c] sm:$0xf]
  %v111 = vld [vmem:[%s0 + $0x280] sm:$0xff]
  %v112 = vld [vmem:[%s0 + $0x288] sm:$0xff]
  %v113 = vld [vmem:[%s0 + $0x290] sm:$0xf]
  %v114 = vld [vmem:[%s0 + $0x294] sm:$0xff]
  %v115 = vld [vmem:[%s0 + $0x29c] sm:$0xff]
  %v116 = vld [vmem:[%s0 + $0x2a4] sm:$0xf]
  %v117 = vld [vmem:[%s0 + $0x2a8] sm:$0xff]
  %v118 = vld [vmem:[%s0 + $0x2b0] sm:$0xff]
  %v119 = vld [vmem:[%s0 + $0x2b8] sm:$0xf]
  %v120 = vld [vmem:[%s0 + $0x2bc] sm:$0xff]
  %v121 = vld [vmem:[%s0 + $0x2c4] sm:$0xff]
  %v122 = vld [vmem:[%s0 + $0x2cc] sm:$0xf]
  %v123 = vld [vmem:[%s0 + $0x2d0] sm:$0xff]
  %v124 = vld [vmem:[%s0 + $0x2d8] sm:$0xff]
  %v125 = vld [vmem:[%s0 + $0x2e0] sm:$0xf]
  %v126 = vld [vmem:[%s0 + $0x2e4] sm:$0xff]
  %v127 = vld [vmem:[%s0 + $0x2ec] sm:$0xff]
  %v128 = vld [vmem:[%s0 + $0x2f4] sm:$0xf]
  %v129 = vld [vmem:[%s0 + $0x2f8] sm:$0xff]
  %v130 = vld [vmem:[%s0 + $0x300] sm:$0xff]
  %v131 = vld [vmem:[%s0 + $0x308] sm:$0xf]
  %v132 = vld [vmem:[%s0 + $0x30c] sm:$0xff]
  %v133 = vld [vmem:[%s0 + $0x314] sm:$0xff]
  %v134 = vld [vmem:[%s0 + $0x31c] sm:$0xf]
  %v135 = vld [vmem:[%s0 + $0x320] sm:$0xff]
  %v136 = vld [vmem:[%s0 + $0x328] sm:$0xff]
  %v137 = vld [vmem:[%s0 + $0x330] sm:$0xf]
  %v138 = vld [vmem:[%s0 + $0x334] sm:$0xff]
  %v139 = vld [vmem:[%s0 + $0x33c] sm:$0xff]
  %v140 = vld [vmem:[%s0 + $0x344] sm:$0xf]
  %v141 = vld [vmem:[%s0 + $0x348] sm:$0xff]
  %v142 = vld [vmem:[%s0 + $0x350] sm:$0xff]
  %v143 = vld [vmem:[%s0 + $0x358] sm:$0xf]
  %v144 = vld [vmem:[%s0 + $0x35c] sm:$0xff]
  %v145 = vld [vmem:[%s0 + $0x364] sm:$0xff]
  %v146 = vld [vmem:[%s0 + $0x36c] sm:$0xf]
  %v147 = vld [vmem:[%s0 + $0x370] sm:$0xff]
  %v148 = vld [vmem:[%s0 + $0x378] sm:$0xff]
  %v149 = vld [vmem:[%s0 + $0x380] sm:$0xf]
  %v150 = vld [vmem:[%s0 + $0x384] sm:$0xff]
  %v151 = vld [vmem:[%s0 + $0x38c] sm:$0xff]
  %v152 = vld [vmem:[%s0 + $0x394] sm:$0xf]
  %v153 = vld [vmem:[%s0 + $0x398] sm:$0xff]
  %v154 = vld [vmem:[%s0 + $0x3a0] sm:$0xff]
  %v155 = vld [vmem:[%s0 + $0x3a8] sm:$0xf]
  %v156 = vld [vmem:[%s0 + $0x3ac] sm:$0xff]
  %v157 = vld [vmem:[%s0 + $0x3b4] sm:$0xff]
  %v158 = vld [vmem:[%s0 + $0x3bc] sm:$0xf]
  %v159 = vld [vmem:[%s0 + $0x3c0] sm:$0xff]
  %v160 = vld [vmem:[%s0 + $0x3c8] sm:$0xff]
  %v161 = vld [vmem:[%s0 + $0x3d0] sm:$0xf]
  %v162 = vld [vmem:[%s1] sm:$0xf]
  %v163 = vld [vmem:[%s1 + $0x4] sm:$0xf]
  %v164 = vld [vmem:[%s1 + $0x8] sm:$0xf]
  %v165 = vld [vmem:[%s1 + $0xc] sm:$0xf]
  %v166 = vld [vmem:[%s1 + $0x10] sm:$0xf]
  %v167 = vld [vmem:[%s1 + $0x14] sm:$0xf]
  %v168 = vld [vmem:[%s1 + $0x18] sm:$0xf]
  %v169 = vld [vmem:[%s1 + $0x1c] sm:$0xf]
  %v170 = vld [vmem:[%s1 + $0x20] sm:$0xf]
  %v171 = vld [vmem:[%s1 + $0x24] sm:$0xf]
  %v172 = vld [vmem:[%s1 + $0x28] sm:$0xf]
  %v173 = vld [vmem:[%s1 + $0x2c] sm:$0xf]
  %v174 = vld [vmem:[%s1 + $0x30] sm:$0xf]
  %v175 = vld [vmem:[%s1 + $0x34] sm:$0xf]
  %v176 = vld [vmem:[%s1 + $0x38] sm:$0xf]
  %v177 = vld [vmem:[%s1 + $0x3c] sm:$0xf]
  %v178 = vld [vmem:[%s1 + $0x40] sm:$0xf]
  %v179 = vld [vmem:[%s1 + $0x44] sm:$0xf]
  %v180 = vld [vmem:[%s1 + $0x48] sm:$0xf]
  %v181 = vld [vmem:[%s1 + $0x4c] sm:$0xf]
  %v182 = vld [vmem:[%s1 + $0x50] sm:$0xf]
  %v183 = vld [vmem:[%s1 + $0x54] sm:$0xf]
  %v184 = vld [vmem:[%s1 + $0x58] sm:$0xf]
  %v185 = vld [vmem:[%s1 + $0x5c] sm:$0xf]
  %v186 = vld [vmem:[%s1 + $0x60] sm:$0xf]
  %v187 = vld [vmem:[%s1 + $0x64] sm:$0xf]
  %v188 = vld [vmem:[%s1 + $0x68] sm:$0xf]
  %v189 = vld [vmem:[%s1 + $0x6c] sm:$0xf]
  %v190 = vld [vmem:[%s1 + $0x70] sm:$0xf]
  %v191 = vld [vmem:[%s1 + $0x74] sm:$0xf]
  %v192 = vld [vmem:[%s1 + $0x78] sm:$0xf]
  %v193 = vld [vmem:[%s1 + $0x7c] sm:$0xf]
  %v194 = vld [vmem:[%s1 + $0x80] sm:$0xf]
  %v195 = vld [vmem:[%s1 + $0x84] sm:$0xf]
  %v196 = vld [vmem:[%s1 + $0x88] sm:$0xf]
  %v197 = vld [vmem:[%s1 + $0x8c] sm:$0xf]
  %v198 = vld [vmem:[%s1 + $0x90] sm:$0xf]
  %v199 = vld [vmem:[%s1 + $0x94] sm:$0xf]
  %v200 = vld [vmem:[%s1 + $0x98] sm:$0xf]
  %v201 = vld [vmem:[%s1 + $0x9c] sm:$0xf]
  %v202 = vld [vmem:[%s1 + $0xa0] sm:$0xf]
  %v203 = vld [vmem:[%s1 + $0xa4] sm:$0xf]
  %v204 = vld [vmem:[%s1 + $0xa8] sm:$0xf]
  %v205 = vld [vmem:[%s1 + $0xac] sm:$0xf]
  %v206 = vld [vmem:[%s1 + $0xb0] sm:$0xf]
  %v207 = vld [vmem:[%s1 + $0xb4] sm:$0xf]
  %v208 = vld [vmem:[%s1 + $0xb8] sm:$0xf]
  %v209 = vld [vmem:[%s1 + $0xbc] sm:$0xf]
  %v210 = vld [vmem:[%s1 + $0xc0] sm:$0xf]
  %v211 = vld [vmem:[%s1 + $0xc4] sm:$0xf]
  %v212 = vld [vmem:[%s1 + $0xc8] sm:$0xf]
  %v213 = vld [vmem:[%s1 + $0xcc] sm:$0xf]
  %v214 = vld [vmem:[%s1 + $0xd0] sm:$0xf]
  %v215 = vld [vmem:[%s1 + $0xd4] sm:$0xf]
  %v216 = vld [vmem:[%s1 + $0xd8] sm:$0xf]
  %v217 = vld [vmem:[%s1 + $0xdc] sm:$0xf]
  %v218 = vld [vmem:[%s1 + $0xe0] sm:$0xf]
  %v219 = vld [vmem:[%s1 + $0xe4] sm:$0xf]
  %v220 = vld [vmem:[%s1 + $0xe8] sm:$0xf]
  %v221 = vld [vmem:[%s1 + $0xec] sm:$0xf]
  %v222 = vld [vmem:[%s1 + $0xf0] sm:$0xf]
  %v223 = vld [vmem:[%s1 + $0xf4] sm:$0xf]
  %v224 = vld [vmem:[%s1 + $0xf8] sm:$0xf]
  %v225 = vld [vmem:[%s1 + $0xfc] sm:$0xf]
  %v226 = vld [vmem:[%s1 + $0x100] sm:$0xf]
  %v227 = vld [vmem:[%s1 + $0x104] sm:$0xf]
  %v228 = vld [vmem:[%s1 + $0x108] sm:$0xf]
  %v229 = vld [vmem:[%s1 + $0x10c] sm:$0xf]
  %v230 = vld [vmem:[%s1 + $0x110] sm:$0xf]
  %v231 = vld [vmem:[%s1 + $0x114] sm:$0xf]
  %v232 = vld [vmem:[%s1 + $0x118] sm:$0xf]
  %v233 = vld [vmem:[%s1 + $0x11c] sm:$0xf]
  %v234 = vld [vmem:[%s2] sm:$0x1]
  %v236 = vlaneseq
  %v237 = vshrl.u32 %v236, 7
  %v238 = vsub.s32 0, %v237
  %v239 = vrot.slane %v234, %v238
  %v388 = vunpack.c.l.b16 %v15
  %v389 = vunpack.c.h.b16 %v15
  %v390 = vunpack.c.l.b16 %v16
  %v391 = vunpack.c.h.b16 %v16
  %v392 = vunpack.c.l.b16 %v17
  %v393 = vunpack.c.l.b16 %v18
  %v394 = vunpack.c.h.b16 %v18
  %v395 = vunpack.c.l.b16 %v19
  %v396 = vunpack.c.h.b16 %v19
  %v397 = vunpack.c.l.b16 %v20
  %v398 = vunpack.c.l.b16 %v21
  %v399 = vunpack.c.h.b16 %v21
  %v400 = vunpack.c.l.b16 %v22
  %v401 = vunpack.c.h.b16 %v22
  %v402 = vunpack.c.l.b16 %v23
  %v403 = vunpack.c.l.b16 %v24
  %v404 = vunpack.c.h.b16 %v24
  %v405 = vunpack.c.l.b16 %v25
  %v406 = vunpack.c.h.b16 %v25
  %v407 = vunpack.c.l.b16 %v26
  %v408 = vunpack.c.l.b16 %v27
  %v409 = vunpack.c.h.b16 %v27
  %v410 = vunpack.c.l.b16 %v28
  %v411 = vunpack.c.h.b16 %v28
  %v412 = vunpack.c.l.b16 %v29
  %v413 = vunpack.c.l.b16 %v30
  %v414 = vunpack.c.h.b16 %v30
  %v415 = vunpack.c.l.b16 %v31
  %v416 = vunpack.c.h.b16 %v31
  %v417 = vunpack.c.l.b16 %v32
  %v418 = vunpack.c.l.b16 %v33
  %v419 = vunpack.c.h.b16 %v33
  %v420 = vunpack.c.l.b16 %v34
  %v421 = vunpack.c.h.b16 %v34
  %v422 = vunpack.c.l.b16 %v35
  %v423 = vunpack.c.l.b16 %v36
  %v424 = vunpack.c.h.b16 %v36
  %v425 = vunpack.c.l.b16 %v37
  %v426 = vunpack.c.h.b16 %v37
  %v427 = vunpack.c.l.b16 %v38
  %v428 = vunpack.c.l.b16 %v39
  %v429 = vunpack.c.h.b16 %v39
  %v430 = vunpack.c.l.b16 %v40
  %v431 = vunpack.c.h.b16 %v40
  %v432 = vunpack.c.l.b16 %v41
  %v433 = vunpack.c.l.b16 %v42
  %v434 = vunpack.c.h.b16 %v42
  %v435 = vunpack.c.l.b16 %v43
  %v436 = vunpack.c.h.b16 %v43
  %v437 = vunpack.c.l.b16 %v44
  %v438 = vunpack.c.l.b16 %v45
  %v439 = vunpack.c.h.b16 %v45
  %v440 = vunpack.c.l.b16 %v46
  %v441 = vunpack.c.h.b16 %v46
  %v442 = vunpack.c.l.b16 %v47
  %v443 = vunpack.c.l.b16 %v48
  %v444 = vunpack.c.h.b16 %v48
  %v445 = vunpack.c.l.b16 %v49
  %v446 = vunpack.c.h.b16 %v49
  %v447 = vunpack.c.l.b16 %v50
  %v448 = vunpack.c.l.b16 %v51
  %v449 = vunpack.c.h.b16 %v51
  %v450 = vunpack.c.l.b16 %v52
  %v451 = vunpack.c.h.b16 %v52
  %v452 = vunpack.c.l.b16 %v53
  %v453 = vunpack.c.l.b16 %v54
  %v454 = vunpack.c.h.b16 %v54
  %v455 = vunpack.c.l.b16 %v55
  %v456 = vunpack.c.h.b16 %v55
  %v457 = vunpack.c.l.b16 %v56
  %v458 = vunpack.c.l.b16 %v57
  %v459 = vunpack.c.h.b16 %v57
  %v460 = vunpack.c.l.b16 %v58
  %v461 = vunpack.c.h.b16 %v58
  %v462 = vunpack.c.l.b16 %v59
  %v463 = vunpack.c.l.b16 %v60
  %v464 = vunpack.c.h.b16 %v60
  %v465 = vunpack.c.l.b16 %v61
  %v466 = vunpack.c.h.b16 %v61
  %v467 = vunpack.c.l.b16 %v62
  %v468 = vunpack.c.l.b16 %v63
  %v469 = vunpack.c.h.b16 %v63
  %v470 = vunpack.c.l.b16 %v64
  %v471 = vunpack.c.h.b16 %v64
  %v472 = vunpack.c.l.b16 %v65
  %v473 = vunpack.c.l.b16 %v66
  %v474 = vunpack.c.h.b16 %v66
  %v475 = vunpack.c.l.b16 %v67
  %v476 = vunpack.c.h.b16 %v67
  %v477 = vunpack.c.l.b16 %v68
  %v478 = vunpack.c.l.b16 %v69
  %v479 = vunpack.c.h.b16 %v69
  %v480 = vunpack.c.l.b16 %v70
  %v481 = vunpack.c.h.b16 %v70
  %v482 = vunpack.c.l.b16 %v71
  %v483 = vunpack.c.l.b16 %v72
  %v484 = vunpack.c.h.b16 %v72
  %v485 = vunpack.c.l.b16 %v73
  %v486 = vunpack.c.h.b16 %v73
  %v487 = vunpack.c.l.b16 %v74
  %v488 = vunpack.c.l.b16 %v75
  %v489 = vunpack.c.h.b16 %v75
  %v490 = vunpack.c.l.b16 %v76
  %v491 = vunpack.c.h.b16 %v76
  %v492 = vunpack.c.l.b16 %v77
  %v493 = vunpack.c.l.b16 %v78
  %v494 = vunpack.c.h.b16 %v78
  %v495 = vunpack.c.l.b16 %v79
  %v496 = vunpack.c.h.b16 %v79
  %v497 = vunpack.c.l.b16 %v80
  %v498 = vunpack.c.l.b16 %v81
  %v499 = vunpack.c.h.b16 %v81
  %v500 = vunpack.c.l.b16 %v82
  %v501 = vunpack.c.h.b16 %v82
  %v502 = vunpack.c.l.b16 %v83
  %v503 = vunpack.c.l.b16 %v84
  %v504 = vunpack.c.h.b16 %v84
  %v505 = vunpack.c.l.b16 %v85
  %v506 = vunpack.c.h.b16 %v85
  %v507 = vunpack.c.l.b16 %v86
  %v508 = vunpack.c.l.b16 %v87
  %v509 = vunpack.c.h.b16 %v87
  %v510 = vunpack.c.l.b16 %v88
  %v511 = vunpack.c.h.b16 %v88
  %v512 = vunpack.c.l.b16 %v89
  %v513 = vunpack.c.l.b16 %v90
  %v514 = vunpack.c.h.b16 %v90
  %v515 = vunpack.c.l.b16 %v91
  %v516 = vunpack.c.h.b16 %v91
  %v517 = vunpack.c.l.b16 %v92
  %v518 = vunpack.c.l.b16 %v93
  %v519 = vunpack.c.h.b16 %v93
  %v520 = vunpack.c.l.b16 %v94
  %v521 = vunpack.c.h.b16 %v94
  %v522 = vunpack.c.l.b16 %v95
  %v523 = vunpack.c.l.b16 %v96
  %v524 = vunpack.c.h.b16 %v96
  %v525 = vunpack.c.l.b16 %v97
  %v526 = vunpack.c.h.b16 %v97
  %v527 = vunpack.c.l.b16 %v98
  %v528 = vunpack.c.l.b16 %v99
  %v529 = vunpack.c.h.b16 %v99
  %v530 = vunpack.c.l.b16 %v100
  %v531 = vunpack.c.h.b16 %v100
  %v532 = vunpack.c.l.b16 %v101
  %v533 = vunpack.c.l.b16 %v102
  %v534 = vunpack.c.h.b16 %v102
  %v535 = vunpack.c.l.b16 %v103
  %v536 = vunpack.c.h.b16 %v103
  %v537 = vunpack.c.l.b16 %v104
  %v538 = vunpack.c.l.b16 %v105
  %v539 = vunpack.c.h.b16 %v105
  %v540 = vunpack.c.l.b16 %v106
  %v541 = vunpack.c.h.b16 %v106
  %v542 = vunpack.c.l.b16 %v107
  %v543 = vunpack.c.l.b16 %v108
  %v544 = vunpack.c.h.b16 %v108
  %v545 = vunpack.c.l.b16 %v109
  %v546 = vunpack.c.h.b16 %v109
  %v547 = vunpack.c.l.b16 %v110
  %v548 = vunpack.c.l.b16 %v111
  %v549 = vunpack.c.h.b16 %v111
  %v550 = vunpack.c.l.b16 %v112
  %v551 = vunpack.c.h.b16 %v112
  %v552 = vunpack.c.l.b16 %v113
  %v553 = vunpack.c.l.b16 %v114
  %v554 = vunpack.c.h.b16 %v114
  %v555 = vunpack.c.l.b16 %v115
  %v556 = vunpack.c.h.b16 %v115
  %v557 = vunpack.c.l.b16 %v116
  %v558 = vunpack.c.l.b16 %v117
  %v559 = vunpack.c.h.b16 %v117
  %v560 = vunpack.c.l.b16 %v118
  %v561 = vunpack.c.h.b16 %v118
  %v562 = vunpack.c.l.b16 %v119
  %v563 = vunpack.c.l.b16 %v120
  %v564 = vunpack.c.h.b16 %v120
  %v565 = vunpack.c.l.b16 %v121
  %v566 = vunpack.c.h.b16 %v121
  %v567 = vunpack.c.l.b16 %v122
  %v568 = vunpack.c.l.b16 %v123
  %v569 = vunpack.c.h.b16 %v123
  %v570 = vunpack.c.l.b16 %v124
  %v571 = vunpack.c.h.b16 %v124
  %v572 = vunpack.c.l.b16 %v125
  %v573 = vunpack.c.l.b16 %v126
  %v574 = vunpack.c.h.b16 %v126
  %v575 = vunpack.c.l.b16 %v127
  %v576 = vunpack.c.h.b16 %v127
  %v577 = vunpack.c.l.b16 %v128
  %v578 = vunpack.c.l.b16 %v129
  %v579 = vunpack.c.h.b16 %v129
  %v580 = vunpack.c.l.b16 %v130
  %v581 = vunpack.c.h.b16 %v130
  %v582 = vunpack.c.l.b16 %v131
  %v583 = vunpack.c.l.b16 %v132
  %v584 = vunpack.c.h.b16 %v132
  %v585 = vunpack.c.l.b16 %v133
  %v586 = vunpack.c.h.b16 %v133
  %v587 = vunpack.c.l.b16 %v134
  %v588 = vunpack.c.l.b16 %v135
  %v589 = vunpack.c.h.b16 %v135
  %v590 = vunpack.c.l.b16 %v136
  %v591 = vunpack.c.h.b16 %v136
  %v592 = vunpack.c.l.b16 %v137
  %v593 = vunpack.c.l.b16 %v138
  %v594 = vunpack.c.h.b16 %v138
  %v595 = vunpack.c.l.b16 %v139
  %v596 = vunpack.c.h.b16 %v139
  %v597 = vunpack.c.l.b16 %v140
  %v598 = vunpack.c.l.b16 %v141
  %v599 = vunpack.c.h.b16 %v141
  %v600 = vunpack.c.l.b16 %v142
  %v601 = vunpack.c.h.b16 %v142
  %v602 = vunpack.c.l.b16 %v143
  %v603 = vunpack.c.l.b16 %v144
  %v604 = vunpack.c.h.b16 %v144
  %v605 = vunpack.c.l.b16 %v145
  %v606 = vunpack.c.h.b16 %v145
  %v607 = vunpack.c.l.b16 %v146
  %v608 = vunpack.c.l.b16 %v147
  %v609 = vunpack.c.h.b16 %v147
  %v610 = vunpack.c.l.b16 %v148
  %v611 = vunpack.c.h.b16 %v148
  %v612 = vunpack.c.l.b16 %v149
  %v613 = vunpack.c.l.b16 %v150
  %v614 = vunpack.c.h.b16 %v150
  %v615 = vunpack.c.l.b16 %v151
  %v616 = vunpack.c.h.b16 %v151
  %v617 = vunpack.c.l.b16 %v152
  %v618 = vunpack.c.l.b16 %v153
  %v619 = vunpack.c.h.b16 %v153
  %v620 = vunpack.c.l.b16 %v154
  %v621 = vunpack.c.h.b16 %v154
  %v622 = vunpack.c.l.b16 %v155
  %v623 = vunpack.c.l.b16 %v156
  %v624 = vunpack.c.h.b16 %v156
  %v625 = vunpack.c.l.b16 %v157
  %v626 = vunpack.c.h.b16 %v157
  %v627 = vunpack.c.l.b16 %v158
  %v628 = vunpack.c.l.b16 %v159
  %v629 = vunpack.c.h.b16 %v159
  %v630 = vunpack.c.l.b16 %v160
  %v631 = vunpack.c.h.b16 %v160
  %v632 = vunpack.c.l.b16 %v161
  %v633 = vpack.c.b16 %v393, %v388
  %v634 = vpack.c.b16 %v394, %v389
  %v635 = vpack.c.b16 %v395, %v390
  %v636 = vpack.c.b16 %v396, %v391
  %v637 = vpack.c.b16 %v397, %v392
  %v638 = vpack.c.b16 %v403, %v398
  %v639 = vpack.c.b16 %v404, %v399
  %v640 = vpack.c.b16 %v405, %v400
  %v641 = vpack.c.b16 %v406, %v401
  %v642 = vpack.c.b16 %v407, %v402
  %v643 = vpack.c.b16 %v413, %v408
  %v644 = vpack.c.b16 %v414, %v409
  %v645 = vpack.c.b16 %v415, %v410
  %v646 = vpack.c.b16 %v416, %v411
  %v647 = vpack.c.b16 %v417, %v412
  %v648 = vpack.c.b16 %v423, %v418
  %v649 = vpack.c.b16 %v424, %v419
  %v650 = vpack.c.b16 %v425, %v420
  %v651 = vpack.c.b16 %v426, %v421
  %v652 = vpack.c.b16 %v427, %v422
  %v653 = vpack.c.b16 %v433, %v428
  %v654 = vpack.c.b16 %v434, %v429
  %v655 = vpack.c.b16 %v435, %v430
  %v656 = vpack.c.b16 %v436, %v431
  %v657 = vpack.c.b16 %v437, %v432
  %v658 = vpack.c.b16 %v443, %v438
  %v659 = vpack.c.b16 %v444, %v439
  %v660 = vpack.c.b16 %v445, %v440
  %v661 = vpack.c.b16 %v446, %v441
  %v662 = vpack.c.b16 %v447, %v442
  %v663 = vpack.c.b16 %v453, %v448
  %v664 = vpack.c.b16 %v454, %v449
  %v665 = vpack.c.b16 %v455, %v450
  %v666 = vpack.c.b16 %v456, %v451
  %v667 = vpack.c.b16 %v457, %v452
  %v668 = vpack.c.b16 %v463, %v458
  %v669 = vpack.c.b16 %v464, %v459
  %v670 = vpack.c.b16 %v465, %v460
  %v671 = vpack.c.b16 %v466, %v461
  %v672 = vpack.c.b16 %v467, %v462
  %v673 = vpack.c.b16 %v473, %v468
  %v674 = vpack.c.b16 %v474, %v469
  %v675 = vpack.c.b16 %v475, %v470
  %v676 = vpack.c.b16 %v476, %v471
  %v677 = vpack.c.b16 %v477, %v472
  %v678 = vpack.c.b16 %v483, %v478
  %v679 = vpack.c.b16 %v484, %v479
  %v680 = vpack.c.b16 %v485, %v480
  %v681 = vpack.c.b16 %v486, %v481
  %v682 = vpack.c.b16 %v487, %v482
  %v683 = vpack.c.b16 %v493, %v488
  %v684 = vpack.c.b16 %v494, %v489
  %v685 = vpack.c.b16 %v495, %v490
  %v686 = vpack.c.b16 %v496, %v491
  %v687 = vpack.c.b16 %v497, %v492
  %v688 = vpack.c.b16 %v503, %v498
  %v689 = vpack.c.b16 %v504, %v499
  %v690 = vpack.c.b16 %v505, %v500
  %v691 = vpack.c.b16 %v506, %v501
  %v692 = vpack.c.b16 %v507, %v502
  %v693 = vpack.c.b16 %v513, %v508
  %v694 = vpack.c.b16 %v514, %v509
  %v695 = vpack.c.b16 %v515, %v510
  %v696 = vpack.c.b16 %v516, %v511
  %v697 = vpack.c.b16 %v517, %v512
  %v698 = vpack.c.b16 %v523, %v518
  %v699 = vpack.c.b16 %v524, %v519
  %v700 = vpack.c.b16 %v525, %v520
  %v701 = vpack.c.b16 %v526, %v521
  %v702 = vpack.c.b16 %v527, %v522
  %v703 = vpack.c.b16 %v533, %v528
  %v704 = vpack.c.b16 %v534, %v529
  %v705 = vpack.c.b16 %v535, %v530
  %v706 = vpack.c.b16 %v536, %v531
  %v707 = vpack.c.b16 %v537, %v532
  %v708 = vpack.c.b16 %v543, %v538
  %v709 = vpack.c.b16 %v544, %v539
  %v710 = vpack.c.b16 %v545, %v540
  %v711 = vpack.c.b16 %v546, %v541
  %v712 = vpack.c.b16 %v547, %v542
  %v713 = vpack.c.b16 %v553, %v548
  %v714 = vpack.c.b16 %v554, %v549
  %v715 = vpack.c.b16 %v555, %v550
  %v716 = vpack.c.b16 %v556, %v551
  %v717 = vpack.c.b16 %v557, %v552
  %v718 = vpack.c.b16 %v563, %v558
  %v719 = vpack.c.b16 %v564, %v559
  %v720 = vpack.c.b16 %v565, %v560
  %v721 = vpack.c.b16 %v566, %v561
  %v722 = vpack.c.b16 %v567, %v562
  %v723 = vpack.c.b16 %v573, %v568
  %v724 = vpack.c.b16 %v574, %v569
  %v725 = vpack.c.b16 %v575, %v570
  %v726 = vpack.c.b16 %v576, %v571
  %v727 = vpack.c.b16 %v577, %v572
  %v728 = vpack.c.b16 %v583, %v578
  %v729 = vpack.c.b16 %v584, %v579
  %v730 = vpack.c.b16 %v585, %v580
  %v731 = vpack.c.b16 %v586, %v581
  %v732 = vpack.c.b16 %v587, %v582
  %v733 = vpack.c.b16 %v593, %v588
  %v734 = vpack.c.b16 %v594, %v589
  %v735 = vpack.c.b16 %v595, %v590
  %v736 = vpack.c.b16 %v596, %v591
  %v737 = vpack.c.b16 %v597, %v592
  %v738 = vpack.c.b16 %v603, %v598
  %v739 = vpack.c.b16 %v604, %v599
  %v740 = vpack.c.b16 %v605, %v600
  %v741 = vpack.c.b16 %v606, %v601
  %v742 = vpack.c.b16 %v607, %v602
  %v743 = vpack.c.b16 %v613, %v608
  %v744 = vpack.c.b16 %v614, %v609
  %v745 = vpack.c.b16 %v615, %v610
  %v746 = vpack.c.b16 %v616, %v611
  %v747 = vpack.c.b16 %v617, %v612
  %v748 = vpack.c.b16 %v623, %v618
  %v749 = vpack.c.b16 %v624, %v619
  %v750 = vpack.c.b16 %v625, %v620
  %v751 = vpack.c.b16 %v626, %v621
  %v752 = vpack.c.b16 %v627, %v622
  %v753 = vpack.c.b16 %v628, %v628
  %v754 = vpack.c.b16 %v629, %v629
  %v755 = vpack.c.b16 %v630, %v630
  %v756 = vpack.c.b16 %v631, %v631
  %v757 = vpack.c.b16 %v632, %v632
  %v930 = vunpack.c.l.b16 %v162
  %v931 = vunpack.c.l.b16 %v163
  %v932 = vunpack.c.l.b16 %v164
  %v933 = vunpack.c.l.b16 %v165
  %v934 = vunpack.c.l.b16 %v166
  %v935 = vunpack.c.l.b16 %v167
  %v936 = vunpack.c.l.b16 %v168
  %v937 = vunpack.c.l.b16 %v169
  %v938 = vunpack.c.l.b16 %v170
  %v939 = vunpack.c.l.b16 %v171
  %v940 = vunpack.c.l.b16 %v172
  %v941 = vunpack.c.l.b16 %v173
  %v942 = vunpack.c.l.b16 %v174
  %v943 = vunpack.c.l.b16 %v175
  %v944 = vunpack.c.l.b16 %v176
  %v945 = vunpack.c.l.b16 %v177
  %v946 = vunpack.c.l.b16 %v178
  %v947 = vunpack.c.l.b16 %v179
  %v948 = vunpack.c.l.b16 %v180
  %v949 = vunpack.c.l.b16 %v181
  %v950 = vunpack.c.l.b16 %v182
  %v951 = vunpack.c.l.b16 %v183
  %v952 = vunpack.c.l.b16 %v184
  %v953 = vunpack.c.l.b16 %v185
  %v954 = vunpack.c.l.b16 %v186
  %v955 = vunpack.c.l.b16 %v187
  %v956 = vunpack.c.l.b16 %v188
  %v957 = vunpack.c.l.b16 %v189
  %v958 = vunpack.c.l.b16 %v190
  %v959 = vunpack.c.l.b16 %v191
  %v960 = vunpack.c.l.b16 %v192
  %v961 = vunpack.c.l.b16 %v193
  %v962 = vunpack.c.l.b16 %v194
  %v963 = vunpack.c.l.b16 %v195
  %v964 = vunpack.c.l.b16 %v196
  %v965 = vunpack.c.l.b16 %v197
  %v966 = vunpack.c.l.b16 %v198
  %v967 = vunpack.c.l.b16 %v199
  %v968 = vunpack.c.l.b16 %v200
  %v969 = vunpack.c.l.b16 %v201
  %v970 = vunpack.c.l.b16 %v202
  %v971 = vunpack.c.l.b16 %v203
  %v972 = vunpack.c.l.b16 %v204
  %v973 = vunpack.c.l.b16 %v205
  %v974 = vunpack.c.l.b16 %v206
  %v975 = vunpack.c.l.b16 %v207
  %v976 = vunpack.c.l.b16 %v208
  %v977 = vunpack.c.l.b16 %v209
  %v978 = vunpack.c.l.b16 %v210
  %v979 = vunpack.c.l.b16 %v211
  %v980 = vunpack.c.l.b16 %v212
  %v981 = vunpack.c.l.b16 %v213
  %v982 = vunpack.c.l.b16 %v214
  %v983 = vunpack.c.l.b16 %v215
  %v984 = vunpack.c.l.b16 %v216
  %v985 = vunpack.c.l.b16 %v217
  %v986 = vunpack.c.l.b16 %v218
  %v987 = vunpack.c.l.b16 %v219
  %v988 = vunpack.c.l.b16 %v220
  %v989 = vunpack.c.l.b16 %v221
  %v990 = vunpack.c.l.b16 %v222
  %v991 = vunpack.c.l.b16 %v223
  %v992 = vunpack.c.l.b16 %v224
  %v993 = vunpack.c.l.b16 %v225
  %v994 = vunpack.c.l.b16 %v226
  %v995 = vunpack.c.l.b16 %v227
  %v996 = vunpack.c.l.b16 %v228
  %v997 = vunpack.c.l.b16 %v229
  %v998 = vunpack.c.l.b16 %v230
  %v999 = vunpack.c.l.b16 %v231
  %v1000 = vunpack.c.l.b16 %v232
  %v1001 = vunpack.c.l.b16 %v233
  %v1002 = vpack.c.b16 %v931, %v930
  %v1003 = vpack.c.b16 %v933, %v932
  %v1004 = vpack.c.b16 %v935, %v934
  %v1005 = vpack.c.b16 %v937, %v936
  %v1006 = vpack.c.b16 %v939, %v938
  %v1007 = vpack.c.b16 %v941, %v940
  %v1008 = vpack.c.b16 %v943, %v942
  %v1009 = vpack.c.b16 %v945, %v944
  %v1010 = vpack.c.b16 %v947, %v946
  %v1011 = vpack.c.b16 %v949, %v948
  %v1012 = vpack.c.b16 %v951, %v950
  %v1013 = vpack.c.b16 %v953, %v952
  %v1014 = vpack.c.b16 %v955, %v954
  %v1015 = vpack.c.b16 %v957, %v956
  %v1016 = vpack.c.b16 %v959, %v958
  %v1017 = vpack.c.b16 %v961, %v960
  %v1018 = vpack.c.b16 %v963, %v962
  %v1019 = vpack.c.b16 %v965, %v964
  %v1020 = vpack.c.b16 %v967, %v966
  %v1021 = vpack.c.b16 %v969, %v968
  %v1022 = vpack.c.b16 %v971, %v970
  %v1023 = vpack.c.b16 %v973, %v972
  %v1024 = vpack.c.b16 %v975, %v974
  %v1025 = vpack.c.b16 %v977, %v976
  %v1026 = vpack.c.b16 %v979, %v978
  %v1027 = vpack.c.b16 %v981, %v980
  %v1028 = vpack.c.b16 %v983, %v982
  %v1029 = vpack.c.b16 %v985, %v984
  %v1030 = vpack.c.b16 %v987, %v986
  %v1031 = vpack.c.b16 %v989, %v988
  %v1032 = vpack.c.b16 %v991, %v990
  %v1033 = vpack.c.b16 %v993, %v992
  %v1034 = vpack.c.b16 %v995, %v994
  %v1035 = vpack.c.b16 %v997, %v996
  %v1036 = vpack.c.b16 %v999, %v998
  %v1037 = vpack.c.b16 %v1001, %v1000
  %vm1074 = vcmask 523264
  %v1076 = vsel %vm1074, %v637, 0
  %v1079 = vsel %vm1074, %v642, 0
  %v1082 = vsel %vm1074, %v647, 0
  %v1085 = vsel %vm1074, %v652, 0
  %v1088 = vsel %vm1074, %v657, 0
  %v1091 = vsel %vm1074, %v662, 0
  %v1094 = vsel %vm1074, %v667, 0
  %v1097 = vsel %vm1074, %v672, 0
  %v1100 = vsel %vm1074, %v677, 0
  %v1103 = vsel %vm1074, %v682, 0
  %v1106 = vsel %vm1074, %v687, 0
  %v1109 = vsel %vm1074, %v692, 0
  %v1112 = vsel %vm1074, %v697, 0
  %v1115 = vsel %vm1074, %v702, 0
  %v1118 = vsel %vm1074, %v707, 0
  %v1121 = vsel %vm1074, %v712, 0
  %v1124 = vsel %vm1074, %v717, 0
  %v1127 = vsel %vm1074, %v722, 0
  %v1130 = vsel %vm1074, %v727, 0
  %v1133 = vsel %vm1074, %v732, 0
  %v1136 = vsel %vm1074, %v737, 0
  %v1139 = vsel %vm1074, %v742, 0
  %v1142 = vsel %vm1074, %v747, 0
  %v1145 = vsel %vm1074, %v752, 0
  %v1148 = vsel %vm1074, %v757, 0
  %1150 = vmatprep.subr.bf16.mxu0 0
  %1151 = vmatpush1.bf16.msra.mxu0 %v1002
  %1152 = vmatprep.subr.bf16.mxu0 0
  %1153 = vmatpush1.bf16.msra.mxu0 %v1003
  %1154 = vmatprep.subr.bf16.mxu0 0
  %1155 = vmatpush1.bf16.msra.mxu0 %v1004
  %1156 = vmatprep.subr.bf16.mxu0 0
  %1157 = vmatpush1.bf16.msra.mxu0 %v1005
  %1158 = vmatprep.subr.bf16.mxu0 0
  %1159 = vmatpush1.bf16.msra.mxu0 %v1006
  %1160 = vmatprep.subr.bf16.mxu0 0
  %1161 = vmatpush1.bf16.msra.mxu0 %v1007
  %1162 = vmatprep.subr.bf16.mxu0 0
  %1163 = vmatpush1.bf16.msra.mxu0 %v1008
  %1164 = vmatprep.subr.bf16.mxu0 0
  %1165 = vmatpush1.bf16.msra.mxu0 %v1009
  %1166 = vmatprep.subr.bf16.mxu0 0
  %1167 = vmatpush1.bf16.msra.mxu0 %v1010
  %1168 = vmatprep.subr.bf16.mxu0 0
  %1169 = vmatpush1.bf16.msra.mxu0 %v1011
  %1170 = vmatprep.subr.bf16.mxu0 0
  %1171 = vmatpush1.bf16.msra.mxu0 %v1012
  %1172 = vmatprep.subr.bf16.mxu0 0
  %1173 = vmatpush1.bf16.msra.mxu0 %v1013
  %1174 = vmatprep.subr.bf16.mxu0 0
  %1175 = vmatpush1.bf16.msra.mxu0 %v1014
  %1176 = vmatprep.subr.bf16.mxu0 0
  %1177 = vmatpush1.bf16.msra.mxu0 %v1015
  %1178 = vmatprep.subr.bf16.mxu0 0
  %1179 = vmatpush1.bf16.msra.mxu0 %v1016
  %1180 = vmatprep.subr.bf16.mxu0 0
  %1181 = vmatpush1.bf16.msra.mxu0 %v1017
  %1182 = vmatprep.mubr.bf16.mxu0 %v634
  %1183 = vmatmul.mubr.bf16.gmra.mrb[0].mxu0 %v633
  %v1184 = vpop.f32.mrb[0].mxu0
  %v1185 = vadd.f32 %v239, %v1184
  %v1186 = vpop.f32.mrb[0].mxu0
  %v1187 = vpop.f32.mrb[0].mxu0
  %v1188 = vadd.f32 %v239, %v1187
  %v1189 = vpop.f32.mrb[0].mxu0
  %1190 = vmatprep.mubr.bf16.mxu0 %v639
  %1191 = vmatmul.mubr.bf16.gmra.mrb[0].mxu0 %v638
  %v1192 = vpop.f32.mrb[0].mxu0
  %v1193 = vadd.f32 %v239, %v1192
  %v1194 = vpop.f32.mrb[0].mxu0
  %v1195 = vpop.f32.mrb[0].mxu0
  %v1196 = vadd.f32 %v239, %v1195
  %v1197 = vpop.f32.mrb[0].mxu0
  %1198 = vmatprep.mubr.bf16.mxu0 %v644
  %1199 = vmatmul.mubr.bf16.gmra.mrb[0].mxu0 %v643
  %v1200 = vpop.f32.mrb[0].mxu0
  %v1201 = vadd.f32 %v239, %v1200
  %v1202 = vpop.f32.mrb[0].mxu0
  %v1203 = vpop.f32.mrb[0].mxu0
  %v1204 = vadd.f32 %v239, %v1203
  %v1205 = vpop.f32.mrb[0].mxu0
  %1206 = vmatprep.mubr.bf16.mxu0 %v649
  %1207 = vmatmul.mubr.bf16.gmra.mrb[0].mxu0 %v648
  %v1208 = vpop.f32.mrb[0].mxu0
  %v1209 = vadd.f32 %v239, %v1208
  %v1210 = vpop.f32.mrb[0].mxu0
  %v1211 = vpop.f32.mrb[0].mxu0
  %v1212 = vadd.f32 %v239, %v1211
  %v1213 = vpop.f32.mrb[0].mxu0
  %1214 = vmatprep.mubr.bf16.mxu0 %v654
  %1215 = vmatmul.mubr.bf16.gmra.mrb[0].mxu0 %v653
  %v1216 = vpop.f32.mrb[0].mxu0
  %v1217 = vadd.f32 %v239, %v1216
  %v1218 = vpop.f32.mrb[0].mxu0
  %v1219 = vpop.f32.mrb[0].mxu0
  %v1220 = vadd.f32 %v239, %v1219
  %v1221 = vpop.f32.mrb[0].mxu0
  %1222 = vmatprep.mubr.bf16.mxu0 %v659
  %1223 = vmatmul.mubr.bf16.gmra.mrb[0].mxu0 %v658
  %v1224 = vpop.f32.mrb[0].mxu0
  %v1225 = vadd.f32 %v239, %v1224
  %v1226 = vpop.f32.mrb[0].mxu0
  %v1227 = vpop.f32.mrb[0].mxu0
  %v1228 = vadd.f32 %v239, %v1227
  %v1229 = vpop.f32.mrb[0].mxu0
  %1230 = vmatprep.mubr.bf16.mxu0 %v664
  %1231 = vmatmul.mubr.bf16.gmra.mrb[0].mxu0 %v663
  %v1232 = vpop.f32.mrb[0].mxu0
  %v1233 = vadd.f32 %v239, %v1232
  %v1234 = vpop.f32.mrb[0].mxu0
  %v1235 = vpop.f32.mrb[0].mxu0
  %v1236 = vadd.f32 %v239, %v1235
  %v1237 = vpop.f32.mrb[0].mxu0
  %1238 = vmatprep.mubr.bf16.mxu0 %v669
  %1239 = vmatmul.mubr.bf16.gmra.mrb[0].mxu0 %v668
  %v1240 = vpop.f32.mrb[0].mxu0
  %v1241 = vadd.f32 %v239, %v1240
  %v1242 = vpop.f32.mrb[0].mxu0
  %v1243 = vpop.f32.mrb[0].mxu0
  %v1244 = vadd.f32 %v239, %v1243
  %v1245 = vpop.f32.mrb[0].mxu0
  %1246 = vmatprep.mubr.bf16.mxu0 %v674
  %1247 = vmatmul.mubr.bf16.gmra.mrb[0].mxu0 %v673
  %v1248 = vpop.f32.mrb[0].mxu0
  %v1249 = vadd.f32 %v239, %v1248
  %v1250 = vpop.f32.mrb[0].mxu0
  %v1251 = vpop.f32.mrb[0].mxu0
  %v1252 = vadd.f32 %v239, %v1251
  %v1253 = vpop.f32.mrb[0].mxu0
  %1254 = vmatprep.mubr.bf16.mxu0 %v679
  %1255 = vmatmul.mubr.bf16.gmra.mrb[0].mxu0 %v678
  %v1256 = vpop.f32.mrb[0].mxu0
  %v1257 = vadd.f32 %v239, %v1256
  %v1258 = vpop.f32.mrb[0].mxu0
  %v1259 = vpop.f32.mrb[0].mxu0
  %v1260 = vadd.f32 %v239, %v1259
  %v1261 = vpop.f32.mrb[0].mxu0
  %1262 = vmatprep.mubr.bf16.mxu0 %v684
  %1263 = vmatmul.mubr.bf16.gmra.mrb[0].mxu0 %v683
  %v1264 = vpop.f32.mrb[0].mxu0
  %v1265 = vadd.f32 %v239, %v1264
  %v1266 = vpop.f32.mrb[0].mxu0
  %v1267 = vpop.f32.mrb[0].mxu0
  %v1268 = vadd.f32 %v239, %v1267
  %v1269 = vpop.f32.mrb[0].mxu0
  %1270 = vmatprep.mubr.bf16.mxu0 %v689
  %1271 = vmatmul.mubr.bf16.gmra.mrb[0].mxu0 %v688
  %v1272 = vpop.f32.mrb[0].mxu0
  %v1273 = vadd.f32 %v239, %v1272
  %v1274 = vpop.f32.mrb[0].mxu0
  %v1275 = vpop.f32.mrb[0].mxu0
  %v1276 = vadd.f32 %v239, %v1275
  %v1277 = vpop.f32.mrb[0].mxu0
  %1278 = vmatprep.mubr.bf16.mxu0 %v694
  %1279 = vmatmul.mubr.bf16.gmra.mrb[0].mxu0 %v693
  %v1280 = vpop.f32.mrb[0].mxu0
  %v1281 = vadd.f32 %v239, %v1280
  %v1282 = vpop.f32.mrb[0].mxu0
  %v1283 = vpop.f32.mrb[0].mxu0
  %v1284 = vadd.f32 %v239, %v1283
  %v1285 = vpop.f32.mrb[0].mxu0
  %1286 = vmatprep.mubr.bf16.mxu0 %v699
  %1287 = vmatmul.mubr.bf16.gmra.mrb[0].mxu0 %v698
  %v1288 = vpop.f32.mrb[0].mxu0
  %v1289 = vadd.f32 %v239, %v1288
  %v1290 = vpop.f32.mrb[0].mxu0
  %v1291 = vpop.f32.mrb[0].mxu0
  %v1292 = vadd.f32 %v239, %v1291
  %v1293 = vpop.f32.mrb[0].mxu0
  %1294 = vmatprep.mubr.bf16.mxu0 %v704
  %1295 = vmatmul.mubr.bf16.gmra.mrb[0].mxu0 %v703
  %v1296 = vpop.f32.mrb[0].mxu0
  %v1297 = vadd.f32 %v239, %v1296
  %v1298 = vpop.f32.mrb[0].mxu0
  %v1299 = vpop.f32.mrb[0].mxu0
  %v1300 = vadd.f32 %v239, %v1299
  %v1301 = vpop.f32.mrb[0].mxu0
  %1302 = vmatprep.mubr.bf16.mxu0 %v709
  %1303 = vmatmul.mubr.bf16.gmra.mrb[0].mxu0 %v708
  %v1304 = vpop.f32.mrb[0].mxu0
  %v1305 = vadd.f32 %v239, %v1304
  %v1306 = vpop.f32.mrb[0].mxu0
  %v1307 = vpop.f32.mrb[0].mxu0
  %v1308 = vadd.f32 %v239, %v1307
  %v1309 = vpop.f32.mrb[0].mxu0
  %1310 = vmatprep.mubr.bf16.mxu0 %v714
  %1311 = vmatmul.mubr.bf16.gmra.mrb[0].mxu0 %v713
  %v1312 = vpop.f32.mrb[0].mxu0
  %v1313 = vadd.f32 %v239, %v1312
  %v1314 = vpop.f32.mrb[0].mxu0
  %v1315 = vpop.f32.mrb[0].mxu0
  %v1316 = vadd.f32 %v239, %v1315
  %v1317 = vpop.f32.mrb[0].mxu0
  %1318 = vmatprep.mubr.bf16.mxu0 %v719
  %1319 = vmatmul.mubr.bf16.gmra.mrb[0].mxu0 %v718
  %v1320 = vpop.f32.mrb[0].mxu0
  %v1321 = vadd.f32 %v239, %v1320
  %v1322 = vpop.f32.mrb[0].mxu0
  %v1323 = vpop.f32.mrb[0].mxu0
  %v1324 = vadd.f32 %v239, %v1323
  %v1325 = vpop.f32.mrb[0].mxu0
  %1326 = vmatprep.mubr.bf16.mxu0 %v724
  %1327 = vmatmul.mubr.bf16.gmra.mrb[0].mxu0 %v723
  %v1328 = vpop.f32.mrb[0].mxu0
  %v1329 = vadd.f32 %v239, %v1328
  %v1330 = vpop.f32.mrb[0].mxu0
  %v1331 = vpop.f32.mrb[0].mxu0
  %v1332 = vadd.f32 %v239, %v1331
  %v1333 = vpop.f32.mrb[0].mxu0
  %1334 = vmatprep.mubr.bf16.mxu0 %v729
  %1335 = vmatmul.mubr.bf16.gmra.mrb[0].mxu0 %v728
  %v1336 = vpop.f32.mrb[0].mxu0
  %v1337 = vadd.f32 %v239, %v1336
  %v1338 = vpop.f32.mrb[0].mxu0
  %v1339 = vpop.f32.mrb[0].mxu0
  %v1340 = vadd.f32 %v239, %v1339
  %v1341 = vpop.f32.mrb[0].mxu0
  %1342 = vmatprep.mubr.bf16.mxu0 %v734
  %1343 = vmatmul.mubr.bf16.gmra.mrb[0].mxu0 %v733
  %v1344 = vpop.f32.mrb[0].mxu0
  %v1345 = vadd.f32 %v239, %v1344
  %v1346 = vpop.f32.mrb[0].mxu0
  %v1347 = vpop.f32.mrb[0].mxu0
  %v1348 = vadd.f32 %v239, %v1347
  %v1349 = vpop.f32.mrb[0].mxu0
  %1350 = vmatprep.mubr.bf16.mxu0 %v739
  %1351 = vmatmul.mubr.bf16.gmra.mrb[0].mxu0 %v738
  %v1352 = vpop.f32.mrb[0].mxu0
  %v1353 = vadd.f32 %v239, %v1352
  %v1354 = vpop.f32.mrb[0].mxu0
  %v1355 = vpop.f32.mrb[0].mxu0
  %v1356 = vadd.f32 %v239, %v1355
  %v1357 = vpop.f32.mrb[0].mxu0
  %1358 = vmatprep.mubr.bf16.mxu0 %v744
  %1359 = vmatmul.mubr.bf16.gmra.mrb[0].mxu0 %v743
  %v1360 = vpop.f32.mrb[0].mxu0
  %v1361 = vadd.f32 %v239, %v1360
  %v1362 = vpop.f32.mrb[0].mxu0
  %v1363 = vpop.f32.mrb[0].mxu0
  %v1364 = vadd.f32 %v239, %v1363
  %v1365 = vpop.f32.mrb[0].mxu0
  %1366 = vmatprep.mubr.bf16.mxu0 %v749
  %1367 = vmatmul.mubr.bf16.gmra.mrb[0].mxu0 %v748
  %v1368 = vpop.f32.mrb[0].mxu0
  %v1369 = vadd.f32 %v239, %v1368
  %v1370 = vpop.f32.mrb[0].mxu0
  %v1371 = vpop.f32.mrb[0].mxu0
  %v1372 = vadd.f32 %v239, %v1371
  %v1373 = vpop.f32.mrb[0].mxu0
  %1374 = vmatprep.mubr.bf16.mxu0 %v754
  %1375 = vmatmul.mubr.bf16.gmra.mrb[0].mxu0 %v753
  %v1376 = vpop.f32.mrb[0].mxu0
  %v1377 = vadd.f32 %v239, %v1376
  %v1378 = vpop.f32.mrb[0].mxu0
  %v1379 = vpop.f32.mrb[0].mxu0
  %v1380 = vpop.f32.mrb[0].mxu0
  %1381 = vdwg.mxu0
  %1382 = vmatprep.subr.bf16.mxu0 0
  %1383 = vmatpush1.bf16.msra.mxu0 %v1018
  %1384 = vmatprep.subr.bf16.mxu0 0
  %1385 = vmatpush1.bf16.msra.mxu0 %v1019
  %1386 = vmatprep.subr.bf16.mxu0 0
  %1387 = vmatpush1.bf16.msra.mxu0 %v1020
  %1388 = vmatprep.subr.bf16.mxu0 0
  %1389 = vmatpush1.bf16.msra.mxu0 %v1021
  %1390 = vmatprep.subr.bf16.mxu0 0
  %1391 = vmatpush1.bf16.msra.mxu0 %v1022
  %1392 = vmatprep.subr.bf16.mxu0 0
  %1393 = vmatpush1.bf16.msra.mxu0 %v1023
  %1394 = vmatprep.subr.bf16.mxu0 0
  %1395 = vmatpush1.bf16.msra.mxu0 %v1024
  %1396 = vmatprep.subr.bf16.mxu0 0
  %1397 = vmatpush1.bf16.msra.mxu0 %v1025
  %1398 = vmatprep.subr.bf16.mxu0 0
  %1399 = vmatpush1.bf16.msra.mxu0 %v1026
  %1400 = vmatprep.subr.bf16.mxu0 0
  %1401 = vmatpush1.bf16.msra.mxu0 %v1027
  %1402 = vmatprep.subr.bf16.mxu0 0
  %1403 = vmatpush1.bf16.msra.mxu0 %v1028
  %1404 = vmatprep.subr.bf16.mxu0 0
  %1405 = vmatpush1.bf16.msra.mxu0 %v1029
  %1406 = vmatprep.subr.bf16.mxu0 0
  %1407 = vmatpush1.bf16.msra.mxu0 %v1030
  %1408 = vmatprep.subr.bf16.mxu0 0
  %1409 = vmatpush1.bf16.msra.mxu0 %v1031
  %1410 = vmatprep.subr.bf16.mxu0 0
  %1411 = vmatpush1.bf16.msra.mxu0 %v1032
  %1412 = vmatprep.subr.bf16.mxu0 0
  %1413 = vmatpush1.bf16.msra.mxu0 %v1033
  %1414 = vmatprep.mubr.bf16.mxu0 %v636
  %1415 = vmatmul.mubr.bf16.gmra.mrb[0].mxu0 %v635
  %v1416 = vpop.f32.mrb[0].mxu0
  %v1417 = vadd.f32 %v1185, %v1416
  %v1418 = vpop.f32.mrb[0].mxu0
  %v1419 = vpop.f32.mrb[0].mxu0
  %v1420 = vadd.f32 %v1188, %v1419
  %v1421 = vpop.f32.mrb[0].mxu0
  %1422 = vmatprep.mubr.bf16.mxu0 %v641
  %1423 = vmatmul.mubr.bf16.gmra.mrb[0].mxu0 %v640
  %v1424 = vpop.f32.mrb[0].mxu0
  %v1425 = vadd.f32 %v1193, %v1424
  %v1426 = vpop.f32.mrb[0].mxu0
  %v1427 = vpop.f32.mrb[0].mxu0
  %v1428 = vadd.f32 %v1196, %v1427
  %v1429 = vpop.f32.mrb[0].mxu0
  %1430 = vmatprep.mubr.bf16.mxu0 %v646
  %1431 = vmatmul.mubr.bf16.gmra.mrb[0].mxu0 %v645
  %v1432 = vpop.f32.mrb[0].mxu0
  %v1433 = vadd.f32 %v1201, %v1432
  %v1434 = vpop.f32.mrb[0].mxu0
  %v1435 = vpop.f32.mrb[0].mxu0
  %v1436 = vadd.f32 %v1204, %v1435
  %v1437 = vpop.f32.mrb[0].mxu0
  %1438 = vmatprep.mubr.bf16.mxu0 %v651
  %1439 = vmatmul.mubr.bf16.gmra.mrb[0].mxu0 %v650
  %v1440 = vpop.f32.mrb[0].mxu0
  %v1441 = vadd.f32 %v1209, %v1440
  %v1442 = vpop.f32.mrb[0].mxu0
  %v1443 = vpop.f32.mrb[0].mxu0
  %v1444 = vadd.f32 %v1212, %v1443
  %v1445 = vpop.f32.mrb[0].mxu0
  %1446 = vmatprep.mubr.bf16.mxu0 %v656
  %1447 = vmatmul.mubr.bf16.gmra.mrb[0].mxu0 %v655
  %v1448 = vpop.f32.mrb[0].mxu0
  %v1449 = vadd.f32 %v1217, %v1448
  %v1450 = vpop.f32.mrb[0].mxu0
  %v1451 = vpop.f32.mrb[0].mxu0
  %v1452 = vadd.f32 %v1220, %v1451
  %v1453 = vpop.f32.mrb[0].mxu0
  %1454 = vmatprep.mubr.bf16.mxu0 %v661
  %1455 = vmatmul.mubr.bf16.gmra.mrb[0].mxu0 %v660
  %v1456 = vpop.f32.mrb[0].mxu0
  %v1457 = vadd.f32 %v1225, %v1456
  %v1458 = vpop.f32.mrb[0].mxu0
  %v1459 = vpop.f32.mrb[0].mxu0
  %v1460 = vadd.f32 %v1228, %v1459
  %v1461 = vpop.f32.mrb[0].mxu0
  %1462 = vmatprep.mubr.bf16.mxu0 %v666
  %1463 = vmatmul.mubr.bf16.gmra.mrb[0].mxu0 %v665
  %v1464 = vpop.f32.mrb[0].mxu0
  %v1465 = vadd.f32 %v1233, %v1464
  %v1466 = vpop.f32.mrb[0].mxu0
  %v1467 = vpop.f32.mrb[0].mxu0
  %v1468 = vadd.f32 %v1236, %v1467
  %v1469 = vpop.f32.mrb[0].mxu0
  %1470 = vmatprep.mubr.bf16.mxu0 %v671
  %1471 = vmatmul.mubr.bf16.gmra.mrb[0].mxu0 %v670
  %v1472 = vpop.f32.mrb[0].mxu0
  %v1473 = vadd.f32 %v1241, %v1472
  %v1474 = vpop.f32.mrb[0].mxu0
  %v1475 = vpop.f32.mrb[0].mxu0
  %v1476 = vadd.f32 %v1244, %v1475
  %v1477 = vpop.f32.mrb[0].mxu0
  %1478 = vmatprep.mubr.bf16.mxu0 %v676
  %1479 = vmatmul.mubr.bf16.gmra.mrb[0].mxu0 %v675
  %v1480 = vpop.f32.mrb[0].mxu0
  %v1481 = vadd.f32 %v1249, %v1480
  %v1482 = vpop.f32.mrb[0].mxu0
  %v1483 = vpop.f32.mrb[0].mxu0
  %v1484 = vadd.f32 %v1252, %v1483
  %v1485 = vpop.f32.mrb[0].mxu0
  %1486 = vmatprep.mubr.bf16.mxu0 %v681
  %1487 = vmatmul.mubr.bf16.gmra.mrb[0].mxu0 %v680
  %v1488 = vpop.f32.mrb[0].mxu0
  %v1489 = vadd.f32 %v1257, %v1488
  %v1490 = vpop.f32.mrb[0].mxu0
  %v1491 = vpop.f32.mrb[0].mxu0
  %v1492 = vadd.f32 %v1260, %v1491
  %v1493 = vpop.f32.mrb[0].mxu0
  %1494 = vmatprep.mubr.bf16.mxu0 %v686
  %1495 = vmatmul.mubr.bf16.gmra.mrb[0].mxu0 %v685
  %v1496 = vpop.f32.mrb[0].mxu0
  %v1497 = vadd.f32 %v1265, %v1496
  %v1498 = vpop.f32.mrb[0].mxu0
  %v1499 = vpop.f32.mrb[0].mxu0
  %v1500 = vadd.f32 %v1268, %v1499
  %v1501 = vpop.f32.mrb[0].mxu0
  %1502 = vmatprep.mubr.bf16.mxu0 %v691
  %1503 = vmatmul.mubr.bf16.gmra.mrb[0].mxu0 %v690
  %v1504 = vpop.f32.mrb[0].mxu0
  %v1505 = vadd.f32 %v1273, %v1504
  %v1506 = vpop.f32.mrb[0].mxu0
  %v1507 = vpop.f32.mrb[0].mxu0
  %v1508 = vadd.f32 %v1276, %v1507
  %v1509 = vpop.f32.mrb[0].mxu0
  %1510 = vmatprep.mubr.bf16.mxu0 %v696
  %1511 = vmatmul.mubr.bf16.gmra.mrb[0].mxu0 %v695
  %v1512 = vpop.f32.mrb[0].mxu0
  %v1513 = vadd.f32 %v1281, %v1512
  %v1514 = vpop.f32.mrb[0].mxu0
  %v1515 = vpop.f32.mrb[0].mxu0
  %v1516 = vadd.f32 %v1284, %v1515
  %v1517 = vpop.f32.mrb[0].mxu0
  %1518 = vmatprep.mubr.bf16.mxu0 %v701
  %1519 = vmatmul.mubr.bf16.gmra.mrb[0].mxu0 %v700
  %v1520 = vpop.f32.mrb[0].mxu0
  %v1521 = vadd.f32 %v1289, %v1520
  %v1522 = vpop.f32.mrb[0].mxu0
  %v1523 = vpop.f32.mrb[0].mxu0
  %v1524 = vadd.f32 %v1292, %v1523
  %v1525 = vpop.f32.mrb[0].mxu0
  %1526 = vmatprep.mubr.bf16.mxu0 %v706
  %1527 = vmatmul.mubr.bf16.gmra.mrb[0].mxu0 %v705
  %v1528 = vpop.f32.mrb[0].mxu0
  %v1529 = vadd.f32 %v1297, %v1528
  %v1530 = vpop.f32.mrb[0].mxu0
  %v1531 = vpop.f32.mrb[0].mxu0
  %v1532 = vadd.f32 %v1300, %v1531
  %v1533 = vpop.f32.mrb[0].mxu0
  %1534 = vmatprep.mubr.bf16.mxu0 %v711
  %1535 = vmatmul.mubr.bf16.gmra.mrb[0].mxu0 %v710
  %v1536 = vpop.f32.mrb[0].mxu0
  %v1537 = vadd.f32 %v1305, %v1536
  %v1538 = vpop.f32.mrb[0].mxu0
  %v1539 = vpop.f32.mrb[0].mxu0
  %v1540 = vadd.f32 %v1308, %v1539
  %v1541 = vpop.f32.mrb[0].mxu0
  %1542 = vmatprep.mubr.bf16.mxu0 %v716
  %1543 = vmatmul.mubr.bf16.gmra.mrb[0].mxu0 %v715
  %v1544 = vpop.f32.mrb[0].mxu0
  %v1545 = vadd.f32 %v1313, %v1544
  %v1546 = vpop.f32.mrb[0].mxu0
  %v1547 = vpop.f32.mrb[0].mxu0
  %v1548 = vadd.f32 %v1316, %v1547
  %v1549 = vpop.f32.mrb[0].mxu0
  %1550 = vmatprep.mubr.bf16.mxu0 %v721
  %1551 = vmatmul.mubr.bf16.gmra.mrb[0].mxu0 %v720
  %v1552 = vpop.f32.mrb[0].mxu0
  %v1553 = vadd.f32 %v1321, %v1552
  %v1554 = vpop.f32.mrb[0].mxu0
  %v1555 = vpop.f32.mrb[0].mxu0
  %v1556 = vadd.f32 %v1324, %v1555
  %v1557 = vpop.f32.mrb[0].mxu0
  %1558 = vmatprep.mubr.bf16.mxu0 %v726
  %1559 = vmatmul.mubr.bf16.gmra.mrb[0].mxu0 %v725
  %v1560 = vpop.f32.mrb[0].mxu0
  %v1561 = vadd.f32 %v1329, %v1560
  %v1562 = vpop.f32.mrb[0].mxu0
  %v1563 = vpop.f32.mrb[0].mxu0
  %v1564 = vadd.f32 %v1332, %v1563
  %v1565 = vpop.f32.mrb[0].mxu0
  %1566 = vmatprep.mubr.bf16.mxu0 %v731
  %1567 = vmatmul.mubr.bf16.gmra.mrb[0].mxu0 %v730
  %v1568 = vpop.f32.mrb[0].mxu0
  %v1569 = vadd.f32 %v1337, %v1568
  %v1570 = vpop.f32.mrb[0].mxu0
  %v1571 = vpop.f32.mrb[0].mxu0
  %v1572 = vadd.f32 %v1340, %v1571
  %v1573 = vpop.f32.mrb[0].mxu0
  %1574 = vmatprep.mubr.bf16.mxu0 %v736
  %1575 = vmatmul.mubr.bf16.gmra.mrb[0].mxu0 %v735
  %v1576 = vpop.f32.mrb[0].mxu0
  %v1577 = vadd.f32 %v1345, %v1576
  %v1578 = vpop.f32.mrb[0].mxu0
  %v1579 = vpop.f32.mrb[0].mxu0
  %v1580 = vadd.f32 %v1348, %v1579
  %v1581 = vpop.f32.mrb[0].mxu0
  %1582 = vmatprep.mubr.bf16.mxu0 %v741
  %1583 = vmatmul.mubr.bf16.gmra.mrb[0].mxu0 %v740
  %v1584 = vpop.f32.mrb[0].mxu0
  %v1585 = vadd.f32 %v1353, %v1584
  %v1586 = vpop.f32.mrb[0].mxu0
  %v1587 = vpop.f32.mrb[0].mxu0
  %v1588 = vadd.f32 %v1356, %v1587
  %v1589 = vpop.f32.mrb[0].mxu0
  %1590 = vmatprep.mubr.bf16.mxu0 %v746
  %1591 = vmatmul.mubr.bf16.gmra.mrb[0].mxu0 %v745
  %v1592 = vpop.f32.mrb[0].mxu0
  %v1593 = vadd.f32 %v1361, %v1592
  %v1594 = vpop.f32.mrb[0].mxu0
  %v1595 = vpop.f32.mrb[0].mxu0
  %v1596 = vadd.f32 %v1364, %v1595
  %v1597 = vpop.f32.mrb[0].mxu0
  %1598 = vmatprep.mubr.bf16.mxu0 %v751
  %1599 = vmatmul.mubr.bf16.gmra.mrb[0].mxu0 %v750
  %v1600 = vpop.f32.mrb[0].mxu0
  %v1601 = vadd.f32 %v1369, %v1600
  %v1602 = vpop.f32.mrb[0].mxu0
  %v1603 = vpop.f32.mrb[0].mxu0
  %v1604 = vadd.f32 %v1372, %v1603
  %v1605 = vpop.f32.mrb[0].mxu0
  %1606 = vmatprep.mubr.bf16.mxu0 %v756
  %1607 = vmatmul.mubr.bf16.gmra.mrb[0].mxu0 %v755
  %v1608 = vpop.f32.mrb[0].mxu0
  %v1609 = vadd.f32 %v1377, %v1608
  %v1610 = vpop.f32.mrb[0].mxu0
  %v1611 = vpop.f32.mrb[0].mxu0
  %v1612 = vpop.f32.mrb[0].mxu0
  %1613 = vdwg.mxu0
  %1614 = vmatprep.subr.bf16.mxu0 0
  %1615 = vmatpush1.bf16.msra.mxu0 %v1034
  %1616 = vmatprep.subr.bf16.mxu0 0
  %1617 = vmatpush1.bf16.msra.mxu0 %v1035
  %1618 = vmatprep.subr.bf16.mxu0 0
  %1619 = vmatpush1.bf16.msra.mxu0 %v1036
  %1620 = vmatprep.subr.bf16.mxu0 0
  %1621 = vmatpush1.bf16.msra.mxu0 %v1037
  %1622 = vmatprep.subr.bf16.mxu0 0
  %1623 = vmatpush1.bf16.msra.mxu0 0
  %1624 = vmatprep.subr.bf16.mxu0 0
  %1625 = vmatpush1.bf16.msra.mxu0 0
  %1626 = vmatprep.subr.bf16.mxu0 0
  %1627 = vmatpush1.bf16.msra.mxu0 0
  %1628 = vmatprep.subr.bf16.mxu0 0
  %1629 = vmatpush1.bf16.msra.mxu0 0
  %1630 = vmatprep.subr.bf16.mxu0 0
  %1631 = vmatpush1.bf16.msra.mxu0 0
  %1632 = vmatprep.subr.bf16.mxu0 0
  %1633 = vmatpush1.bf16.msra.mxu0 0
  %1634 = vmatprep.subr.bf16.mxu0 0
  %1635 = vmatpush1.bf16.msra.mxu0 0
  %1636 = vmatprep.subr.bf16.mxu0 0
  %1637 = vmatpush1.bf16.msra.mxu0 0
  %1638 = vmatprep.subr.bf16.mxu0 0
  %1639 = vmatpush1.bf16.msra.mxu0 0
  %1640 = vmatprep.subr.bf16.mxu0 0
  %1641 = vmatpush1.bf16.msra.mxu0 0
  %1642 = vmatprep.subr.bf16.mxu0 0
  %1643 = vmatpush1.bf16.msra.mxu0 0
  %1644 = vmatprep.subr.bf16.mxu0 0
  %1645 = vmatpush1.bf16.msra.mxu0 0
  %1646 = vmatprep.mubr.bf16.mxu0 0
  %1647 = vmatmul.mubr.bf16.gmra.mrb[0].mxu0 %v1076
  %v1648 = vpop.f32.mrb[0].mxu0
  %v1649 = vadd.f32 %v1417, %v1648
  %v1650 = vpop.f32.mrb[0].mxu0
  %v1651 = vpop.f32.mrb[0].mxu0
  %v1652 = vadd.f32 %v1420, %v1651
  %v1653 = vpop.f32.mrb[0].mxu0
  %1654 = vmatprep.mubr.bf16.mxu0 0
  %1655 = vmatmul.mubr.bf16.gmra.mrb[0].mxu0 %v1079
  %v1656 = vpop.f32.mrb[0].mxu0
  %v1657 = vadd.f32 %v1425, %v1656
  %v1658 = vpop.f32.mrb[0].mxu0
  %v1659 = vpop.f32.mrb[0].mxu0
  %v1660 = vadd.f32 %v1428, %v1659
  %v1661 = vpop.f32.mrb[0].mxu0
  %1662 = vmatprep.mubr.bf16.mxu0 0
  %1663 = vmatmul.mubr.bf16.gmra.mrb[0].mxu0 %v1082
  %v1664 = vpop.f32.mrb[0].mxu0
  %v1665 = vadd.f32 %v1433, %v1664
  %v1666 = vpop.f32.mrb[0].mxu0
  %v1667 = vpop.f32.mrb[0].mxu0
  %v1668 = vadd.f32 %v1436, %v1667
  %v1669 = vpop.f32.mrb[0].mxu0
  %1670 = vmatprep.mubr.bf16.mxu0 0
  %1671 = vmatmul.mubr.bf16.gmra.mrb[0].mxu0 %v1085
  %v1672 = vpop.f32.mrb[0].mxu0
  %v1673 = vadd.f32 %v1441, %v1672
  %v1674 = vpop.f32.mrb[0].mxu0
  %v1675 = vpop.f32.mrb[0].mxu0
  %v1676 = vadd.f32 %v1444, %v1675
  %v1677 = vpop.f32.mrb[0].mxu0
  %1678 = vmatprep.mubr.bf16.mxu0 0
  %1679 = vmatmul.mubr.bf16.gmra.mrb[0].mxu0 %v1088
  %v1680 = vpop.f32.mrb[0].mxu0
  %v1681 = vadd.f32 %v1449, %v1680
  %v1682 = vpop.f32.mrb[0].mxu0
  %v1683 = vpop.f32.mrb[0].mxu0
  %v1684 = vadd.f32 %v1452, %v1683
  %v1685 = vpop.f32.mrb[0].mxu0
  %1686 = vmatprep.mubr.bf16.mxu0 0
  %1687 = vmatmul.mubr.bf16.gmra.mrb[0].mxu0 %v1091
  %v1688 = vpop.f32.mrb[0].mxu0
  %v1689 = vadd.f32 %v1457, %v1688
  %v1690 = vpop.f32.mrb[0].mxu0
  %v1691 = vpop.f32.mrb[0].mxu0
  %v1692 = vadd.f32 %v1460, %v1691
  %v1693 = vpop.f32.mrb[0].mxu0
  %1694 = vmatprep.mubr.bf16.mxu0 0
  %1695 = vmatmul.mubr.bf16.gmra.mrb[0].mxu0 %v1094
  %v1696 = vpop.f32.mrb[0].mxu0
  %v1697 = vadd.f32 %v1465, %v1696
  %v1698 = vpop.f32.mrb[0].mxu0
  %v1699 = vpop.f32.mrb[0].mxu0
  %v1700 = vadd.f32 %v1468, %v1699
  %v1701 = vpop.f32.mrb[0].mxu0
  %1702 = vmatprep.mubr.bf16.mxu0 0
  %1703 = vmatmul.mubr.bf16.gmra.mrb[0].mxu0 %v1097
  %v1704 = vpop.f32.mrb[0].mxu0
  %v1705 = vadd.f32 %v1473, %v1704
  %v1706 = vpop.f32.mrb[0].mxu0
  %v1707 = vpop.f32.mrb[0].mxu0
  %v1708 = vadd.f32 %v1476, %v1707
  %v1709 = vpop.f32.mrb[0].mxu0
  %1710 = vmatprep.mubr.bf16.mxu0 0
  %1711 = vmatmul.mubr.bf16.gmra.mrb[0].mxu0 %v1100
  %v1712 = vpop.f32.mrb[0].mxu0
  %v1713 = vadd.f32 %v1481, %v1712
  %v1714 = vpop.f32.mrb[0].mxu0
  %v1715 = vpop.f32.mrb[0].mxu0
  %v1716 = vadd.f32 %v1484, %v1715
  %v1717 = vpop.f32.mrb[0].mxu0
  %1718 = vmatprep.mubr.bf16.mxu0 0
  %1719 = vmatmul.mubr.bf16.gmra.mrb[0].mxu0 %v1103
  %v1720 = vpop.f32.mrb[0].mxu0
  %v1721 = vadd.f32 %v1489, %v1720
  %v1722 = vpop.f32.mrb[0].mxu0
  %v1723 = vpop.f32.mrb[0].mxu0
  %v1724 = vadd.f32 %v1492, %v1723
  %v1725 = vpop.f32.mrb[0].mxu0
  %1726 = vmatprep.mubr.bf16.mxu0 0
  %1727 = vmatmul.mubr.bf16.gmra.mrb[0].mxu0 %v1106
  %v1728 = vpop.f32.mrb[0].mxu0
  %v1729 = vadd.f32 %v1497, %v1728
  %v1730 = vpop.f32.mrb[0].mxu0
  %v1731 = vpop.f32.mrb[0].mxu0
  %v1732 = vadd.f32 %v1500, %v1731
  %v1733 = vpop.f32.mrb[0].mxu0
  %1734 = vmatprep.mubr.bf16.mxu0 0
  %1735 = vmatmul.mubr.bf16.gmra.mrb[0].mxu0 %v1109
  %v1736 = vpop.f32.mrb[0].mxu0
  %v1737 = vadd.f32 %v1505, %v1736
  %v1738 = vpop.f32.mrb[0].mxu0
  %v1739 = vpop.f32.mrb[0].mxu0
  %v1740 = vadd.f32 %v1508, %v1739
  %v1741 = vpop.f32.mrb[0].mxu0
  %1742 = vmatprep.mubr.bf16.mxu0 0
  %1743 = vmatmul.mubr.bf16.gmra.mrb[0].mxu0 %v1112
  %v1744 = vpop.f32.mrb[0].mxu0
  %v1745 = vadd.f32 %v1513, %v1744
  %v1746 = vpop.f32.mrb[0].mxu0
  %v1747 = vpop.f32.mrb[0].mxu0
  %v1748 = vadd.f32 %v1516, %v1747
  %v1749 = vpop.f32.mrb[0].mxu0
  %1750 = vmatprep.mubr.bf16.mxu0 0
  %1751 = vmatmul.mubr.bf16.gmra.mrb[0].mxu0 %v1115
  %v1752 = vpop.f32.mrb[0].mxu0
  %v1753 = vadd.f32 %v1521, %v1752
  %v1754 = vpop.f32.mrb[0].mxu0
  %v1755 = vpop.f32.mrb[0].mxu0
  %v1756 = vadd.f32 %v1524, %v1755
  %v1757 = vpop.f32.mrb[0].mxu0
  %1758 = vmatprep.mubr.bf16.mxu0 0
  %1759 = vmatmul.mubr.bf16.gmra.mrb[0].mxu0 %v1118
  %v1760 = vpop.f32.mrb[0].mxu0
  %v1761 = vadd.f32 %v1529, %v1760
  %v1762 = vpop.f32.mrb[0].mxu0
  %v1763 = vpop.f32.mrb[0].mxu0
  %v1764 = vadd.f32 %v1532, %v1763
  %v1765 = vpop.f32.mrb[0].mxu0
  %1766 = vmatprep.mubr.bf16.mxu0 0
  %1767 = vmatmul.mubr.bf16.gmra.mrb[0].mxu0 %v1121
  %v1768 = vpop.f32.mrb[0].mxu0
  %v1769 = vadd.f32 %v1537, %v1768
  %v1770 = vpop.f32.mrb[0].mxu0
  %v1771 = vpop.f32.mrb[0].mxu0
  %v1772 = vadd.f32 %v1540, %v1771
  %v1773 = vpop.f32.mrb[0].mxu0
  %1774 = vmatprep.mubr.bf16.mxu0 0
  %1775 = vmatmul.mubr.bf16.gmra.mrb[0].mxu0 %v1124
  %v1776 = vpop.f32.mrb[0].mxu0
  %v1777 = vadd.f32 %v1545, %v1776
  %v1778 = vpop.f32.mrb[0].mxu0
  %v1779 = vpop.f32.mrb[0].mxu0
  %v1780 = vadd.f32 %v1548, %v1779
  %v1781 = vpop.f32.mrb[0].mxu0
  %1782 = vmatprep.mubr.bf16.mxu0 0
  %1783 = vmatmul.mubr.bf16.gmra.mrb[0].mxu0 %v1127
  %v1784 = vpop.f32.mrb[0].mxu0
  %v1785 = vadd.f32 %v1553, %v1784
  %v1786 = vpop.f32.mrb[0].mxu0
  %v1787 = vpop.f32.mrb[0].mxu0
  %v1788 = vadd.f32 %v1556, %v1787
  %v1789 = vpop.f32.mrb[0].mxu0
  %1790 = vmatprep.mubr.bf16.mxu0 0
  %1791 = vmatmul.mubr.bf16.gmra.mrb[0].mxu0 %v1130
  %v1792 = vpop.f32.mrb[0].mxu0
  %v1793 = vadd.f32 %v1561, %v1792
  %v1794 = vpop.f32.mrb[0].mxu0
  %v1795 = vpop.f32.mrb[0].mxu0
  %v1796 = vadd.f32 %v1564, %v1795
  %v1797 = vpop.f32.mrb[0].mxu0
  %1798 = vmatprep.mubr.bf16.mxu0 0
  %1799 = vmatmul.mubr.bf16.gmra.mrb[0].mxu0 %v1133
  %v1800 = vpop.f32.mrb[0].mxu0
  %v1801 = vadd.f32 %v1569, %v1800
  %v1802 = vpop.f32.mrb[0].mxu0
  %v1803 = vpop.f32.mrb[0].mxu0
  %v1804 = vadd.f32 %v1572, %v1803
  %v1805 = vpop.f32.mrb[0].mxu0
  %1806 = vmatprep.mubr.bf16.mxu0 0
  %1807 = vmatmul.mubr.bf16.gmra.mrb[0].mxu0 %v1136
  %v1808 = vpop.f32.mrb[0].mxu0
  %v1809 = vadd.f32 %v1577, %v1808
  %v1810 = vpop.f32.mrb[0].mxu0
  %v1811 = vpop.f32.mrb[0].mxu0
  %v1812 = vadd.f32 %v1580, %v1811
  %v1813 = vpop.f32.mrb[0].mxu0
  %1814 = vmatprep.mubr.bf16.mxu0 0
  %1815 = vmatmul.mubr.bf16.gmra.mrb[0].mxu0 %v1139
  %v1816 = vpop.f32.mrb[0].mxu0
  %v1817 = vadd.f32 %v1585, %v1816
  %v1818 = vpop.f32.mrb[0].mxu0
  %v1819 = vpop.f32.mrb[0].mxu0
  %v1820 = vadd.f32 %v1588, %v1819
  %v1821 = vpop.f32.mrb[0].mxu0
  %1822 = vmatprep.mubr.bf16.mxu0 0
  %1823 = vmatmul.mubr.bf16.gmra.mrb[0].mxu0 %v1142
  %v1824 = vpop.f32.mrb[0].mxu0
  %v1825 = vadd.f32 %v1593, %v1824
  %v1826 = vpop.f32.mrb[0].mxu0
  %v1827 = vpop.f32.mrb[0].mxu0
  %v1828 = vadd.f32 %v1596, %v1827
  %v1829 = vpop.f32.mrb[0].mxu0
  %1830 = vmatprep.mubr.bf16.mxu0 0
  %1831 = vmatmul.mubr.bf16.gmra.mrb[0].mxu0 %v1145
  %v1832 = vpop.f32.mrb[0].mxu0
  %v1833 = vadd.f32 %v1601, %v1832
  %v1834 = vpop.f32.mrb[0].mxu0
  %v1835 = vpop.f32.mrb[0].mxu0
  %v1836 = vadd.f32 %v1604, %v1835
  %v1837 = vpop.f32.mrb[0].mxu0
  %1838 = vmatprep.mubr.bf16.mxu0 0
  %1839 = vmatmul.mubr.bf16.gmra.mrb[0].mxu0 %v1148
  %v1840 = vpop.f32.mrb[0].mxu0
  %v1841 = vadd.f32 %v1609, %v1840
  %v1842 = vpop.f32.mrb[0].mxu0
  %v1843 = vpop.f32.mrb[0].mxu0
  %v1844 = vpop.f32.mrb[0].mxu0
  %1845 = vdwg.mxu0
  %1846 = vst [vmem:[%s3] sm:$0xff] %v1649
  %1847 = vst [vmem:[%s3 + $0x8] sm:$0xff] %v1652
  %1848 = vst [vmem:[%s3 + $0x10] sm:$0xff] %v1657
  %1849 = vst [vmem:[%s3 + $0x18] sm:$0xff] %v1660
  %1850 = vst [vmem:[%s3 + $0x20] sm:$0xff] %v1665
  %1851 = vst [vmem:[%s3 + $0x28] sm:$0xff] %v1668
  %1852 = vst [vmem:[%s3 + $0x30] sm:$0xff] %v1673
  %1853 = vst [vmem:[%s3 + $0x38] sm:$0xff] %v1676
  %1854 = vst [vmem:[%s3 + $0x40] sm:$0xff] %v1681
  %1855 = vst [vmem:[%s3 + $0x48] sm:$0xff] %v1684
  %1856 = vst [vmem:[%s3 + $0x50] sm:$0xff] %v1689
  %1857 = vst [vmem:[%s3 + $0x58] sm:$0xff] %v1692
  %1858 = vst [vmem:[%s3 + $0x60] sm:$0xff] %v1697
  %1859 = vst [vmem:[%s3 + $0x68] sm:$0xff] %v1700
  %1860 = vst [vmem:[%s3 + $0x70] sm:$0xff] %v1705
  %1861 = vst [vmem:[%s3 + $0x78] sm:$0xff] %v1708
  %1862 = vst [vmem:[%s3 + $0x80] sm:$0xff] %v1713
  %1863 = vst [vmem:[%s3 + $0x88] sm:$0xff] %v1716
  %1864 = vst [vmem:[%s3 + $0x90] sm:$0xff] %v1721
  %1865 = vst [vmem:[%s3 + $0x98] sm:$0xff] %v1724
  %1866 = vst [vmem:[%s3 + $0xa0] sm:$0xff] %v1729
  %1867 = vst [vmem:[%s3 + $0xa8] sm:$0xff] %v1732
  %1868 = vst [vmem:[%s3 + $0xb0] sm:$0xff] %v1737
  %1869 = vst [vmem:[%s3 + $0xb8] sm:$0xff] %v1740
  %1870 = vst [vmem:[%s3 + $0xc0] sm:$0xff] %v1745
  %1871 = vst [vmem:[%s3 + $0xc8] sm:$0xff] %v1748
  %1872 = vst [vmem:[%s3 + $0xd0] sm:$0xff] %v1753
  %1873 = vst [vmem:[%s3 + $0xd8] sm:$0xff] %v1756
  %1874 = vst [vmem:[%s3 + $0xe0] sm:$0xff] %v1761
  %1875 = vst [vmem:[%s3 + $0xe8] sm:$0xff] %v1764
  %1876 = vst [vmem:[%s3 + $0xf0] sm:$0xff] %v1769
  %1877 = vst [vmem:[%s3 + $0xf8] sm:$0xff] %v1772
  %1878 = vst [vmem:[%s3 + $0x100] sm:$0xff] %v1777
  %1879 = vst [vmem:[%s3 + $0x108] sm:$0xff] %v1780
  %1880 = vst [vmem:[%s3 + $0x110] sm:$0xff] %v1785
  %1881 = vst [vmem:[%s3 + $0x118] sm:$0xff] %v1788
  %1882 = vst [vmem:[%s3 + $0x120] sm:$0xff] %v1793
  %1883 = vst [vmem:[%s3 + $0x128] sm:$0xff] %v1796
  %1884 = vst [vmem:[%s3 + $0x130] sm:$0xff] %v1801
  %1885 = vst [vmem:[%s3 + $0x138] sm:$0xff] %v1804
  %1886 = vst [vmem:[%s3 + $0x140] sm:$0xff] %v1809
  %1887 = vst [vmem:[%s3 + $0x148] sm:$0xff] %v1812
  %1888 = vst [vmem:[%s3 + $0x150] sm:$0xff] %v1817
  %1889 = vst [vmem:[%s3 + $0x158] sm:$0xff] %v1820
  %1890 = vst [vmem:[%s3 + $0x160] sm:$0xff] %v1825
  %1891 = vst [vmem:[%s3 + $0x168] sm:$0xff] %v1828
  %1892 = vst [vmem:[%s3 + $0x170] sm:$0xff] %v1833
  %1893 = vst [vmem:[%s3 + $0x178] sm:$0xff] %v1836
  %1894 = vst [vmem:[%s3 + $0x180] sm:$0xff] %v1841
  // Predicated region
  $region14: #{mnist_conv_forward.10} parent=0 // pred_check
    _
  $region15: #{mnist_conv_forward.10} parent=0 // pred_check_branch
    %1896 = sbr.rel (0) target = $region17
  $region16: #{mnist_conv_forward.10} parent=0 // pred_region
    _
  $region17: #{mnist_conv_forward.10} parent=0 // pred_fallthru
    _
  // Predicated region
  $region18: #{mnist_conv_forward.10} parent=0 // pred_check
    _
  $region19: #{mnist_conv_forward.10} parent=0 // pred_check_branch
    %1898 = sbr.rel (0) target = $region21
  $region20: #{mnist_conv_forward.10} parent=0 // pred_region
    _
  $region21: #{mnist_conv_forward.10} parent=0 // pred_fallthru
    _

// kernel: mnist_conv_forward.11
$region0: #{mnist_conv_forward.11}
  #allocation0 [shape = 'u32[]', space=smem, size = 0x4, offset = 0x4, fixed_abs, tag = 'smem constant byte address 0x4 - core index']
  #allocation1 [shape = 'u32[144,128]{1,0:T(1,128)}', space=vmem, size = 0x12000, scoped, tag = 'internal scratch']
  #allocation2 [shape = 'f32[2,6272]{1,0:T(2,128)}', space=vmem, size = 0xc400, scoped, tag = 'scratch operand']
  %s0 = inlined_call_operand.vmem [shape: f32[4,2,6272], index: 0, kind: input, shape index: {}]
  %s1 = inlined_call_operand.vmem [shape: f32[4,2,6272], index: 1, kind: output, shape index: {}]
  %s2 = sld [smem:[#allocation0]]
  $region41: #{mnist_conv_forward.11} parent=0
    _
  %s4 = ssub.s32 1, %s2
  %s5 = scalar_select 0, %s4, %s2
  loop: start=0, step=1, limit=6
  $region2: #{mnist_conv_forward.11} parent=0 // loop_pre_header
    _
  $region3: #{mnist_conv_forward.11} parent=0 // loop_header
    %s7 = sphi 0, %s11
    %p8 = scmp.ge.s32.totalorder %s7, 6
    %s14 = sphi 0, %s26
    %s15 = sphi 0, %s22
    %s16 = sphi 0, %s14
    %s17 = sphi 0, %s15
    %s18 = sphi 0, %s16
    %s19 = sphi 0, %s17
    %s31 = sphi 0, %s33
    %s34 = sphi 0, %s31
    %s35 = sphi 0, %s34
    %s51 = sphi 0, %s35
    %s59 = sphi 0, %s61
    %s62 = sphi 0, %s59
    %s63 = sphi 0, %s62
    %s79 = sphi 0, %s63
  $region4: #{mnist_conv_forward.11} parent=0 // loop_header_branch
    %10 = sbr.rel (%p8) target = $region8
  $region5: #{mnist_conv_forward.11} parent=0 // loop_body
    %s12 = ssub.s32 %s7, 1
    %s13 = ssub.s32 %s7, 2
    %s20 = sadd.s32 1, %s15
    %p21 = scmp.ge.s32.totalorder %s20, 4
    %s22 = scalar_select %p21, 0, %s20
    %s23 = sadd.s32 1, %s14
    %s24 = scalar_select %p21, %s23, %s14
    %p25 = scmp.ge.s32.totalorder %s24, 1
    %s26 = scalar_select %p25, 0, %s24
    %s27 = ssub.s32 %s15, %s22
    %s28 = ssub.s32 %s14, %s26
    %s29 = sor.u32 %s27, %s28
    %p30 = scmp.eq.s32.totalorder %s29, 0
    %s32 = sadd.s32 %s31, 1
    %s33 = scalar_select %p30, %s31, %s32
    %p36 = pneg %p30
    %p37 = scmp.eq.s32.totalorder %s7, 3
    %p38 = por %p36, %p37
    %p39 = scmp.ne.s32.totalorder %s31, %s34
    %p40 = scmp.eq.s32.totalorder %s7, 0
    %p41 = por %p39, %p40
    %p42 = scmp.ne.s32.totalorder %s31, %s34
    %p43 = scmp.eq.s32.totalorder %s12, 3
    %p44 = por %p42, %p43
    %p45 = scmp.ne.s32.totalorder %s34, %s35
    %p46 = scmp.eq.s32.totalorder %s12, 0
    %p47 = por %p45, %p46
    %p48 = scmp.ne.s32.totalorder %s34, %s35
    %p49 = scmp.eq.s32.totalorder %s13, 3
    %p50 = por %p48, %p49
    %p52 = scmp.ne.s32.totalorder %s35, %s51
    %p53 = scmp.eq.s32.totalorder %s13, 0
    %p54 = por %p52, %p53
    %s55 = ssub.s32 %s15, %s22
    %s56 = ssub.s32 %s14, %s26
    %s57 = sor.u32 %s55, %s56
    %p58 = scmp.eq.s32.totalorder %s57, 0
    %s60 = sadd.s32 %s59, 1
    %s61 = scalar_select %p58, %s59, %s60
    %p64 = pneg %p58
    %p65 = scmp.eq.s32.totalorder %s7, 3
    %p66 = por %p64, %p65
    %p67 = scmp.ne.s32.totalorder %s59, %s62
    %p68 = scmp.eq.s32.totalorder %s7, 0
    %p69 = por %p67, %p68
    %p70 = scmp.ne.s32.totalorder %s59, %s62
    %p71 = scmp.eq.s32.totalorder %s12, 3
    %p72 = por %p70, %p71
    %p73 = scmp.ne.s32.totalorder %s62, %s63
    %p74 = scmp.eq.s32.totalorder %s12, 0
    %p75 = por %p73, %p74
    %p76 = scmp.ne.s32.totalorder %s62, %s63
    %p77 = scmp.eq.s32.totalorder %s13, 3
    %p78 = por %p76, %p77
    %p80 = scmp.ne.s32.totalorder %s63, %s79
    %p81 = scmp.eq.s32.totalorder %s13, 0
    %p82 = por %p80, %p81
    %p83 = scmp.le.s32.totalorder 1, %s7
    %p84 = scmp.lt.s32.totalorder %s7, 5
    %p85 = pnand %p83, %p84
    %p86 = pneg %p85
    // Predicated region
    $region9: #{mnist_conv_forward.11} parent=5 // pred_check
      _
    $region10: #{mnist_conv_forward.11} parent=5 // pred_check_branch
      %88 = sbr.rel (%p85) target = $region12
    $region11: #{mnist_conv_forward.11} parent=5 // pred_region
      %s89 = ssub.s32 %s7, 1
    $region12: #{mnist_conv_forward.11} parent=5 // pred_fallthru
      _
    %p90 = scmp.lt.s32.totalorder %s7, 4
    // Predicated region
    $region13: #{mnist_conv_forward.11} parent=5 // pred_check
      %p91 = pneg %p90
    $region14: #{mnist_conv_forward.11} parent=5 // pred_check_branch
      %93 = sbr.rel (%p91) target = $region16
    $region15: #{mnist_conv_forward.11} parent=5 // pred_region
      // Predicated region
      $region17: #{mnist_conv_forward.11} parent=15 // pred_check
        %p94 = pneg %p41
      $region18: #{mnist_conv_forward.11} parent=15 // pred_check_branch
        %96 = sbr.rel (%p94) target = $region20
      $region19: #{mnist_conv_forward.11} parent=15 // pred_region
        %s97 = smul.u32 49, %s14
        %p98 = scmp.lt.s32.totalorder %s15, 3
        %s99 = scalar_select %p98, %s15, 3
        %p100 = scmp.lt.s32.totalorder %s97, 48
        %s101 = scalar_select %p100, %s97, 48
        %s102 = smul.addr %s99, 49
        %s103 = sadd.s32 %s101, %s102
        %s104 = smul.addr %s103, 2
        %s105 = scalar_lea.vmem %s0, %s104
        %s106 = smul.u32 49, %s14
      $region20: #{mnist_conv_forward.11} parent=15 // pred_fallthru
        _
    $region16: #{mnist_conv_forward.11} parent=5 // pred_fallthru
      _
    %p107 = scmp.le.s32.totalorder 1, %s7
    %p108 = scmp.lt.s32.totalorder %s7, 5
    %p109 = pnand %p107, %p108
    %p110 = pneg %p109
    // Predicated region
    $region21: #{mnist_conv_forward.11} parent=5 // pred_check
      _
    $region22: #{mnist_conv_forward.11} parent=5 // pred_check_branch
      %112 = sbr.rel (%p109) target = $region24
    $region23: #{mnist_conv_forward.11} parent=5 // pred_region
      %s113 = ssub.s32 %s7, 1
      %s114 = smul.u32 49, %s16
      %p115 = scmp.lt.s32.totalorder %s17, 3
      %s116 = scalar_select %p115, %s17, 3
      %p117 = scmp.lt.s32.totalorder %s114, 48
      %s118 = scalar_select %p117, %s114, 48
      %s119 = smul.addr %s116, 49
      %s120 = sadd.s32 %s118, %s119
      %s121 = smul.addr %s120, 2
      %s122 = scalar_lea.vmem %s0, %s121
      %p123 = pneg %p47
      %p124 = pneg %p44
      %p125 = pneg %p75
      %p126 = pneg %p72
      %s127 = smul.u32 49, %s16
      %p128 = scmp.lt.s32.totalorder %s17, 3
      %s129 = scalar_select %p128, %s17, 3
      %p130 = scmp.lt.s32.totalorder %s127, 48
      %s131 = scalar_select %p130, %s127, 48
      %s132 = smul.addr %s129, 49
      %s133 = sadd.s32 %s131, %s132
      %s134 = smul.addr %s133, 2
      %s135 = scalar_lea.vmem %s1, %s134
      %s136 = smul.u32 49, %s16
      %p137 = scmp.lt.s32.totalorder %s17, 3
      %s138 = scalar_select %p137, %s17, 3
      %p139 = scmp.lt.s32.totalorder %s136, 48
      %s140 = scalar_select %p139, %s136, 48
      %s141 = smul.addr %s138, 49
      %s142 = sadd.s32 %s140, %s141
      %s143 = smul.addr %s142, 2
      %s144 = scalar_lea.vmem %s0, %s143
      %s145 = smul.u32 49, %s16
      %s146 = smul.u32 49, %s16
      %p147 = scmp.lt.s32.totalorder %s17, 3
      %s148 = scalar_select %p147, %s17, 3
      %p149 = scmp.lt.s32.totalorder %s146, 48
      %s150 = scalar_select %p149, %s146, 48
      %s151 = smul.addr %s148, 49
      %s152 = sadd.s32 %s150, %s151
      %s153 = smul.addr %s152, 2
      %s154 = scalar_lea.vmem %s1, %s153
      %s155 = smul.u32 49, %s16
      %p156 = scmp.eq.s32.totalorder %s17, 0
      // Predicated region
      $region25: #{mnist_conv_forward.11} parent=23 // pred_check
        %p157 = pneg %p156
      $region26: #{mnist_conv_forward.11} parent=23 // pred_check_branch
        %159 = sbr.rel (%p157) target = $region28
      $region27: #{mnist_conv_forward.11} parent=23 // pred_region
        %160 = vst [vmem:[#allocation2] sm:$0xff] 0.0
        %161 = vst [vmem:[#allocation2 + $0x8] sm:$0xff] 0.0
        %162 = vst [vmem:[#allocation2 + $0x10] sm:$0xff] 0.0
        %163 = vst [vmem:[#allocation2 + $0x18] sm:$0xff] 0.0
        %164 = vst [vmem:[#allocation2 + $0x20] sm:$0xff] 0.0
        %165 = vst [vmem:[#allocation2 + $0x28] sm:$0xff] 0.0
        %166 = vst [vmem:[#allocation2 + $0x30] sm:$0xff] 0.0
        %167 = vst [vmem:[#allocation2 + $0x38] sm:$0xff] 0.0
        %168 = vst [vmem:[#allocation2 + $0x40] sm:$0xff] 0.0
        %169 = vst [vmem:[#allocation2 + $0x48] sm:$0xff] 0.0
        %170 = vst [vmem:[#allocation2 + $0x50] sm:$0xff] 0.0
        %171 = vst [vmem:[#allocation2 + $0x58] sm:$0xff] 0.0
        %172 = vst [vmem:[#allocation2 + $0x60] sm:$0x3] 0.0
      $region28: #{mnist_conv_forward.11} parent=23 // pred_fallthru
        _
      %v173 = vld [vmem:[#allocation2] sm:$0xff]
      %v174 = vld [vmem:[#allocation2 + $0x8] sm:$0xff]
      %v175 = vld [vmem:[#allocation2 + $0x10] sm:$0xff]
      %v176 = vld [vmem:[#allocation2 + $0x18] sm:$0xff]
      %v177 = vld [vmem:[#allocation2 + $0x20] sm:$0xff]
      %v178 = vld [vmem:[#allocation2 + $0x28] sm:$0xff]
      %v179 = vld [vmem:[#allocation2 + $0x30] sm:$0xff]
      %v180 = vld [vmem:[#allocation2 + $0x38] sm:$0xff]
      %v181 = vld [vmem:[#allocation2 + $0x40] sm:$0xff]
      %v182 = vld [vmem:[#allocation2 + $0x48] sm:$0xff]
      %v183 = vld [vmem:[#allocation2 + $0x50] sm:$0xff]
      %v184 = vld [vmem:[#allocation2 + $0x58] sm:$0xff]
      %v185 = vld [vmem:[#allocation2 + $0x60] sm:$0x3]
      %v186 = vld [vmem:[%s144] sm:$0xff]
      %v187 = vld [vmem:[%s144 + $0x8] sm:$0xff]
      %v188 = vld [vmem:[%s144 + $0x10] sm:$0xff]
      %v189 = vld [vmem:[%s144 + $0x18] sm:$0xff]
      %v190 = vld [vmem:[%s144 + $0x20] sm:$0xff]
      %v191 = vld [vmem:[%s144 + $0x28] sm:$0xff]
      %v192 = vld [vmem:[%s144 + $0x30] sm:$0xff]
      %v193 = vld [vmem:[%s144 + $0x38] sm:$0xff]
      %v194 = vld [vmem:[%s144 + $0x40] sm:$0xff]
      %v195 = vld [vmem:[%s144 + $0x48] sm:$0xff]
      %v196 = vld [vmem:[%s144 + $0x50] sm:$0xff]
      %v197 = vld [vmem:[%s144 + $0x58] sm:$0xff]
      %v198 = vld [vmem:[%s144 + $0x60] sm:$0x3]
      %v199 = vadd.f32 %v173, %v186
      %v200 = vadd.f32 %v174, %v187
      %v201 = vadd.f32 %v175, %v188
      %v202 = vadd.f32 %v176, %v189
      %v203 = vadd.f32 %v177, %v190
      %v204 = vadd.f32 %v178, %v191
      %v205 = vadd.f32 %v179, %v192
      %v206 = vadd.f32 %v180, %v193
      %v207 = vadd.f32 %v181, %v194
      %v208 = vadd.f32 %v182, %v195
      %v209 = vadd.f32 %v183, %v196
      %v210 = vadd.f32 %v184, %v197
      %v211 = vadd.f32 %v185, %v198
      %vm212 = vcmp.gt.f32.partialorder %v199, 0.5
      %vm213 = vcmp.gt.f32.partialorder %v200, 0.5
      %vm214 = vcmp.gt.f32.partialorder %v201, 0.5
      %vm215 = vcmp.gt.f32.partialorder %v202, 0.5
      %vm216 = vcmp.gt.f32.partialorder %v203, 0.5
      %vm217 = vcmp.gt.f32.partialorder %v204, 0.5
      %vm218 = vcmp.gt.f32.partialorder %v205, 0.5
      %vm219 = vcmp.gt.f32.partialorder %v206, 0.5
      %vm220 = vcmp.gt.f32.partialorder %v207, 0.5
      %vm221 = vcmp.gt.f32.partialorder %v208, 0.5
      %vm222 = vcmp.gt.f32.partialorder %v209, 0.5
      %vm223 = vcmp.gt.f32.partialorder %v210, 0.5
      %vm224 = vcmp.gt.f32.partialorder %v211, 0.5
      %v225 = vsel %vm212, 1, 0
      %v226 = vsel %vm213, 1, 0
      %v227 = vsel %vm214, 1, 0
      %v228 = vsel %vm215, 1, 0
      %v229 = vsel %vm216, 1, 0
      %v230 = vsel %vm217, 1, 0
      %v231 = vsel %vm218, 1, 0
      %v232 = vsel %vm219, 1, 0
      %v233 = vsel %vm220, 1, 0
      %v234 = vsel %vm221, 1, 0
      %v235 = vsel %vm222, 1, 0
      %v236 = vsel %vm223, 1, 0
      %v237 = vsel %vm224, 1, 0
      %v238 = vcvt.s32.f32 %v225
      %v239 = vcvt.s32.f32 %v226
      %v240 = vcvt.s32.f32 %v227
      %v241 = vcvt.s32.f32 %v228
      %v242 = vcvt.s32.f32 %v229
      %v243 = vcvt.s32.f32 %v230
      %v244 = vcvt.s32.f32 %v231
      %v245 = vcvt.s32.f32 %v232
      %v246 = vcvt.s32.f32 %v233
      %v247 = vcvt.s32.f32 %v234
      %v248 = vcvt.s32.f32 %v235
      %v249 = vcvt.s32.f32 %v236
      %v250 = vcvt.s32.f32 %v237
      %251 = vst [vmem:[%s154] sm:$0xff] %v238
      %252 = vst [vmem:[%s154 + $0x8] sm:$0xff] %v239
      %253 = vst [vmem:[%s154 + $0x10] sm:$0xff] %v240
      %254 = vst [vmem:[%s154 + $0x18] sm:$0xff] %v241
      %255 = vst [vmem:[%s154 + $0x20] sm:$0xff] %v242
      %256 = vst [vmem:[%s154 + $0x28] sm:$0xff] %v243
      %257 = vst [vmem:[%s154 + $0x30] sm:$0xff] %v244
      %258 = vst [vmem:[%s154 + $0x38] sm:$0xff] %v245
      %259 = vst [vmem:[%s154 + $0x40] sm:$0xff] %v246
      %260 = vst [vmem:[%s154 + $0x48] sm:$0xff] %v247
      %261 = vst [vmem:[%s154 + $0x50] sm:$0xff] %v248
      %262 = vst [vmem:[%s154 + $0x58] sm:$0xff] %v249
      %263 = vst [vmem:[%s154 + $0x60] sm:$0x3] %v250
      %v264 = vsub.f32 1.0, %v238
      %v265 = vsub.f32 1.0, %v239
      %v266 = vsub.f32 1.0, %v240
      %v267 = vsub.f32 1.0, %v241
      %v268 = vsub.f32 1.0, %v242
      %v269 = vsub.f32 1.0, %v243
      %v270 = vsub.f32 1.0, %v244
      %v271 = vsub.f32 1.0, %v245
      %v272 = vsub.f32 1.0, %v246
      %v273 = vsub.f32 1.0, %v247
      %v274 = vsub.f32 1.0, %v248
      %v275 = vsub.f32 1.0, %v249
      %v276 = vsub.f32 1.0, %v250
      %v277 = vmul.f32 %v264, 0.2
      %v278 = vmul.f32 %v265, 0.2
      %v279 = vmul.f32 %v266, 0.2
      %v280 = vmul.f32 %v267, 0.2
      %v281 = vmul.f32 %v268, 0.2
      %v282 = vmul.f32 %v269, 0.2
      %v283 = vmul.f32 %v270, 0.2
      %v284 = vmul.f32 %v271, 0.2
      %v285 = vmul.f32 %v272, 0.2
      %v286 = vmul.f32 %v273, 0.2
      %v287 = vmul.f32 %v274, 0.2
      %v288 = vmul.f32 %v275, 0.2
      %v289 = vmul.f32 %v276, 0.2
      %v290 = vmul.f32 %v199, %v277
      %v291 = vmul.f32 %v200, %v278
      %v292 = vmul.f32 %v201, %v279
      %v293 = vmul.f32 %v202, %v280
      %v294 = vmul.f32 %v203, %v281
      %v295 = vmul.f32 %v204, %v282
      %v296 = vmul.f32 %v205, %v283
      %v297 = vmul.f32 %v206, %v284
      %v298 = vmul.f32 %v207, %v285
      %v299 = vmul.f32 %v208, %v286
      %v300 = vmul.f32 %v209, %v287
      %v301 = vmul.f32 %v210, %v288
      %v302 = vmul.f32 %v211, %v289
      %303 = vst [vmem:[#allocation2] sm:$0xff] %v290
      %304 = vst [vmem:[#allocation2 + $0x8] sm:$0xff] %v291
      %305 = vst [vmem:[#allocation2 + $0x10] sm:$0xff] %v292
      %306 = vst [vmem:[#allocation2 + $0x18] sm:$0xff] %v293
      %307 = vst [vmem:[#allocation2 + $0x20] sm:$0xff] %v294
      %308 = vst [vmem:[#allocation2 + $0x28] sm:$0xff] %v295
      %309 = vst [vmem:[#allocation2 + $0x30] sm:$0xff] %v296
      %310 = vst [vmem:[#allocation2 + $0x38] sm:$0xff] %v297
      %311 = vst [vmem:[#allocation2 + $0x40] sm:$0xff] %v298
      %312 = vst [vmem:[#allocation2 + $0x48] sm:$0xff] %v299
      %313 = vst [vmem:[#allocation2 + $0x50] sm:$0xff] %v300
      %314 = vst [vmem:[#allocation2 + $0x58] sm:$0xff] %v301
      %315 = vst [vmem:[#allocation2 + $0x60] sm:$0x3] %v302
      %s316 = smul.u32 49, %s16
      %p317 = scmp.lt.s32.totalorder %s17, 3
      %s318 = scalar_select %p317, %s17, 3
      %p319 = scmp.lt.s32.totalorder %s316, 48
      %s320 = scalar_select %p319, %s316, 48
      %s321 = smul.addr %s318, 49
      %s322 = sadd.s32 %s320, %s321
      %s323 = smul.addr %s322, 2
      %s324 = scalar_lea.vmem %s1, %s323
      // Predicated region
      $region29: #{mnist_conv_forward.11} parent=23 // pred_check
        %p325 = pneg %p72
      $region30: #{mnist_conv_forward.11} parent=23 // pred_check_branch
        %327 = sbr.rel (%p325) target = $region32
      $region31: #{mnist_conv_forward.11} parent=23 // pred_region
        %s328 = smul.u32 49, %s16
      $region32: #{mnist_conv_forward.11} parent=23 // pred_fallthru
        _
    $region24: #{mnist_conv_forward.11} parent=5 // pred_fallthru
      _
    %p329 = scmp.le.s32.totalorder 2, %s7
    // Predicated region
    $region33: #{mnist_conv_forward.11} parent=5 // pred_check
      %p330 = pneg %p329
    $region34: #{mnist_conv_forward.11} parent=5 // pred_check_branch
      %332 = sbr.rel (%p330) target = $region36
    $region35: #{mnist_conv_forward.11} parent=5 // pred_region
      %s333 = ssub.s32 %s7, 2
      // Predicated region
      $region37: #{mnist_conv_forward.11} parent=35 // pred_check
        %p334 = pneg %p78
      $region38: #{mnist_conv_forward.11} parent=35 // pred_check_branch
        %336 = sbr.rel (%p334) target = $region40
      $region39: #{mnist_conv_forward.11} parent=35 // pred_region
        %s337 = smul.u32 49, %s18
        %p338 = scmp.lt.s32.totalorder %s19, 3
        %s339 = scalar_select %p338, %s19, 3
        %p340 = scmp.lt.s32.totalorder %s337, 48
        %s341 = scalar_select %p340, %s337, 48
        %s342 = smul.addr %s339, 49
        %s343 = sadd.s32 %s341, %s342
        %s344 = smul.addr %s343, 2
        %s345 = scalar_lea.vmem %s1, %s344
      $region40: #{mnist_conv_forward.11} parent=35 // pred_fallthru
        _
    $region36: #{mnist_conv_forward.11} parent=5 // pred_fallthru
      _
  $region6: #{mnist_conv_forward.11} parent=0 // loop_footer
    %s11 = sadd.s32 1, %s7
  $region7: #{mnist_conv_forward.11} parent=0 // loop_footer_branch
    %6 = sbr.rel target = $region3
  $region8: #{mnist_conv_forward.11} parent=0 // loop_exit
    _

// kernel: mnist_conv_forward.12
$region0: #{mnist_conv_forward.12}
  #allocation0 [shape = 'u32[]', space=smem, size = 0x4, offset = 0x4, fixed_abs, tag = 'smem constant byte address 0x4 - core index']
  #allocation1 [shape = 'u32[144,128]{1,0:T(1,128)}', space=vmem, size = 0x12000, scoped, tag = 'internal scratch']
  %s0 = inlined_call_operand.vmem [shape: bf16[8,6272], index: 0, kind: input, shape index: {}]
  %s1 = inlined_call_operand.vmem [shape: bf16[6272,256], index: 1, kind: input, shape index: {}]
  %s2 = inlined_call_operand.vmem [shape: f32[1,256], index: 2, kind: input, shape index: {}]
  %s3 = inlined_call_operand.vmem [shape: f32[8,256], index: 3, kind: output, shape index: {}]
  %s4 = sld [smem:[#allocation0]]
  $region22: #{mnist_conv_forward.12} parent=0
    _
  %s6 = ssub.s32 1, %s4
  %s7 = scalar_select 0, %s6, %s4
  // Predicated region
  $region2: #{mnist_conv_forward.12} parent=0 // pred_check
    _
  $region3: #{mnist_conv_forward.12} parent=0 // pred_check_branch
    %9 = sbr.rel (0) target = $region5
  $region4: #{mnist_conv_forward.12} parent=0 // pred_region
    _
  $region5: #{mnist_conv_forward.12} parent=0 // pred_fallthru
    _
  // Predicated region
  $region6: #{mnist_conv_forward.12} parent=0 // pred_check
    _
  $region7: #{mnist_conv_forward.12} parent=0 // pred_check_branch
    %11 = sbr.rel (0) target = $region9
  $region8: #{mnist_conv_forward.12} parent=0 // pred_region
    _
  $region9: #{mnist_conv_forward.12} parent=0 // pred_fallthru
    _
  // Predicated region
  $region10: #{mnist_conv_forward.12} parent=0 // pred_check
    _
  $region11: #{mnist_conv_forward.12} parent=0 // pred_check_branch
    %13 = sbr.rel (0) target = $region13
  $region12: #{mnist_conv_forward.12} parent=0 // pred_region
    _
  $region13: #{mnist_conv_forward.12} parent=0 // pred_fallthru
    _
  %v15 = vld [vmem:[%s0] sm:$0xff]
  %v16 = vld [vmem:[%s0 + $0x8] sm:$0xff]
  %v17 = vld [vmem:[%s0 + $0x10] sm:$0xff]
  %v18 = vld [vmem:[%s0 + $0x18] sm:$0xff]
  %v19 = vld [vmem:[%s0 + $0x20] sm:$0xff]
  %v20 = vld [vmem:[%s0 + $0x28] sm:$0xff]
  %v21 = vld [vmem:[%s0 + $0x30] sm:$0xff]
  %v22 = vld [vmem:[%s0 + $0x38] sm:$0xff]
  %v23 = vld [vmem:[%s0 + $0x40] sm:$0xff]
  %v24 = vld [vmem:[%s0 + $0x48] sm:$0xff]
  %v25 = vld [vmem:[%s0 + $0x50] sm:$0xff]
  %v26 = vld [vmem:[%s0 + $0x58] sm:$0xff]
  %v27 = vld [vmem:[%s0 + $0x60] sm:$0xff]
  %v28 = vld [vmem:[%s0 + $0x68] sm:$0xff]
  %v29 = vld [vmem:[%s0 + $0x70] sm:$0xff]
  %v30 = vld [vmem:[%s0 + $0x78] sm:$0xff]
  %v31 = vld [vmem:[%s0 + $0x80] sm:$0xff]
  %v32 = vld [vmem:[%s0 + $0x88] sm:$0xff]
  %v33 = vld [vmem:[%s0 + $0x90] sm:$0xff]
  %v34 = vld [vmem:[%s0 + $0x98] sm:$0xff]
  %v35 = vld [vmem:[%s0 + $0xa0] sm:$0xff]
  %v36 = vld [vmem:[%s0 + $0xa8] sm:$0xff]
  %v37 = vld [vmem:[%s0 + $0xb0] sm:$0xff]
  %v38 = vld [vmem:[%s0 + $0xb8] sm:$0xff]
  %v39 = vld [vmem:[%s0 + $0xc0] sm:$0xf]
  %v40 = vld [vmem:[%s1] sm:$0xff]
  %v41 = vld [vmem:[%s1 + $0x8] sm:$0xff]
  %v42 = vld [vmem:[%s1 + $0x10] sm:$0xff]
  %v43 = vld [vmem:[%s1 + $0x18] sm:$0xff]
  %v44 = vld [vmem:[%s1 + $0x20] sm:$0xff]
  %v45 = vld [vmem:[%s1 + $0x28] sm:$0xff]
  %v46 = vld [vmem:[%s1 + $0x30] sm:$0xff]
  %v47 = vld [vmem:[%s1 + $0x38] sm:$0xff]
  %v48 = vld [vmem:[%s1 + $0x40] sm:$0xff]
  %v49 = vld [vmem:[%s1 + $0x48] sm:$0xff]
  %v50 = vld [vmem:[%s1 + $0x50] sm:$0xff]
  %v51 = vld [vmem:[%s1 + $0x58] sm:$0xff]
  %v52 = vld [vmem:[%s1 + $0x60] sm:$0xff]
  %v53 = vld [vmem:[%s1 + $0x68] sm:$0xff]
  %v54 = vld [vmem:[%s1 + $0x70] sm:$0xff]
  %v55 = vld [vmem:[%s1 + $0x78] sm:$0xff]
  %v56 = vld [vmem:[%s1 + $0x80] sm:$0xff]
  %v57 = vld [vmem:[%s1 + $0x88] sm:$0xff]
  %v58 = vld [vmem:[%s1 + $0x90] sm:$0xff]
  %v59 = vld [vmem:[%s1 + $0x98] sm:$0xff]
  %v60 = vld [vmem:[%s1 + $0xa0] sm:$0xff]
  %v61 = vld [vmem:[%s1 + $0xa8] sm:$0xff]
  %v62 = vld [vmem:[%s1 + $0xb0] sm:$0xff]
  %v63 = vld [vmem:[%s1 + $0xb8] sm:$0xff]
  %v64 = vld [vmem:[%s1 + $0xc0] sm:$0xff]
  %v65 = vld [vmem:[%s1 + $0xc8] sm:$0xff]
  %v66 = vld [vmem:[%s1 + $0xd0] sm:$0xff]
  %v67 = vld [vmem:[%s1 + $0xd8] sm:$0xff]
  %v68 = vld [vmem:[%s1 + $0xe0] sm:$0xff]
  %v69 = vld [vmem:[%s1 + $0xe8] sm:$0xff]
  %v70 = vld [vmem:[%s1 + $0xf0] sm:$0xff]
  %v71 = vld [vmem:[%s1 + $0xf8] sm:$0xff]
  %v72 = vld [vmem:[%s1 + $0x100] sm:$0xff]
  %v73 = vld [vmem:[%s1 + $0x108] sm:$0xff]
  %v74 = vld [vmem:[%s1 + $0x110] sm:$0xff]
  %v75 = vld [vmem:[%s1 + $0x118] sm:$0xff]
  %v76 = vld [vmem:[%s1 + $0x120] sm:$0xff]
  %v77 = vld [vmem:[%s1 + $0x128] sm:$0xff]
  %v78 = vld [vmem:[%s1 + $0x130] sm:$0xff]
  %v79 = vld [vmem:[%s1 + $0x138] sm:$0xff]
  %v80 = vld [vmem:[%s1 + $0x140] sm:$0xff]
  %v81 = vld [vmem:[%s1 + $0x148] sm:$0xff]
  %v82 = vld [vmem:[%s1 + $0x150] sm:$0xff]
  %v83 = vld [vmem:[%s1 + $0x158] sm:$0xff]
  %v84 = vld [vmem:[%s1 + $0x160] sm:$0xff]
  %v85 = vld [vmem:[%s1 + $0x168] sm:$0xff]
  %v86 = vld [vmem:[%s1 + $0x170] sm:$0xff]
  %v87 = vld [vmem:[%s1 + $0x178] sm:$0xff]
  %v88 = vld [vmem:[%s1 + $0x180] sm:$0xff]
  %v89 = vld [vmem:[%s1 + $0x188] sm:$0xff]
  %v90 = vld [vmem:[%s1 + $0x190] sm:$0xff]
  %v91 = vld [vmem:[%s1 + $0x198] sm:$0xff]
  %v92 = vld [vmem:[%s1 + $0x1a0] sm:$0xff]
  %v93 = vld [vmem:[%s1 + $0x1a8] sm:$0xff]
  %v94 = vld [vmem:[%s1 + $0x1b0] sm:$0xff]
  %v95 = vld [vmem:[%s1 + $0x1b8] sm:$0xff]
  %v96 = vld [vmem:[%s1 + $0x1c0] sm:$0xff]
  %v97 = vld [vmem:[%s1 + $0x1c8] sm:$0xff]
  %v98 = vld [vmem:[%s1 + $0x1d0] sm:$0xff]
  %v99 = vld [vmem:[%s1 + $0x1d8] sm:$0xff]
  %v100 = vld [vmem:[%s1 + $0x1e0] sm:$0xff]
  %v101 = vld [vmem:[%s1 + $0x1e8] sm:$0xff]
  %v102 = vld [vmem:[%s1 + $0x1f0] sm:$0xff]
  %v103 = vld [vmem:[%s1 + $0x1f8] sm:$0xff]
  %v104 = vld [vmem:[%s1 + $0x200] sm:$0xff]
  %v105 = vld [vmem:[%s1 + $0x208] sm:$0xff]
  %v106 = vld [vmem:[%s1 + $0x210] sm:$0xff]
  %v107 = vld [vmem:[%s1 + $0x218] sm:$0xff]
  %v108 = vld [vmem:[%s1 + $0x220] sm:$0xff]
  %v109 = vld [vmem:[%s1 + $0x228] sm:$0xff]
  %v110 = vld [vmem:[%s1 + $0x230] sm:$0xff]
  %v111 = vld [vmem:[%s1 + $0x238] sm:$0xff]
  %v112 = vld [vmem:[%s1 + $0x240] sm:$0xff]
  %v113 = vld [vmem:[%s1 + $0x248] sm:$0xff]
  %v114 = vld [vmem:[%s1 + $0x250] sm:$0xff]
  %v115 = vld [vmem:[%s1 + $0x258] sm:$0xff]
  %v116 = vld [vmem:[%s1 + $0x260] sm:$0xff]
  %v117 = vld [vmem:[%s1 + $0x268] sm:$0xff]
  %v118 = vld [vmem:[%s1 + $0x270] sm:$0xff]
  %v119 = vld [vmem:[%s1 + $0x278] sm:$0xff]
  %v120 = vld [vmem:[%s1 + $0x280] sm:$0xff]
  %v121 = vld [vmem:[%s1 + $0x288] sm:$0xff]
  %v122 = vld [vmem:[%s1 + $0x290] sm:$0xff]
  %v123 = vld [vmem:[%s1 + $0x298] sm:$0xff]
  %v124 = vld [vmem:[%s1 + $0x2a0] sm:$0xff]
  %v125 = vld [vmem:[%s1 + $0x2a8] sm:$0xff]
  %v126 = vld [vmem:[%s1 + $0x2b0] sm:$0xff]
  %v127 = vld [vmem:[%s1 + $0x2b8] sm:$0xff]
  %v128 = vld [vmem:[%s1 + $0x2c0] sm:$0xff]
  %v129 = vld [vmem:[%s1 + $0x2c8] sm:$0xff]
  %v130 = vld [vmem:[%s1 + $0x2d0] sm:$0xff]
  %v131 = vld [vmem:[%s1 + $0x2d8] sm:$0xff]
  %v132 = vld [vmem:[%s1 + $0x2e0] sm:$0xff]
  %v133 = vld [vmem:[%s1 + $0x2e8] sm:$0xff]
  %v134 = vld [vmem:[%s1 + $0x2f0] sm:$0xff]
  %v135 = vld [vmem:[%s1 + $0x2f8] sm:$0xff]
  %v136 = vld [vmem:[%s1 + $0x300] sm:$0xff]
  %v137 = vld [vmem:[%s1 + $0x308] sm:$0xff]
  %v138 = vld [vmem:[%s1 + $0x310] sm:$0xff]
  %v139 = vld [vmem:[%s1 + $0x318] sm:$0xff]
  %v140 = vld [vmem:[%s1 + $0x320] sm:$0xff]
  %v141 = vld [vmem:[%s1 + $0x328] sm:$0xff]
  %v142 = vld [vmem:[%s1 + $0x330] sm:$0xff]
  %v143 = vld [vmem:[%s1 + $0x338] sm:$0xff]
  %v144 = vld [vmem:[%s1 + $0x340] sm:$0xff]
  %v145 = vld [vmem:[%s1 + $0x348] sm:$0xff]
  %v146 = vld [vmem:[%s1 + $0x350] sm:$0xff]
  %v147 = vld [vmem:[%s1 + $0x358] sm:$0xff]
  %v148 = vld [vmem:[%s1 + $0x360] sm:$0xff]
  %v149 = vld [vmem:[%s1 + $0x368] sm:$0xff]
  %v150 = vld [vmem:[%s1 + $0x370] sm:$0xff]
  %v151 = vld [vmem:[%s1 + $0x378] sm:$0xff]
  %v152 = vld [vmem:[%s1 + $0x380] sm:$0xff]
  %v153 = vld [vmem:[%s1 + $0x388] sm:$0xff]
  %v154 = vld [vmem:[%s1 + $0x390] sm:$0xff]
  %v155 = vld [vmem:[%s1 + $0x398] sm:$0xff]
  %v156 = vld [vmem:[%s1 + $0x3a0] sm:$0xff]
  %v157 = vld [vmem:[%s1 + $0x3a8] sm:$0xff]
  %v158 = vld [vmem:[%s1 + $0x3b0] sm:$0xff]
  %v159 = vld [vmem:[%s1 + $0x3b8] sm:$0xff]
  %v160 = vld [vmem:[%s1 + $0x3c0] sm:$0xff]
  %v161 = vld [vmem:[%s1 + $0x3c8] sm:$0xff]
  %v162 = vld [vmem:[%s1 + $0x3d0] sm:$0xff]
  %v163 = vld [vmem:[%s1 + $0x3d8] sm:$0xff]
  %v164 = vld [vmem:[%s1 + $0x3e0] sm:$0xff]
  %v165 = vld [vmem:[%s1 + $0x3e8] sm:$0xff]
  %v166 = vld [vmem:[%s1 + $0x3f0] sm:$0xff]
  %v167 = vld [vmem:[%s1 + $0x3f8] sm:$0xff]
  %v168 = vld [vmem:[%s1 + $0x400] sm:$0xff]
  %v169 = vld [vmem:[%s1 + $0x408] sm:$0xff]
  %v170 = vld [vmem:[%s1 + $0x410] sm:$0xff]
  %v171 = vld [vmem:[%s1 + $0x418] sm:$0xff]
  %v172 = vld [vmem:[%s1 + $0x420] sm:$0xff]
  %v173 = vld [vmem:[%s1 + $0x428] sm:$0xff]
  %v174 = vld [vmem:[%s1 + $0x430] sm:$0xff]
  %v175 = vld [vmem:[%s1 + $0x438] sm:$0xff]
  %v176 = vld [vmem:[%s1 + $0x440] sm:$0xff]
  %v177 = vld [vmem:[%s1 + $0x448] sm:$0xff]
  %v178 = vld [vmem:[%s1 + $0x450] sm:$0xff]
  %v179 = vld [vmem:[%s1 + $0x458] sm:$0xff]
  %v180 = vld [vmem:[%s1 + $0x460] sm:$0xff]
  %v181 = vld [vmem:[%s1 + $0x468] sm:$0xff]
  %v182 = vld [vmem:[%s1 + $0x470] sm:$0xff]
  %v183 = vld [vmem:[%s1 + $0x478] sm:$0xff]
  %v184 = vld [vmem:[%s1 + $0x480] sm:$0xff]
  %v185 = vld [vmem:[%s1 + $0x488] sm:$0xff]
  %v186 = vld [vmem:[%s1 + $0x490] sm:$0xff]
  %v187 = vld [vmem:[%s1 + $0x498] sm:$0xff]
  %v188 = vld [vmem:[%s1 + $0x4a0] sm:$0xff]
  %v189 = vld [vmem:[%s1 + $0x4a8] sm:$0xff]
  %v190 = vld [vmem:[%s1 + $0x4b0] sm:$0xff]
  %v191 = vld [vmem:[%s1 + $0x4b8] sm:$0xff]
  %v192 = vld [vmem:[%s1 + $0x4c0] sm:$0xff]
  %v193 = vld [vmem:[%s1 + $0x4c8] sm:$0xff]
  %v194 = vld [vmem:[%s1 + $0x4d0] sm:$0xff]
  %v195 = vld [vmem:[%s1 + $0x4d8] sm:$0xff]
  %v196 = vld [vmem:[%s1 + $0x4e0] sm:$0xff]
  %v197 = vld [vmem:[%s1 + $0x4e8] sm:$0xff]
  %v198 = vld [vmem:[%s1 + $0x4f0] sm:$0xff]
  %v199 = vld [vmem:[%s1 + $0x4f8] sm:$0xff]
  %v200 = vld [vmem:[%s1 + $0x500] sm:$0xff]
  %v201 = vld [vmem:[%s1 + $0x508] sm:$0xff]
  %v202 = vld [vmem:[%s1 + $0x510] sm:$0xff]
  %v203 = vld [vmem:[%s1 + $0x518] sm:$0xff]
  %v204 = vld [vmem:[%s1 + $0x520] sm:$0xff]
  %v205 = vld [vmem:[%s1 + $0x528] sm:$0xff]
  %v206 = vld [vmem:[%s1 + $0x530] sm:$0xff]
  %v207 = vld [vmem:[%s1 + $0x538] sm:$0xff]
  %v208 = vld [vmem:[%s1 + $0x540] sm:$0xff]
  %v209 = vld [vmem:[%s1 + $0x548] sm:$0xff]
  %v210 = vld [vmem:[%s1 + $0x550] sm:$0xff]
  %v211 = vld [vmem:[%s1 + $0x558] sm:$0xff]
  %v212 = vld [vmem:[%s1 + $0x560] sm:$0xff]
  %v213 = vld [vmem:[%s1 + $0x568] sm:$0xff]
  %v214 = vld [vmem:[%s1 + $0x570] sm:$0xff]
  %v215 = vld [vmem:[%s1 + $0x578] sm:$0xff]
  %v216 = vld [vmem:[%s1 + $0x580] sm:$0xff]
  %v217 = vld [vmem:[%s1 + $0x588] sm:$0xff]
  %v218 = vld [vmem:[%s1 + $0x590] sm:$0xff]
  %v219 = vld [vmem:[%s1 + $0x598] sm:$0xff]
  %v220 = vld [vmem:[%s1 + $0x5a0] sm:$0xff]
  %v221 = vld [vmem:[%s1 + $0x5a8] sm:$0xff]
  %v222 = vld [vmem:[%s1 + $0x5b0] sm:$0xff]
  %v223 = vld [vmem:[%s1 + $0x5b8] sm:$0xff]
  %v224 = vld [vmem:[%s1 + $0x5c0] sm:$0xff]
  %v225 = vld [vmem:[%s1 + $0x5c8] sm:$0xff]
  %v226 = vld [vmem:[%s1 + $0x5d0] sm:$0xff]
  %v227 = vld [vmem:[%s1 + $0x5d8] sm:$0xff]
  %v228 = vld [vmem:[%s1 + $0x5e0] sm:$0xff]
  %v229 = vld [vmem:[%s1 + $0x5e8] sm:$0xff]
  %v230 = vld [vmem:[%s1 + $0x5f0] sm:$0xff]
  %v231 = vld [vmem:[%s1 + $0x5f8] sm:$0xff]
  %v232 = vld [vmem:[%s1 + $0x600] sm:$0xff]
  %v233 = vld [vmem:[%s1 + $0x608] sm:$0xff]
  %v234 = vld [vmem:[%s1 + $0x610] sm:$0xff]
  %v235 = vld [vmem:[%s1 + $0x618] sm:$0xff]
  %v236 = vld [vmem:[%s1 + $0x620] sm:$0xff]
  %v237 = vld [vmem:[%s1 + $0x628] sm:$0xff]
  %v238 = vld [vmem:[%s1 + $0x630] sm:$0xff]
  %v239 = vld [vmem:[%s1 + $0x638] sm:$0xff]
  %v240 = vld [vmem:[%s1 + $0x640] sm:$0xff]
  %v241 = vld [vmem:[%s1 + $0x648] sm:$0xff]
  %v242 = vld [vmem:[%s1 + $0x650] sm:$0xff]
  %v243 = vld [vmem:[%s1 + $0x658] sm:$0xff]
  %v244 = vld [vmem:[%s1 + $0x660] sm:$0xff]
  %v245 = vld [vmem:[%s1 + $0x668] sm:$0xff]
  %v246 = vld [vmem:[%s1 + $0x670] sm:$0xff]
  %v247 = vld [vmem:[%s1 + $0x678] sm:$0xff]
  %v248 = vld [vmem:[%s1 + $0x680] sm:$0xff]
  %v249 = vld [vmem:[%s1 + $0x688] sm:$0xff]
  %v250 = vld [vmem:[%s1 + $0x690] sm:$0xff]
  %v251 = vld [vmem:[%s1 + $0x698] sm:$0xff]
  %v252 = vld [vmem:[%s1 + $0x6a0] sm:$0xff]
  %v253 = vld [vmem:[%s1 + $0x6a8] sm:$0xff]
  %v254 = vld [vmem:[%s1 + $0x6b0] sm:$0xff]
  %v255 = vld [vmem:[%s1 + $0x6b8] sm:$0xff]
  %v256 = vld [vmem:[%s1 + $0x6c0] sm:$0xff]
  %v257 = vld [vmem:[%s1 + $0x6c8] sm:$0xff]
  %v258 = vld [vmem:[%s1 + $0x6d0] sm:$0xff]
  %v259 = vld [vmem:[%s1 + $0x6d8] sm:$0xff]
  %v260 = vld [vmem:[%s1 + $0x6e0] sm:$0xff]
  %v261 = vld [vmem:[%s1 + $0x6e8] sm:$0xff]
  %v262 = vld [vmem:[%s1 + $0x6f0] sm:$0xff]
  %v263 = vld [vmem:[%s1 + $0x6f8] sm:$0xff]
  %v264 = vld [vmem:[%s1 + $0x700] sm:$0xff]
  %v265 = vld [vmem:[%s1 + $0x708] sm:$0xff]
  %v266 = vld [vmem:[%s1 + $0x710] sm:$0xff]
  %v267 = vld [vmem:[%s1 + $0x718] sm:$0xff]
  %v268 = vld [vmem:[%s1 + $0x720] sm:$0xff]
  %v269 = vld [vmem:[%s1 + $0x728] sm:$0xff]
  %v270 = vld [vmem:[%s1 + $0x730] sm:$0xff]
  %v271 = vld [vmem:[%s1 + $0x738] sm:$0xff]
  %v272 = vld [vmem:[%s1 + $0x740] sm:$0xff]
  %v273 = vld [vmem:[%s1 + $0x748] sm:$0xff]
  %v274 = vld [vmem:[%s1 + $0x750] sm:$0xff]
  %v275 = vld [vmem:[%s1 + $0x758] sm:$0xff]
  %v276 = vld [vmem:[%s1 + $0x760] sm:$0xff]
  %v277 = vld [vmem:[%s1 + $0x768] sm:$0xff]
  %v278 = vld [vmem:[%s1 + $0x770] sm:$0xff]
  %v279 = vld [vmem:[%s1 + $0x778] sm:$0xff]
  %v280 = vld [vmem:[%s1 + $0x780] sm:$0xff]
  %v281 = vld [vmem:[%s1 + $0x788] sm:$0xff]
  %v282 = vld [vmem:[%s1 + $0x790] sm:$0xff]
  %v283 = vld [vmem:[%s1 + $0x798] sm:$0xff]
  %v284 = vld [vmem:[%s1 + $0x7a0] sm:$0xff]
  %v285 = vld [vmem:[%s1 + $0x7a8] sm:$0xff]
  %v286 = vld [vmem:[%s1 + $0x7b0] sm:$0xff]
  %v287 = vld [vmem:[%s1 + $0x7b8] sm:$0xff]
  %v288 = vld [vmem:[%s1 + $0x7c0] sm:$0xff]
  %v289 = vld [vmem:[%s1 + $0x7c8] sm:$0xff]
  %v290 = vld [vmem:[%s1 + $0x7d0] sm:$0xff]
  %v291 = vld [vmem:[%s1 + $0x7d8] sm:$0xff]
  %v292 = vld [vmem:[%s1 + $0x7e0] sm:$0xff]
  %v293 = vld [vmem:[%s1 + $0x7e8] sm:$0xff]
  %v294 = vld [vmem:[%s1 + $0x7f0] sm:$0xff]
  %v295 = vld [vmem:[%s1 + $0x7f8] sm:$0xff]
  %v296 = vld [vmem:[%s1 + $0x800] sm:$0xff]
  %v297 = vld [vmem:[%s1 + $0x808] sm:$0xff]
  %v298 = vld [vmem:[%s1 + $0x810] sm:$0xff]
  %v299 = vld [vmem:[%s1 + $0x818] sm:$0xff]
  %v300 = vld [vmem:[%s1 + $0x820] sm:$0xff]
  %v301 = vld [vmem:[%s1 + $0x828] sm:$0xff]
  %v302 = vld [vmem:[%s1 + $0x830] sm:$0xff]
  %v303 = vld [vmem:[%s1 + $0x838] sm:$0xff]
  %v304 = vld [vmem:[%s1 + $0x840] sm:$0xff]
  %v305 = vld [vmem:[%s1 + $0x848] sm:$0xff]
  %v306 = vld [vmem:[%s1 + $0x850] sm:$0xff]
  %v307 = vld [vmem:[%s1 + $0x858] sm:$0xff]
  %v308 = vld [vmem:[%s1 + $0x860] sm:$0xff]
  %v309 = vld [vmem:[%s1 + $0x868] sm:$0xff]
  %v310 = vld [vmem:[%s1 + $0x870] sm:$0xff]
  %v311 = vld [vmem:[%s1 + $0x878] sm:$0xff]
  %v312 = vld [vmem:[%s1 + $0x880] sm:$0xff]
  %v313 = vld [vmem:[%s1 + $0x888] sm:$0xff]
  %v314 = vld [vmem:[%s1 + $0x890] sm:$0xff]
  %v315 = vld [vmem:[%s1 + $0x898] sm:$0xff]
  %v316 = vld [vmem:[%s1 + $0x8a0] sm:$0xff]
  %v317 = vld [vmem:[%s1 + $0x8a8] sm:$0xff]
  %v318 = vld [vmem:[%s1 + $0x8b0] sm:$0xff]
  %v319 = vld [vmem:[%s1 + $0x8b8] sm:$0xff]
  %v320 = vld [vmem:[%s1 + $0x8c0] sm:$0xff]
  %v321 = vld [vmem:[%s1 + $0x8c8] sm:$0xff]
  %v322 = vld [vmem:[%s1 + $0x8d0] sm:$0xff]
  %v323 = vld [vmem:[%s1 + $0x8d8] sm:$0xff]
  %v324 = vld [vmem:[%s1 + $0x8e0] sm:$0xff]
  %v325 = vld [vmem:[%s1 + $0x8e8] sm:$0xff]
  %v326 = vld [vmem:[%s1 + $0x8f0] sm:$0xff]
  %v327 = vld [vmem:[%s1 + $0x8f8] sm:$0xff]
  %v328 = vld [vmem:[%s1 + $0x900] sm:$0xff]
  %v329 = vld [vmem:[%s1 + $0x908] sm:$0xff]
  %v330 = vld [vmem:[%s1 + $0x910] sm:$0xff]
  %v331 = vld [vmem:[%s1 + $0x918] sm:$0xff]
  %v332 = vld [vmem:[%s1 + $0x920] sm:$0xff]
  %v333 = vld [vmem:[%s1 + $0x928] sm:$0xff]
  %v334 = vld [vmem:[%s1 + $0x930] sm:$0xff]
  %v335 = vld [vmem:[%s1 + $0x938] sm:$0xff]
  %v336 = vld [vmem:[%s1 + $0x940] sm:$0xff]
  %v337 = vld [vmem:[%s1 + $0x948] sm:$0xff]
  %v338 = vld [vmem:[%s1 + $0x950] sm:$0xff]
  %v339 = vld [vmem:[%s1 + $0x958] sm:$0xff]
  %v340 = vld [vmem:[%s1 + $0x960] sm:$0xff]
  %v341 = vld [vmem:[%s1 + $0x968] sm:$0xff]
  %v342 = vld [vmem:[%s1 + $0x970] sm:$0xff]
  %v343 = vld [vmem:[%s1 + $0x978] sm:$0xff]
  %v344 = vld [vmem:[%s1 + $0x980] sm:$0xff]
  %v345 = vld [vmem:[%s1 + $0x988] sm:$0xff]
  %v346 = vld [vmem:[%s1 + $0x990] sm:$0xff]
  %v347 = vld [vmem:[%s1 + $0x998] sm:$0xff]
  %v348 = vld [vmem:[%s1 + $0x9a0] sm:$0xff]
  %v349 = vld [vmem:[%s1 + $0x9a8] sm:$0xff]
  %v350 = vld [vmem:[%s1 + $0x9b0] sm:$0xff]
  %v351 = vld [vmem:[%s1 + $0x9b8] sm:$0xff]
  %v352 = vld [vmem:[%s1 + $0x9c0] sm:$0xff]
  %v353 = vld [vmem:[%s1 + $0x9c8] sm:$0xff]
  %v354 = vld [vmem:[%s1 + $0x9d0] sm:$0xff]
  %v355 = vld [vmem:[%s1 + $0x9d8] sm:$0xff]
  %v356 = vld [vmem:[%s1 + $0x9e0] sm:$0xff]
  %v357 = vld [vmem:[%s1 + $0x9e8] sm:$0xff]
  %v358 = vld [vmem:[%s1 + $0x9f0] sm:$0xff]
  %v359 = vld [vmem:[%s1 + $0x9f8] sm:$0xff]
  %v360 = vld [vmem:[%s1 + $0xa00] sm:$0xff]
  %v361 = vld [vmem:[%s1 + $0xa08] sm:$0xff]
  %v362 = vld [vmem:[%s1 + $0xa10] sm:$0xff]
  %v363 = vld [vmem:[%s1 + $0xa18] sm:$0xff]
  %v364 = vld [vmem:[%s1 + $0xa20] sm:$0xff]
  %v365 = vld [vmem:[%s1 + $0xa28] sm:$0xff]
  %v366 = vld [vmem:[%s1 + $0xa30] sm:$0xff]
  %v367 = vld [vmem:[%s1 + $0xa38] sm:$0xff]
  %v368 = vld [vmem:[%s1 + $0xa40] sm:$0xff]
  %v369 = vld [vmem:[%s1 + $0xa48] sm:$0xff]
  %v370 = vld [vmem:[%s1 + $0xa50] sm:$0xff]
  %v371 = vld [vmem:[%s1 + $0xa58] sm:$0xff]
  %v372 = vld [vmem:[%s1 + $0xa60] sm:$0xff]
  %v373 = vld [vmem:[%s1 + $0xa68] sm:$0xff]
  %v374 = vld [vmem:[%s1 + $0xa70] sm:$0xff]
  %v375 = vld [vmem:[%s1 + $0xa78] sm:$0xff]
  %v376 = vld [vmem:[%s1 + $0xa80] sm:$0xff]
  %v377 = vld [vmem:[%s1 + $0xa88] sm:$0xff]
  %v378 = vld [vmem:[%s1 + $0xa90] sm:$0xff]
  %v379 = vld [vmem:[%s1 + $0xa98] sm:$0xff]
  %v380 = vld [vmem:[%s1 + $0xaa0] sm:$0xff]
  %v381 = vld [vmem:[%s1 + $0xaa8] sm:$0xff]
  %v382 = vld [vmem:[%s1 + $0xab0] sm:$0xff]
  %v383 = vld [vmem:[%s1 + $0xab8] sm:$0xff]
  %v384 = vld [vmem:[%s1 + $0xac0] sm:$0xff]
  %v385 = vld [vmem:[%s1 + $0xac8] sm:$0xff]
  %v386 = vld [vmem:[%s1 + $0xad0] sm:$0xff]
  %v387 = vld [vmem:[%s1 + $0xad8] sm:$0xff]
  %v388 = vld [vmem:[%s1 + $0xae0] sm:$0xff]
  %v389 = vld [vmem:[%s1 + $0xae8] sm:$0xff]
  %v390 = vld [vmem:[%s1 + $0xaf0] sm:$0xff]
  %v391 = vld [vmem:[%s1 + $0xaf8] sm:$0xff]
  %v392 = vld [vmem:[%s1 + $0xb00] sm:$0xff]
  %v393 = vld [vmem:[%s1 + $0xb08] sm:$0xff]
  %v394 = vld [vmem:[%s1 + $0xb10] sm:$0xff]
  %v395 = vld [vmem:[%s1 + $0xb18] sm:$0xff]
  %v396 = vld [vmem:[%s1 + $0xb20] sm:$0xff]
  %v397 = vld [vmem:[%s1 + $0xb28] sm:$0xff]
  %v398 = vld [vmem:[%s1 + $0xb30] sm:$0xff]
  %v399 = vld [vmem:[%s1 + $0xb38] sm:$0xff]
  %v400 = vld [vmem:[%s1 + $0xb40] sm:$0xff]
  %v401 = vld [vmem:[%s1 + $0xb48] sm:$0xff]
  %v402 = vld [vmem:[%s1 + $0xb50] sm:$0xff]
  %v403 = vld [vmem:[%s1 + $0xb58] sm:$0xff]
  %v404 = vld [vmem:[%s1 + $0xb60] sm:$0xff]
  %v405 = vld [vmem:[%s1 + $0xb68] sm:$0xff]
  %v406 = vld [vmem:[%s1 + $0xb70] sm:$0xff]
  %v407 = vld [vmem:[%s1 + $0xb78] sm:$0xff]
  %v408 = vld [vmem:[%s1 + $0xb80] sm:$0xff]
  %v409 = vld [vmem:[%s1 + $0xb88] sm:$0xff]
  %v410 = vld [vmem:[%s1 + $0xb90] sm:$0xff]
  %v411 = vld [vmem:[%s1 + $0xb98] sm:$0xff]
  %v412 = vld [vmem:[%s1 + $0xba0] sm:$0xff]
  %v413 = vld [vmem:[%s1 + $0xba8] sm:$0xff]
  %v414 = vld [vmem:[%s1 + $0xbb0] sm:$0xff]
  %v415 = vld [vmem:[%s1 + $0xbb8] sm:$0xff]
  %v416 = vld [vmem:[%s1 + $0xbc0] sm:$0xff]
  %v417 = vld [vmem:[%s1 + $0xbc8] sm:$0xff]
  %v418 = vld [vmem:[%s1 + $0xbd0] sm:$0xff]
  %v419 = vld [vmem:[%s1 + $0xbd8] sm:$0xff]
  %v420 = vld [vmem:[%s1 + $0xbe0] sm:$0xff]
  %v421 = vld [vmem:[%s1 + $0xbe8] sm:$0xff]
  %v422 = vld [vmem:[%s1 + $0xbf0] sm:$0xff]
  %v423 = vld [vmem:[%s1 + $0xbf8] sm:$0xff]
  %v424 = vld [vmem:[%s1 + $0xc00] sm:$0xff]
  %v425 = vld [vmem:[%s1 + $0xc08] sm:$0xff]
  %v426 = vld [vmem:[%s1 + $0xc10] sm:$0xff]
  %v427 = vld [vmem:[%s1 + $0xc18] sm:$0xff]
  %v428 = vld [vmem:[%s1 + $0xc20] sm:$0xff]
  %v429 = vld [vmem:[%s1 + $0xc28] sm:$0xff]
  %v430 = vld [vmem:[%s1 + $0xc30] sm:$0xff]
  %v431 = vld [vmem:[%s1 + $0xc38] sm:$0xff]
  %v432 = vld [vmem:[%s1 + $0xc40] sm:$0xff]
  %v433 = vld [vmem:[%s1 + $0xc48] sm:$0xff]
  %v434 = vld [vmem:[%s1 + $0xc50] sm:$0xff]
  %v435 = vld [vmem:[%s1 + $0xc58] sm:$0xff]
  %v436 = vld [vmem:[%s1 + $0xc60] sm:$0xff]
  %v437 = vld [vmem:[%s1 + $0xc68] sm:$0xff]
  %v438 = vld [vmem:[%s1 + $0xc70] sm:$0xff]
  %v439 = vld [vmem:[%s1 + $0xc78] sm:$0xff]
  %v440 = vld [vmem:[%s1 + $0xc80] sm:$0xff]
  %v441 = vld [vmem:[%s1 + $0xc88] sm:$0xff]
  %v442 = vld [vmem:[%s1 + $0xc90] sm:$0xff]
  %v443 = vld [vmem:[%s1 + $0xc98] sm:$0xff]
  %v444 = vld [vmem:[%s1 + $0xca0] sm:$0xff]
  %v445 = vld [vmem:[%s1 + $0xca8] sm:$0xff]
  %v446 = vld [vmem:[%s1 + $0xcb0] sm:$0xff]
  %v447 = vld [vmem:[%s1 + $0xcb8] sm:$0xff]
  %v448 = vld [vmem:[%s1 + $0xcc0] sm:$0xff]
  %v449 = vld [vmem:[%s1 + $0xcc8] sm:$0xff]
  %v450 = vld [vmem:[%s1 + $0xcd0] sm:$0xff]
  %v451 = vld [vmem:[%s1 + $0xcd8] sm:$0xff]
  %v452 = vld [vmem:[%s1 + $0xce0] sm:$0xff]
  %v453 = vld [vmem:[%s1 + $0xce8] sm:$0xff]
  %v454 = vld [vmem:[%s1 + $0xcf0] sm:$0xff]
  %v455 = vld [vmem:[%s1 + $0xcf8] sm:$0xff]
  %v456 = vld [vmem:[%s1 + $0xd00] sm:$0xff]
  %v457 = vld [vmem:[%s1 + $0xd08] sm:$0xff]
  %v458 = vld [vmem:[%s1 + $0xd10] sm:$0xff]
  %v459 = vld [vmem:[%s1 + $0xd18] sm:$0xff]
  %v460 = vld [vmem:[%s1 + $0xd20] sm:$0xff]
  %v461 = vld [vmem:[%s1 + $0xd28] sm:$0xff]
  %v462 = vld [vmem:[%s1 + $0xd30] sm:$0xff]
  %v463 = vld [vmem:[%s1 + $0xd38] sm:$0xff]
  %v464 = vld [vmem:[%s1 + $0xd40] sm:$0xff]
  %v465 = vld [vmem:[%s1 + $0xd48] sm:$0xff]
  %v466 = vld [vmem:[%s1 + $0xd50] sm:$0xff]
  %v467 = vld [vmem:[%s1 + $0xd58] sm:$0xff]
  %v468 = vld [vmem:[%s1 + $0xd60] sm:$0xff]
  %v469 = vld [vmem:[%s1 + $0xd68] sm:$0xff]
  %v470 = vld [vmem:[%s1 + $0xd70] sm:$0xff]
  %v471 = vld [vmem:[%s1 + $0xd78] sm:$0xff]
  %v472 = vld [vmem:[%s1 + $0xd80] sm:$0xff]
  %v473 = vld [vmem:[%s1 + $0xd88] sm:$0xff]
  %v474 = vld [vmem:[%s1 + $0xd90] sm:$0xff]
  %v475 = vld [vmem:[%s1 + $0xd98] sm:$0xff]
  %v476 = vld [vmem:[%s1 + $0xda0] sm:$0xff]
  %v477 = vld [vmem:[%s1 + $0xda8] sm:$0xff]
  %v478 = vld [vmem:[%s1 + $0xdb0] sm:$0xff]
  %v479 = vld [vmem:[%s1 + $0xdb8] sm:$0xff]
  %v480 = vld [vmem:[%s1 + $0xdc0] sm:$0xff]
  %v481 = vld [vmem:[%s1 + $0xdc8] sm:$0xff]
  %v482 = vld [vmem:[%s1 + $0xdd0] sm:$0xff]
  %v483 = vld [vmem:[%s1 + $0xdd8] sm:$0xff]
  %v484 = vld [vmem:[%s1 + $0xde0] sm:$0xff]
  %v485 = vld [vmem:[%s1 + $0xde8] sm:$0xff]
  %v486 = vld [vmem:[%s1 + $0xdf0] sm:$0xff]
  %v487 = vld [vmem:[%s1 + $0xdf8] sm:$0xff]
  %v488 = vld [vmem:[%s1 + $0xe00] sm:$0xff]
  %v489 = vld [vmem:[%s1 + $0xe08] sm:$0xff]
  %v490 = vld [vmem:[%s1 + $0xe10] sm:$0xff]
  %v491 = vld [vmem:[%s1 + $0xe18] sm:$0xff]
  %v492 = vld [vmem:[%s1 + $0xe20] sm:$0xff]
  %v493 = vld [vmem:[%s1 + $0xe28] sm:$0xff]
  %v494 = vld [vmem:[%s1 + $0xe30] sm:$0xff]
  %v495 = vld [vmem:[%s1 + $0xe38] sm:$0xff]
  %v496 = vld [vmem:[%s1 + $0xe40] sm:$0xff]
  %v497 = vld [vmem:[%s1 + $0xe48] sm:$0xff]
  %v498 = vld [vmem:[%s1 + $0xe50] sm:$0xff]
  %v499 = vld [vmem:[%s1 + $0xe58] sm:$0xff]
  %v500 = vld [vmem:[%s1 + $0xe60] sm:$0xff]
  %v501 = vld [vmem:[%s1 + $0xe68] sm:$0xff]
  %v502 = vld [vmem:[%s1 + $0xe70] sm:$0xff]
  %v503 = vld [vmem:[%s1 + $0xe78] sm:$0xff]
  %v504 = vld [vmem:[%s1 + $0xe80] sm:$0xff]
  %v505 = vld [vmem:[%s1 + $0xe88] sm:$0xff]
  %v506 = vld [vmem:[%s1 + $0xe90] sm:$0xff]
  %v507 = vld [vmem:[%s1 + $0xe98] sm:$0xff]
  %v508 = vld [vmem:[%s1 + $0xea0] sm:$0xff]
  %v509 = vld [vmem:[%s1 + $0xea8] sm:$0xff]
  %v510 = vld [vmem:[%s1 + $0xeb0] sm:$0xff]
  %v511 = vld [vmem:[%s1 + $0xeb8] sm:$0xff]
  %v512 = vld [vmem:[%s1 + $0xec0] sm:$0xff]
  %v513 = vld [vmem:[%s1 + $0xec8] sm:$0xff]
  %v514 = vld [vmem:[%s1 + $0xed0] sm:$0xff]
  %v515 = vld [vmem:[%s1 + $0xed8] sm:$0xff]
  %v516 = vld [vmem:[%s1 + $0xee0] sm:$0xff]
  %v517 = vld [vmem:[%s1 + $0xee8] sm:$0xff]
  %v518 = vld [vmem:[%s1 + $0xef0] sm:$0xff]
  %v519 = vld [vmem:[%s1 + $0xef8] sm:$0xff]
  %v520 = vld [vmem:[%s1 + $0xf00] sm:$0xff]
  %v521 = vld [vmem:[%s1 + $0xf08] sm:$0xff]
  %v522 = vld [vmem:[%s1 + $0xf10] sm:$0xff]
  %v523 = vld [vmem:[%s1 + $0xf18] sm:$0xff]
  %v524 = vld [vmem:[%s1 + $0xf20] sm:$0xff]
  %v525 = vld [vmem:[%s1 + $0xf28] sm:$0xff]
  %v526 = vld [vmem:[%s1 + $0xf30] sm:$0xff]
  %v527 = vld [vmem:[%s1 + $0xf38] sm:$0xff]
  %v528 = vld [vmem:[%s1 + $0xf40] sm:$0xff]
  %v529 = vld [vmem:[%s1 + $0xf48] sm:$0xff]
  %v530 = vld [vmem:[%s1 + $0xf50] sm:$0xff]
  %v531 = vld [vmem:[%s1 + $0xf58] sm:$0xff]
  %v532 = vld [vmem:[%s1 + $0xf60] sm:$0xff]
  %v533 = vld [vmem:[%s1 + $0xf68] sm:$0xff]
  %v534 = vld [vmem:[%s1 + $0xf70] sm:$0xff]
  %v535 = vld [vmem:[%s1 + $0xf78] sm:$0xff]
  %v536 = vld [vmem:[%s1 + $0xf80] sm:$0xff]
  %v537 = vld [vmem:[%s1 + $0xf88] sm:$0xff]
  %v538 = vld [vmem:[%s1 + $0xf90] sm:$0xff]
  %v539 = vld [vmem:[%s1 + $0xf98] sm:$0xff]
  %v540 = vld [vmem:[%s1 + $0xfa0] sm:$0xff]
  %v541 = vld [vmem:[%s1 + $0xfa8] sm:$0xff]
  %v542 = vld [vmem:[%s1 + $0xfb0] sm:$0xff]
  %v543 = vld [vmem:[%s1 + $0xfb8] sm:$0xff]
  %v544 = vld [vmem:[%s1 + $0xfc0] sm:$0xff]
  %v545 = vld [vmem:[%s1 + $0xfc8] sm:$0xff]
  %v546 = vld [vmem:[%s1 + $0xfd0] sm:$0xff]
  %v547 = vld [vmem:[%s1 + $0xfd8] sm:$0xff]
  %v548 = vld [vmem:[%s1 + $0xfe0] sm:$0xff]
  %v549 = vld [vmem:[%s1 + $0xfe8] sm:$0xff]
  %v550 = vld [vmem:[%s1 + $0xff0] sm:$0xff]
  %v551 = vld [vmem:[%s1 + $0xff8] sm:$0xff]
  %v552 = vld [vmem:[%s1 + $0x1000] sm:$0xff]
  %v553 = vld [vmem:[%s1 + $0x1008] sm:$0xff]
  %v554 = vld [vmem:[%s1 + $0x1010] sm:$0xff]
  %v555 = vld [vmem:[%s1 + $0x1018] sm:$0xff]
  %v556 = vld [vmem:[%s1 + $0x1020] sm:$0xff]
  %v557 = vld [vmem:[%s1 + $0x1028] sm:$0xff]
  %v558 = vld [vmem:[%s1 + $0x1030] sm:$0xff]
  %v559 = vld [vmem:[%s1 + $0x1038] sm:$0xff]
  %v560 = vld [vmem:[%s1 + $0x1040] sm:$0xff]
  %v561 = vld [vmem:[%s1 + $0x1048] sm:$0xff]
  %v562 = vld [vmem:[%s1 + $0x1050] sm:$0xff]
  %v563 = vld [vmem:[%s1 + $0x1058] sm:$0xff]
  %v564 = vld [vmem:[%s1 + $0x1060] sm:$0xff]
  %v565 = vld [vmem:[%s1 + $0x1068] sm:$0xff]
  %v566 = vld [vmem:[%s1 + $0x1070] sm:$0xff]
  %v567 = vld [vmem:[%s1 + $0x1078] sm:$0xff]
  %v568 = vld [vmem:[%s1 + $0x1080] sm:$0xff]
  %v569 = vld [vmem:[%s1 + $0x1088] sm:$0xff]
  %v570 = vld [vmem:[%s1 + $0x1090] sm:$0xff]
  %v571 = vld [vmem:[%s1 + $0x1098] sm:$0xff]
  %v572 = vld [vmem:[%s1 + $0x10a0] sm:$0xff]
  %v573 = vld [vmem:[%s1 + $0x10a8] sm:$0xff]
  %v574 = vld [vmem:[%s1 + $0x10b0] sm:$0xff]
  %v575 = vld [vmem:[%s1 + $0x10b8] sm:$0xff]
  %v576 = vld [vmem:[%s1 + $0x10c0] sm:$0xff]
  %v577 = vld [vmem:[%s1 + $0x10c8] sm:$0xff]
  %v578 = vld [vmem:[%s1 + $0x10d0] sm:$0xff]
  %v579 = vld [vmem:[%s1 + $0x10d8] sm:$0xff]
  %v580 = vld [vmem:[%s1 + $0x10e0] sm:$0xff]
  %v581 = vld [vmem:[%s1 + $0x10e8] sm:$0xff]
  %v582 = vld [vmem:[%s1 + $0x10f0] sm:$0xff]
  %v583 = vld [vmem:[%s1 + $0x10f8] sm:$0xff]
  %v584 = vld [vmem:[%s1 + $0x1100] sm:$0xff]
  %v585 = vld [vmem:[%s1 + $0x1108] sm:$0xff]
  %v586 = vld [vmem:[%s1 + $0x1110] sm:$0xff]
  %v587 = vld [vmem:[%s1 + $0x1118] sm:$0xff]
  %v588 = vld [vmem:[%s1 + $0x1120] sm:$0xff]
  %v589 = vld [vmem:[%s1 + $0x1128] sm:$0xff]
  %v590 = vld [vmem:[%s1 + $0x1130] sm:$0xff]
  %v591 = vld [vmem:[%s1 + $0x1138] sm:$0xff]
  %v592 = vld [vmem:[%s1 + $0x1140] sm:$0xff]
  %v593 = vld [vmem:[%s1 + $0x1148] sm:$0xff]
  %v594 = vld [vmem:[%s1 + $0x1150] sm:$0xff]
  %v595 = vld [vmem:[%s1 + $0x1158] sm:$0xff]
  %v596 = vld [vmem:[%s1 + $0x1160] sm:$0xff]
  %v597 = vld [vmem:[%s1 + $0x1168] sm:$0xff]
  %v598 = vld [vmem:[%s1 + $0x1170] sm:$0xff]
  %v599 = vld [vmem:[%s1 + $0x1178] sm:$0xff]
  %v600 = vld [vmem:[%s1 + $0x1180] sm:$0xff]
  %v601 = vld [vmem:[%s1 + $0x1188] sm:$0xff]
  %v602 = vld [vmem:[%s1 + $0x1190] sm:$0xff]
  %v603 = vld [vmem:[%s1 + $0x1198] sm:$0xff]
  %v604 = vld [vmem:[%s1 + $0x11a0] sm:$0xff]
  %v605 = vld [vmem:[%s1 + $0x11a8] sm:$0xff]
  %v606 = vld [vmem:[%s1 + $0x11b0] sm:$0xff]
  %v607 = vld [vmem:[%s1 + $0x11b8] sm:$0xff]
  %v608 = vld [vmem:[%s1 + $0x11c0] sm:$0xff]
  %v609 = vld [vmem:[%s1 + $0x11c8] sm:$0xff]
  %v610 = vld [vmem:[%s1 + $0x11d0] sm:$0xff]
  %v611 = vld [vmem:[%s1 + $0x11d8] sm:$0xff]
  %v612 = vld [vmem:[%s1 + $0x11e0] sm:$0xff]
  %v613 = vld [vmem:[%s1 + $0x11e8] sm:$0xff]
  %v614 = vld [vmem:[%s1 + $0x11f0] sm:$0xff]
  %v615 = vld [vmem:[%s1 + $0x11f8] sm:$0xff]
  %v616 = vld [vmem:[%s1 + $0x1200] sm:$0xff]
  %v617 = vld [vmem:[%s1 + $0x1208] sm:$0xff]
  %v618 = vld [vmem:[%s1 + $0x1210] sm:$0xff]
  %v619 = vld [vmem:[%s1 + $0x1218] sm:$0xff]
  %v620 = vld [vmem:[%s1 + $0x1220] sm:$0xff]
  %v621 = vld [vmem:[%s1 + $0x1228] sm:$0xff]
  %v622 = vld [vmem:[%s1 + $0x1230] sm:$0xff]
  %v623 = vld [vmem:[%s1 + $0x1238] sm:$0xff]
  %v624 = vld [vmem:[%s1 + $0x1240] sm:$0xff]
  %v625 = vld [vmem:[%s1 + $0x1248] sm:$0xff]
  %v626 = vld [vmem:[%s1 + $0x1250] sm:$0xff]
  %v627 = vld [vmem:[%s1 + $0x1258] sm:$0xff]
  %v628 = vld [vmem:[%s1 + $0x1260] sm:$0xff]
  %v629 = vld [vmem:[%s1 + $0x1268] sm:$0xff]
  %v630 = vld [vmem:[%s1 + $0x1270] sm:$0xff]
  %v631 = vld [vmem:[%s1 + $0x1278] sm:$0xff]
  %v632 = vld [vmem:[%s1 + $0x1280] sm:$0xff]
  %v633 = vld [vmem:[%s1 + $0x1288] sm:$0xff]
  %v634 = vld [vmem:[%s1 + $0x1290] sm:$0xff]
  %v635 = vld [vmem:[%s1 + $0x1298] sm:$0xff]
  %v636 = vld [vmem:[%s1 + $0x12a0] sm:$0xff]
  %v637 = vld [vmem:[%s1 + $0x12a8] sm:$0xff]
  %v638 = vld [vmem:[%s1 + $0x12b0] sm:$0xff]
  %v639 = vld [vmem:[%s1 + $0x12b8] sm:$0xff]
  %v640 = vld [vmem:[%s1 + $0x12c0] sm:$0xff]
  %v641 = vld [vmem:[%s1 + $0x12c8] sm:$0xff]
  %v642 = vld [vmem:[%s1 + $0x12d0] sm:$0xff]
  %v643 = vld [vmem:[%s1 + $0x12d8] sm:$0xff]
  %v644 = vld [vmem:[%s1 + $0x12e0] sm:$0xff]
  %v645 = vld [vmem:[%s1 + $0x12e8] sm:$0xff]
  %v646 = vld [vmem:[%s1 + $0x12f0] sm:$0xff]
  %v647 = vld [vmem:[%s1 + $0x12f8] sm:$0xff]
  %v648 = vld [vmem:[%s1 + $0x1300] sm:$0xff]
  %v649 = vld [vmem:[%s1 + $0x1308] sm:$0xff]
  %v650 = vld [vmem:[%s1 + $0x1310] sm:$0xff]
  %v651 = vld [vmem:[%s1 + $0x1318] sm:$0xff]
  %v652 = vld [vmem:[%s1 + $0x1320] sm:$0xff]
  %v653 = vld [vmem:[%s1 + $0x1328] sm:$0xff]
  %v654 = vld [vmem:[%s1 + $0x1330] sm:$0xff]
  %v655 = vld [vmem:[%s1 + $0x1338] sm:$0xff]
  %v656 = vld [vmem:[%s1 + $0x1340] sm:$0xff]
  %v657 = vld [vmem:[%s1 + $0x1348] sm:$0xff]
  %v658 = vld [vmem:[%s1 + $0x1350] sm:$0xff]
  %v659 = vld [vmem:[%s1 + $0x1358] sm:$0xff]
  %v660 = vld [vmem:[%s1 + $0x1360] sm:$0xff]
  %v661 = vld [vmem:[%s1 + $0x1368] sm:$0xff]
  %v662 = vld [vmem:[%s1 + $0x1370] sm:$0xff]
  %v663 = vld [vmem:[%s1 + $0x1378] sm:$0xff]
  %v664 = vld [vmem:[%s1 + $0x1380] sm:$0xff]
  %v665 = vld [vmem:[%s1 + $0x1388] sm:$0xff]
  %v666 = vld [vmem:[%s1 + $0x1390] sm:$0xff]
  %v667 = vld [vmem:[%s1 + $0x1398] sm:$0xff]
  %v668 = vld [vmem:[%s1 + $0x13a0] sm:$0xff]
  %v669 = vld [vmem:[%s1 + $0x13a8] sm:$0xff]
  %v670 = vld [vmem:[%s1 + $0x13b0] sm:$0xff]
  %v671 = vld [vmem:[%s1 + $0x13b8] sm:$0xff]
  %v672 = vld [vmem:[%s1 + $0x13c0] sm:$0xff]
  %v673 = vld [vmem:[%s1 + $0x13c8] sm:$0xff]
  %v674 = vld [vmem:[%s1 + $0x13d0] sm:$0xff]
  %v675 = vld [vmem:[%s1 + $0x13d8] sm:$0xff]
  %v676 = vld [vmem:[%s1 + $0x13e0] sm:$0xff]
  %v677 = vld [vmem:[%s1 + $0x13e8] sm:$0xff]
  %v678 = vld [vmem:[%s1 + $0x13f0] sm:$0xff]
  %v679 = vld [vmem:[%s1 + $0x13f8] sm:$0xff]
  %v680 = vld [vmem:[%s1 + $0x1400] sm:$0xff]
  %v681 = vld [vmem:[%s1 + $0x1408] sm:$0xff]
  %v682 = vld [vmem:[%s1 + $0x1410] sm:$0xff]
  %v683 = vld [vmem:[%s1 + $0x1418] sm:$0xff]
  %v684 = vld [vmem:[%s1 + $0x1420] sm:$0xff]
  %v685 = vld [vmem:[%s1 + $0x1428] sm:$0xff]
  %v686 = vld [vmem:[%s1 + $0x1430] sm:$0xff]
  %v687 = vld [vmem:[%s1 + $0x1438] sm:$0xff]
  %v688 = vld [vmem:[%s1 + $0x1440] sm:$0xff]
  %v689 = vld [vmem:[%s1 + $0x1448] sm:$0xff]
  %v690 = vld [vmem:[%s1 + $0x1450] sm:$0xff]
  %v691 = vld [vmem:[%s1 + $0x1458] sm:$0xff]
  %v692 = vld [vmem:[%s1 + $0x1460] sm:$0xff]
  %v693 = vld [vmem:[%s1 + $0x1468] sm:$0xff]
  %v694 = vld [vmem:[%s1 + $0x1470] sm:$0xff]
  %v695 = vld [vmem:[%s1 + $0x1478] sm:$0xff]
  %v696 = vld [vmem:[%s1 + $0x1480] sm:$0xff]
  %v697 = vld [vmem:[%s1 + $0x1488] sm:$0xff]
  %v698 = vld [vmem:[%s1 + $0x1490] sm:$0xff]
  %v699 = vld [vmem:[%s1 + $0x1498] sm:$0xff]
  %v700 = vld [vmem:[%s1 + $0x14a0] sm:$0xff]
  %v701 = vld [vmem:[%s1 + $0x14a8] sm:$0xff]
  %v702 = vld [vmem:[%s1 + $0x14b0] sm:$0xff]
  %v703 = vld [vmem:[%s1 + $0x14b8] sm:$0xff]
  %v704 = vld [vmem:[%s1 + $0x14c0] sm:$0xff]
  %v705 = vld [vmem:[%s1 + $0x14c8] sm:$0xff]
  %v706 = vld [vmem:[%s1 + $0x14d0] sm:$0xff]
  %v707 = vld [vmem:[%s1 + $0x14d8] sm:$0xff]
  %v708 = vld [vmem:[%s1 + $0x14e0] sm:$0xff]
  %v709 = vld [vmem:[%s1 + $0x14e8] sm:$0xff]
  %v710 = vld [vmem:[%s1 + $0x14f0] sm:$0xff]
  %v711 = vld [vmem:[%s1 + $0x14f8] sm:$0xff]
  %v712 = vld [vmem:[%s1 + $0x1500] sm:$0xff]
  %v713 = vld [vmem:[%s1 + $0x1508] sm:$0xff]
  %v714 = vld [vmem:[%s1 + $0x1510] sm:$0xff]
  %v715 = vld [vmem:[%s1 + $0x1518] sm:$0xff]
  %v716 = vld [vmem:[%s1 + $0x1520] sm:$0xff]
  %v717 = vld [vmem:[%s1 + $0x1528] sm:$0xff]
  %v718 = vld [vmem:[%s1 + $0x1530] sm:$0xff]
  %v719 = vld [vmem:[%s1 + $0x1538] sm:$0xff]
  %v720 = vld [vmem:[%s1 + $0x1540] sm:$0xff]
  %v721 = vld [vmem:[%s1 + $0x1548] sm:$0xff]
  %v722 = vld [vmem:[%s1 + $0x1550] sm:$0xff]
  %v723 = vld [vmem:[%s1 + $0x1558] sm:$0xff]
  %v724 = vld [vmem:[%s1 + $0x1560] sm:$0xff]
  %v725 = vld [vmem:[%s1 + $0x1568] sm:$0xff]
  %v726 = vld [vmem:[%s1 + $0x1570] sm:$0xff]
  %v727 = vld [vmem:[%s1 + $0x1578] sm:$0xff]
  %v728 = vld [vmem:[%s1 + $0x1580] sm:$0xff]
  %v729 = vld [vmem:[%s1 + $0x1588] sm:$0xff]
  %v730 = vld [vmem:[%s1 + $0x1590] sm:$0xff]
  %v731 = vld [vmem:[%s1 + $0x1598] sm:$0xff]
  %v732 = vld [vmem:[%s1 + $0x15a0] sm:$0xff]
  %v733 = vld [vmem:[%s1 + $0x15a8] sm:$0xff]
  %v734 = vld [vmem:[%s1 + $0x15b0] sm:$0xff]
  %v735 = vld [vmem:[%s1 + $0x15b8] sm:$0xff]
  %v736 = vld [vmem:[%s1 + $0x15c0] sm:$0xff]
  %v737 = vld [vmem:[%s1 + $0x15c8] sm:$0xff]
  %v738 = vld [vmem:[%s1 + $0x15d0] sm:$0xff]
  %v739 = vld [vmem:[%s1 + $0x15d8] sm:$0xff]
  %v740 = vld [vmem:[%s1 + $0x15e0] sm:$0xff]
  %v741 = vld [vmem:[%s1 + $0x15e8] sm:$0xff]
  %v742 = vld [vmem:[%s1 + $0x15f0] sm:$0xff]
  %v743 = vld [vmem:[%s1 + $0x15f8] sm:$0xff]
  %v744 = vld [vmem:[%s1 + $0x1600] sm:$0xff]
  %v745 = vld [vmem:[%s1 + $0x1608] sm:$0xff]
  %v746 = vld [vmem:[%s1 + $0x1610] sm:$0xff]
  %v747 = vld [vmem:[%s1 + $0x1618] sm:$0xff]
  %v748 = vld [vmem:[%s1 + $0x1620] sm:$0xff]
  %v749 = vld [vmem:[%s1 + $0x1628] sm:$0xff]
  %v750 = vld [vmem:[%s1 + $0x1630] sm:$0xff]
  %v751 = vld [vmem:[%s1 + $0x1638] sm:$0xff]
  %v752 = vld [vmem:[%s1 + $0x1640] sm:$0xff]
  %v753 = vld [vmem:[%s1 + $0x1648] sm:$0xff]
  %v754 = vld [vmem:[%s1 + $0x1650] sm:$0xff]
  %v755 = vld [vmem:[%s1 + $0x1658] sm:$0xff]
  %v756 = vld [vmem:[%s1 + $0x1660] sm:$0xff]
  %v757 = vld [vmem:[%s1 + $0x1668] sm:$0xff]
  %v758 = vld [vmem:[%s1 + $0x1670] sm:$0xff]
  %v759 = vld [vmem:[%s1 + $0x1678] sm:$0xff]
  %v760 = vld [vmem:[%s1 + $0x1680] sm:$0xff]
  %v761 = vld [vmem:[%s1 + $0x1688] sm:$0xff]
  %v762 = vld [vmem:[%s1 + $0x1690] sm:$0xff]
  %v763 = vld [vmem:[%s1 + $0x1698] sm:$0xff]
  %v764 = vld [vmem:[%s1 + $0x16a0] sm:$0xff]
  %v765 = vld [vmem:[%s1 + $0x16a8] sm:$0xff]
  %v766 = vld [vmem:[%s1 + $0x16b0] sm:$0xff]
  %v767 = vld [vmem:[%s1 + $0x16b8] sm:$0xff]
  %v768 = vld [vmem:[%s1 + $0x16c0] sm:$0xff]
  %v769 = vld [vmem:[%s1 + $0x16c8] sm:$0xff]
  %v770 = vld [vmem:[%s1 + $0x16d0] sm:$0xff]
  %v771 = vld [vmem:[%s1 + $0x16d8] sm:$0xff]
  %v772 = vld [vmem:[%s1 + $0x16e0] sm:$0xff]
  %v773 = vld [vmem:[%s1 + $0x16e8] sm:$0xff]
  %v774 = vld [vmem:[%s1 + $0x16f0] sm:$0xff]
  %v775 = vld [vmem:[%s1 + $0x16f8] sm:$0xff]
  %v776 = vld [vmem:[%s1 + $0x1700] sm:$0xff]
  %v777 = vld [vmem:[%s1 + $0x1708] sm:$0xff]
  %v778 = vld [vmem:[%s1 + $0x1710] sm:$0xff]
  %v779 = vld [vmem:[%s1 + $0x1718] sm:$0xff]
  %v780 = vld [vmem:[%s1 + $0x1720] sm:$0xff]
  %v781 = vld [vmem:[%s1 + $0x1728] sm:$0xff]
  %v782 = vld [vmem:[%s1 + $0x1730] sm:$0xff]
  %v783 = vld [vmem:[%s1 + $0x1738] sm:$0xff]
  %v784 = vld [vmem:[%s1 + $0x1740] sm:$0xff]
  %v785 = vld [vmem:[%s1 + $0x1748] sm:$0xff]
  %v786 = vld [vmem:[%s1 + $0x1750] sm:$0xff]
  %v787 = vld [vmem:[%s1 + $0x1758] sm:$0xff]
  %v788 = vld [vmem:[%s1 + $0x1760] sm:$0xff]
  %v789 = vld [vmem:[%s1 + $0x1768] sm:$0xff]
  %v790 = vld [vmem:[%s1 + $0x1770] sm:$0xff]
  %v791 = vld [vmem:[%s1 + $0x1778] sm:$0xff]
  %v792 = vld [vmem:[%s1 + $0x1780] sm:$0xff]
  %v793 = vld [vmem:[%s1 + $0x1788] sm:$0xff]
  %v794 = vld [vmem:[%s1 + $0x1790] sm:$0xff]
  %v795 = vld [vmem:[%s1 + $0x1798] sm:$0xff]
  %v796 = vld [vmem:[%s1 + $0x17a0] sm:$0xff]
  %v797 = vld [vmem:[%s1 + $0x17a8] sm:$0xff]
  %v798 = vld [vmem:[%s1 + $0x17b0] sm:$0xff]
  %v799 = vld [vmem:[%s1 + $0x17b8] sm:$0xff]
  %v800 = vld [vmem:[%s1 + $0x17c0] sm:$0xff]
  %v801 = vld [vmem:[%s1 + $0x17c8] sm:$0xff]
  %v802 = vld [vmem:[%s1 + $0x17d0] sm:$0xff]
  %v803 = vld [vmem:[%s1 + $0x17d8] sm:$0xff]
  %v804 = vld [vmem:[%s1 + $0x17e0] sm:$0xff]
  %v805 = vld [vmem:[%s1 + $0x17e8] sm:$0xff]
  %v806 = vld [vmem:[%s1 + $0x17f0] sm:$0xff]
  %v807 = vld [vmem:[%s1 + $0x17f8] sm:$0xff]
  %v808 = vld [vmem:[%s1 + $0x1800] sm:$0xff]
  %v809 = vld [vmem:[%s1 + $0x1808] sm:$0xff]
  %v810 = vld [vmem:[%s1 + $0x1810] sm:$0xff]
  %v811 = vld [vmem:[%s1 + $0x1818] sm:$0xff]
  %v812 = vld [vmem:[%s1 + $0x1820] sm:$0xff]
  %v813 = vld [vmem:[%s1 + $0x1828] sm:$0xff]
  %v814 = vld [vmem:[%s1 + $0x1830] sm:$0xff]
  %v815 = vld [vmem:[%s1 + $0x1838] sm:$0xff]
  %v816 = vld [vmem:[%s1 + $0x1840] sm:$0xff]
  %v817 = vld [vmem:[%s1 + $0x1848] sm:$0xff]
  %v818 = vld [vmem:[%s1 + $0x1850] sm:$0xff]
  %v819 = vld [vmem:[%s1 + $0x1858] sm:$0xff]
  %v820 = vld [vmem:[%s1 + $0x1860] sm:$0xff]
  %v821 = vld [vmem:[%s1 + $0x1868] sm:$0xff]
  %v822 = vld [vmem:[%s1 + $0x1870] sm:$0xff]
  %v823 = vld [vmem:[%s1 + $0x1878] sm:$0xff]
  %v824 = vld [vmem:[%s2] sm:$0x3]
  %v826 = vlaneseq
  %v827 = vshrl.u32 %v826, 7
  %v828 = vsub.s32 0, %v827
  %v829 = vrot.slane %v824, %v828
  %v830 = vlaneseq
  %v831 = vshrl.u32 %v830, 7
  %v832 = vsub.s32 1, %v831
  %v833 = vrot.slane %v824, %v832
  %v861 = vunpack.c.l.b16 %v15
  %v862 = vunpack.c.h.b16 %v15
  %v863 = vunpack.c.l.b16 %v16
  %v864 = vunpack.c.h.b16 %v16
  %v865 = vunpack.c.l.b16 %v17
  %v866 = vunpack.c.h.b16 %v17
  %v867 = vunpack.c.l.b16 %v18
  %v868 = vunpack.c.h.b16 %v18
  %v869 = vunpack.c.l.b16 %v19
  %v870 = vunpack.c.h.b16 %v19
  %v871 = vunpack.c.l.b16 %v20
  %v872 = vunpack.c.h.b16 %v20
  %v873 = vunpack.c.l.b16 %v21
  %v874 = vunpack.c.h.b16 %v21
  %v875 = vunpack.c.l.b16 %v22
  %v876 = vunpack.c.h.b16 %v22
  %v877 = vunpack.c.l.b16 %v23
  %v878 = vunpack.c.h.b16 %v23
  %v879 = vunpack.c.l.b16 %v24
  %v880 = vunpack.c.h.b16 %v24
  %v881 = vunpack.c.l.b16 %v25
  %v882 = vunpack.c.h.b16 %v25
  %v883 = vunpack.c.l.b16 %v26
  %v884 = vunpack.c.h.b16 %v26
  %v885 = vunpack.c.l.b16 %v27
  %v886 = vunpack.c.h.b16 %v27
  %v887 = vunpack.c.l.b16 %v28
  %v888 = vunpack.c.h.b16 %v28
  %v889 = vunpack.c.l.b16 %v29
  %v890 = vunpack.c.h.b16 %v29
  %v891 = vunpack.c.l.b16 %v30
  %v892 = vunpack.c.h.b16 %v30
  %v893 = vunpack.c.l.b16 %v31
  %v894 = vunpack.c.h.b16 %v31
  %v895 = vunpack.c.l.b16 %v32
  %v896 = vunpack.c.h.b16 %v32
  %v897 = vunpack.c.l.b16 %v33
  %v898 = vunpack.c.h.b16 %v33
  %v899 = vunpack.c.l.b16 %v34
  %v900 = vunpack.c.h.b16 %v34
  %v901 = vunpack.c.l.b16 %v35
  %v902 = vunpack.c.h.b16 %v35
  %v903 = vunpack.c.l.b16 %v36
  %v904 = vunpack.c.h.b16 %v36
  %v905 = vunpack.c.l.b16 %v37
  %v906 = vunpack.c.h.b16 %v37
  %v907 = vunpack.c.l.b16 %v38
  %v908 = vunpack.c.h.b16 %v38
  %v909 = vunpack.c.l.b16 %v39
  %v910 = vpack.c.b16 %v861, %v861
  %v911 = vpack.c.b16 %v862, %v862
  %v912 = vpack.c.b16 %v863, %v863
  %v913 = vpack.c.b16 %v864, %v864
  %v914 = vpack.c.b16 %v865, %v865
  %v915 = vpack.c.b16 %v866, %v866
  %v916 = vpack.c.b16 %v867, %v867
  %v917 = vpack.c.b16 %v868, %v868
  %v918 = vpack.c.b16 %v869, %v869
  %v919 = vpack.c.b16 %v870, %v870
  %v920 = vpack.c.b16 %v871, %v871
  %v921 = vpack.c.b16 %v872, %v872
  %v922 = vpack.c.b16 %v873, %v873
  %v923 = vpack.c.b16 %v874, %v874
  %v924 = vpack.c.b16 %v875, %v875
  %v925 = vpack.c.b16 %v876, %v876
  %v926 = vpack.c.b16 %v877, %v877
  %v927 = vpack.c.b16 %v878, %v878
  %v928 = vpack.c.b16 %v879, %v879
  %v929 = vpack.c.b16 %v880, %v880
  %v930 = vpack.c.b16 %v881, %v881
  %v931 = vpack.c.b16 %v882, %v882
  %v932 = vpack.c.b16 %v883, %v883
  %v933 = vpack.c.b16 %v884, %v884
  %v934 = vpack.c.b16 %v885, %v885
  %v935 = vpack.c.b16 %v886, %v886
  %v936 = vpack.c.b16 %v887, %v887
  %v937 = vpack.c.b16 %v888, %v888
  %v938 = vpack.c.b16 %v889, %v889
  %v939 = vpack.c.b16 %v890, %v890
  %v940 = vpack.c.b16 %v891, %v891
  %v941 = vpack.c.b16 %v892, %v892
  %v942 = vpack.c.b16 %v893, %v893
  %v943 = vpack.c.b16 %v894, %v894
  %v944 = vpack.c.b16 %v895, %v895
  %v945 = vpack.c.b16 %v896, %v896
  %v946 = vpack.c.b16 %v897, %v897
  %v947 = vpack.c.b16 %v898, %v898
  %v948 = vpack.c.b16 %v899, %v899
  %v949 = vpack.c.b16 %v900, %v900
  %v950 = vpack.c.b16 %v901, %v901
  %v951 = vpack.c.b16 %v902, %v902
  %v952 = vpack.c.b16 %v903, %v903
  %v953 = vpack.c.b16 %v904, %v904
  %v954 = vpack.c.b16 %v905, %v905
  %v955 = vpack.c.b16 %v906, %v906
  %v956 = vpack.c.b16 %v907, %v907
  %v957 = vpack.c.b16 %v908, %v908
  %v958 = vpack.c.b16 %v909, %v909
  %v1792 = vunpack.c.l.b16 %v40
  %v1793 = vunpack.c.h.b16 %v40
  %v1794 = vunpack.c.l.b16 %v41
  %v1795 = vunpack.c.h.b16 %v41
  %v1796 = vunpack.c.l.b16 %v42
  %v1797 = vunpack.c.h.b16 %v42
  %v1798 = vunpack.c.l.b16 %v43
  %v1799 = vunpack.c.h.b16 %v43
  %v1800 = vunpack.c.l.b16 %v44
  %v1801 = vunpack.c.h.b16 %v44
  %v1802 = vunpack.c.l.b16 %v45
  %v1803 = vunpack.c.h.b16 %v45
  %v1804 = vunpack.c.l.b16 %v46
  %v1805 = vunpack.c.h.b16 %v46
  %v1806 = vunpack.c.l.b16 %v47
  %v1807 = vunpack.c.h.b16 %v47
  %v1808 = vunpack.c.l.b16 %v48
  %v1809 = vunpack.c.h.b16 %v48
  %v1810 = vunpack.c.l.b16 %v49
  %v1811 = vunpack.c.h.b16 %v49
  %v1812 = vunpack.c.l.b16 %v50
  %v1813 = vunpack.c.h.b16 %v50
  %v1814 = vunpack.c.l.b16 %v51
  %v1815 = vunpack.c.h.b16 %v51
  %v1816 = vunpack.c.l.b16 %v52
  %v1817 = vunpack.c.h.b16 %v52
  %v1818 = vunpack.c.l.b16 %v53
  %v1819 = vunpack.c.h.b16 %v53
  %v1820 = vunpack.c.l.b16 %v54
  %v1821 = vunpack.c.h.b16 %v54
  %v1822 = vunpack.c.l.b16 %v55
  %v1823 = vunpack.c.h.b16 %v55
  %v1824 = vunpack.c.l.b16 %v56
  %v1825 = vunpack.c.h.b16 %v56
  %v1826 = vunpack.c.l.b16 %v57
  %v1827 = vunpack.c.h.b16 %v57
  %v1828 = vunpack.c.l.b16 %v58
  %v1829 = vunpack.c.h.b16 %v58
  %v1830 = vunpack.c.l.b16 %v59
  %v1831 = vunpack.c.h.b16 %v59
  %v1832 = vunpack.c.l.b16 %v60
  %v1833 = vunpack.c.h.b16 %v60
  %v1834 = vunpack.c.l.b16 %v61
  %v1835 = vunpack.c.h.b16 %v61
  %v1836 = vunpack.c.l.b16 %v62
  %v1837 = vunpack.c.h.b16 %v62
  %v1838 = vunpack.c.l.b16 %v63
  %v1839 = vunpack.c.h.b16 %v63
  %v1840 = vunpack.c.l.b16 %v64
  %v1841 = vunpack.c.h.b16 %v64
  %v1842 = vunpack.c.l.b16 %v65
  %v1843 = vunpack.c.h.b16 %v65
  %v1844 = vunpack.c.l.b16 %v66
  %v1845 = vunpack.c.h.b16 %v66
  %v1846 = vunpack.c.l.b16 %v67
  %v1847 = vunpack.c.h.b16 %v67
  %v1848 = vunpack.c.l.b16 %v68
  %v1849 = vunpack.c.h.b16 %v68
  %v1850 = vunpack.c.l.b16 %v69
  %v1851 = vunpack.c.h.b16 %v69
  %v1852 = vunpack.c.l.b16 %v70
  %v1853 = vunpack.c.h.b16 %v70
  %v1854 = vunpack.c.l.b16 %v71
  %v1855 = vunpack.c.h.b16 %v71
  %v1856 = vunpack.c.l.b16 %v72
  %v1857 = vunpack.c.h.b16 %v72
  %v1858 = vunpack.c.l.b16 %v73
  %v1859 = vunpack.c.h.b16 %v73
  %v1860 = vunpack.c.l.b16 %v74
  %v1861 = vunpack.c.h.b16 %v74
  %v1862 = vunpack.c.l.b16 %v75
  %v1863 = vunpack.c.h.b16 %v75
  %v1864 = vunpack.c.l.b16 %v76
  %v1865 = vunpack.c.h.b16 %v76
  %v1866 = vunpack.c.l.b16 %v77
  %v1867 = vunpack.c.h.b16 %v77
  %v1868 = vunpack.c.l.b16 %v78
  %v1869 = vunpack.c.h.b16 %v78
  %v1870 = vunpack.c.l.b16 %v79
  %v1871 = vunpack.c.h.b16 %v79
  %v1872 = vunpack.c.l.b16 %v80
  %v1873 = vunpack.c.h.b16 %v80
  %v1874 = vunpack.c.l.b16 %v81
  %v1875 = vunpack.c.h.b16 %v81
  %v1876 = vunpack.c.l.b16 %v82
  %v1877 = vunpack.c.h.b16 %v82
  %v1878 = vunpack.c.l.b16 %v83
  %v1879 = vunpack.c.h.b16 %v83
  %v1880 = vunpack.c.l.b16 %v84
  %v1881 = vunpack.c.h.b16 %v84
  %v1882 = vunpack.c.l.b16 %v85
  %v1883 = vunpack.c.h.b16 %v85
  %v1884 = vunpack.c.l.b16 %v86
  %v1885 = vunpack.c.h.b16 %v86
  %v1886 = vunpack.c.l.b16 %v87
  %v1887 = vunpack.c.h.b16 %v87
  %v1888 = vunpack.c.l.b16 %v88
  %v1889 = vunpack.c.h.b16 %v88
  %v1890 = vunpack.c.l.b16 %v89
  %v1891 = vunpack.c.h.b16 %v89
  %v1892 = vunpack.c.l.b16 %v90
  %v1893 = vunpack.c.h.b16 %v90
  %v1894 = vunpack.c.l.b16 %v91
  %v1895 = vunpack.c.h.b16 %v91
  %v1896 = vunpack.c.l.b16 %v92
  %v1897 = vunpack.c.h.b16 %v92
  %v1898 = vunpack.c.l.b16 %v93
  %v1899 = vunpack.c.h.b16 %v93
  %v1900 = vunpack.c.l.b16 %v94
  %v1901 = vunpack.c.h.b16 %v94
  %v1902 = vunpack.c.l.b16 %v95
  %v1903 = vunpack.c.h.b16 %v95
  %v1904 = vunpack.c.l.b16 %v96
  %v1905 = vunpack.c.h.b16 %v96
  %v1906 = vunpack.c.l.b16 %v97
  %v1907 = vunpack.c.h.b16 %v97
  %v1908 = vunpack.c.l.b16 %v98
  %v1909 = vunpack.c.h.b16 %v98
  %v1910 = vunpack.c.l.b16 %v99
  %v1911 = vunpack.c.h.b16 %v99
  %v1912 = vunpack.c.l.b16 %v100
  %v1913 = vunpack.c.h.b16 %v100
  %v1914 = vunpack.c.l.b16 %v101
  %v1915 = vunpack.c.h.b16 %v101
  %v1916 = vunpack.c.l.b16 %v102
  %v1917 = vunpack.c.h.b16 %v102
  %v1918 = vunpack.c.l.b16 %v103
  %v1919 = vunpack.c.h.b16 %v103
  %v1920 = vunpack.c.l.b16 %v104
  %v1921 = vunpack.c.h.b16 %v104
  %v1922 = vunpack.c.l.b16 %v105
  %v1923 = vunpack.c.h.b16 %v105
  %v1924 = vunpack.c.l.b16 %v106
  %v1925 = vunpack.c.h.b16 %v106
  %v1926 = vunpack.c.l.b16 %v107
  %v1927 = vunpack.c.h.b16 %v107
  %v1928 = vunpack.c.l.b16 %v108
  %v1929 = vunpack.c.h.b16 %v108
  %v1930 = vunpack.c.l.b16 %v109
  %v1931 = vunpack.c.h.b16 %v109
  %v1932 = vunpack.c.l.b16 %v110
  %v1933 = vunpack.c.h.b16 %v110
  %v1934 = vunpack.c.l.b16 %v111
  %v1935 = vunpack.c.h.b16 %v111
  %v1936 = vunpack.c.l.b16 %v112
  %v1937 = vunpack.c.h.b16 %v112
  %v1938 = vunpack.c.l.b16 %v113
  %v1939 = vunpack.c.h.b16 %v113
  %v1940 = vunpack.c.l.b16 %v114
  %v1941 = vunpack.c.h.b16 %v114
  %v1942 = vunpack.c.l.b16 %v115
  %v1943 = vunpack.c.h.b16 %v115
  %v1944 = vunpack.c.l.b16 %v116
  %v1945 = vunpack.c.h.b16 %v116
  %v1946 = vunpack.c.l.b16 %v117
  %v1947 = vunpack.c.h.b16 %v117
  %v1948 = vunpack.c.l.b16 %v118
  %v1949 = vunpack.c.h.b16 %v118
  %v1950 = vunpack.c.l.b16 %v119
  %v1951 = vunpack.c.h.b16 %v119
  %v1952 = vunpack.c.l.b16 %v120
  %v1953 = vunpack.c.h.b16 %v120
  %v1954 = vunpack.c.l.b16 %v121
  %v1955 = vunpack.c.h.b16 %v121
  %v1956 = vunpack.c.l.b16 %v122
  %v1957 = vunpack.c.h.b16 %v122
  %v1958 = vunpack.c.l.b16 %v123
  %v1959 = vunpack.c.h.b16 %v123
  %v1960 = vunpack.c.l.b16 %v124
  %v1961 = vunpack.c.h.b16 %v124
  %v1962 = vunpack.c.l.b16 %v125
  %v1963 = vunpack.c.h.b16 %v125
  %v1964 = vunpack.c.l.b16 %v126
  %v1965 = vunpack.c.h.b16 %v126
  %v1966 = vunpack.c.l.b16 %v127
  %v1967 = vunpack.c.h.b16 %v127
  %v1968 = vunpack.c.l.b16 %v128
  %v1969 = vunpack.c.h.b16 %v128
  %v1970 = vunpack.c.l.b16 %v129
  %v1971 = vunpack.c.h.b16 %v129
  %v1972 = vunpack.c.l.b16 %v130
  %v1973 = vunpack.c.h.b16 %v130
  %v1974 = vunpack.c.l.b16 %v131
  %v1975 = vunpack.c.h.b16 %v131
  %v1976 = vunpack.c.l.b16 %v132
  %v1977 = vunpack.c.h.b16 %v132
  %v1978 = vunpack.c.l.b16 %v133
  %v1979 = vunpack.c.h.b16 %v133
  %v1980 = vunpack.c.l.b16 %v134
  %v1981 = vunpack.c.h.b16 %v134
  %v1982 = vunpack.c.l.b16 %v135
  %v1983 = vunpack.c.h.b16 %v135
  %v1984 = vunpack.c.l.b16 %v136
  %v1985 = vunpack.c.h.b16 %v136
  %v1986 = vunpack.c.l.b16 %v137
  %v1987 = vunpack.c.h.b16 %v137
  %v1988 = vunpack.c.l.b16 %v138
  %v1989 = vunpack.c.h.b16 %v138
  %v1990 = vunpack.c.l.b16 %v139
  %v1991 = vunpack.c.h.b16 %v139
  %v1992 = vunpack.c.l.b16 %v140
  %v1993 = vunpack.c.h.b16 %v140
  %v1994 = vunpack.c.l.b16 %v141
  %v1995 = vunpack.c.h.b16 %v141
  %v1996 = vunpack.c.l.b16 %v142
  %v1997 = vunpack.c.h.b16 %v142
  %v1998 = vunpack.c.l.b16 %v143
  %v1999 = vunpack.c.h.b16 %v143
  %v2000 = vunpack.c.l.b16 %v144
  %v2001 = vunpack.c.h.b16 %v144
  %v2002 = vunpack.c.l.b16 %v145
  %v2003 = vunpack.c.h.b16 %v145
  %v2004 = vunpack.c.l.b16 %v146
  %v2005 = vunpack.c.h.b16 %v146
  %v2006 = vunpack.c.l.b16 %v147
  %v2007 = vunpack.c.h.b16 %v147
  %v2008 = vunpack.c.l.b16 %v148
  %v2009 = vunpack.c.h.b16 %v148
  %v2010 = vunpack.c.l.b16 %v149
  %v2011 = vunpack.c.h.b16 %v149
  %v2012 = vunpack.c.l.b16 %v150
  %v2013 = vunpack.c.h.b16 %v150
  %v2014 = vunpack.c.l.b16 %v151
  %v2015 = vunpack.c.h.b16 %v151
  %v2016 = vunpack.c.l.b16 %v152
  %v2017 = vunpack.c.h.b16 %v152
  %v2018 = vunpack.c.l.b16 %v153
  %v2019 = vunpack.c.h.b16 %v153
  %v2020 = vunpack.c.l.b16 %v154
  %v2021 = vunpack.c.h.b16 %v154
  %v2022 = vunpack.c.l.b16 %v155
  %v2023 = vunpack.c.h.b16 %v155
  %v2024 = vunpack.c.l.b16 %v156
  %v2025 = vunpack.c.h.b16 %v156
  %v2026 = vunpack.c.l.b16 %v157
  %v2027 = vunpack.c.h.b16 %v157
  %v2028 = vunpack.c.l.b16 %v158
  %v2029 = vunpack.c.h.b16 %v158
  %v2030 = vunpack.c.l.b16 %v159
  %v2031 = vunpack.c.h.b16 %v159
  %v2032 = vunpack.c.l.b16 %v160
  %v2033 = vunpack.c.h.b16 %v160
  %v2034 = vunpack.c.l.b16 %v161
  %v2035 = vunpack.c.h.b16 %v161
  %v2036 = vunpack.c.l.b16 %v162
  %v2037 = vunpack.c.h.b16 %v162
  %v2038 = vunpack.c.l.b16 %v163
  %v2039 = vunpack.c.h.b16 %v163
  %v2040 = vunpack.c.l.b16 %v164
  %v2041 = vunpack.c.h.b16 %v164
  %v2042 = vunpack.c.l.b16 %v165
  %v2043 = vunpack.c.h.b16 %v165
  %v2044 = vunpack.c.l.b16 %v166
  %v2045 = vunpack.c.h.b16 %v166
  %v2046 = vunpack.c.l.b16 %v167
  %v2047 = vunpack.c.h.b16 %v167
  %v2048 = vunpack.c.l.b16 %v168
  %v2049 = vunpack.c.h.b16 %v168
  %v2050 = vunpack.c.l.b16 %v169
  %v2051 = vunpack.c.h.b16 %v169
  %v2052 = vunpack.c.l.b16 %v170
  %v2053 = vunpack.c.h.b16 %v170
  %v2054 = vunpack.c.l.b16 %v171
  %v2055 = vunpack.c.h.b16 %v171
  %v2056 = vunpack.c.l.b16 %v172
  %v2057 = vunpack.c.h.b16 %v172
  %v2058 = vunpack.c.l.b16 %v173
  %v2059 = vunpack.c.h.b16 %v173
  %v2060 = vunpack.c.l.b16 %v174
  %v2061 = vunpack.c.h.b16 %v174
  %v2062 = vunpack.c.l.b16 %v175
  %v2063 = vunpack.c.h.b16 %v175
  %v2064 = vunpack.c.l.b16 %v176
  %v2065 = vunpack.c.h.b16 %v176
  %v2066 = vunpack.c.l.b16 %v177
  %v2067 = vunpack.c.h.b16 %v177
  %v2068 = vunpack.c.l.b16 %v178
  %v2069 = vunpack.c.h.b16 %v178
  %v2070 = vunpack.c.l.b16 %v179
  %v2071 = vunpack.c.h.b16 %v179
  %v2072 = vunpack.c.l.b16 %v180
  %v2073 = vunpack.c.h.b16 %v180
  %v2074 = vunpack.c.l.b16 %v181
  %v2075 = vunpack.c.h.b16 %v181
  %v2076 = vunpack.c.l.b16 %v182
  %v2077 = vunpack.c.h.b16 %v182
  %v2078 = vunpack.c.l.b16 %v183
  %v2079 = vunpack.c.h.b16 %v183
  %v2080 = vunpack.c.l.b16 %v184
  %v2081 = vunpack.c.h.b16 %v184
  %v2082 = vunpack.c.l.b16 %v185
  %v2083 = vunpack.c.h.b16 %v185
  %v2084 = vunpack.c.l.b16 %v186
  %v2085 = vunpack.c.h.b16 %v186
  %v2086 = vunpack.c.l.b16 %v187
  %v2087 = vunpack.c.h.b16 %v187
  %v2088 = vunpack.c.l.b16 %v188
  %v2089 = vunpack.c.h.b16 %v188
  %v2090 = vunpack.c.l.b16 %v189
  %v2091 = vunpack.c.h.b16 %v189
  %v2092 = vunpack.c.l.b16 %v190
  %v2093 = vunpack.c.h.b16 %v190
  %v2094 = vunpack.c.l.b16 %v191
  %v2095 = vunpack.c.h.b16 %v191
  %v2096 = vunpack.c.l.b16 %v192
  %v2097 = vunpack.c.h.b16 %v192
  %v2098 = vunpack.c.l.b16 %v193
  %v2099 = vunpack.c.h.b16 %v193
  %v2100 = vunpack.c.l.b16 %v194
  %v2101 = vunpack.c.h.b16 %v194
  %v2102 = vunpack.c.l.b16 %v195
  %v2103 = vunpack.c.h.b16 %v195
  %v2104 = vunpack.c.l.b16 %v196
  %v2105 = vunpack.c.h.b16 %v196
  %v2106 = vunpack.c.l.b16 %v197
  %v2107 = vunpack.c.h.b16 %v197
  %v2108 = vunpack.c.l.b16 %v198
  %v2109 = vunpack.c.h.b16 %v198
  %v2110 = vunpack.c.l.b16 %v199
  %v2111 = vunpack.c.h.b16 %v199
  %v2112 = vunpack.c.l.b16 %v200
  %v2113 = vunpack.c.h.b16 %v200
  %v2114 = vunpack.c.l.b16 %v201
  %v2115 = vunpack.c.h.b16 %v201
  %v2116 = vunpack.c.l.b16 %v202
  %v2117 = vunpack.c.h.b16 %v202
  %v2118 = vunpack.c.l.b16 %v203
  %v2119 = vunpack.c.h.b16 %v203
  %v2120 = vunpack.c.l.b16 %v204
  %v2121 = vunpack.c.h.b16 %v204
  %v2122 = vunpack.c.l.b16 %v205
  %v2123 = vunpack.c.h.b16 %v205
  %v2124 = vunpack.c.l.b16 %v206
  %v2125 = vunpack.c.h.b16 %v206
  %v2126 = vunpack.c.l.b16 %v207
  %v2127 = vunpack.c.h.b16 %v207
  %v2128 = vunpack.c.l.b16 %v208
  %v2129 = vunpack.c.h.b16 %v208
  %v2130 = vunpack.c.l.b16 %v209
  %v2131 = vunpack.c.h.b16 %v209
  %v2132 = vunpack.c.l.b16 %v210
  %v2133 = vunpack.c.h.b16 %v210
  %v2134 = vunpack.c.l.b16 %v211
  %v2135 = vunpack.c.h.b16 %v211
  %v2136 = vunpack.c.l.b16 %v212
  %v2137 = vunpack.c.h.b16 %v212
  %v2138 = vunpack.c.l.b16 %v213
  %v2139 = vunpack.c.h.b16 %v213
  %v2140 = vunpack.c.l.b16 %v214
  %v2141 = vunpack.c.h.b16 %v214
  %v2142 = vunpack.c.l.b16 %v215
  %v2143 = vunpack.c.h.b16 %v215
  %v2144 = vunpack.c.l.b16 %v216
  %v2145 = vunpack.c.h.b16 %v216
  %v2146 = vunpack.c.l.b16 %v217
  %v2147 = vunpack.c.h.b16 %v217
  %v2148 = vunpack.c.l.b16 %v218
  %v2149 = vunpack.c.h.b16 %v218
  %v2150 = vunpack.c.l.b16 %v219
  %v2151 = vunpack.c.h.b16 %v219
  %v2152 = vunpack.c.l.b16 %v220
  %v2153 = vunpack.c.h.b16 %v220
  %v2154 = vunpack.c.l.b16 %v221
  %v2155 = vunpack.c.h.b16 %v221
  %v2156 = vunpack.c.l.b16 %v222
  %v2157 = vunpack.c.h.b16 %v222
  %v2158 = vunpack.c.l.b16 %v223
  %v2159 = vunpack.c.h.b16 %v223
  %v2160 = vunpack.c.l.b16 %v224
  %v2161 = vunpack.c.h.b16 %v224
  %v2162 = vunpack.c.l.b16 %v225
  %v2163 = vunpack.c.h.b16 %v225
  %v2164 = vunpack.c.l.b16 %v226
  %v2165 = vunpack.c.h.b16 %v226
  %v2166 = vunpack.c.l.b16 %v227
  %v2167 = vunpack.c.h.b16 %v227
  %v2168 = vunpack.c.l.b16 %v228
  %v2169 = vunpack.c.h.b16 %v228
  %v2170 = vunpack.c.l.b16 %v229
  %v2171 = vunpack.c.h.b16 %v229
  %v2172 = vunpack.c.l.b16 %v230
  %v2173 = vunpack.c.h.b16 %v230
  %v2174 = vunpack.c.l.b16 %v231
  %v2175 = vunpack.c.h.b16 %v231
  %v2176 = vunpack.c.l.b16 %v232
  %v2177 = vunpack.c.h.b16 %v232
  %v2178 = vunpack.c.l.b16 %v233
  %v2179 = vunpack.c.h.b16 %v233
  %v2180 = vunpack.c.l.b16 %v234
  %v2181 = vunpack.c.h.b16 %v234
  %v2182 = vunpack.c.l.b16 %v235
  %v2183 = vunpack.c.h.b16 %v235
  %v2184 = vunpack.c.l.b16 %v236
  %v2185 = vunpack.c.h.b16 %v236
  %v2186 = vunpack.c.l.b16 %v237
  %v2187 = vunpack.c.h.b16 %v237
  %v2188 = vunpack.c.l.b16 %v238
  %v2189 = vunpack.c.h.b16 %v238
  %v2190 = vunpack.c.l.b16 %v239
  %v2191 = vunpack.c.h.b16 %v239
  %v2192 = vunpack.c.l.b16 %v240
  %v2193 = vunpack.c.h.b16 %v240
  %v2194 = vunpack.c.l.b16 %v241
  %v2195 = vunpack.c.h.b16 %v241
  %v2196 = vunpack.c.l.b16 %v242
  %v2197 = vunpack.c.h.b16 %v242
  %v2198 = vunpack.c.l.b16 %v243
  %v2199 = vunpack.c.h.b16 %v243
  %v2200 = vunpack.c.l.b16 %v244
  %v2201 = vunpack.c.h.b16 %v244
  %v2202 = vunpack.c.l.b16 %v245
  %v2203 = vunpack.c.h.b16 %v245
  %v2204 = vunpack.c.l.b16 %v246
  %v2205 = vunpack.c.h.b16 %v246
  %v2206 = vunpack.c.l.b16 %v247
  %v2207 = vunpack.c.h.b16 %v247
  %v2208 = vunpack.c.l.b16 %v248
  %v2209 = vunpack.c.h.b16 %v248
  %v2210 = vunpack.c.l.b16 %v249
  %v2211 = vunpack.c.h.b16 %v249
  %v2212 = vunpack.c.l.b16 %v250
  %v2213 = vunpack.c.h.b16 %v250
  %v2214 = vunpack.c.l.b16 %v251
  %v2215 = vunpack.c.h.b16 %v251
  %v2216 = vunpack.c.l.b16 %v252
  %v2217 = vunpack.c.h.b16 %v252
  %v2218 = vunpack.c.l.b16 %v253
  %v2219 = vunpack.c.h.b16 %v253
  %v2220 = vunpack.c.l.b16 %v254
  %v2221 = vunpack.c.h.b16 %v254
  %v2222 = vunpack.c.l.b16 %v255
  %v2223 = vunpack.c.h.b16 %v255
  %v2224 = vunpack.c.l.b16 %v256
  %v2225 = vunpack.c.h.b16 %v256
  %v2226 = vunpack.c.l.b16 %v257
  %v2227 = vunpack.c.h.b16 %v257
  %v2228 = vunpack.c.l.b16 %v258
  %v2229 = vunpack.c.h.b16 %v258
  %v2230 = vunpack.c.l.b16 %v259
  %v2231 = vunpack.c.h.b16 %v259
  %v2232 = vunpack.c.l.b16 %v260
  %v2233 = vunpack.c.h.b16 %v260
  %v2234 = vunpack.c.l.b16 %v261
  %v2235 = vunpack.c.h.b16 %v261
  %v2236 = vunpack.c.l.b16 %v262
  %v2237 = vunpack.c.h.b16 %v262
  %v2238 = vunpack.c.l.b16 %v263
  %v2239 = vunpack.c.h.b16 %v263
  %v2240 = vunpack.c.l.b16 %v264
  %v2241 = vunpack.c.h.b16 %v264
  %v2242 = vunpack.c.l.b16 %v265
  %v2243 = vunpack.c.h.b16 %v265
  %v2244 = vunpack.c.l.b16 %v266
  %v2245 = vunpack.c.h.b16 %v266
  %v2246 = vunpack.c.l.b16 %v267
  %v2247 = vunpack.c.h.b16 %v267
  %v2248 = vunpack.c.l.b16 %v268
  %v2249 = vunpack.c.h.b16 %v268
  %v2250 = vunpack.c.l.b16 %v269
  %v2251 = vunpack.c.h.b16 %v269
  %v2252 = vunpack.c.l.b16 %v270
  %v2253 = vunpack.c.h.b16 %v270
  %v2254 = vunpack.c.l.b16 %v271
  %v2255 = vunpack.c.h.b16 %v271
  %v2256 = vunpack.c.l.b16 %v272
  %v2257 = vunpack.c.h.b16 %v272
  %v2258 = vunpack.c.l.b16 %v273
  %v2259 = vunpack.c.h.b16 %v273
  %v2260 = vunpack.c.l.b16 %v274
  %v2261 = vunpack.c.h.b16 %v274
  %v2262 = vunpack.c.l.b16 %v275
  %v2263 = vunpack.c.h.b16 %v275
  %v2264 = vunpack.c.l.b16 %v276
  %v2265 = vunpack.c.h.b16 %v276
  %v2266 = vunpack.c.l.b16 %v277
  %v2267 = vunpack.c.h.b16 %v277
  %v2268 = vunpack.c.l.b16 %v278
  %v2269 = vunpack.c.h.b16 %v278
  %v2270 = vunpack.c.l.b16 %v279
  %v2271 = vunpack.c.h.b16 %v279
  %v2272 = vunpack.c.l.b16 %v280
  %v2273 = vunpack.c.h.b16 %v280
  %v2274 = vunpack.c.l.b16 %v281
  %v2275 = vunpack.c.h.b16 %v281
  %v2276 = vunpack.c.l.b16 %v282
  %v2277 = vunpack.c.h.b16 %v282
  %v2278 = vunpack.c.l.b16 %v283
  %v2279 = vunpack.c.h.b16 %v283
  %v2280 = vunpack.c.l.b16 %v284
  %v2281 = vunpack.c.h.b16 %v284
  %v2282 = vunpack.c.l.b16 %v285
  %v2283 = vunpack.c.h.b16 %v285
  %v2284 = vunpack.c.l.b16 %v286
  %v2285 = vunpack.c.h.b16 %v286
  %v2286 = vunpack.c.l.b16 %v287
  %v2287 = vunpack.c.h.b16 %v287
  %v2288 = vunpack.c.l.b16 %v288
  %v2289 = vunpack.c.h.b16 %v288
  %v2290 = vunpack.c.l.b16 %v289
  %v2291 = vunpack.c.h.b16 %v289
  %v2292 = vunpack.c.l.b16 %v290
  %v2293 = vunpack.c.h.b16 %v290
  %v2294 = vunpack.c.l.b16 %v291
  %v2295 = vunpack.c.h.b16 %v291
  %v2296 = vunpack.c.l.b16 %v292
  %v2297 = vunpack.c.h.b16 %v292
  %v2298 = vunpack.c.l.b16 %v293
  %v2299 = vunpack.c.h.b16 %v293
  %v2300 = vunpack.c.l.b16 %v294
  %v2301 = vunpack.c.h.b16 %v294
  %v2302 = vunpack.c.l.b16 %v295
  %v2303 = vunpack.c.h.b16 %v295
  %v2304 = vunpack.c.l.b16 %v296
  %v2305 = vunpack.c.h.b16 %v296
  %v2306 = vunpack.c.l.b16 %v297
  %v2307 = vunpack.c.h.b16 %v297
  %v2308 = vunpack.c.l.b16 %v298
  %v2309 = vunpack.c.h.b16 %v298
  %v2310 = vunpack.c.l.b16 %v299
  %v2311 = vunpack.c.h.b16 %v299
  %v2312 = vunpack.c.l.b16 %v300
  %v2313 = vunpack.c.h.b16 %v300
  %v2314 = vunpack.c.l.b16 %v301
  %v2315 = vunpack.c.h.b16 %v301
  %v2316 = vunpack.c.l.b16 %v302
  %v2317 = vunpack.c.h.b16 %v302
  %v2318 = vunpack.c.l.b16 %v303
  %v2319 = vunpack.c.h.b16 %v303
  %v2320 = vunpack.c.l.b16 %v304
  %v2321 = vunpack.c.h.b16 %v304
  %v2322 = vunpack.c.l.b16 %v305
  %v2323 = vunpack.c.h.b16 %v305
  %v2324 = vunpack.c.l.b16 %v306
  %v2325 = vunpack.c.h.b16 %v306
  %v2326 = vunpack.c.l.b16 %v307
  %v2327 = vunpack.c.h.b16 %v307
  %v2328 = vunpack.c.l.b16 %v308
  %v2329 = vunpack.c.h.b16 %v308
  %v2330 = vunpack.c.l.b16 %v309
  %v2331 = vunpack.c.h.b16 %v309
  %v2332 = vunpack.c.l.b16 %v310
  %v2333 = vunpack.c.h.b16 %v310
  %v2334 = vunpack.c.l.b16 %v311
  %v2335 = vunpack.c.h.b16 %v311
  %v2336 = vunpack.c.l.b16 %v312
  %v2337 = vunpack.c.h.b16 %v312
  %v2338 = vunpack.c.l.b16 %v313
  %v2339 = vunpack.c.h.b16 %v313
  %v2340 = vunpack.c.l.b16 %v314
  %v2341 = vunpack.c.h.b16 %v314
  %v2342 = vunpack.c.l.b16 %v315
  %v2343 = vunpack.c.h.b16 %v315
  %v2344 = vunpack.c.l.b16 %v316
  %v2345 = vunpack.c.h.b16 %v316
  %v2346 = vunpack.c.l.b16 %v317
  %v2347 = vunpack.c.h.b16 %v317
  %v2348 = vunpack.c.l.b16 %v318
  %v2349 = vunpack.c.h.b16 %v318
  %v2350 = vunpack.c.l.b16 %v319
  %v2351 = vunpack.c.h.b16 %v319
  %v2352 = vunpack.c.l.b16 %v320
  %v2353 = vunpack.c.h.b16 %v320
  %v2354 = vunpack.c.l.b16 %v321
  %v2355 = vunpack.c.h.b16 %v321
  %v2356 = vunpack.c.l.b16 %v322
  %v2357 = vunpack.c.h.b16 %v322
  %v2358 = vunpack.c.l.b16 %v323
  %v2359 = vunpack.c.h.b16 %v323
  %v2360 = vunpack.c.l.b16 %v324
  %v2361 = vunpack.c.h.b16 %v324
  %v2362 = vunpack.c.l.b16 %v325
  %v2363 = vunpack.c.h.b16 %v325
  %v2364 = vunpack.c.l.b16 %v326
  %v2365 = vunpack.c.h.b16 %v326
  %v2366 = vunpack.c.l.b16 %v327
  %v2367 = vunpack.c.h.b16 %v327
  %v2368 = vunpack.c.l.b16 %v328
  %v2369 = vunpack.c.h.b16 %v328
  %v2370 = vunpack.c.l.b16 %v329
  %v2371 = vunpack.c.h.b16 %v329
  %v2372 = vunpack.c.l.b16 %v330
  %v2373 = vunpack.c.h.b16 %v330
  %v2374 = vunpack.c.l.b16 %v331
  %v2375 = vunpack.c.h.b16 %v331
  %v2376 = vunpack.c.l.b16 %v332
  %v2377 = vunpack.c.h.b16 %v332
  %v2378 = vunpack.c.l.b16 %v333
  %v2379 = vunpack.c.h.b16 %v333
  %v2380 = vunpack.c.l.b16 %v334
  %v2381 = vunpack.c.h.b16 %v334
  %v2382 = vunpack.c.l.b16 %v335
  %v2383 = vunpack.c.h.b16 %v335
  %v2384 = vunpack.c.l.b16 %v336
  %v2385 = vunpack.c.h.b16 %v336
  %v2386 = vunpack.c.l.b16 %v337
  %v2387 = vunpack.c.h.b16 %v337
  %v2388 = vunpack.c.l.b16 %v338
  %v2389 = vunpack.c.h.b16 %v338
  %v2390 = vunpack.c.l.b16 %v339
  %v2391 = vunpack.c.h.b16 %v339
  %v2392 = vunpack.c.l.b16 %v340
  %v2393 = vunpack.c.h.b16 %v340
  %v2394 = vunpack.c.l.b16 %v341
  %v2395 = vunpack.c.h.b16 %v341
  %v2396 = vunpack.c.l.b16 %v342
  %v2397 = vunpack.c.h.b16 %v342
  %v2398 = vunpack.c.l.b16 %v343
  %v2399 = vunpack.c.h.b16 %v343
  %v2400 = vunpack.c.l.b16 %v344
  %v2401 = vunpack.c.h.b16 %v344
  %v2402 = vunpack.c.l.b16 %v345
  %v2403 = vunpack.c.h.b16 %v345
  %v2404 = vunpack.c.l.b16 %v346
  %v2405 = vunpack.c.h.b16 %v346
  %v2406 = vunpack.c.l.b16 %v347
  %v2407 = vunpack.c.h.b16 %v347
  %v2408 = vunpack.c.l.b16 %v348
  %v2409 = vunpack.c.h.b16 %v348
  %v2410 = vunpack.c.l.b16 %v349
  %v2411 = vunpack.c.h.b16 %v349
  %v2412 = vunpack.c.l.b16 %v350
  %v2413 = vunpack.c.h.b16 %v350
  %v2414 = vunpack.c.l.b16 %v351
  %v2415 = vunpack.c.h.b16 %v351
  %v2416 = vunpack.c.l.b16 %v352
  %v2417 = vunpack.c.h.b16 %v352
  %v2418 = vunpack.c.l.b16 %v353
  %v2419 = vunpack.c.h.b16 %v353
  %v2420 = vunpack.c.l.b16 %v354
  %v2421 = vunpack.c.h.b16 %v354
  %v2422 = vunpack.c.l.b16 %v355
  %v2423 = vunpack.c.h.b16 %v355
  %v2424 = vunpack.c.l.b16 %v356
  %v2425 = vunpack.c.h.b16 %v356
  %v2426 = vunpack.c.l.b16 %v357
  %v2427 = vunpack.c.h.b16 %v357
  %v2428 = vunpack.c.l.b16 %v358
  %v2429 = vunpack.c.h.b16 %v358
  %v2430 = vunpack.c.l.b16 %v359
  %v2431 = vunpack.c.h.b16 %v359
  %v2432 = vunpack.c.l.b16 %v360
  %v2433 = vunpack.c.h.b16 %v360
  %v2434 = vunpack.c.l.b16 %v361
  %v2435 = vunpack.c.h.b16 %v361
  %v2436 = vunpack.c.l.b16 %v362
  %v2437 = vunpack.c.h.b16 %v362
  %v2438 = vunpack.c.l.b16 %v363
  %v2439 = vunpack.c.h.b16 %v363
  %v2440 = vunpack.c.l.b16 %v364
  %v2441 = vunpack.c.h.b16 %v364
  %v2442 = vunpack.c.l.b16 %v365
  %v2443 = vunpack.c.h.b16 %v365
  %v2444 = vunpack.c.l.b16 %v366
  %v2445 = vunpack.c.h.b16 %v366
  %v2446 = vunpack.c.l.b16 %v367
  %v2447 = vunpack.c.h.b16 %v367
  %v2448 = vunpack.c.l.b16 %v368
  %v2449 = vunpack.c.h.b16 %v368
  %v2450 = vunpack.c.l.b16 %v369
  %v2451 = vunpack.c.h.b16 %v369
  %v2452 = vunpack.c.l.b16 %v370
  %v2453 = vunpack.c.h.b16 %v370
  %v2454 = vunpack.c.l.b16 %v371
  %v2455 = vunpack.c.h.b16 %v371
  %v2456 = vunpack.c.l.b16 %v372
  %v2457 = vunpack.c.h.b16 %v372
  %v2458 = vunpack.c.l.b16 %v373
  %v2459 = vunpack.c.h.b16 %v373
  %v2460 = vunpack.c.l.b16 %v374
  %v2461 = vunpack.c.h.b16 %v374
  %v2462 = vunpack.c.l.b16 %v375
  %v2463 = vunpack.c.h.b16 %v375
  %v2464 = vunpack.c.l.b16 %v376
  %v2465 = vunpack.c.h.b16 %v376
  %v2466 = vunpack.c.l.b16 %v377
  %v2467 = vunpack.c.h.b16 %v377
  %v2468 = vunpack.c.l.b16 %v378
  %v2469 = vunpack.c.h.b16 %v378
  %v2470 = vunpack.c.l.b16 %v379
  %v2471 = vunpack.c.h.b16 %v379
  %v2472 = vunpack.c.l.b16 %v380
  %v2473 = vunpack.c.h.b16 %v380
  %v2474 = vunpack.c.l.b16 %v381
  %v2475 = vunpack.c.h.b16 %v381
  %v2476 = vunpack.c.l.b16 %v382
  %v2477 = vunpack.c.h.b16 %v382
  %v2478 = vunpack.c.l.b16 %v383
  %v2479 = vunpack.c.h.b16 %v383
  %v2480 = vunpack.c.l.b16 %v384
  %v2481 = vunpack.c.h.b16 %v384
  %v2482 = vunpack.c.l.b16 %v385
  %v2483 = vunpack.c.h.b16 %v385
  %v2484 = vunpack.c.l.b16 %v386
  %v2485 = vunpack.c.h.b16 %v386
  %v2486 = vunpack.c.l.b16 %v387
  %v2487 = vunpack.c.h.b16 %v387
  %v2488 = vunpack.c.l.b16 %v388
  %v2489 = vunpack.c.h.b16 %v388
  %v2490 = vunpack.c.l.b16 %v389
  %v2491 = vunpack.c.h.b16 %v389
  %v2492 = vunpack.c.l.b16 %v390
  %v2493 = vunpack.c.h.b16 %v390
  %v2494 = vunpack.c.l.b16 %v391
  %v2495 = vunpack.c.h.b16 %v391
  %v2496 = vunpack.c.l.b16 %v392
  %v2497 = vunpack.c.h.b16 %v392
  %v2498 = vunpack.c.l.b16 %v393
  %v2499 = vunpack.c.h.b16 %v393
  %v2500 = vunpack.c.l.b16 %v394
  %v2501 = vunpack.c.h.b16 %v394
  %v2502 = vunpack.c.l.b16 %v395
  %v2503 = vunpack.c.h.b16 %v395
  %v2504 = vunpack.c.l.b16 %v396
  %v2505 = vunpack.c.h.b16 %v396
  %v2506 = vunpack.c.l.b16 %v397
  %v2507 = vunpack.c.h.b16 %v397
  %v2508 = vunpack.c.l.b16 %v398
  %v2509 = vunpack.c.h.b16 %v398
  %v2510 = vunpack.c.l.b16 %v399
  %v2511 = vunpack.c.h.b16 %v399
  %v2512 = vunpack.c.l.b16 %v400
  %v2513 = vunpack.c.h.b16 %v400
  %v2514 = vunpack.c.l.b16 %v401
  %v2515 = vunpack.c.h.b16 %v401
  %v2516 = vunpack.c.l.b16 %v402
  %v2517 = vunpack.c.h.b16 %v402
  %v2518 = vunpack.c.l.b16 %v403
  %v2519 = vunpack.c.h.b16 %v403
  %v2520 = vunpack.c.l.b16 %v404
  %v2521 = vunpack.c.h.b16 %v404
  %v2522 = vunpack.c.l.b16 %v405
  %v2523 = vunpack.c.h.b16 %v405
  %v2524 = vunpack.c.l.b16 %v406
  %v2525 = vunpack.c.h.b16 %v406
  %v2526 = vunpack.c.l.b16 %v407
  %v2527 = vunpack.c.h.b16 %v407
  %v2528 = vunpack.c.l.b16 %v408
  %v2529 = vunpack.c.h.b16 %v408
  %v2530 = vunpack.c.l.b16 %v409
  %v2531 = vunpack.c.h.b16 %v409
  %v2532 = vunpack.c.l.b16 %v410
  %v2533 = vunpack.c.h.b16 %v410
  %v2534 = vunpack.c.l.b16 %v411
  %v2535 = vunpack.c.h.b16 %v411
  %v2536 = vunpack.c.l.b16 %v412
  %v2537 = vunpack.c.h.b16 %v412
  %v2538 = vunpack.c.l.b16 %v413
  %v2539 = vunpack.c.h.b16 %v413
  %v2540 = vunpack.c.l.b16 %v414
  %v2541 = vunpack.c.h.b16 %v414
  %v2542 = vunpack.c.l.b16 %v415
  %v2543 = vunpack.c.h.b16 %v415
  %v2544 = vunpack.c.l.b16 %v416
  %v2545 = vunpack.c.h.b16 %v416
  %v2546 = vunpack.c.l.b16 %v417
  %v2547 = vunpack.c.h.b16 %v417
  %v2548 = vunpack.c.l.b16 %v418
  %v2549 = vunpack.c.h.b16 %v418
  %v2550 = vunpack.c.l.b16 %v419
  %v2551 = vunpack.c.h.b16 %v419
  %v2552 = vunpack.c.l.b16 %v420
  %v2553 = vunpack.c.h.b16 %v420
  %v2554 = vunpack.c.l.b16 %v421
  %v2555 = vunpack.c.h.b16 %v421
  %v2556 = vunpack.c.l.b16 %v422
  %v2557 = vunpack.c.h.b16 %v422
  %v2558 = vunpack.c.l.b16 %v423
  %v2559 = vunpack.c.h.b16 %v423
  %v2560 = vunpack.c.l.b16 %v424
  %v2561 = vunpack.c.h.b16 %v424
  %v2562 = vunpack.c.l.b16 %v425
  %v2563 = vunpack.c.h.b16 %v425
  %v2564 = vunpack.c.l.b16 %v426
  %v2565 = vunpack.c.h.b16 %v426
  %v2566 = vunpack.c.l.b16 %v427
  %v2567 = vunpack.c.h.b16 %v427
  %v2568 = vunpack.c.l.b16 %v428
  %v2569 = vunpack.c.h.b16 %v428
  %v2570 = vunpack.c.l.b16 %v429
  %v2571 = vunpack.c.h.b16 %v429
  %v2572 = vunpack.c.l.b16 %v430
  %v2573 = vunpack.c.h.b16 %v430
  %v2574 = vunpack.c.l.b16 %v431
  %v2575 = vunpack.c.h.b16 %v431
  %v2576 = vunpack.c.l.b16 %v432
  %v2577 = vunpack.c.h.b16 %v432
  %v2578 = vunpack.c.l.b16 %v433
  %v2579 = vunpack.c.h.b16 %v433
  %v2580 = vunpack.c.l.b16 %v434
  %v2581 = vunpack.c.h.b16 %v434
  %v2582 = vunpack.c.l.b16 %v435
  %v2583 = vunpack.c.h.b16 %v435
  %v2584 = vunpack.c.l.b16 %v436
  %v2585 = vunpack.c.h.b16 %v436
  %v2586 = vunpack.c.l.b16 %v437
  %v2587 = vunpack.c.h.b16 %v437
  %v2588 = vunpack.c.l.b16 %v438
  %v2589 = vunpack.c.h.b16 %v438
  %v2590 = vunpack.c.l.b16 %v439
  %v2591 = vunpack.c.h.b16 %v439
  %v2592 = vunpack.c.l.b16 %v440
  %v2593 = vunpack.c.h.b16 %v440
  %v2594 = vunpack.c.l.b16 %v441
  %v2595 = vunpack.c.h.b16 %v441
  %v2596 = vunpack.c.l.b16 %v442
  %v2597 = vunpack.c.h.b16 %v442
  %v2598 = vunpack.c.l.b16 %v443
  %v2599 = vunpack.c.h.b16 %v443
  %v2600 = vunpack.c.l.b16 %v444
  %v2601 = vunpack.c.h.b16 %v444
  %v2602 = vunpack.c.l.b16 %v445
  %v2603 = vunpack.c.h.b16 %v445
  %v2604 = vunpack.c.l.b16 %v446
  %v2605 = vunpack.c.h.b16 %v446
  %v2606 = vunpack.c.l.b16 %v447
  %v2607 = vunpack.c.h.b16 %v447
  %v2608 = vunpack.c.l.b16 %v448
  %v2609 = vunpack.c.h.b16 %v448
  %v2610 = vunpack.c.l.b16 %v449
  %v2611 = vunpack.c.h.b16 %v449
  %v2612 = vunpack.c.l.b16 %v450
  %v2613 = vunpack.c.h.b16 %v450
  %v2614 = vunpack.c.l.b16 %v451
  %v2615 = vunpack.c.h.b16 %v451
  %v2616 = vunpack.c.l.b16 %v452
  %v2617 = vunpack.c.h.b16 %v452
  %v2618 = vunpack.c.l.b16 %v453
  %v2619 = vunpack.c.h.b16 %v453
  %v2620 = vunpack.c.l.b16 %v454
  %v2621 = vunpack.c.h.b16 %v454
  %v2622 = vunpack.c.l.b16 %v455
  %v2623 = vunpack.c.h.b16 %v455
  %v2624 = vunpack.c.l.b16 %v456
  %v2625 = vunpack.c.h.b16 %v456
  %v2626 = vunpack.c.l.b16 %v457
  %v2627 = vunpack.c.h.b16 %v457
  %v2628 = vunpack.c.l.b16 %v458
  %v2629 = vunpack.c.h.b16 %v458
  %v2630 = vunpack.c.l.b16 %v459
  %v2631 = vunpack.c.h.b16 %v459
  %v2632 = vunpack.c.l.b16 %v460
  %v2633 = vunpack.c.h.b16 %v460
  %v2634 = vunpack.c.l.b16 %v461
  %v2635 = vunpack.c.h.b16 %v461
  %v2636 = vunpack.c.l.b16 %v462
  %v2637 = vunpack.c.h.b16 %v462
  %v2638 = vunpack.c.l.b16 %v463
  %v2639 = vunpack.c.h.b16 %v463
  %v2640 = vunpack.c.l.b16 %v464
  %v2641 = vunpack.c.h.b16 %v464
  %v2642 = vunpack.c.l.b16 %v465
  %v2643 = vunpack.c.h.b16 %v465
  %v2644 = vunpack.c.l.b16 %v466
  %v2645 = vunpack.c.h.b16 %v466
  %v2646 = vunpack.c.l.b16 %v467
  %v2647 = vunpack.c.h.b16 %v467
  %v2648 = vunpack.c.l.b16 %v468
  %v2649 = vunpack.c.h.b16 %v468
  %v2650 = vunpack.c.l.b16 %v469
  %v2651 = vunpack.c.h.b16 %v469
  %v2652 = vunpack.c.l.b16 %v470
  %v2653 = vunpack.c.h.b16 %v470
  %v2654 = vunpack.c.l.b16 %v471
  %v2655 = vunpack.c.h.b16 %v471
  %v2656 = vunpack.c.l.b16 %v472
  %v2657 = vunpack.c.h.b16 %v472
  %v2658 = vunpack.c.l.b16 %v473
  %v2659 = vunpack.c.h.b16 %v473
  %v2660 = vunpack.c.l.b16 %v474
  %v2661 = vunpack.c.h.b16 %v474
  %v2662 = vunpack.c.l.b16 %v475
  %v2663 = vunpack.c.h.b16 %v475
  %v2664 = vunpack.c.l.b16 %v476
  %v2665 = vunpack.c.h.b16 %v476
  %v2666 = vunpack.c.l.b16 %v477
  %v2667 = vunpack.c.h.b16 %v477
  %v2668 = vunpack.c.l.b16 %v478
  %v2669 = vunpack.c.h.b16 %v478
  %v2670 = vunpack.c.l.b16 %v479
  %v2671 = vunpack.c.h.b16 %v479
  %v2672 = vunpack.c.l.b16 %v480
  %v2673 = vunpack.c.h.b16 %v480
  %v2674 = vunpack.c.l.b16 %v481
  %v2675 = vunpack.c.h.b16 %v481
  %v2676 = vunpack.c.l.b16 %v482
  %v2677 = vunpack.c.h.b16 %v482
  %v2678 = vunpack.c.l.b16 %v483
  %v2679 = vunpack.c.h.b16 %v483
  %v2680 = vunpack.c.l.b16 %v484
  %v2681 = vunpack.c.h.b16 %v484
  %v2682 = vunpack.c.l.b16 %v485
  %v2683 = vunpack.c.h.b16 %v485
  %v2684 = vunpack.c.l.b16 %v486
  %v2685 = vunpack.c.h.b16 %v486
  %v2686 = vunpack.c.l.b16 %v487
  %v2687 = vunpack.c.h.b16 %v487
  %v2688 = vunpack.c.l.b16 %v488
  %v2689 = vunpack.c.h.b16 %v488
  %v2690 = vunpack.c.l.b16 %v489
  %v2691 = vunpack.c.h.b16 %v489
  %v2692 = vunpack.c.l.b16 %v490
  %v2693 = vunpack.c.h.b16 %v490
  %v2694 = vunpack.c.l.b16 %v491
  %v2695 = vunpack.c.h.b16 %v491
  %v2696 = vunpack.c.l.b16 %v492
  %v2697 = vunpack.c.h.b16 %v492
  %v2698 = vunpack.c.l.b16 %v493
  %v2699 = vunpack.c.h.b16 %v493
  %v2700 = vunpack.c.l.b16 %v494
  %v2701 = vunpack.c.h.b16 %v494
  %v2702 = vunpack.c.l.b16 %v495
  %v2703 = vunpack.c.h.b16 %v495
  %v2704 = vunpack.c.l.b16 %v496
  %v2705 = vunpack.c.h.b16 %v496
  %v2706 = vunpack.c.l.b16 %v497
  %v2707 = vunpack.c.h.b16 %v497
  %v2708 = vunpack.c.l.b16 %v498
  %v2709 = vunpack.c.h.b16 %v498
  %v2710 = vunpack.c.l.b16 %v499
  %v2711 = vunpack.c.h.b16 %v499
  %v2712 = vunpack.c.l.b16 %v500
  %v2713 = vunpack.c.h.b16 %v500
  %v2714 = vunpack.c.l.b16 %v501
  %v2715 = vunpack.c.h.b16 %v501
  %v2716 = vunpack.c.l.b16 %v502
  %v2717 = vunpack.c.h.b16 %v502
  %v2718 = vunpack.c.l.b16 %v503
  %v2719 = vunpack.c.h.b16 %v503
  %v2720 = vunpack.c.l.b16 %v504
  %v2721 = vunpack.c.h.b16 %v504
  %v2722 = vunpack.c.l.b16 %v505
  %v2723 = vunpack.c.h.b16 %v505
  %v2724 = vunpack.c.l.b16 %v506
  %v2725 = vunpack.c.h.b16 %v506
  %v2726 = vunpack.c.l.b16 %v507
  %v2727 = vunpack.c.h.b16 %v507
  %v2728 = vunpack.c.l.b16 %v508
  %v2729 = vunpack.c.h.b16 %v508
  %v2730 = vunpack.c.l.b16 %v509
  %v2731 = vunpack.c.h.b16 %v509
  %v2732 = vunpack.c.l.b16 %v510
  %v2733 = vunpack.c.h.b16 %v510
  %v2734 = vunpack.c.l.b16 %v511
  %v2735 = vunpack.c.h.b16 %v511
  %v2736 = vunpack.c.l.b16 %v512
  %v2737 = vunpack.c.h.b16 %v512
  %v2738 = vunpack.c.l.b16 %v513
  %v2739 = vunpack.c.h.b16 %v513
  %v2740 = vunpack.c.l.b16 %v514
  %v2741 = vunpack.c.h.b16 %v514
  %v2742 = vunpack.c.l.b16 %v515
  %v2743 = vunpack.c.h.b16 %v515
  %v2744 = vunpack.c.l.b16 %v516
  %v2745 = vunpack.c.h.b16 %v516
  %v2746 = vunpack.c.l.b16 %v517
  %v2747 = vunpack.c.h.b16 %v517
  %v2748 = vunpack.c.l.b16 %v518
  %v2749 = vunpack.c.h.b16 %v518
  %v2750 = vunpack.c.l.b16 %v519
  %v2751 = vunpack.c.h.b16 %v519
  %v2752 = vunpack.c.l.b16 %v520
  %v2753 = vunpack.c.h.b16 %v520
  %v2754 = vunpack.c.l.b16 %v521
  %v2755 = vunpack.c.h.b16 %v521
  %v2756 = vunpack.c.l.b16 %v522
  %v2757 = vunpack.c.h.b16 %v522
  %v2758 = vunpack.c.l.b16 %v523
  %v2759 = vunpack.c.h.b16 %v523
  %v2760 = vunpack.c.l.b16 %v524
  %v2761 = vunpack.c.h.b16 %v524
  %v2762 = vunpack.c.l.b16 %v525
  %v2763 = vunpack.c.h.b16 %v525
  %v2764 = vunpack.c.l.b16 %v526
  %v2765 = vunpack.c.h.b16 %v526
  %v2766 = vunpack.c.l.b16 %v527
  %v2767 = vunpack.c.h.b16 %v527
  %v2768 = vunpack.c.l.b16 %v528
  %v2769 = vunpack.c.h.b16 %v528
  %v2770 = vunpack.c.l.b16 %v529
  %v2771 = vunpack.c.h.b16 %v529
  %v2772 = vunpack.c.l.b16 %v530
  %v2773 = vunpack.c.h.b16 %v530
  %v2774 = vunpack.c.l.b16 %v531
  %v2775 = vunpack.c.h.b16 %v531
  %v2776 = vunpack.c.l.b16 %v532
  %v2777 = vunpack.c.h.b16 %v532
  %v2778 = vunpack.c.l.b16 %v533
  %v2779 = vunpack.c.h.b16 %v533
  %v2780 = vunpack.c.l.b16 %v534
  %v2781 = vunpack.c.h.b16 %v534
  %v2782 = vunpack.c.l.b16 %v535
  %v2783 = vunpack.c.h.b16 %v535
  %v2784 = vunpack.c.l.b16 %v536
  %v2785 = vunpack.c.h.b16 %v536
  %v2786 = vunpack.c.l.b16 %v537
  %v2787 = vunpack.c.h.b16 %v537
  %v2788 = vunpack.c.l.b16 %v538
  %v2789 = vunpack.c.h.b16 %v538
  %v2790 = vunpack.c.l.b16 %v539
  %v2791 = vunpack.c.h.b16 %v539
  %v2792 = vunpack.c.l.b16 %v540
  %v2793 = vunpack.c.h.b16 %v540
  %v2794 = vunpack.c.l.b16 %v541
  %v2795 = vunpack.c.h.b16 %v541
  %v2796 = vunpack.c.l.b16 %v542
  %v2797 = vunpack.c.h.b16 %v542
  %v2798 = vunpack.c.l.b16 %v543
  %v2799 = vunpack.c.h.b16 %v543
  %v2800 = vunpack.c.l.b16 %v544
  %v2801 = vunpack.c.h.b16 %v544
  %v2802 = vunpack.c.l.b16 %v545
  %v2803 = vunpack.c.h.b16 %v545
  %v2804 = vunpack.c.l.b16 %v546
  %v2805 = vunpack.c.h.b16 %v546
  %v2806 = vunpack.c.l.b16 %v547
  %v2807 = vunpack.c.h.b16 %v547
  %v2808 = vunpack.c.l.b16 %v548
  %v2809 = vunpack.c.h.b16 %v548
  %v2810 = vunpack.c.l.b16 %v549
  %v2811 = vunpack.c.h.b16 %v549
  %v2812 = vunpack.c.l.b16 %v550
  %v2813 = vunpack.c.h.b16 %v550
  %v2814 = vunpack.c.l.b16 %v551
  %v2815 = vunpack.c.h.b16 %v551
  %v2816 = vunpack.c.l.b16 %v552
  %v2817 = vunpack.c.h.b16 %v552
  %v2818 = vunpack.c.l.b16 %v553
  %v2819 = vunpack.c.h.b16 %v553
  %v2820 = vunpack.c.l.b16 %v554
  %v2821 = vunpack.c.h.b16 %v554
  %v2822 = vunpack.c.l.b16 %v555
  %v2823 = vunpack.c.h.b16 %v555
  %v2824 = vunpack.c.l.b16 %v556
  %v2825 = vunpack.c.h.b16 %v556
  %v2826 = vunpack.c.l.b16 %v557
  %v2827 = vunpack.c.h.b16 %v557
  %v2828 = vunpack.c.l.b16 %v558
  %v2829 = vunpack.c.h.b16 %v558
  %v2830 = vunpack.c.l.b16 %v559
  %v2831 = vunpack.c.h.b16 %v559
  %v2832 = vunpack.c.l.b16 %v560
  %v2833 = vunpack.c.h.b16 %v560
  %v2834 = vunpack.c.l.b16 %v561
  %v2835 = vunpack.c.h.b16 %v561
  %v2836 = vunpack.c.l.b16 %v562
  %v2837 = vunpack.c.h.b16 %v562
  %v2838 = vunpack.c.l.b16 %v563
  %v2839 = vunpack.c.h.b16 %v563
  %v2840 = vunpack.c.l.b16 %v564
  %v2841 = vunpack.c.h.b16 %v564
  %v2842 = vunpack.c.l.b16 %v565
  %v2843 = vunpack.c.h.b16 %v565
  %v2844 = vunpack.c.l.b16 %v566
  %v2845 = vunpack.c.h.b16 %v566
  %v2846 = vunpack.c.l.b16 %v567
  %v2847 = vunpack.c.h.b16 %v567
  %v2848 = vunpack.c.l.b16 %v568
  %v2849 = vunpack.c.h.b16 %v568
  %v2850 = vunpack.c.l.b16 %v569
  %v2851 = vunpack.c.h.b16 %v569
  %v2852 = vunpack.c.l.b16 %v570
  %v2853 = vunpack.c.h.b16 %v570
  %v2854 = vunpack.c.l.b16 %v571
  %v2855 = vunpack.c.h.b16 %v571
  %v2856 = vunpack.c.l.b16 %v572
  %v2857 = vunpack.c.h.b16 %v572
  %v2858 = vunpack.c.l.b16 %v573
  %v2859 = vunpack.c.h.b16 %v573
  %v2860 = vunpack.c.l.b16 %v574
  %v2861 = vunpack.c.h.b16 %v574
  %v2862 = vunpack.c.l.b16 %v575
  %v2863 = vunpack.c.h.b16 %v575
  %v2864 = vunpack.c.l.b16 %v576
  %v2865 = vunpack.c.h.b16 %v576
  %v2866 = vunpack.c.l.b16 %v577
  %v2867 = vunpack.c.h.b16 %v577
  %v2868 = vunpack.c.l.b16 %v578
  %v2869 = vunpack.c.h.b16 %v578
  %v2870 = vunpack.c.l.b16 %v579
  %v2871 = vunpack.c.h.b16 %v579
  %v2872 = vunpack.c.l.b16 %v580
  %v2873 = vunpack.c.h.b16 %v580
  %v2874 = vunpack.c.l.b16 %v581
  %v2875 = vunpack.c.h.b16 %v581
  %v2876 = vunpack.c.l.b16 %v582
  %v2877 = vunpack.c.h.b16 %v582
  %v2878 = vunpack.c.l.b16 %v583
  %v2879 = vunpack.c.h.b16 %v583
  %v2880 = vunpack.c.l.b16 %v584
  %v2881 = vunpack.c.h.b16 %v584
  %v2882 = vunpack.c.l.b16 %v585
  %v2883 = vunpack.c.h.b16 %v585
  %v2884 = vunpack.c.l.b16 %v586
  %v2885 = vunpack.c.h.b16 %v586
  %v2886 = vunpack.c.l.b16 %v587
  %v2887 = vunpack.c.h.b16 %v587
  %v2888 = vunpack.c.l.b16 %v588
  %v2889 = vunpack.c.h.b16 %v588
  %v2890 = vunpack.c.l.b16 %v589
  %v2891 = vunpack.c.h.b16 %v589
  %v2892 = vunpack.c.l.b16 %v590
  %v2893 = vunpack.c.h.b16 %v590
  %v2894 = vunpack.c.l.b16 %v591
  %v2895 = vunpack.c.h.b16 %v591
  %v2896 = vunpack.c.l.b16 %v592
  %v2897 = vunpack.c.h.b16 %v592
  %v2898 = vunpack.c.l.b16 %v593
  %v2899 = vunpack.c.h.b16 %v593
  %v2900 = vunpack.c.l.b16 %v594
  %v2901 = vunpack.c.h.b16 %v594
  %v2902 = vunpack.c.l.b16 %v595
  %v2903 = vunpack.c.h.b16 %v595
  %v2904 = vunpack.c.l.b16 %v596
  %v2905 = vunpack.c.h.b16 %v596
  %v2906 = vunpack.c.l.b16 %v597
  %v2907 = vunpack.c.h.b16 %v597
  %v2908 = vunpack.c.l.b16 %v598
  %v2909 = vunpack.c.h.b16 %v598
  %v2910 = vunpack.c.l.b16 %v599
  %v2911 = vunpack.c.h.b16 %v599
  %v2912 = vunpack.c.l.b16 %v600
  %v2913 = vunpack.c.h.b16 %v600
  %v2914 = vunpack.c.l.b16 %v601
  %v2915 = vunpack.c.h.b16 %v601
  %v2916 = vunpack.c.l.b16 %v602
  %v2917 = vunpack.c.h.b16 %v602
  %v2918 = vunpack.c.l.b16 %v603
  %v2919 = vunpack.c.h.b16 %v603
  %v2920 = vunpack.c.l.b16 %v604
  %v2921 = vunpack.c.h.b16 %v604
  %v2922 = vunpack.c.l.b16 %v605
  %v2923 = vunpack.c.h.b16 %v605
  %v2924 = vunpack.c.l.b16 %v606
  %v2925 = vunpack.c.h.b16 %v606
  %v2926 = vunpack.c.l.b16 %v607
  %v2927 = vunpack.c.h.b16 %v607
  %v2928 = vunpack.c.l.b16 %v608
  %v2929 = vunpack.c.h.b16 %v608
  %v2930 = vunpack.c.l.b16 %v609
  %v2931 = vunpack.c.h.b16 %v609
  %v2932 = vunpack.c.l.b16 %v610
  %v2933 = vunpack.c.h.b16 %v610
  %v2934 = vunpack.c.l.b16 %v611
  %v2935 = vunpack.c.h.b16 %v611
  %v2936 = vunpack.c.l.b16 %v612
  %v2937 = vunpack.c.h.b16 %v612
  %v2938 = vunpack.c.l.b16 %v613
  %v2939 = vunpack.c.h.b16 %v613
  %v2940 = vunpack.c.l.b16 %v614
  %v2941 = vunpack.c.h.b16 %v614
  %v2942 = vunpack.c.l.b16 %v615
  %v2943 = vunpack.c.h.b16 %v615
  %v2944 = vunpack.c.l.b16 %v616
  %v2945 = vunpack.c.h.b16 %v616
  %v2946 = vunpack.c.l.b16 %v617
  %v2947 = vunpack.c.h.b16 %v617
  %v2948 = vunpack.c.l.b16 %v618
  %v2949 = vunpack.c.h.b16 %v618
  %v2950 = vunpack.c.l.b16 %v619
  %v2951 = vunpack.c.h.b16 %v619
  %v2952 = vunpack.c.l.b16 %v620
  %v2953 = vunpack.c.h.b16 %v620
  %v2954 = vunpack.c.l.b16 %v621
  %v2955 = vunpack.c.h.b16 %v621
  %v2956 = vunpack.c.l.b16 %v622
  %v2957 = vunpack.c.h.b16 %v622
  %v2958 = vunpack.c.l.b16 %v623
  %v2959 = vunpack.c.h.b16 %v623
  %v2960 = vunpack.c.l.b16 %v624
  %v2961 = vunpack.c.h.b16 %v624
  %v2962 = vunpack.c.l.b16 %v625
  %v2963 = vunpack.c.h.b16 %v625
  %v2964 = vunpack.c.l.b16 %v626
  %v2965 = vunpack.c.h.b16 %v626
  %v2966 = vunpack.c.l.b16 %v627
  %v2967 = vunpack.c.h.b16 %v627
  %v2968 = vunpack.c.l.b16 %v628
  %v2969 = vunpack.c.h.b16 %v628
  %v2970 = vunpack.c.l.b16 %v629
  %v2971 = vunpack.c.h.b16 %v629
  %v2972 = vunpack.c.l.b16 %v630
  %v2973 = vunpack.c.h.b16 %v630
  %v2974 = vunpack.c.l.b16 %v631
  %v2975 = vunpack.c.h.b16 %v631
  %v2976 = vunpack.c.l.b16 %v632
  %v2977 = vunpack.c.h.b16 %v632
  %v2978 = vunpack.c.l.b16 %v633
  %v2979 = vunpack.c.h.b16 %v633
  %v2980 = vunpack.c.l.b16 %v634
  %v2981 = vunpack.c.h.b16 %v634
  %v2982 = vunpack.c.l.b16 %v635
  %v2983 = vunpack.c.h.b16 %v635
  %v2984 = vunpack.c.l.b16 %v636
  %v2985 = vunpack.c.h.b16 %v636
  %v2986 = vunpack.c.l.b16 %v637
  %v2987 = vunpack.c.h.b16 %v637
  %v2988 = vunpack.c.l.b16 %v638
  %v2989 = vunpack.c.h.b16 %v638
  %v2990 = vunpack.c.l.b16 %v639
  %v2991 = vunpack.c.h.b16 %v639
  %v2992 = vunpack.c.l.b16 %v640
  %v2993 = vunpack.c.h.b16 %v640
  %v2994 = vunpack.c.l.b16 %v641
  %v2995 = vunpack.c.h.b16 %v641
  %v2996 = vunpack.c.l.b16 %v642
  %v2997 = vunpack.c.h.b16 %v642
  %v2998 = vunpack.c.l.b16 %v643
  %v2999 = vunpack.c.h.b16 %v643
  %v3000 = vunpack.c.l.b16 %v644
  %v3001 = vunpack.c.h.b16 %v644
  %v3002 = vunpack.c.l.b16 %v645
  %v3003 = vunpack.c.h.b16 %v645
  %v3004 = vunpack.c.l.b16 %v646
  %v3005 = vunpack.c.h.b16 %v646
  %v3006 = vunpack.c.l.b16 %v647
  %v3007 = vunpack.c.h.b16 %v647
  %v3008 = vunpack.c.l.b16 %v648
  %v3009 = vunpack.c.h.b16 %v648
  %v3010 = vunpack.c.l.b16 %v649
  %v3011 = vunpack.c.h.b16 %v649
  %v3012 = vunpack.c.l.b16 %v650
  %v3013 = vunpack.c.h.b16 %v650
  %v3014 = vunpack.c.l.b16 %v651
  %v3015 = vunpack.c.h.b16 %v651
  %v3016 = vunpack.c.l.b16 %v652
  %v3017 = vunpack.c.h.b16 %v652
  %v3018 = vunpack.c.l.b16 %v653
  %v3019 = vunpack.c.h.b16 %v653
  %v3020 = vunpack.c.l.b16 %v654
  %v3021 = vunpack.c.h.b16 %v654
  %v3022 = vunpack.c.l.b16 %v655
  %v3023 = vunpack.c.h.b16 %v655
  %v3024 = vunpack.c.l.b16 %v656
  %v3025 = vunpack.c.h.b16 %v656
  %v3026 = vunpack.c.l.b16 %v657
  %v3027 = vunpack.c.h.b16 %v657
  %v3028 = vunpack.c.l.b16 %v658
  %v3029 = vunpack.c.h.b16 %v658
  %v3030 = vunpack.c.l.b16 %v659
  %v3031 = vunpack.c.h.b16 %v659
  %v3032 = vunpack.c.l.b16 %v660
  %v3033 = vunpack.c.h.b16 %v660
  %v3034 = vunpack.c.l.b16 %v661
  %v3035 = vunpack.c.h.b16 %v661
  %v3036 = vunpack.c.l.b16 %v662
  %v3037 = vunpack.c.h.b16 %v662
  %v3038 = vunpack.c.l.b16 %v663
  %v3039 = vunpack.c.h.b16 %v663
  %v3040 = vunpack.c.l.b16 %v664
  %v3041 = vunpack.c.h.b16 %v664
  %v3042 = vunpack.c.l.b16 %v665
  %v3043 = vunpack.c.h.b16 %v665
  %v3044 = vunpack.c.l.b16 %v666
  %v3045 = vunpack.c.h.b16 %v666
  %v3046 = vunpack.c.l.b16 %v667
  %v3047 = vunpack.c.h.b16 %v667
  %v3048 = vunpack.c.l.b16 %v668
  %v3049 = vunpack.c.h.b16 %v668
  %v3050 = vunpack.c.l.b16 %v669
  %v3051 = vunpack.c.h.b16 %v669
  %v3052 = vunpack.c.l.b16 %v670
  %v3053 = vunpack.c.h.b16 %v670
  %v3054 = vunpack.c.l.b16 %v671
  %v3055 = vunpack.c.h.b16 %v671
  %v3056 = vunpack.c.l.b16 %v672
  %v3057 = vunpack.c.h.b16 %v672
  %v3058 = vunpack.c.l.b16 %v673
  %v3059 = vunpack.c.h.b16 %v673
  %v3060 = vunpack.c.l.b16 %v674
  %v3061 = vunpack.c.h.b16 %v674
  %v3062 = vunpack.c.l.b16 %v675
  %v3063 = vunpack.c.h.b16 %v675
  %v3064 = vunpack.c.l.b16 %v676
  %v3065 = vunpack.c.h.b16 %v676
  %v3066 = vunpack.c.l.b16 %v677
  %v3067 = vunpack.c.h.b16 %v677
  %v3068 = vunpack.c.l.b16 %v678
  %v3069 = vunpack.c.h.b16 %v678
  %v3070 = vunpack.c.l.b16 %v679
  %v3071 = vunpack.c.h.b16 %v679
  %v3072 = vunpack.c.l.b16 %v680
  %v3073 = vunpack.c.h.b16 %v680
  %v3074 = vunpack.c.l.b16 %v681
  %v3075 = vunpack.c.h.b16 %v681
  %v3076 = vunpack.c.l.b16 %v682
  %v3077 = vunpack.c.h.b16 %v682
  %v3078 = vunpack.c.l.b16 %v683
  %v3079 = vunpack.c.h.b16 %v683
  %v3080 = vunpack.c.l.b16 %v684
  %v3081 = vunpack.c.h.b16 %v684
  %v3082 = vunpack.c.l.b16 %v685
  %v3083 = vunpack.c.h.b16 %v685
  %v3084 = vunpack.c.l.b16 %v686
  %v3085 = vunpack.c.h.b16 %v686
  %v3086 = vunpack.c.l.b16 %v687
  %v3087 = vunpack.c.h.b16 %v687
  %v3088 = vunpack.c.l.b16 %v688
  %v3089 = vunpack.c.h.b16 %v688
  %v3090 = vunpack.c.l.b16 %v689
  %v3091 = vunpack.c.h.b16 %v689
  %v3092 = vunpack.c.l.b16 %v690
  %v3093 = vunpack.c.h.b16 %v690
  %v3094 = vunpack.c.l.b16 %v691
  %v3095 = vunpack.c.h.b16 %v691
  %v3096 = vunpack.c.l.b16 %v692
  %v3097 = vunpack.c.h.b16 %v692
  %v3098 = vunpack.c.l.b16 %v693
  %v3099 = vunpack.c.h.b16 %v693
  %v3100 = vunpack.c.l.b16 %v694
  %v3101 = vunpack.c.h.b16 %v694
  %v3102 = vunpack.c.l.b16 %v695
  %v3103 = vunpack.c.h.b16 %v695
  %v3104 = vunpack.c.l.b16 %v696
  %v3105 = vunpack.c.h.b16 %v696
  %v3106 = vunpack.c.l.b16 %v697
  %v3107 = vunpack.c.h.b16 %v697
  %v3108 = vunpack.c.l.b16 %v698
  %v3109 = vunpack.c.h.b16 %v698
  %v3110 = vunpack.c.l.b16 %v699
  %v3111 = vunpack.c.h.b16 %v699
  %v3112 = vunpack.c.l.b16 %v700
  %v3113 = vunpack.c.h.b16 %v700
  %v3114 = vunpack.c.l.b16 %v701
  %v3115 = vunpack.c.h.b16 %v701
  %v3116 = vunpack.c.l.b16 %v702
  %v3117 = vunpack.c.h.b16 %v702
  %v3118 = vunpack.c.l.b16 %v703
  %v3119 = vunpack.c.h.b16 %v703
  %v3120 = vunpack.c.l.b16 %v704
  %v3121 = vunpack.c.h.b16 %v704
  %v3122 = vunpack.c.l.b16 %v705
  %v3123 = vunpack.c.h.b16 %v705
  %v3124 = vunpack.c.l.b16 %v706
  %v3125 = vunpack.c.h.b16 %v706
  %v3126 = vunpack.c.l.b16 %v707
  %v3127 = vunpack.c.h.b16 %v707
  %v3128 = vunpack.c.l.b16 %v708
  %v3129 = vunpack.c.h.b16 %v708
  %v3130 = vunpack.c.l.b16 %v709
  %v3131 = vunpack.c.h.b16 %v709
  %v3132 = vunpack.c.l.b16 %v710
  %v3133 = vunpack.c.h.b16 %v710
  %v3134 = vunpack.c.l.b16 %v711
  %v3135 = vunpack.c.h.b16 %v711
  %v3136 = vunpack.c.l.b16 %v712
  %v3137 = vunpack.c.h.b16 %v712
  %v3138 = vunpack.c.l.b16 %v713
  %v3139 = vunpack.c.h.b16 %v713
  %v3140 = vunpack.c.l.b16 %v714
  %v3141 = vunpack.c.h.b16 %v714
  %v3142 = vunpack.c.l.b16 %v715
  %v3143 = vunpack.c.h.b16 %v715
  %v3144 = vunpack.c.l.b16 %v716
  %v3145 = vunpack.c.h.b16 %v716
  %v3146 = vunpack.c.l.b16 %v717
  %v3147 = vunpack.c.h.b16 %v717
  %v3148 = vunpack.c.l.b16 %v718
  %v3149 = vunpack.c.h.b16 %v718
  %v3150 = vunpack.c.l.b16 %v719
  %v3151 = vunpack.c.h.b16 %v719
  %v3152 = vunpack.c.l.b16 %v720
  %v3153 = vunpack.c.h.b16 %v720
  %v3154 = vunpack.c.l.b16 %v721
  %v3155 = vunpack.c.h.b16 %v721
  %v3156 = vunpack.c.l.b16 %v722
  %v3157 = vunpack.c.h.b16 %v722
  %v3158 = vunpack.c.l.b16 %v723
  %v3159 = vunpack.c.h.b16 %v723
  %v3160 = vunpack.c.l.b16 %v724
  %v3161 = vunpack.c.h.b16 %v724
  %v3162 = vunpack.c.l.b16 %v725
  %v3163 = vunpack.c.h.b16 %v725
  %v3164 = vunpack.c.l.b16 %v726
  %v3165 = vunpack.c.h.b16 %v726
  %v3166 = vunpack.c.l.b16 %v727
  %v3167 = vunpack.c.h.b16 %v727
  %v3168 = vunpack.c.l.b16 %v728
  %v3169 = vunpack.c.h.b16 %v728
  %v3170 = vunpack.c.l.b16 %v729
  %v3171 = vunpack.c.h.b16 %v729
  %v3172 = vunpack.c.l.b16 %v730
  %v3173 = vunpack.c.h.b16 %v730
  %v3174 = vunpack.c.l.b16 %v731
  %v3175 = vunpack.c.h.b16 %v731
  %v3176 = vunpack.c.l.b16 %v732
  %v3177 = vunpack.c.h.b16 %v732
  %v3178 = vunpack.c.l.b16 %v733
  %v3179 = vunpack.c.h.b16 %v733
  %v3180 = vunpack.c.l.b16 %v734
  %v3181 = vunpack.c.h.b16 %v734
  %v3182 = vunpack.c.l.b16 %v735
  %v3183 = vunpack.c.h.b16 %v735
  %v3184 = vunpack.c.l.b16 %v736
  %v3185 = vunpack.c.h.b16 %v736
  %v3186 = vunpack.c.l.b16 %v737
  %v3187 = vunpack.c.h.b16 %v737
  %v3188 = vunpack.c.l.b16 %v738
  %v3189 = vunpack.c.h.b16 %v738
  %v3190 = vunpack.c.l.b16 %v739
  %v3191 = vunpack.c.h.b16 %v739
  %v3192 = vunpack.c.l.b16 %v740
  %v3193 = vunpack.c.h.b16 %v740
  %v3194 = vunpack.c.l.b16 %v741
  %v3195 = vunpack.c.h.b16 %v741
  %v3196 = vunpack.c.l.b16 %v742
  %v3197 = vunpack.c.h.b16 %v742
  %v3198 = vunpack.c.l.b16 %v743
  %v3199 = vunpack.c.h.b16 %v743
  %v3200 = vunpack.c.l.b16 %v744
  %v3201 = vunpack.c.h.b16 %v744
  %v3202 = vunpack.c.l.b16 %v745
  %v3203 = vunpack.c.h.b16 %v745
  %v3204 = vunpack.c.l.b16 %v746
  %v3205 = vunpack.c.h.b16 %v746
  %v3206 = vunpack.c.l.b16 %v747
  %v3207 = vunpack.c.h.b16 %v747
  %v3208 = vunpack.c.l.b16 %v748
  %v3209 = vunpack.c.h.b16 %v748
  %v3210 = vunpack.c.l.b16 %v749
  %v3211 = vunpack.c.h.b16 %v749
  %v3212 = vunpack.c.l.b16 %v750
  %v3213 = vunpack.c.h.b16 %v750
  %v3214 = vunpack.c.l.b16 %v751
  %v3215 = vunpack.c.h.b16 %v751
  %v3216 = vunpack.c.l.b16 %v752
  %v3217 = vunpack.c.h.b16 %v752
  %v3218 = vunpack.c.l.b16 %v753
  %v3219 = vunpack.c.h.b16 %v753
  %v3220 = vunpack.c.l.b16 %v754
  %v3221 = vunpack.c.h.b16 %v754
  %v3222 = vunpack.c.l.b16 %v755
  %v3223 = vunpack.c.h.b16 %v755
  %v3224 = vunpack.c.l.b16 %v756
  %v3225 = vunpack.c.h.b16 %v756
  %v3226 = vunpack.c.l.b16 %v757
  %v3227 = vunpack.c.h.b16 %v757
  %v3228 = vunpack.c.l.b16 %v758
  %v3229 = vunpack.c.h.b16 %v758
  %v3230 = vunpack.c.l.b16 %v759
  %v3231 = vunpack.c.h.b16 %v759
  %v3232 = vunpack.c.l.b16 %v760
  %v3233 = vunpack.c.h.b16 %v760
  %v3234 = vunpack.c.l.b16 %v761
  %v3235 = vunpack.c.h.b16 %v761
  %v3236 = vunpack.c.l.b16 %v762
  %v3237 = vunpack.c.h.b16 %v762
  %v3238 = vunpack.c.l.b16 %v763
  %v3239 = vunpack.c.h.b16 %v763
  %v3240 = vunpack.c.l.b16 %v764
  %v3241 = vunpack.c.h.b16 %v764
  %v3242 = vunpack.c.l.b16 %v765
  %v3243 = vunpack.c.h.b16 %v765
  %v3244 = vunpack.c.l.b16 %v766
  %v3245 = vunpack.c.h.b16 %v766
  %v3246 = vunpack.c.l.b16 %v767
  %v3247 = vunpack.c.h.b16 %v767
  %v3248 = vunpack.c.l.b16 %v768
  %v3249 = vunpack.c.h.b16 %v768
  %v3250 = vunpack.c.l.b16 %v769
  %v3251 = vunpack.c.h.b16 %v769
  %v3252 = vunpack.c.l.b16 %v770
  %v3253 = vunpack.c.h.b16 %v770
  %v3254 = vunpack.c.l.b16 %v771
  %v3255 = vunpack.c.h.b16 %v771
  %v3256 = vunpack.c.l.b16 %v772
  %v3257 = vunpack.c.h.b16 %v772
  %v3258 = vunpack.c.l.b16 %v773
  %v3259 = vunpack.c.h.b16 %v773
  %v3260 = vunpack.c.l.b16 %v774
  %v3261 = vunpack.c.h.b16 %v774
  %v3262 = vunpack.c.l.b16 %v775
  %v3263 = vunpack.c.h.b16 %v775
  %v3264 = vunpack.c.l.b16 %v776
  %v3265 = vunpack.c.h.b16 %v776
  %v3266 = vunpack.c.l.b16 %v777
  %v3267 = vunpack.c.h.b16 %v777
  %v3268 = vunpack.c.l.b16 %v778
  %v3269 = vunpack.c.h.b16 %v778
  %v3270 = vunpack.c.l.b16 %v779
  %v3271 = vunpack.c.h.b16 %v779
  %v3272 = vunpack.c.l.b16 %v780
  %v3273 = vunpack.c.h.b16 %v780
  %v3274 = vunpack.c.l.b16 %v781
  %v3275 = vunpack.c.h.b16 %v781
  %v3276 = vunpack.c.l.b16 %v782
  %v3277 = vunpack.c.h.b16 %v782
  %v3278 = vunpack.c.l.b16 %v783
  %v3279 = vunpack.c.h.b16 %v783
  %v3280 = vunpack.c.l.b16 %v784
  %v3281 = vunpack.c.h.b16 %v784
  %v3282 = vunpack.c.l.b16 %v785
  %v3283 = vunpack.c.h.b16 %v785
  %v3284 = vunpack.c.l.b16 %v786
  %v3285 = vunpack.c.h.b16 %v786
  %v3286 = vunpack.c.l.b16 %v787
  %v3287 = vunpack.c.h.b16 %v787
  %v3288 = vunpack.c.l.b16 %v788
  %v3289 = vunpack.c.h.b16 %v788
  %v3290 = vunpack.c.l.b16 %v789
  %v3291 = vunpack.c.h.b16 %v789
  %v3292 = vunpack.c.l.b16 %v790
  %v3293 = vunpack.c.h.b16 %v790
  %v3294 = vunpack.c.l.b16 %v791
  %v3295 = vunpack.c.h.b16 %v791
  %v3296 = vunpack.c.l.b16 %v792
  %v3297 = vunpack.c.h.b16 %v792
  %v3298 = vunpack.c.l.b16 %v793
  %v3299 = vunpack.c.h.b16 %v793
  %v3300 = vunpack.c.l.b16 %v794
  %v3301 = vunpack.c.h.b16 %v794
  %v3302 = vunpack.c.l.b16 %v795
  %v3303 = vunpack.c.h.b16 %v795
  %v3304 = vunpack.c.l.b16 %v796
  %v3305 = vunpack.c.h.b16 %v796
  %v3306 = vunpack.c.l.b16 %v797
  %v3307 = vunpack.c.h.b16 %v797
  %v3308 = vunpack.c.l.b16 %v798
  %v3309 = vunpack.c.h.b16 %v798
  %v3310 = vunpack.c.l.b16 %v799
  %v3311 = vunpack.c.h.b16 %v799
  %v3312 = vunpack.c.l.b16 %v800
  %v3313 = vunpack.c.h.b16 %v800
  %v3314 = vunpack.c.l.b16 %v801
  %v3315 = vunpack.c.h.b16 %v801
  %v3316 = vunpack.c.l.b16 %v802
  %v3317 = vunpack.c.h.b16 %v802
  %v3318 = vunpack.c.l.b16 %v803
  %v3319 = vunpack.c.h.b16 %v803
  %v3320 = vunpack.c.l.b16 %v804
  %v3321 = vunpack.c.h.b16 %v804
  %v3322 = vunpack.c.l.b16 %v805
  %v3323 = vunpack.c.h.b16 %v805
  %v3324 = vunpack.c.l.b16 %v806
  %v3325 = vunpack.c.h.b16 %v806
  %v3326 = vunpack.c.l.b16 %v807
  %v3327 = vunpack.c.h.b16 %v807
  %v3328 = vunpack.c.l.b16 %v808
  %v3329 = vunpack.c.h.b16 %v808
  %v3330 = vunpack.c.l.b16 %v809
  %v3331 = vunpack.c.h.b16 %v809
  %v3332 = vunpack.c.l.b16 %v810
  %v3333 = vunpack.c.h.b16 %v810
  %v3334 = vunpack.c.l.b16 %v811
  %v3335 = vunpack.c.h.b16 %v811
  %v3336 = vunpack.c.l.b16 %v812
  %v3337 = vunpack.c.h.b16 %v812
  %v3338 = vunpack.c.l.b16 %v813
  %v3339 = vunpack.c.h.b16 %v813
  %v3340 = vunpack.c.l.b16 %v814
  %v3341 = vunpack.c.h.b16 %v814
  %v3342 = vunpack.c.l.b16 %v815
  %v3343 = vunpack.c.h.b16 %v815
  %v3344 = vunpack.c.l.b16 %v816
  %v3345 = vunpack.c.h.b16 %v816
  %v3346 = vunpack.c.l.b16 %v817
  %v3347 = vunpack.c.h.b16 %v817
  %v3348 = vunpack.c.l.b16 %v818
  %v3349 = vunpack.c.h.b16 %v818
  %v3350 = vunpack.c.l.b16 %v819
  %v3351 = vunpack.c.h.b16 %v819
  %v3352 = vunpack.c.l.b16 %v820
  %v3353 = vunpack.c.h.b16 %v820
  %v3354 = vunpack.c.l.b16 %v821
  %v3355 = vunpack.c.h.b16 %v821
  %v3356 = vunpack.c.l.b16 %v822
  %v3357 = vunpack.c.h.b16 %v822
  %v3358 = vunpack.c.l.b16 %v823
  %v3359 = vunpack.c.h.b16 %v823
  %v3360 = vpack.c.b16 %v1794, %v1792
  %v3361 = vpack.c.b16 %v1795, %v1793
  %v3362 = vpack.c.b16 %v1798, %v1796
  %v3363 = vpack.c.b16 %v1799, %v1797
  %v3364 = vpack.c.b16 %v1802, %v1800
  %v3365 = vpack.c.b16 %v1803, %v1801
  %v3366 = vpack.c.b16 %v1806, %v1804
  %v3367 = vpack.c.b16 %v1807, %v1805
  %v3368 = vpack.c.b16 %v1810, %v1808
  %v3369 = vpack.c.b16 %v1811, %v1809
  %v3370 = vpack.c.b16 %v1814, %v1812
  %v3371 = vpack.c.b16 %v1815, %v1813
  %v3372 = vpack.c.b16 %v1818, %v1816
  %v3373 = vpack.c.b16 %v1819, %v1817
  %v3374 = vpack.c.b16 %v1822, %v1820
  %v3375 = vpack.c.b16 %v1823, %v1821
  %v3376 = vpack.c.b16 %v1826, %v1824
  %v3377 = vpack.c.b16 %v1827, %v1825
  %v3378 = vpack.c.b16 %v1830, %v1828
  %v3379 = vpack.c.b16 %v1831, %v1829
  %v3380 = vpack.c.b16 %v1834, %v1832
  %v3381 = vpack.c.b16 %v1835, %v1833
  %v3382 = vpack.c.b16 %v1838, %v1836
  %v3383 = vpack.c.b16 %v1839, %v1837
  %v3384 = vpack.c.b16 %v1842, %v1840
  %v3385 = vpack.c.b16 %v1843, %v1841
  %v3386 = vpack.c.b16 %v1846, %v1844
  %v3387 = vpack.c.b16 %v1847, %v1845
  %v3388 = vpack.c.b16 %v1850, %v1848
  %v3389 = vpack.c.b16 %v1851, %v1849
  %v3390 = vpack.c.b16 %v1854, %v1852
  %v3391 = vpack.c.b16 %v1855, %v1853
  %v3392 = vpack.c.b16 %v1858, %v1856
  %v3393 = vpack.c.b16 %v1859, %v1857
  %v3394 = vpack.c.b16 %v1862, %v1860
  %v3395 = vpack.c.b16 %v1863, %v1861
  %v3396 = vpack.c.b16 %v1866, %v1864
  %v3397 = vpack.c.b16 %v1867, %v1865
  %v3398 = vpack.c.b16 %v1870, %v1868
  %v3399 = vpack.c.b16 %v1871, %v1869
  %v3400 = vpack.c.b16 %v1874, %v1872
  %v3401 = vpack.c.b16 %v1875, %v1873
  %v3402 = vpack.c.b16 %v1878, %v1876
  %v3403 = vpack.c.b16 %v1879, %v1877
  %v3404 = vpack.c.b16 %v1882, %v1880
  %v3405 = vpack.c.b16 %v1883, %v1881
  %v3406 = vpack.c.b16 %v1886, %v1884
  %v3407 = vpack.c.b16 %v1887, %v1885
  %v3408 = vpack.c.b16 %v1890, %v1888
  %v3409 = vpack.c.b16 %v1891, %v1889
  %v3410 = vpack.c.b16 %v1894, %v1892
  %v3411 = vpack.c.b16 %v1895, %v1893
  %v3412 = vpack.c.b16 %v1898, %v1896
  %v3413 = vpack.c.b16 %v1899, %v1897
  %v3414 = vpack.c.b16 %v1902, %v1900
  %v3415 = vpack.c.b16 %v1903, %v1901
  %v3416 = vpack.c.b16 %v1906, %v1904
  %v3417 = vpack.c.b16 %v1907, %v1905
  %v3418 = vpack.c.b16 %v1910, %v1908
  %v3419 = vpack.c.b16 %v1911, %v1909
  %v3420 = vpack.c.b16 %v1914, %v1912
  %v3421 = vpack.c.b16 %v1915, %v1913
  %v3422 = vpack.c.b16 %v1918, %v1916
  %v3423 = vpack.c.b16 %v1919, %v1917
  %v3424 = vpack.c.b16 %v1922, %v1920
  %v3425 = vpack.c.b16 %v1923, %v1921
  %v3426 = vpack.c.b16 %v1926, %v1924
  %v3427 = vpack.c.b16 %v1927, %v1925
  %v3428 = vpack.c.b16 %v1930, %v1928
  %v3429 = vpack.c.b16 %v1931, %v1929
  %v3430 = vpack.c.b16 %v1934, %v1932
  %v3431 = vpack.c.b16 %v1935, %v1933
  %v3432 = vpack.c.b16 %v1938, %v1936
  %v3433 = vpack.c.b16 %v1939, %v1937
  %v3434 = vpack.c.b16 %v1942, %v1940
  %v3435 = vpack.c.b16 %v1943, %v1941
  %v3436 = vpack.c.b16 %v1946, %v1944
  %v3437 = vpack.c.b16 %v1947, %v1945
  %v3438 = vpack.c.b16 %v1950, %v1948
  %v3439 = vpack.c.b16 %v1951, %v1949
  %v3440 = vpack.c.b16 %v1954, %v1952
  %v3441 = vpack.c.b16 %v1955, %v1953
  %v3442 = vpack.c.b16 %v1958, %v1956
  %v3443 = vpack.c.b16 %v1959, %v1957
  %v3444 = vpack.c.b16 %v1962, %v1960
  %v3445 = vpack.c.b16 %v1963, %v1961
  %v3446 = vpack.c.b16 %v1966, %v1964
  %v3447 = vpack.c.b16 %v1967, %v1965
  %v3448 = vpack.c.b16 %v1970, %v1968
  %v3449 = vpack.c.b16 %v1971, %v1969
  %v3450 = vpack.c.b16 %v1974, %v1972
  %v3451 = vpack.c.b16 %v1975, %v1973
  %v3452 = vpack.c.b16 %v1978, %v1976
  %v3453 = vpack.c.b16 %v1979, %v1977
  %v3454 = vpack.c.b16 %v1982, %v1980
  %v3455 = vpack.c.b16 %v1983, %v1981
  %v3456 = vpack.c.b16 %v1986, %v1984
  %v3457 = vpack.c.b16 %v1987, %v1985
  %v3458 = vpack.c.b16 %v1990, %v1988
  %v3459 = vpack.c.b16 %v1991, %v1989
  %v3460 = vpack.c.b16 %v1994, %v1992
  %v3461 = vpack.c.b16 %v1995, %v1993
  %v3462 = vpack.c.b16 %v1998, %v1996
  %v3463 = vpack.c.b16 %v1999, %v1997
  %v3464 = vpack.c.b16 %v2002, %v2000
  %v3465 = vpack.c.b16 %v2003, %v2001
  %v3466 = vpack.c.b16 %v2006, %v2004
  %v3467 = vpack.c.b16 %v2007, %v2005
  %v3468 = vpack.c.b16 %v2010, %v2008
  %v3469 = vpack.c.b16 %v2011, %v2009
  %v3470 = vpack.c.b16 %v2014, %v2012
  %v3471 = vpack.c.b16 %v2015, %v2013
  %v3472 = vpack.c.b16 %v2018, %v2016
  %v3473 = vpack.c.b16 %v2019, %v2017
  %v3474 = vpack.c.b16 %v2022, %v2020
  %v3475 = vpack.c.b16 %v2023, %v2021
  %v3476 = vpack.c.b16 %v2026, %v2024
  %v3477 = vpack.c.b16 %v2027, %v2025
  %v3478 = vpack.c.b16 %v2030, %v2028
  %v3479 = vpack.c.b16 %v2031, %v2029
  %v3480 = vpack.c.b16 %v2034, %v2032
  %v3481 = vpack.c.b16 %v2035, %v2033
  %v3482 = vpack.c.b16 %v2038, %v2036
  %v3483 = vpack.c.b16 %v2039, %v2037
  %v3484 = vpack.c.b16 %v2042, %v2040
  %v3485 = vpack.c.b16 %v2043, %v2041
  %v3486 = vpack.c.b16 %v2046, %v2044
  %v3487 = vpack.c.b16 %v2047, %v2045
  %v3488 = vpack.c.b16 %v2050, %v2048
  %v3489 = vpack.c.b16 %v2051, %v2049
  %v3490 = vpack.c.b16 %v2054, %v2052
  %v3491 = vpack.c.b16 %v2055, %v2053
  %v3492 = vpack.c.b16 %v2058, %v2056
  %v3493 = vpack.c.b16 %v2059, %v2057
  %v3494 = vpack.c.b16 %v2062, %v2060
  %v3495 = vpack.c.b16 %v2063, %v2061
  %v3496 = vpack.c.b16 %v2066, %v2064
  %v3497 = vpack.c.b16 %v2067, %v2065
  %v3498 = vpack.c.b16 %v2070, %v2068
  %v3499 = vpack.c.b16 %v2071, %v2069
  %v3500 = vpack.c.b16 %v2074, %v2072
  %v3501 = vpack.c.b16 %v2075, %v2073
  %v3502 = vpack.c.b16 %v2078, %v2076
  %v3503 = vpack.c.b16 %v2079, %v2077
  %v3504 = vpack.c.b16 %v2082, %v2080
  %v3505 = vpack.c.b16 %v2083, %v2081
  %v3506 = vpack.c.b16 %v2086, %v2084
  %v3507 = vpack.c.b16 %v2087, %v2085
  %v3508 = vpack.c.b16 %v2090, %v2088
  %v3509 = vpack.c.b16 %v2091, %v2089
  %v3510 = vpack.c.b16 %v2094, %v2092
  %v3511 = vpack.c.b16 %v2095, %v2093
  %v3512 = vpack.c.b16 %v2098, %v2096
  %v3513 = vpack.c.b16 %v2099, %v2097
  %v3514 = vpack.c.b16 %v2102, %v2100
  %v3515 = vpack.c.b16 %v2103, %v2101
  %v3516 = vpack.c.b16 %v2106, %v2104
  %v3517 = vpack.c.b16 %v2107, %v2105
  %v3518 = vpack.c.b16 %v2110, %v2108
  %v3519 = vpack.c.b16 %v2111, %v2109
  %v3520 = vpack.c.b16 %v2114, %v2112
  %v3521 = vpack.c.b16 %v2115, %v2113
  %v3522 = vpack.c.b16 %v2118, %v2116
  %v3523 = vpack.c.b16 %v2119, %v2117
  %v3524 = vpack.c.b16 %v2122, %v2120
  %v3525 = vpack.c.b16 %v2123, %v2121
  %v3526 = vpack.c.b16 %v2126, %v2124
  %v3527 = vpack.c.b16 %v2127, %v2125
  %v3528 = vpack.c.b16 %v2130, %v2128
  %v3529 = vpack.c.b16 %v2131, %v2129
  %v3530 = vpack.c.b16 %v2134, %v2132
  %v3531 = vpack.c.b16 %v2135, %v2133
  %v3532 = vpack.c.b16 %v2138, %v2136
  %v3533 = vpack.c.b16 %v2139, %v2137
  %v3534 = vpack.c.b16 %v2142, %v2140
  %v3535 = vpack.c.b16 %v2143, %v2141
  %v3536 = vpack.c.b16 %v2146, %v2144
  %v3537 = vpack.c.b16 %v2147, %v2145
  %v3538 = vpack.c.b16 %v2150, %v2148
  %v3539 = vpack.c.b16 %v2151, %v2149
  %v3540 = vpack.c.b16 %v2154, %v2152
  %v3541 = vpack.c.b16 %v2155, %v2153
  %v3542 = vpack.c.b16 %v2158, %v2156
  %v3543 = vpack.c.b16 %v2159, %v2157
  %v3544 = vpack.c.b16 %v2162, %v2160
  %v3545 = vpack.c.b16 %v2163, %v2161
  %v3546 = vpack.c.b16 %v2166, %v2164
  %v3547 = vpack.c.b16 %v2167, %v2165
  %v3548 = vpack.c.b16 %v2170, %v2168
  %v3549 = vpack.c.b16 %v2171, %v2169
  %v3550 = vpack.c.b16 %v2174, %v2172
  %v3551 = vpack.c.b16 %v2175, %v2173
  %v3552 = vpack.c.b16 %v2178, %v2176
  %v3553 = vpack.c.b16 %v2179, %v2177
  %v3554 = vpack.c.b16 %v2182, %v2180
  %v3555 = vpack.c.b16 %v2183, %v2181
  %v3556 = vpack.c.b16 %v2186, %v2184
  %v3557 = vpack.c.b16 %v2187, %v2185
  %v3558 = vpack.c.b16 %v2190, %v2188
  %v3559 = vpack.c.b16 %v2191, %v2189
  %v3560 = vpack.c.b16 %v2194, %v2192
  %v3561 = vpack.c.b16 %v2195, %v2193
  %v3562 = vpack.c.b16 %v2198, %v2196
  %v3563 = vpack.c.b16 %v2199, %v2197
  %v3564 = vpack.c.b16 %v2202, %v2200
  %v3565 = vpack.c.b16 %v2203, %v2201
  %v3566 = vpack.c.b16 %v2206, %v2204
  %v3567 = vpack.c.b16 %v2207, %v2205
  %v3568 = vpack.c.b16 %v2210, %v2208
  %v3569 = vpack.c.b16 %v2211, %v2209
  %v3570 = vpack.c.b16 %v2214, %v2212
  %v3571 = vpack.c.b16 %v2215, %v2213
  %v3572 = vpack.c.b16 %v2218, %v2216
  %v3573 = vpack.c.b16 %v2219, %v2217
  %v3574 = vpack.c.b16 %v2222, %v2220
  %v3575 = vpack.c.b16 %v2223, %v2221
  %v3576 = vpack.c.b16 %v2226, %v2224
  %v3577 = vpack.c.b16 %v2227, %v2225
  %v3578 = vpack.c.b16 %v2230, %v2228
  %v3579 = vpack.c.b16 %v2231, %v2229
  %v3580 = vpack.c.b16 %v2234, %v2232
  %v3581 = vpack.c.b16 %v2235, %v2233
  %v3582 = vpack.c.b16 %v2238, %v2236
  %v3583 = vpack.c.b16 %v2239, %v2237
  %v3584 = vpack.c.b16 %v2242, %v2240
  %v3585 = vpack.c.b16 %v2243, %v2241
  %v3586 = vpack.c.b16 %v2246, %v2244
  %v3587 = vpack.c.b16 %v2247, %v2245
  %v3588 = vpack.c.b16 %v2250, %v2248
  %v3589 = vpack.c.b16 %v2251, %v2249
  %v3590 = vpack.c.b16 %v2254, %v2252
  %v3591 = vpack.c.b16 %v2255, %v2253
  %v3592 = vpack.c.b16 %v2258, %v2256
  %v3593 = vpack.c.b16 %v2259, %v2257
  %v3594 = vpack.c.b16 %v2262, %v2260
  %v3595 = vpack.c.b16 %v2263, %v2261
  %v3596 = vpack.c.b16 %v2266, %v2264
  %v3597 = vpack.c.b16 %v2267, %v2265
  %v3598 = vpack.c.b16 %v2270, %v2268
  %v3599 = vpack.c.b16 %v2271, %v2269
  %v3600 = vpack.c.b16 %v2274, %v2272
  %v3601 = vpack.c.b16 %v2275, %v2273
  %v3602 = vpack.c.b16 %v2278, %v2276
  %v3603 = vpack.c.b16 %v2279, %v2277
  %v3604 = vpack.c.b16 %v2282, %v2280
  %v3605 = vpack.c.b16 %v2283, %v2281
  %v3606 = vpack.c.b16 %v2286, %v2284
  %v3607 = vpack.c.b16 %v2287, %v2285
  %v3608 = vpack.c.b16 %v2290, %v2288
  %v3609 = vpack.c.b16 %v2291, %v2289
  %v3610 = vpack.c.b16 %v2294, %v2292
  %v3611 = vpack.c.b16 %v2295, %v2293
  %v3612 = vpack.c.b16 %v2298, %v2296
  %v3613 = vpack.c.b16 %v2299, %v2297
  %v3614 = vpack.c.b16 %v2302, %v2300
  %v3615 = vpack.c.b16 %v2303, %v2301
  %v3616 = vpack.c.b16 %v2306, %v2304
  %v3617 = vpack.c.b16 %v2307, %v2305
  %v3618 = vpack.c.b16 %v2310, %v2308
  %v3619 = vpack.c.b16 %v2311, %v2309
  %v3620 = vpack.c.b16 %v2314, %v2312
  %v3621 = vpack.c.b16 %v2315, %v2313
  %v3622 = vpack.c.b16 %v2318, %v2316
  %v3623 = vpack.c.b16 %v2319, %v2317
  %v3624 = vpack.c.b16 %v2322, %v2320
  %v3625 = vpack.c.b16 %v2323, %v2321
  %v3626 = vpack.c.b16 %v2326, %v2324
  %v3627 = vpack.c.b16 %v2327, %v2325
  %v3628 = vpack.c.b16 %v2330, %v2328
  %v3629 = vpack.c.b16 %v2331, %v2329
  %v3630 = vpack.c.b16 %v2334, %v2332
  %v3631 = vpack.c.b16 %v2335, %v2333
  %v3632 = vpack.c.b16 %v2338, %v2336
  %v3633 = vpack.c.b16 %v2339, %v2337
  %v3634 = vpack.c.b16 %v2342, %v2340
  %v3635 = vpack.c.b16 %v2343, %v2341
  %v3636 = vpack.c.b16 %v2346, %v2344
  %v3637 = vpack.c.b16 %v2347, %v2345
  %v3638 = vpack.c.b16 %v2350, %v2348
  %v3639 = vpack.c.b16 %v2351, %v2349
  %v3640 = vpack.c.b16 %v2354, %v2352
  %v3641 = vpack.c.b16 %v2355, %v2353
  %v3642 = vpack.c.b16 %v2358, %v2356
  %v3643 = vpack.c.b16 %v2359, %v2357
  %v3644 = vpack.c.b16 %v2362, %v2360
  %v3645 = vpack.c.b16 %v2363, %v2361
  %v3646 = vpack.c.b16 %v2366, %v2364
  %v3647 = vpack.c.b16 %v2367, %v2365
  %v3648 = vpack.c.b16 %v2370, %v2368
  %v3649 = vpack.c.b16 %v2371, %v2369
  %v3650 = vpack.c.b16 %v2374, %v2372
  %v3651 = vpack.c.b16 %v2375, %v2373
  %v3652 = vpack.c.b16 %v2378, %v2376
  %v3653 = vpack.c.b16 %v2379, %v2377
  %v3654 = vpack.c.b16 %v2382, %v2380
  %v3655 = vpack.c.b16 %v2383, %v2381
  %v3656 = vpack.c.b16 %v2386, %v2384
  %v3657 = vpack.c.b16 %v2387, %v2385
  %v3658 = vpack.c.b16 %v2390, %v2388
  %v3659 = vpack.c.b16 %v2391, %v2389
  %v3660 = vpack.c.b16 %v2394, %v2392
  %v3661 = vpack.c.b16 %v2395, %v2393
  %v3662 = vpack.c.b16 %v2398, %v2396
  %v3663 = vpack.c.b16 %v2399, %v2397
  %v3664 = vpack.c.b16 %v2402, %v2400
  %v3665 = vpack.c.b16 %v2403, %v2401
  %v3666 = vpack.c.b16 %v2406, %v2404
  %v3667 = vpack.c.b16 %v2407, %v2405
  %v3668 = vpack.c.b16 %v2410, %v2408
  %v3669 = vpack.c.b16 %v2411, %v2409
  %v3670 = vpack.c.b16 %v2414, %v2412
  %v3671 = vpack.c.b16 %v2415, %v2413
  %v3672 = vpack.c.b16 %v2418, %v2416
  %v3673 = vpack.c.b16 %v2419, %v2417
  %v3674 = vpack.c.b16 %v2422, %v2420
  %v3675 = vpack.c.b16 %v2423, %v2421
  %v3676 = vpack.c.b16 %v2426, %v2424
  %v3677 = vpack.c.b16 %v2427, %v2425
  %v3678 = vpack.c.b16 %v2430, %v2428
  %v3679 = vpack.c.b16 %v2431, %v2429
  %v3680 = vpack.c.b16 %v2434, %v2432
  %v3681 = vpack.c.b16 %v2435, %v2433
  %v3682 = vpack.c.b16 %v2438, %v2436
  %v3683 = vpack.c.b16 %v2439, %v2437
  %v3684 = vpack.c.b16 %v2442, %v2440
  %v3685 = vpack.c.b16 %v2443, %v2441
  %v3686 = vpack.c.b16 %v2446, %v2444
  %v3687 = vpack.c.b16 %v2447, %v2445
  %v3688 = vpack.c.b16 %v2450, %v2448
  %v3689 = vpack.c.b16 %v2451, %v2449
  %v3690 = vpack.c.b16 %v2454, %v2452
  %v3691 = vpack.c.b16 %v2455, %v2453
  %v3692 = vpack.c.b16 %v2458, %v2456
  %v3693 = vpack.c.b16 %v2459, %v2457
  %v3694 = vpack.c.b16 %v2462, %v2460
  %v3695 = vpack.c.b16 %v2463, %v2461
  %v3696 = vpack.c.b16 %v2466, %v2464
  %v3697 = vpack.c.b16 %v2467, %v2465
  %v3698 = vpack.c.b16 %v2470, %v2468
  %v3699 = vpack.c.b16 %v2471, %v2469
  %v3700 = vpack.c.b16 %v2474, %v2472
  %v3701 = vpack.c.b16 %v2475, %v2473
  %v3702 = vpack.c.b16 %v2478, %v2476
  %v3703 = vpack.c.b16 %v2479, %v2477
  %v3704 = vpack.c.b16 %v2482, %v2480
  %v3705 = vpack.c.b16 %v2483, %v2481
  %v3706 = vpack.c.b16 %v2486, %v2484
  %v3707 = vpack.c.b16 %v2487, %v2485
  %v3708 = vpack.c.b16 %v2490, %v2488
  %v3709 = vpack.c.b16 %v2491, %v2489
  %v3710 = vpack.c.b16 %v2494, %v2492
  %v3711 = vpack.c.b16 %v2495, %v2493
  %v3712 = vpack.c.b16 %v2498, %v2496
  %v3713 = vpack.c.b16 %v2499, %v2497
  %v3714 = vpack.c.b16 %v2502, %v2500
  %v3715 = vpack.c.b16 %v2503, %v2501
  %v3716 = vpack.c.b16 %v2506, %v2504
  %v3717 = vpack.c.b16 %v2507, %v2505
  %v3718 = vpack.c.b16 %v2510, %v2508
  %v3719 = vpack.c.b16 %v2511, %v2509
  %v3720 = vpack.c.b16 %v2514, %v2512
  %v3721 = vpack.c.b16 %v2515, %v2513
  %v3722 = vpack.c.b16 %v2518, %v2516
  %v3723 = vpack.c.b16 %v2519, %v2517
  %v3724 = vpack.c.b16 %v2522, %v2520
  %v3725 = vpack.c.b16 %v2523, %v2521
  %v3726 = vpack.c.b16 %v2526, %v2524
  %v3727 = vpack.c.b16 %v2527, %v2525
  %v3728 = vpack.c.b16 %v2530, %v2528
  %v3729 = vpack.c.b16 %v2531, %v2529
  %v3730 = vpack.c.b16 %v2534, %v2532
  %v3731 = vpack.c.b16 %v2535, %v2533
  %v3732 = vpack.c.b16 %v2538, %v2536
  %v3733 = vpack.c.b16 %v2539, %v2537
  %v3734 = vpack.c.b16 %v2542, %v2540
  %v3735 = vpack.c.b16 %v2543, %v2541
  %v3736 = vpack.c.b16 %v2546, %v2544
  %v3737 = vpack.c.b16 %v2547, %v2545
  %v3738 = vpack.c.b16 %v2550, %v2548
  %v3739 = vpack.c.b16 %v2551, %v2549
  %v3740 = vpack.c.b16 %v2554, %v2552
  %v3741 = vpack.c.b16 %v2555, %v2553
  %v3742 = vpack.c.b16 %v2558, %v2556
  %v3743 = vpack.c.b16 %v2559, %v2557
  %v3744 = vpack.c.b16 %v2562, %v2560
  %v3745 = vpack.c.b16 %v2563, %v2561
  %v3746 = vpack.c.b16 %v2566, %v2564
  %v3747 = vpack.c.b16 %v2567, %v2565
  %v3748 = vpack.c.b16 %v2570, %v2568
  %v3749 = vpack.c.b16 %v2571, %v2569
  %v3750 = vpack.c.b16 %v2574, %v2572
  %v3751 = vpack.c.b16 %v2575, %v2573
  %v3752 = vpack.c.b16 %v2578, %v2576
  %v3753 = vpack.c.b16 %v2579, %v2577
  %v3754 = vpack.c.b16 %v2582, %v2580
  %v3755 = vpack.c.b16 %v2583, %v2581
  %v3756 = vpack.c.b16 %v2586, %v2584
  %v3757 = vpack.c.b16 %v2587, %v2585
  %v3758 = vpack.c.b16 %v2590, %v2588
  %v3759 = vpack.c.b16 %v2591, %v2589
  %v3760 = vpack.c.b16 %v2594, %v2592
  %v3761 = vpack.c.b16 %v2595, %v2593
  %v3762 = vpack.c.b16 %v2598, %v2596
  %v3763 = vpack.c.b16 %v2599, %v2597
  %v3764 = vpack.c.b16 %v2602, %v2600
  %v3765 = vpack.c.b16 %v2603, %v2601
  %v3766 = vpack.c.b16 %v2606, %v2604
  %v3767 = vpack.c.b16 %v2607, %v2605
  %v3768 = vpack.c.b16 %v2610, %v2608
  %v3769 = vpack.c.b16 %v2611, %v2609
  %v3770 = vpack.c.b16 %v2614, %v2612
  %v3771 = vpack.c.b16 %v2615, %v2613
  %v3772 = vpack.c.b16 %v2618, %v2616
  %v3773 = vpack.c.b16 %v2619, %v2617
  %v3774 = vpack.c.b16 %v2622, %v2620
  %v3775 = vpack.c.b16 %v2623, %v2621
  %v3776 = vpack.c.b16 %v2626, %v2624
  %v3777 = vpack.c.b16 %v2627, %v2625
  %v3778 = vpack.c.b16 %v2630, %v2628
  %v3779 = vpack.c.b16 %v2631, %v2629
  %v3780 = vpack.c.b16 %v2634, %v2632
  %v3781 = vpack.c.b16 %v2635, %v2633
  %v3782 = vpack.c.b16 %v2638, %v2636
  %v3783 = vpack.c.b16 %v2639, %v2637
  %v3784 = vpack.c.b16 %v2642, %v2640
  %v3785 = vpack.c.b16 %v2643, %v2641
  %v3786 = vpack.c.b16 %v2646, %v2644
  %v3787 = vpack.c.b16 %v2647, %v2645
  %v3788 = vpack.c.b16 %v2650, %v2648
  %v3789 = vpack.c.b16 %v2651, %v2649
  %v3790 = vpack.c.b16 %v2654, %v2652
  %v3791 = vpack.c.b16 %v2655, %v2653
  %v3792 = vpack.c.b16 %v2658, %v2656
  %v3793 = vpack.c.b16 %v2659, %v2657
  %v3794 = vpack.c.b16 %v2662, %v2660
  %v3795 = vpack.c.b16 %v2663, %v2661
  %v3796 = vpack.c.b16 %v2666, %v2664
  %v3797 = vpack.c.b16 %v2667, %v2665
  %v3798 = vpack.c.b16 %v2670, %v2668
  %v3799 = vpack.c.b16 %v2671, %v2669
  %v3800 = vpack.c.b16 %v2674, %v2672
  %v3801 = vpack.c.b16 %v2675, %v2673
  %v3802 = vpack.c.b16 %v2678, %v2676
  %v3803 = vpack.c.b16 %v2679, %v2677
  %v3804 = vpack.c.b16 %v2682, %v2680
  %v3805 = vpack.c.b16 %v2683, %v2681
  %v3806 = vpack.c.b16 %v2686, %v2684
  %v3807 = vpack.c.b16 %v2687, %v2685
  %v3808 = vpack.c.b16 %v2690, %v2688
  %v3809 = vpack.c.b16 %v2691, %v2689
  %v3810 = vpack.c.b16 %v2694, %v2692
  %v3811 = vpack.c.b16 %v2695, %v2693
  %v3812 = vpack.c.b16 %v2698, %v2696
  %v3813 = vpack.c.b16 %v2699, %v2697
  %v3814 = vpack.c.b16 %v2702, %v2700
  %v3815 = vpack.c.b16 %v2703, %v2701
  %v3816 = vpack.c.b16 %v2706, %v2704
  %v3817 = vpack.c.b16 %v2707, %v2705
  %v3818 = vpack.c.b16 %v2710, %v2708
  %v3819 = vpack.c.b16 %v2711, %v2709
  %v3820 = vpack.c.b16 %v2714, %v2712
  %v3821 = vpack.c.b16 %v2715, %v2713
  %v3822 = vpack.c.b16 %v2718, %v2716
  %v3823 = vpack.c.b16 %v2719, %v2717
  %v3824 = vpack.c.b16 %v2722, %v2720
  %v3825 = vpack.c.b16 %v2723, %v2721
  %v3826 = vpack.c.b16 %v2726, %v2724
  %v3827 = vpack.c.b16 %v2727, %v2725
  %v3828 = vpack.c.b16 %v2730, %v2728
  %v3829 = vpack.c.b16 %v2731, %v2729
  %v3830 = vpack.c.b16 %v2734, %v2732
  %v3831 = vpack.c.b16 %v2735, %v2733
  %v3832 = vpack.c.b16 %v2738, %v2736
  %v3833 = vpack.c.b16 %v2739, %v2737
  %v3834 = vpack.c.b16 %v2742, %v2740
  %v3835 = vpack.c.b16 %v2743, %v2741
  %v3836 = vpack.c.b16 %v2746, %v2744
  %v3837 = vpack.c.b16 %v2747, %v2745
  %v3838 = vpack.c.b16 %v2750, %v2748
  %v3839 = vpack.c.b16 %v2751, %v2749
  %v3840 = vpack.c.b16 %v2754, %v2752
  %v3841 = vpack.c.b16 %v2755, %v2753
  %v3842 = vpack.c.b16 %v2758, %v2756
  %v3843 = vpack.c.b16 %v2759, %v2757
  %v3844 = vpack.c.b16 %v2762, %v2760
  %v3845 = vpack.c.b16 %v2763, %v2761
  %v3846 = vpack.c.b16 %v2766, %v2764
  %v3847 = vpack.c.b16 %v2767, %v2765
  %v3848 = vpack.c.b16 %v2770, %v2768
  %v3849 = vpack.c.b16 %v2771, %v2769
  %v3850 = vpack.c.b16 %v2774, %v2772
  %v3851 = vpack.c.b16 %v2775, %v2773
  %v3852 = vpack.c.b16 %v2778, %v2776
  %v3853 = vpack.c.b16 %v2779, %v2777
  %v3854 = vpack.c.b16 %v2782, %v2780
  %v3855 = vpack.c.b16 %v2783, %v2781
  %v3856 = vpack.c.b16 %v2786, %v2784
  %v3857 = vpack.c.b16 %v2787, %v2785
  %v3858 = vpack.c.b16 %v2790, %v2788
  %v3859 = vpack.c.b16 %v2791, %v2789
  %v3860 = vpack.c.b16 %v2794, %v2792
  %v3861 = vpack.c.b16 %v2795, %v2793
  %v3862 = vpack.c.b16 %v2798, %v2796
  %v3863 = vpack.c.b16 %v2799, %v2797
  %v3864 = vpack.c.b16 %v2802, %v2800
  %v3865 = vpack.c.b16 %v2803, %v2801
  %v3866 = vpack.c.b16 %v2806, %v2804
  %v3867 = vpack.c.b16 %v2807, %v2805
  %v3868 = vpack.c.b16 %v2810, %v2808
  %v3869 = vpack.c.b16 %v2811, %v2809
  %v3870 = vpack.c.b16 %v2814, %v2812
  %v3871 = vpack.c.b16 %v2815, %v2813
  %v3872 = vpack.c.b16 %v2818, %v2816
  %v3873 = vpack.c.b16 %v2819, %v2817
  %v3874 = vpack.c.b16 %v2822, %v2820
  %v3875 = vpack.c.b16 %v2823, %v2821
  %v3876 = vpack.c.b16 %v2826, %v2824
  %v3877 = vpack.c.b16 %v2827, %v2825
  %v3878 = vpack.c.b16 %v2830, %v2828
  %v3879 = vpack.c.b16 %v2831, %v2829
  %v3880 = vpack.c.b16 %v2834, %v2832
  %v3881 = vpack.c.b16 %v2835, %v2833
  %v3882 = vpack.c.b16 %v2838, %v2836
  %v3883 = vpack.c.b16 %v2839, %v2837
  %v3884 = vpack.c.b16 %v2842, %v2840
  %v3885 = vpack.c.b16 %v2843, %v2841
  %v3886 = vpack.c.b16 %v2846, %v2844
  %v3887 = vpack.c.b16 %v2847, %v2845
  %v3888 = vpack.c.b16 %v2850, %v2848
  %v3889 = vpack.c.b16 %v2851, %v2849
  %v3890 = vpack.c.b16 %v2854, %v2852
  %v3891 = vpack.c.b16 %v2855, %v2853
  %v3892 = vpack.c.b16 %v2858, %v2856
  %v3893 = vpack.c.b16 %v2859, %v2857
  %v3894 = vpack.c.b16 %v2862, %v2860
  %v3895 = vpack.c.b16 %v2863, %v2861
  %v3896 = vpack.c.b16 %v2866, %v2864
  %v3897 = vpack.c.b16 %v2867, %v2865
  %v3898 = vpack.c.b16 %v2870, %v2868
  %v3899 = vpack.c.b16 %v2871, %v2869
  %v3900 = vpack.c.b16 %v2874, %v2872
  %v3901 = vpack.c.b16 %v2875, %v2873
  %v3902 = vpack.c.b16 %v2878, %v2876
  %v3903 = vpack.c.b16 %v2879, %v2877
  %v3904 = vpack.c.b16 %v2882, %v2880
  %v3905 = vpack.c.b16 %v2883, %v2881
  %v3906 = vpack.c.b16 %v2886, %v2884
  %v3907 = vpack.c.b16 %v2887, %v2885
  %v3908 = vpack.c.b16 %v2890, %v2888
  %v3909 = vpack.c.b16 %v2891, %v2889
  %v3910 = vpack.c.b16 %v2894, %v2892
  %v3911 = vpack.c.b16 %v2895, %v2893
  %v3912 = vpack.c.b16 %v2898, %v2896
  %v3913 = vpack.c.b16 %v2899, %v2897
  %v3914 = vpack.c.b16 %v2902, %v2900
  %v3915 = vpack.c.b16 %v2903, %v2901
  %v3916 = vpack.c.b16 %v2906, %v2904
  %v3917 = vpack.c.b16 %v2907, %v2905
  %v3918 = vpack.c.b16 %v2910, %v2908
  %v3919 = vpack.c.b16 %v2911, %v2909
  %v3920 = vpack.c.b16 %v2914, %v2912
  %v3921 = vpack.c.b16 %v2915, %v2913
  %v3922 = vpack.c.b16 %v2918, %v2916
  %v3923 = vpack.c.b16 %v2919, %v2917
  %v3924 = vpack.c.b16 %v2922, %v2920
  %v3925 = vpack.c.b16 %v2923, %v2921
  %v3926 = vpack.c.b16 %v2926, %v2924
  %v3927 = vpack.c.b16 %v2927, %v2925
  %v3928 = vpack.c.b16 %v2930, %v2928
  %v3929 = vpack.c.b16 %v2931, %v2929
  %v3930 = vpack.c.b16 %v2934, %v2932
  %v3931 = vpack.c.b16 %v2935, %v2933
  %v3932 = vpack.c.b16 %v2938, %v2936
  %v3933 = vpack.c.b16 %v2939, %v2937
  %v3934 = vpack.c.b16 %v2942, %v2940
  %v3935 = vpack.c.b16 %v2943, %v2941
  %v3936 = vpack.c.b16 %v2946, %v2944
  %v3937 = vpack.c.b16 %v2947, %v2945
  %v3938 = vpack.c.b16 %v2950, %v2948
  %v3939 = vpack.c.b16 %v2951, %v2949
  %v3940 = vpack.c.b16 %v2954, %v2952
  %v3941 = vpack.c.b16 %v2955, %v2953
  %v3942 = vpack.c.b16 %v2958, %v2956
  %v3943 = vpack.c.b16 %v2959, %v2957
  %v3944 = vpack.c.b16 %v2962, %v2960
  %v3945 = vpack.c.b16 %v2963, %v2961
  %v3946 = vpack.c.b16 %v2966, %v2964
  %v3947 = vpack.c.b16 %v2967, %v2965
  %v3948 = vpack.c.b16 %v2970, %v2968
  %v3949 = vpack.c.b16 %v2971, %v2969
  %v3950 = vpack.c.b16 %v2974, %v2972
  %v3951 = vpack.c.b16 %v2975, %v2973
  %v3952 = vpack.c.b16 %v2978, %v2976
  %v3953 = vpack.c.b16 %v2979, %v2977
  %v3954 = vpack.c.b16 %v2982, %v2980
  %v3955 = vpack.c.b16 %v2983, %v2981
  %v3956 = vpack.c.b16 %v2986, %v2984
  %v3957 = vpack.c.b16 %v2987, %v2985
  %v3958 = vpack.c.b16 %v2990, %v2988
  %v3959 = vpack.c.b16 %v2991, %v2989
  %v3960 = vpack.c.b16 %v2994, %v2992
  %v3961 = vpack.c.b16 %v2995, %v2993
  %v3962 = vpack.c.b16 %v2998, %v2996
  %v3963 = vpack.c.b16 %v2999, %v2997
  %v3964 = vpack.c.b16 %v3002, %v3000
  %v3965 = vpack.c.b16 %v3003, %v3001
  %v3966 = vpack.c.b16 %v3006, %v3004
  %v3967 = vpack.c.b16 %v3007, %v3005
  %v3968 = vpack.c.b16 %v3010, %v3008
  %v3969 = vpack.c.b16 %v3011, %v3009
  %v3970 = vpack.c.b16 %v3014, %v3012
  %v3971 = vpack.c.b16 %v3015, %v3013
  %v3972 = vpack.c.b16 %v3018, %v3016
  %v3973 = vpack.c.b16 %v3019, %v3017
  %v3974 = vpack.c.b16 %v3022, %v3020
  %v3975 = vpack.c.b16 %v3023, %v3021
  %v3976 = vpack.c.b16 %v3026, %v3024
  %v3977 = vpack.c.b16 %v3027, %v3025
  %v3978 = vpack.c.b16 %v3030, %v3028
  %v3979 = vpack.c.b16 %v3031, %v3029
  %v3980 = vpack.c.b16 %v3034, %v3032
  %v3981 = vpack.c.b16 %v3035, %v3033
  %v3982 = vpack.c.b16 %v3038, %v3036
  %v3983 = vpack.c.b16 %v3039, %v3037
  %v3984 = vpack.c.b16 %v3042, %v3040
  %v3985 = vpack.c.b16 %v3043, %v3041
  %v3986 = vpack.c.b16 %v3046, %v3044
  %v3987 = vpack.c.b16 %v3047, %v3045
  %v3988 = vpack.c.b16 %v3050, %v3048
  %v3989 = vpack.c.b16 %v3051, %v3049
  %v3990 = vpack.c.b16 %v3054, %v3052
  %v3991 = vpack.c.b16 %v3055, %v3053
  %v3992 = vpack.c.b16 %v3058, %v3056
  %v3993 = vpack.c.b16 %v3059, %v3057
  %v3994 = vpack.c.b16 %v3062, %v3060
  %v3995 = vpack.c.b16 %v3063, %v3061
  %v3996 = vpack.c.b16 %v3066, %v3064
  %v3997 = vpack.c.b16 %v3067, %v3065
  %v3998 = vpack.c.b16 %v3070, %v3068
  %v3999 = vpack.c.b16 %v3071, %v3069
  %v4000 = vpack.c.b16 %v3074, %v3072
  %v4001 = vpack.c.b16 %v3075, %v3073
  %v4002 = vpack.c.b16 %v3078, %v3076
  %v4003 = vpack.c.b16 %v3079, %v3077
  %v4004 = vpack.c.b16 %v3082, %v3080
  %v4005 = vpack.c.b16 %v3083, %v3081
  %v4006 = vpack.c.b16 %v3086, %v3084
  %v4007 = vpack.c.b16 %v3087, %v3085
  %v4008 = vpack.c.b16 %v3090, %v3088
  %v4009 = vpack.c.b16 %v3091, %v3089
  %v4010 = vpack.c.b16 %v3094, %v3092
  %v4011 = vpack.c.b16 %v3095, %v3093
  %v4012 = vpack.c.b16 %v3098, %v3096
  %v4013 = vpack.c.b16 %v3099, %v3097
  %v4014 = vpack.c.b16 %v3102, %v3100
  %v4015 = vpack.c.b16 %v3103, %v3101
  %v4016 = vpack.c.b16 %v3106, %v3104
  %v4017 = vpack.c.b16 %v3107, %v3105
  %v4018 = vpack.c.b16 %v3110, %v3108
  %v4019 = vpack.c.b16 %v3111, %v3109
  %v4020 = vpack.c.b16 %v3114, %v3112
  %v4021 = vpack.c.b16 %v3115, %v3113
  %v4022 = vpack.c.b16 %v3118, %v3116
  %v4023 = vpack.c.b16 %v3119, %v3117
  %v4024 = vpack.c.b16 %v3122, %v3120
  %v4025 = vpack.c.b16 %v3123, %v3121
  %v4026 = vpack.c.b16 %v3126, %v3124
  %v4027 = vpack.c.b16 %v3127, %v3125
  %v4028 = vpack.c.b16 %v3130, %v3128
  %v4029 = vpack.c.b16 %v3131, %v3129
  %v4030 = vpack.c.b16 %v3134, %v3132
  %v4031 = vpack.c.b16 %v3135, %v3133
  %v4032 = vpack.c.b16 %v3138, %v3136
  %v4033 = vpack.c.b16 %v3139, %v3137
  %v4034 = vpack.c.b16 %v3142, %v3140
  %v4035 = vpack.c.b16 %v3143, %v3141
  %v4036 = vpack.c.b16 %v3146, %v3144
  %v4037 = vpack.c.b16 %v3147, %v3145
  %v4038 = vpack.c.b16 %v3150, %v3148
  %v4039 = vpack.c.b16 %v3151, %v3149
  %v4040 = vpack.c.b16 %v3154, %v3152
  %v4041 = vpack.c.b16 %v3155, %v3153
  %v4042 = vpack.c.b16 %v3158, %v3156
  %v4043 = vpack.c.b16 %v3159, %v3157
  %v4044 = vpack.c.b16 %v3162, %v3160
  %v4045 = vpack.c.b16 %v3163, %v3161
  %v4046 = vpack.c.b16 %v3166, %v3164
  %v4047 = vpack.c.b16 %v3167, %v3165
  %v4048 = vpack.c.b16 %v3170, %v3168
  %v4049 = vpack.c.b16 %v3171, %v3169
  %v4050 = vpack.c.b16 %v3174, %v3172
  %v4051 = vpack.c.b16 %v3175, %v3173
  %v4052 = vpack.c.b16 %v3178, %v3176
  %v4053 = vpack.c.b16 %v3179, %v3177
  %v4054 = vpack.c.b16 %v3182, %v3180
  %v4055 = vpack.c.b16 %v3183, %v3181
  %v4056 = vpack.c.b16 %v3186, %v3184
  %v4057 = vpack.c.b16 %v3187, %v3185
  %v4058 = vpack.c.b16 %v3190, %v3188
  %v4059 = vpack.c.b16 %v3191, %v3189
  %v4060 = vpack.c.b16 %v3194, %v3192
  %v4061 = vpack.c.b16 %v3195, %v3193
  %v4062 = vpack.c.b16 %v3198, %v3196
  %v4063 = vpack.c.b16 %v3199, %v3197
  %v4064 = vpack.c.b16 %v3202, %v3200
  %v4065 = vpack.c.b16 %v3203, %v3201
  %v4066 = vpack.c.b16 %v3206, %v3204
  %v4067 = vpack.c.b16 %v3207, %v3205
  %v4068 = vpack.c.b16 %v3210, %v3208
  %v4069 = vpack.c.b16 %v3211, %v3209
  %v4070 = vpack.c.b16 %v3214, %v3212
  %v4071 = vpack.c.b16 %v3215, %v3213
  %v4072 = vpack.c.b16 %v3218, %v3216
  %v4073 = vpack.c.b16 %v3219, %v3217
  %v4074 = vpack.c.b16 %v3222, %v3220
  %v4075 = vpack.c.b16 %v3223, %v3221
  %v4076 = vpack.c.b16 %v3226, %v3224
  %v4077 = vpack.c.b16 %v3227, %v3225
  %v4078 = vpack.c.b16 %v3230, %v3228
  %v4079 = vpack.c.b16 %v3231, %v3229
  %v4080 = vpack.c.b16 %v3234, %v3232
  %v4081 = vpack.c.b16 %v3235, %v3233
  %v4082 = vpack.c.b16 %v3238, %v3236
  %v4083 = vpack.c.b16 %v3239, %v3237
  %v4084 = vpack.c.b16 %v3242, %v3240
  %v4085 = vpack.c.b16 %v3243, %v3241
  %v4086 = vpack.c.b16 %v3246, %v3244
  %v4087 = vpack.c.b16 %v3247, %v3245
  %v4088 = vpack.c.b16 %v3250, %v3248
  %v4089 = vpack.c.b16 %v3251, %v3249
  %v4090 = vpack.c.b16 %v3254, %v3252
  %v4091 = vpack.c.b16 %v3255, %v3253
  %v4092 = vpack.c.b16 %v3258, %v3256
  %v4093 = vpack.c.b16 %v3259, %v3257
  %v4094 = vpack.c.b16 %v3262, %v3260
  %v4095 = vpack.c.b16 %v3263, %v3261
  %v4096 = vpack.c.b16 %v3266, %v3264
  %v4097 = vpack.c.b16 %v3267, %v3265
  %v4098 = vpack.c.b16 %v3270, %v3268
  %v4099 = vpack.c.b16 %v3271, %v3269
  %v4100 = vpack.c.b16 %v3274, %v3272
  %v4101 = vpack.c.b16 %v3275, %v3273
  %v4102 = vpack.c.b16 %v3278, %v3276
  %v4103 = vpack.c.b16 %v3279, %v3277
  %v4104 = vpack.c.b16 %v3282, %v3280
  %v4105 = vpack.c.b16 %v3283, %v3281
  %v4106 = vpack.c.b16 %v3286, %v3284
  %v4107 = vpack.c.b16 %v3287, %v3285
  %v4108 = vpack.c.b16 %v3290, %v3288
  %v4109 = vpack.c.b16 %v3291, %v3289
  %v4110 = vpack.c.b16 %v3294, %v3292
  %v4111 = vpack.c.b16 %v3295, %v3293
  %v4112 = vpack.c.b16 %v3298, %v3296
  %v4113 = vpack.c.b16 %v3299, %v3297
  %v4114 = vpack.c.b16 %v3302, %v3300
  %v4115 = vpack.c.b16 %v3303, %v3301
  %v4116 = vpack.c.b16 %v3306, %v3304
  %v4117 = vpack.c.b16 %v3307, %v3305
  %v4118 = vpack.c.b16 %v3310, %v3308
  %v4119 = vpack.c.b16 %v3311, %v3309
  %v4120 = vpack.c.b16 %v3314, %v3312
  %v4121 = vpack.c.b16 %v3315, %v3313
  %v4122 = vpack.c.b16 %v3318, %v3316
  %v4123 = vpack.c.b16 %v3319, %v3317
  %v4124 = vpack.c.b16 %v3322, %v3320
  %v4125 = vpack.c.b16 %v3323, %v3321
  %v4126 = vpack.c.b16 %v3326, %v3324
  %v4127 = vpack.c.b16 %v3327, %v3325
  %v4128 = vpack.c.b16 %v3330, %v3328
  %v4129 = vpack.c.b16 %v3331, %v3329
  %v4130 = vpack.c.b16 %v3334, %v3332
  %v4131 = vpack.c.b16 %v3335, %v3333
  %v4132 = vpack.c.b16 %v3338, %v3336
  %v4133 = vpack.c.b16 %v3339, %v3337
  %v4134 = vpack.c.b16 %v3342, %v3340
  %v4135 = vpack.c.b16 %v3343, %v3341
  %v4136 = vpack.c.b16 %v3346, %v3344
  %v4137 = vpack.c.b16 %v3347, %v3345
  %v4138 = vpack.c.b16 %v3350, %v3348
  %v4139 = vpack.c.b16 %v3351, %v3349
  %v4140 = vpack.c.b16 %v3354, %v3352
  %v4141 = vpack.c.b16 %v3355, %v3353
  %v4142 = vpack.c.b16 %v3358, %v3356
  %v4143 = vpack.c.b16 %v3359, %v3357
  %4928 = vmatprep.subr.bf16.mxu0 %v3361
  %4929 = vmatpush1.bf16.msra.mxu0 %v3360
  %4930 = vmatprep.subr.bf16.mxu0 %v3363
  %4931 = vmatpush1.bf16.msra.mxu0 %v3362
  %4932 = vmatprep.subr.bf16.mxu0 %v3365
  %4933 = vmatpush1.bf16.msra.mxu0 %v3364
  %4934 = vmatprep.subr.bf16.mxu0 %v3367
  %4935 = vmatpush1.bf16.msra.mxu0 %v3366
  %4936 = vmatprep.subr.bf16.mxu0 %v3369
  %4937 = vmatpush1.bf16.msra.mxu0 %v3368
  %4938 = vmatprep.subr.bf16.mxu0 %v3371
  %4939 = vmatpush1.bf16.msra.mxu0 %v3370
  %4940 = vmatprep.subr.bf16.mxu0 %v3373
  %4941 = vmatpush1.bf16.msra.mxu0 %v3372
  %4942 = vmatprep.subr.bf16.mxu0 %v3375
  %4943 = vmatpush1.bf16.msra.mxu0 %v3374
  %4944 = vmatprep.subr.bf16.mxu0 %v3377
  %4945 = vmatpush1.bf16.msra.mxu0 %v3376
  %4946 = vmatprep.subr.bf16.mxu0 %v3379
  %4947 = vmatpush1.bf16.msra.mxu0 %v3378
  %4948 = vmatprep.subr.bf16.mxu0 %v3381
  %4949 = vmatpush1.bf16.msra.mxu0 %v3380
  %4950 = vmatprep.subr.bf16.mxu0 %v3383
  %4951 = vmatpush1.bf16.msra.mxu0 %v3382
  %4952 = vmatprep.subr.bf16.mxu0 %v3385
  %4953 = vmatpush1.bf16.msra.mxu0 %v3384
  %4954 = vmatprep.subr.bf16.mxu0 %v3387
  %4955 = vmatpush1.bf16.msra.mxu0 %v3386
  %4956 = vmatprep.subr.bf16.mxu0 %v3389
  %4957 = vmatpush1.bf16.msra.mxu0 %v3388
  %4958 = vmatprep.subr.bf16.mxu0 %v3391
  %4959 = vmatpush1.bf16.msra.mxu0 %v3390
  %4960 = vmatprep.mubr.bf16.mxu0 %v911
  %4961 = vmatmul.mubr.bf16.gmra.mrb[0].mxu0 %v910
  %v4962 = vpop.f32.mrb[0].mxu0
  %v4963 = vadd.f32 %v829, %v4962
  %v4964 = vpop.f32.mrb[0].mxu0
  %v4965 = vadd.f32 %v833, %v4964
  %v4966 = vpop.f32.mrb[0].mxu0
  %v4967 = vpop.f32.mrb[0].mxu0
  %4968 = vdwg.mxu0
  %4969 = vmatprep.subr.bf16.mxu0 %v3393
  %4970 = vmatpush1.bf16.msra.mxu0 %v3392
  %4971 = vmatprep.subr.bf16.mxu0 %v3395
  %4972 = vmatpush1.bf16.msra.mxu0 %v3394
  %4973 = vmatprep.subr.bf16.mxu0 %v3397
  %4974 = vmatpush1.bf16.msra.mxu0 %v3396
  %4975 = vmatprep.subr.bf16.mxu0 %v3399
  %4976 = vmatpush1.bf16.msra.mxu0 %v3398
  %4977 = vmatprep.subr.bf16.mxu0 %v3401
  %4978 = vmatpush1.bf16.msra.mxu0 %v3400
  %4979 = vmatprep.subr.bf16.mxu0 %v3403
  %4980 = vmatpush1.bf16.msra.mxu0 %v3402
  %4981 = vmatprep.subr.bf16.mxu0 %v3405
  %4982 = vmatpush1.bf16.msra.mxu0 %v3404
  %4983 = vmatprep.subr.bf16.mxu0 %v3407
  %4984 = vmatpush1.bf16.msra.mxu0 %v3406
  %4985 = vmatprep.subr.bf16.mxu0 %v3409
  %4986 = vmatpush1.bf16.msra.mxu0 %v3408
  %4987 = vmatprep.subr.bf16.mxu0 %v3411
  %4988 = vmatpush1.bf16.msra.mxu0 %v3410
  %4989 = vmatprep.subr.bf16.mxu0 %v3413
  %4990 = vmatpush1.bf16.msra.mxu0 %v3412
  %4991 = vmatprep.subr.bf16.mxu0 %v3415
  %4992 = vmatpush1.bf16.msra.mxu0 %v3414
  %4993 = vmatprep.subr.bf16.mxu0 %v3417
  %4994 = vmatpush1.bf16.msra.mxu0 %v3416
  %4995 = vmatprep.subr.bf16.mxu0 %v3419
  %4996 = vmatpush1.bf16.msra.mxu0 %v3418
  %4997 = vmatprep.subr.bf16.mxu0 %v3421
  %4998 = vmatpush1.bf16.msra.mxu0 %v3420
  %4999 = vmatprep.subr.bf16.mxu0 %v3423
  %5000 = vmatpush1.bf16.msra.mxu0 %v3422
  %5001 = vmatprep.mubr.bf16.mxu0 %v913
  %5002 = vmatmul.mubr.bf16.gmra.mrb[0].mxu0 %v912
  %v5003 = vpop.f32.mrb[0].mxu0
  %v5004 = vadd.f32 %v4963, %v5003
  %v5005 = vpop.f32.mrb[0].mxu0
  %v5006 = vadd.f32 %v4965, %v5005
  %v5007 = vpop.f32.mrb[0].mxu0
  %v5008 = vpop.f32.mrb[0].mxu0
  %5009 = vdwg.mxu0
  %5010 = vmatprep.subr.bf16.mxu0 %v3425
  %5011 = vmatpush1.bf16.msra.mxu0 %v3424
  %5012 = vmatprep.subr.bf16.mxu0 %v3427
  %5013 = vmatpush1.bf16.msra.mxu0 %v3426
  %5014 = vmatprep.subr.bf16.mxu0 %v3429
  %5015 = vmatpush1.bf16.msra.mxu0 %v3428
  %5016 = vmatprep.subr.bf16.mxu0 %v3431
  %5017 = vmatpush1.bf16.msra.mxu0 %v3430
  %5018 = vmatprep.subr.bf16.mxu0 %v3433
  %5019 = vmatpush1.bf16.msra.mxu0 %v3432
  %5020 = vmatprep.subr.bf16.mxu0 %v3435
  %5021 = vmatpush1.bf16.msra.mxu0 %v3434
  %5022 = vmatprep.subr.bf16.mxu0 %v3437
  %5023 = vmatpush1.bf16.msra.mxu0 %v3436
  %5024 = vmatprep.subr.bf16.mxu0 %v3439
  %5025 = vmatpush1.bf16.msra.mxu0 %v3438
  %5026 = vmatprep.subr.bf16.mxu0 %v3441
  %5027 = vmatpush1.bf16.msra.mxu0 %v3440
  %5028 = vmatprep.subr.bf16.mxu0 %v3443
  %5029 = vmatpush1.bf16.msra.mxu0 %v3442
  %5030 = vmatprep.subr.bf16.mxu0 %v3445
  %5031 = vmatpush1.bf16.msra.mxu0 %v3444
  %5032 = vmatprep.subr.bf16.mxu0 %v3447
  %5033 = vmatpush1.bf16.msra.mxu0 %v3446
  %5034 = vmatprep.subr.bf16.mxu0 %v3449
  %5035 = vmatpush1.bf16.msra.mxu0 %v3448
  %5036 = vmatprep.subr.bf16.mxu0 %v3451
  %5037 = vmatpush1.bf16.msra.mxu0 %v3450
  %5038 = vmatprep.subr.bf16.mxu0 %v3453
  %5039 = vmatpush1.bf16.msra.mxu0 %v3452
  %5040 = vmatprep.subr.bf16.mxu0 %v3455
  %5041 = vmatpush1.bf16.msra.mxu0 %v3454
  %5042 = vmatprep.mubr.bf16.mxu0 %v915
  %5043 = vmatmul.mubr.bf16.gmra.mrb[0].mxu0 %v914
  %v5044 = vpop.f32.mrb[0].mxu0
  %v5045 = vadd.f32 %v5004, %v5044
  %v5046 = vpop.f32.mrb[0].mxu0
  %v5047 = vadd.f32 %v5006, %v5046
  %v5048 = vpop.f32.mrb[0].mxu0
  %v5049 = vpop.f32.mrb[0].mxu0
  %5050 = vdwg.mxu0
  %5051 = vmatprep.subr.bf16.mxu0 %v3457
  %5052 = vmatpush1.bf16.msra.mxu0 %v3456
  %5053 = vmatprep.subr.bf16.mxu0 %v3459
  %5054 = vmatpush1.bf16.msra.mxu0 %v3458
  %5055 = vmatprep.subr.bf16.mxu0 %v3461
  %5056 = vmatpush1.bf16.msra.mxu0 %v3460
  %5057 = vmatprep.subr.bf16.mxu0 %v3463
  %5058 = vmatpush1.bf16.msra.mxu0 %v3462
  %5059 = vmatprep.subr.bf16.mxu0 %v3465
  %5060 = vmatpush1.bf16.msra.mxu0 %v3464
  %5061 = vmatprep.subr.bf16.mxu0 %v3467
  %5062 = vmatpush1.bf16.msra.mxu0 %v3466
  %5063 = vmatprep.subr.bf16.mxu0 %v3469
  %5064 = vmatpush1.bf16.msra.mxu0 %v3468
  %5065 = vmatprep.subr.bf16.mxu0 %v3471
  %5066 = vmatpush1.bf16.msra.mxu0 %v3470
  %5067 = vmatprep.subr.bf16.mxu0 %v3473
  %5068 = vmatpush1.bf16.msra.mxu0 %v3472
  %5069 = vmatprep.subr.bf16.mxu0 %v3475
  %5070 = vmatpush1.bf16.msra.mxu0 %v3474
  %5071 = vmatprep.subr.bf16.mxu0 %v3477
  %5072 = vmatpush1.bf16.msra.mxu0 %v3476
  %5073 = vmatprep.subr.bf16.mxu0 %v3479
  %5074 = vmatpush1.bf16.msra.mxu0 %v3478
  %5075 = vmatprep.subr.bf16.mxu0 %v3481
  %5076 = vmatpush1.bf16.msra.mxu0 %v3480
  %5077 = vmatprep.subr.bf16.mxu0 %v3483
  %5078 = vmatpush1.bf16.msra.mxu0 %v3482
  %5079 = vmatprep.subr.bf16.mxu0 %v3485
  %5080 = vmatpush1.bf16.msra.mxu0 %v3484
  %5081 = vmatprep.subr.bf16.mxu0 %v3487
  %5082 = vmatpush1.bf16.msra.mxu0 %v3486
  %5083 = vmatprep.mubr.bf16.mxu0 %v917
  %5084 = vmatmul.mubr.bf16.gmra.mrb[0].mxu0 %v916
  %v5085 = vpop.f32.mrb[0].mxu0
  %v5086 = vadd.f32 %v5045, %v5085
  %v5087 = vpop.f32.mrb[0].mxu0
  %v5088 = vadd.f32 %v5047, %v5087
  %v5089 = vpop.f32.mrb[0].mxu0
  %v5090 = vpop.f32.mrb[0].mxu0
  %5091 = vdwg.mxu0
  %5092 = vmatprep.subr.bf16.mxu0 %v3489
  %5093 = vmatpush1.bf16.msra.mxu0 %v3488
  %5094 = vmatprep.subr.bf16.mxu0 %v3491
  %5095 = vmatpush1.bf16.msra.mxu0 %v3490
  %5096 = vmatprep.subr.bf16.mxu0 %v3493
  %5097 = vmatpush1.bf16.msra.mxu0 %v3492
  %5098 = vmatprep.subr.bf16.mxu0 %v3495
  %5099 = vmatpush1.bf16.msra.mxu0 %v3494
  %5100 = vmatprep.subr.bf16.mxu0 %v3497
  %5101 = vmatpush1.bf16.msra.mxu0 %v3496
  %5102 = vmatprep.subr.bf16.mxu0 %v3499
  %5103 = vmatpush1.bf16.msra.mxu0 %v3498
  %5104 = vmatprep.subr.bf16.mxu0 %v3501
  %5105 = vmatpush1.bf16.msra.mxu0 %v3500
  %5106 = vmatprep.subr.bf16.mxu0 %v3503
  %5107 = vmatpush1.bf16.msra.mxu0 %v3502
  %5108 = vmatprep.subr.bf16.mxu0 %v3505
  %5109 = vmatpush1.bf16.msra.mxu0 %v3504
  %5110 = vmatprep.subr.bf16.mxu0 %v3507
  %5111 = vmatpush1.bf16.msra.mxu0 %v3506
  %5112 = vmatprep.subr.bf16.mxu0 %v3509
  %5113 = vmatpush1.bf16.msra.mxu0 %v3508
  %5114 = vmatprep.subr.bf16.mxu0 %v3511
  %5115 = vmatpush1.bf16.msra.mxu0 %v3510
  %5116 = vmatprep.subr.bf16.mxu0 %v3513
  %5117 = vmatpush1.bf16.msra.mxu0 %v3512
  %5118 = vmatprep.subr.bf16.mxu0 %v3515
  %5119 = vmatpush1.bf16.msra.mxu0 %v3514
  %5120 = vmatprep.subr.bf16.mxu0 %v3517
  %5121 = vmatpush1.bf16.msra.mxu0 %v3516
  %5122 = vmatprep.subr.bf16.mxu0 %v3519
  %5123 = vmatpush1.bf16.msra.mxu0 %v3518
  %5124 = vmatprep.mubr.bf16.mxu0 %v919
  %5125 = vmatmul.mubr.bf16.gmra.mrb[0].mxu0 %v918
  %v5126 = vpop.f32.mrb[0].mxu0
  %v5127 = vadd.f32 %v5086, %v5126
  %v5128 = vpop.f32.mrb[0].mxu0
  %v5129 = vadd.f32 %v5088, %v5128
  %v5130 = vpop.f32.mrb[0].mxu0
  %v5131 = vpop.f32.mrb[0].mxu0
  %5132 = vdwg.mxu0
  %5133 = vmatprep.subr.bf16.mxu0 %v3521
  %5134 = vmatpush1.bf16.msra.mxu0 %v3520
  %5135 = vmatprep.subr.bf16.mxu0 %v3523
  %5136 = vmatpush1.bf16.msra.mxu0 %v3522
  %5137 = vmatprep.subr.bf16.mxu0 %v3525
  %5138 = vmatpush1.bf16.msra.mxu0 %v3524
  %5139 = vmatprep.subr.bf16.mxu0 %v3527
  %5140 = vmatpush1.bf16.msra.mxu0 %v3526
  %5141 = vmatprep.subr.bf16.mxu0 %v3529
  %5142 = vmatpush1.bf16.msra.mxu0 %v3528
  %5143 = vmatprep.subr.bf16.mxu0 %v3531
  %5144 = vmatpush1.bf16.msra.mxu0 %v3530
  %5145 = vmatprep.subr.bf16.mxu0 %v3533
  %5146 = vmatpush1.bf16.msra.mxu0 %v3532
  %5147 = vmatprep.subr.bf16.mxu0 %v3535
  %5148 = vmatpush1.bf16.msra.mxu0 %v3534
  %5149 = vmatprep.subr.bf16.mxu0 %v3537
  %5150 = vmatpush1.bf16.msra.mxu0 %v3536
  %5151 = vmatprep.subr.bf16.mxu0 %v3539
  %5152 = vmatpush1.bf16.msra.mxu0 %v3538
  %5153 = vmatprep.subr.bf16.mxu0 %v3541
  %5154 = vmatpush1.bf16.msra.mxu0 %v3540
  %5155 = vmatprep.subr.bf16.mxu0 %v3543
  %5156 = vmatpush1.bf16.msra.mxu0 %v3542
  %5157 = vmatprep.subr.bf16.mxu0 %v3545
  %5158 = vmatpush1.bf16.msra.mxu0 %v3544
  %5159 = vmatprep.subr.bf16.mxu0 %v3547
  %5160 = vmatpush1.bf16.msra.mxu0 %v3546
  %5161 = vmatprep.subr.bf16.mxu0 %v3549
  %5162 = vmatpush1.bf16.msra.mxu0 %v3548
  %5163 = vmatprep.subr.bf16.mxu0 %v3551
  %5164 = vmatpush1.bf16.msra.mxu0 %v3550
  %5165 = vmatprep.mubr.bf16.mxu0 %v921
  %5166 = vmatmul.mubr.bf16.gmra.mrb[0].mxu0 %v920
  %v5167 = vpop.f32.mrb[0].mxu0
  %v5168 = vadd.f32 %v5127, %v5167
  %v5169 = vpop.f32.mrb[0].mxu0
  %v5170 = vadd.f32 %v5129, %v5169
  %v5171 = vpop.f32.mrb[0].mxu0
  %v5172 = vpop.f32.mrb[0].mxu0
  %5173 = vdwg.mxu0
  %5174 = vmatprep.subr.bf16.mxu0 %v3553
  %5175 = vmatpush1.bf16.msra.mxu0 %v3552
  %5176 = vmatprep.subr.bf16.mxu0 %v3555
  %5177 = vmatpush1.bf16.msra.mxu0 %v3554
  %5178 = vmatprep.subr.bf16.mxu0 %v3557
  %5179 = vmatpush1.bf16.msra.mxu0 %v3556
  %5180 = vmatprep.subr.bf16.mxu0 %v3559
  %5181 = vmatpush1.bf16.msra.mxu0 %v3558
  %5182 = vmatprep.subr.bf16.mxu0 %v3561
  %5183 = vmatpush1.bf16.msra.mxu0 %v3560
  %5184 = vmatprep.subr.bf16.mxu0 %v3563
  %5185 = vmatpush1.bf16.msra.mxu0 %v3562
  %5186 = vmatprep.subr.bf16.mxu0 %v3565
  %5187 = vmatpush1.bf16.msra.mxu0 %v3564
  %5188 = vmatprep.subr.bf16.mxu0 %v3567
  %5189 = vmatpush1.bf16.msra.mxu0 %v3566
  %5190 = vmatprep.subr.bf16.mxu0 %v3569
  %5191 = vmatpush1.bf16.msra.mxu0 %v3568
  %5192 = vmatprep.subr.bf16.mxu0 %v3571
  %5193 = vmatpush1.bf16.msra.mxu0 %v3570
  %5194 = vmatprep.subr.bf16.mxu0 %v3573
  %5195 = vmatpush1.bf16.msra.mxu0 %v3572
  %5196 = vmatprep.subr.bf16.mxu0 %v3575
  %5197 = vmatpush1.bf16.msra.mxu0 %v3574
  %5198 = vmatprep.subr.bf16.mxu0 %v3577
  %5199 = vmatpush1.bf16.msra.mxu0 %v3576
  %5200 = vmatprep.subr.bf16.mxu0 %v3579
  %5201 = vmatpush1.bf16.msra.mxu0 %v3578
  %5202 = vmatprep.subr.bf16.mxu0 %v3581
  %5203 = vmatpush1.bf16.msra.mxu0 %v3580
  %5204 = vmatprep.subr.bf16.mxu0 %v3583
  %5205 = vmatpush1.bf16.msra.mxu0 %v3582
  %5206 = vmatprep.mubr.bf16.mxu0 %v923
  %5207 = vmatmul.mubr.bf16.gmra.mrb[0].mxu0 %v922
  %v5208 = vpop.f32.mrb[0].mxu0
  %v5209 = vadd.f32 %v5168, %v5208
  %v5210 = vpop.f32.mrb[0].mxu0
  %v5211 = vadd.f32 %v5170, %v5210
  %v5212 = vpop.f32.mrb[0].mxu0
  %v5213 = vpop.f32.mrb[0].mxu0
  %5214 = vdwg.mxu0
  %5215 = vmatprep.subr.bf16.mxu0 %v3585
  %5216 = vmatpush1.bf16.msra.mxu0 %v3584
  %5217 = vmatprep.subr.bf16.mxu0 %v3587
  %5218 = vmatpush1.bf16.msra.mxu0 %v3586
  %5219 = vmatprep.subr.bf16.mxu0 %v3589
  %5220 = vmatpush1.bf16.msra.mxu0 %v3588
  %5221 = vmatprep.subr.bf16.mxu0 %v3591
  %5222 = vmatpush1.bf16.msra.mxu0 %v3590
  %5223 = vmatprep.subr.bf16.mxu0 %v3593
  %5224 = vmatpush1.bf16.msra.mxu0 %v3592
  %5225 = vmatprep.subr.bf16.mxu0 %v3595
  %5226 = vmatpush1.bf16.msra.mxu0 %v3594
  %5227 = vmatprep.subr.bf16.mxu0 %v3597
  %5228 = vmatpush1.bf16.msra.mxu0 %v3596
  %5229 = vmatprep.subr.bf16.mxu0 %v3599
  %5230 = vmatpush1.bf16.msra.mxu0 %v3598
  %5231 = vmatprep.subr.bf16.mxu0 %v3601
  %5232 = vmatpush1.bf16.msra.mxu0 %v3600
  %5233 = vmatprep.subr.bf16.mxu0 %v3603
  %5234 = vmatpush1.bf16.msra.mxu0 %v3602
  %5235 = vmatprep.subr.bf16.mxu0 %v3605
  %5236 = vmatpush1.bf16.msra.mxu0 %v3604
  %5237 = vmatprep.subr.bf16.mxu0 %v3607
  %5238 = vmatpush1.bf16.msra.mxu0 %v3606
  %5239 = vmatprep.subr.bf16.mxu0 %v3609
  %5240 = vmatpush1.bf16.msra.mxu0 %v3608
  %5241 = vmatprep.subr.bf16.mxu0 %v3611
  %5242 = vmatpush1.bf16.msra.mxu0 %v3610
  %5243 = vmatprep.subr.bf16.mxu0 %v3613
  %5244 = vmatpush1.bf16.msra.mxu0 %v3612
  %5245 = vmatprep.subr.bf16.mxu0 %v3615
  %5246 = vmatpush1.bf16.msra.mxu0 %v3614
  %5247 = vmatprep.mubr.bf16.mxu0 %v925
  %5248 = vmatmul.mubr.bf16.gmra.mrb[0].mxu0 %v924
  %v5249 = vpop.f32.mrb[0].mxu0
  %v5250 = vadd.f32 %v5209, %v5249
  %v5251 = vpop.f32.mrb[0].mxu0
  %v5252 = vadd.f32 %v5211, %v5251
  %v5253 = vpop.f32.mrb[0].mxu0
  %v5254 = vpop.f32.mrb[0].mxu0
  %5255 = vdwg.mxu0
  %5256 = vmatprep.subr.bf16.mxu0 %v3617
  %5257 = vmatpush1.bf16.msra.mxu0 %v3616
  %5258 = vmatprep.subr.bf16.mxu0 %v3619
  %5259 = vmatpush1.bf16.msra.mxu0 %v3618
  %5260 = vmatprep.subr.bf16.mxu0 %v3621
  %5261 = vmatpush1.bf16.msra.mxu0 %v3620
  %5262 = vmatprep.subr.bf16.mxu0 %v3623
  %5263 = vmatpush1.bf16.msra.mxu0 %v3622
  %5264 = vmatprep.subr.bf16.mxu0 %v3625
  %5265 = vmatpush1.bf16.msra.mxu0 %v3624
  %5266 = vmatprep.subr.bf16.mxu0 %v3627
  %5267 = vmatpush1.bf16.msra.mxu0 %v3626
  %5268 = vmatprep.subr.bf16.mxu0 %v3629
  %5269 = vmatpush1.bf16.msra.mxu0 %v3628
  %5270 = vmatprep.subr.bf16.mxu0 %v3631
  %5271 = vmatpush1.bf16.msra.mxu0 %v3630
  %5272 = vmatprep.subr.bf16.mxu0 %v3633
  %5273 = vmatpush1.bf16.msra.mxu0 %v3632
  %5274 = vmatprep.subr.bf16.mxu0 %v3635
  %5275 = vmatpush1.bf16.msra.mxu0 %v3634
  %5276 = vmatprep.subr.bf16.mxu0 %v3637
  %5277 = vmatpush1.bf16.msra.mxu0 %v3636
  %5278 = vmatprep.subr.bf16.mxu0 %v3639
  %5279 = vmatpush1.bf16.msra.mxu0 %v3638
  %5280 = vmatprep.subr.bf16.mxu0 %v3641
  %5281 = vmatpush1.bf16.msra.mxu0 %v3640
  %5282 = vmatprep.subr.bf16.mxu0 %v3643
  %5283 = vmatpush1.bf16.msra.mxu0 %v3642
  %5284 = vmatprep.subr.bf16.mxu0 %v3645
  %5285 = vmatpush1.bf16.msra.mxu0 %v3644
  %5286 = vmatprep.subr.bf16.mxu0 %v3647
  %5287 = vmatpush1.bf16.msra.mxu0 %v3646
  %5288 = vmatprep.mubr.bf16.mxu0 %v927
  %5289 = vmatmul.mubr.bf16.gmra.mrb[0].mxu0 %v926
  %v5290 = vpop.f32.mrb[0].mxu0
  %v5291 = vadd.f32 %v5250, %v5290
  %v5292 = vpop.f32.mrb[0].mxu0
  %v5293 = vadd.f32 %v5252, %v5292
  %v5294 = vpop.f32.mrb[0].mxu0
  %v5295 = vpop.f32.mrb[0].mxu0
  %5296 = vdwg.mxu0
  %5297 = vmatprep.subr.bf16.mxu0 %v3649
  %5298 = vmatpush1.bf16.msra.mxu0 %v3648
  %5299 = vmatprep.subr.bf16.mxu0 %v3651
  %5300 = vmatpush1.bf16.msra.mxu0 %v3650
  %5301 = vmatprep.subr.bf16.mxu0 %v3653
  %5302 = vmatpush1.bf16.msra.mxu0 %v3652
  %5303 = vmatprep.subr.bf16.mxu0 %v3655
  %5304 = vmatpush1.bf16.msra.mxu0 %v3654
  %5305 = vmatprep.subr.bf16.mxu0 %v3657
  %5306 = vmatpush1.bf16.msra.mxu0 %v3656
  %5307 = vmatprep.subr.bf16.mxu0 %v3659
  %5308 = vmatpush1.bf16.msra.mxu0 %v3658
  %5309 = vmatprep.subr.bf16.mxu0 %v3661
  %5310 = vmatpush1.bf16.msra.mxu0 %v3660
  %5311 = vmatprep.subr.bf16.mxu0 %v3663
  %5312 = vmatpush1.bf16.msra.mxu0 %v3662
  %5313 = vmatprep.subr.bf16.mxu0 %v3665
  %5314 = vmatpush1.bf16.msra.mxu0 %v3664
  %5315 = vmatprep.subr.bf16.mxu0 %v3667
  %5316 = vmatpush1.bf16.msra.mxu0 %v3666
  %5317 = vmatprep.subr.bf16.mxu0 %v3669
  %5318 = vmatpush1.bf16.msra.mxu0 %v3668
  %5319 = vmatprep.subr.bf16.mxu0 %v3671
  %5320 = vmatpush1.bf16.msra.mxu0 %v3670
  %5321 = vmatprep.subr.bf16.mxu0 %v3673
  %5322 = vmatpush1.bf16.msra.mxu0 %v3672
  %5323 = vmatprep.subr.bf16.mxu0 %v3675
  %5324 = vmatpush1.bf16.msra.mxu0 %v3674
  %5325 = vmatprep.subr.bf16.mxu0 %v3677
  %5326 = vmatpush1.bf16.msra.mxu0 %v3676
  %5327 = vmatprep.subr.bf16.mxu0 %v3679
  %5328 = vmatpush1.bf16.msra.mxu0 %v3678
  %5329 = vmatprep.mubr.bf16.mxu0 %v929
  %5330 = vmatmul.mubr.bf16.gmra.mrb[0].mxu0 %v928
  %v5331 = vpop.f32.mrb[0].mxu0
  %v5332 = vadd.f32 %v5291, %v5331
  %v5333 = vpop.f32.mrb[0].mxu0
  %v5334 = vadd.f32 %v5293, %v5333
  %v5335 = vpop.f32.mrb[0].mxu0
  %v5336 = vpop.f32.mrb[0].mxu0
  %5337 = vdwg.mxu0
  %5338 = vmatprep.subr.bf16.mxu0 %v3681
  %5339 = vmatpush1.bf16.msra.mxu0 %v3680
  %5340 = vmatprep.subr.bf16.mxu0 %v3683
  %5341 = vmatpush1.bf16.msra.mxu0 %v3682
  %5342 = vmatprep.subr.bf16.mxu0 %v3685
  %5343 = vmatpush1.bf16.msra.mxu0 %v3684
  %5344 = vmatprep.subr.bf16.mxu0 %v3687
  %5345 = vmatpush1.bf16.msra.mxu0 %v3686
  %5346 = vmatprep.subr.bf16.mxu0 %v3689
  %5347 = vmatpush1.bf16.msra.mxu0 %v3688
  %5348 = vmatprep.subr.bf16.mxu0 %v3691
  %5349 = vmatpush1.bf16.msra.mxu0 %v3690
  %5350 = vmatprep.subr.bf16.mxu0 %v3693
  %5351 = vmatpush1.bf16.msra.mxu0 %v3692
  %5352 = vmatprep.subr.bf16.mxu0 %v3695
  %5353 = vmatpush1.bf16.msra.mxu0 %v3694
  %5354 = vmatprep.subr.bf16.mxu0 %v3697
  %5355 = vmatpush1.bf16.msra.mxu0 %v3696
  %5356 = vmatprep.subr.bf16.mxu0 %v3699
  %5357 = vmatpush1.bf16.msra.mxu0 %v3698
  %5358 = vmatprep.subr.bf16.mxu0 %v3701
  %5359 = vmatpush1.bf16.msra.mxu0 %v3700
  %5360 = vmatprep.subr.bf16.mxu0 %v3703
  %5361 = vmatpush1.bf16.msra.mxu0 %v3702
  %5362 = vmatprep.subr.bf16.mxu0 %v3705
  %5363 = vmatpush1.bf16.msra.mxu0 %v3704
  %5364 = vmatprep.subr.bf16.mxu0 %v3707
  %5365 = vmatpush1.bf16.msra.mxu0 %v3706
  %5366 = vmatprep.subr.bf16.mxu0 %v3709
  %5367 = vmatpush1.bf16.msra.mxu0 %v3708
  %5368 = vmatprep.subr.bf16.mxu0 %v3711
  %5369 = vmatpush1.bf16.msra.mxu0 %v3710
  %5370 = vmatprep.mubr.bf16.mxu0 %v931
  %5371 = vmatmul.mubr.bf16.gmra.mrb[0].mxu0 %v930
  %v5372 = vpop.f32.mrb[0].mxu0
  %v5373 = vadd.f32 %v5332, %v5372
  %v5374 = vpop.f32.mrb[0].mxu0
  %v5375 = vadd.f32 %v5334, %v5374
  %v5376 = vpop.f32.mrb[0].mxu0
  %v5377 = vpop.f32.mrb[0].mxu0
  %5378 = vdwg.mxu0
  %5379 = vmatprep.subr.bf16.mxu0 %v3713
  %5380 = vmatpush1.bf16.msra.mxu0 %v3712
  %5381 = vmatprep.subr.bf16.mxu0 %v3715
  %5382 = vmatpush1.bf16.msra.mxu0 %v3714
  %5383 = vmatprep.subr.bf16.mxu0 %v3717
  %5384 = vmatpush1.bf16.msra.mxu0 %v3716
  %5385 = vmatprep.subr.bf16.mxu0 %v3719
  %5386 = vmatpush1.bf16.msra.mxu0 %v3718
  %5387 = vmatprep.subr.bf16.mxu0 %v3721
  %5388 = vmatpush1.bf16.msra.mxu0 %v3720
  %5389 = vmatprep.subr.bf16.mxu0 %v3723
  %5390 = vmatpush1.bf16.msra.mxu0 %v3722
  %5391 = vmatprep.subr.bf16.mxu0 %v3725
  %5392 = vmatpush1.bf16.msra.mxu0 %v3724
  %5393 = vmatprep.subr.bf16.mxu0 %v3727
  %5394 = vmatpush1.bf16.msra.mxu0 %v3726
  %5395 = vmatprep.subr.bf16.mxu0 %v3729
  %5396 = vmatpush1.bf16.msra.mxu0 %v3728
  %5397 = vmatprep.subr.bf16.mxu0 %v3731
  %5398 = vmatpush1.bf16.msra.mxu0 %v3730
  %5399 = vmatprep.subr.bf16.mxu0 %v3733
  %5400 = vmatpush1.bf16.msra.mxu0 %v3732
  %5401 = vmatprep.subr.bf16.mxu0 %v3735
  %5402 = vmatpush1.bf16.msra.mxu0 %v3734
  %5403 = vmatprep.subr.bf16.mxu0 %v3737
  %5404 = vmatpush1.bf16.msra.mxu0 %v3736
  %5405 = vmatprep.subr.bf16.mxu0 %v3739
  %5406 = vmatpush1.bf16.msra.mxu0 %v3738
  %5407 = vmatprep.subr.bf16.mxu0 %v3741
  %5408 = vmatpush1.bf16.msra.mxu0 %v3740
  %5409 = vmatprep.subr.bf16.mxu0 %v3743
  %5410 = vmatpush1.bf16.msra.mxu0 %v3742
  %5411 = vmatprep.mubr.bf16.mxu0 %v933
  %5412 = vmatmul.mubr.bf16.gmra.mrb[0].mxu0 %v932
  %v5413 = vpop.f32.mrb[0].mxu0
  %v5414 = vadd.f32 %v5373, %v5413
  %v5415 = vpop.f32.mrb[0].mxu0
  %v5416 = vadd.f32 %v5375, %v5415
  %v5417 = vpop.f32.mrb[0].mxu0
  %v5418 = vpop.f32.mrb[0].mxu0
  %5419 = vdwg.mxu0
  %5420 = vmatprep.subr.bf16.mxu0 %v3745
  %5421 = vmatpush1.bf16.msra.mxu0 %v3744
  %5422 = vmatprep.subr.bf16.mxu0 %v3747
  %5423 = vmatpush1.bf16.msra.mxu0 %v3746
  %5424 = vmatprep.subr.bf16.mxu0 %v3749
  %5425 = vmatpush1.bf16.msra.mxu0 %v3748
  %5426 = vmatprep.subr.bf16.mxu0 %v3751
  %5427 = vmatpush1.bf16.msra.mxu0 %v3750
  %5428 = vmatprep.subr.bf16.mxu0 %v3753
  %5429 = vmatpush1.bf16.msra.mxu0 %v3752
  %5430 = vmatprep.subr.bf16.mxu0 %v3755
  %5431 = vmatpush1.bf16.msra.mxu0 %v3754
  %5432 = vmatprep.subr.bf16.mxu0 %v3757
  %5433 = vmatpush1.bf16.msra.mxu0 %v3756
  %5434 = vmatprep.subr.bf16.mxu0 %v3759
  %5435 = vmatpush1.bf16.msra.mxu0 %v3758
  %5436 = vmatprep.subr.bf16.mxu0 %v3761
  %5437 = vmatpush1.bf16.msra.mxu0 %v3760
  %5438 = vmatprep.subr.bf16.mxu0 %v3763
  %5439 = vmatpush1.bf16.msra.mxu0 %v3762
  %5440 = vmatprep.subr.bf16.mxu0 %v3765
  %5441 = vmatpush1.bf16.msra.mxu0 %v3764
  %5442 = vmatprep.subr.bf16.mxu0 %v3767
  %5443 = vmatpush1.bf16.msra.mxu0 %v3766
  %5444 = vmatprep.subr.bf16.mxu0 %v3769
  %5445 = vmatpush1.bf16.msra.mxu0 %v3768
  %5446 = vmatprep.subr.bf16.mxu0 %v3771
  %5447 = vmatpush1.bf16.msra.mxu0 %v3770
  %5448 = vmatprep.subr.bf16.mxu0 %v3773
  %5449 = vmatpush1.bf16.msra.mxu0 %v3772
  %5450 = vmatprep.subr.bf16.mxu0 %v3775
  %5451 = vmatpush1.bf16.msra.mxu0 %v3774
  %5452 = vmatprep.mubr.bf16.mxu0 %v935
  %5453 = vmatmul.mubr.bf16.gmra.mrb[0].mxu0 %v934
  %v5454 = vpop.f32.mrb[0].mxu0
  %v5455 = vadd.f32 %v5414, %v5454
  %v5456 = vpop.f32.mrb[0].mxu0
  %v5457 = vadd.f32 %v5416, %v5456
  %v5458 = vpop.f32.mrb[0].mxu0
  %v5459 = vpop.f32.mrb[0].mxu0
  %5460 = vdwg.mxu0
  %5461 = vmatprep.subr.bf16.mxu0 %v3777
  %5462 = vmatpush1.bf16.msra.mxu0 %v3776
  %5463 = vmatprep.subr.bf16.mxu0 %v3779
  %5464 = vmatpush1.bf16.msra.mxu0 %v3778
  %5465 = vmatprep.subr.bf16.mxu0 %v3781
  %5466 = vmatpush1.bf16.msra.mxu0 %v3780
  %5467 = vmatprep.subr.bf16.mxu0 %v3783
  %5468 = vmatpush1.bf16.msra.mxu0 %v3782
  %5469 = vmatprep.subr.bf16.mxu0 %v3785
  %5470 = vmatpush1.bf16.msra.mxu0 %v3784
  %5471 = vmatprep.subr.bf16.mxu0 %v3787
  %5472 = vmatpush1.bf16.msra.mxu0 %v3786
  %5473 = vmatprep.subr.bf16.mxu0 %v3789
  %5474 = vmatpush1.bf16.msra.mxu0 %v3788
  %5475 = vmatprep.subr.bf16.mxu0 %v3791
  %5476 = vmatpush1.bf16.msra.mxu0 %v3790
  %5477 = vmatprep.subr.bf16.mxu0 %v3793
  %5478 = vmatpush1.bf16.msra.mxu0 %v3792
  %5479 = vmatprep.subr.bf16.mxu0 %v3795
  %5480 = vmatpush1.bf16.msra.mxu0 %v3794
  %5481 = vmatprep.subr.bf16.mxu0 %v3797
  %5482 = vmatpush1.bf16.msra.mxu0 %v3796
  %5483 = vmatprep.subr.bf16.mxu0 %v3799
  %5484 = vmatpush1.bf16.msra.mxu0 %v3798
  %5485 = vmatprep.subr.bf16.mxu0 %v3801
  %5486 = vmatpush1.bf16.msra.mxu0 %v3800
  %5487 = vmatprep.subr.bf16.mxu0 %v3803
  %5488 = vmatpush1.bf16.msra.mxu0 %v3802
  %5489 = vmatprep.subr.bf16.mxu0 %v3805
  %5490 = vmatpush1.bf16.msra.mxu0 %v3804
  %5491 = vmatprep.subr.bf16.mxu0 %v3807
  %5492 = vmatpush1.bf16.msra.mxu0 %v3806
  %5493 = vmatprep.mubr.bf16.mxu0 %v937
  %5494 = vmatmul.mubr.bf16.gmra.mrb[0].mxu0 %v936
  %v5495 = vpop.f32.mrb[0].mxu0
  %v5496 = vadd.f32 %v5455, %v5495
  %v5497 = vpop.f32.mrb[0].mxu0
  %v5498 = vadd.f32 %v5457, %v5497
  %v5499 = vpop.f32.mrb[0].mxu0
  %v5500 = vpop.f32.mrb[0].mxu0
  %5501 = vdwg.mxu0
  %5502 = vmatprep.subr.bf16.mxu0 %v3809
  %5503 = vmatpush1.bf16.msra.mxu0 %v3808
  %5504 = vmatprep.subr.bf16.mxu0 %v3811
  %5505 = vmatpush1.bf16.msra.mxu0 %v3810
  %5506 = vmatprep.subr.bf16.mxu0 %v3813
  %5507 = vmatpush1.bf16.msra.mxu0 %v3812
  %5508 = vmatprep.subr.bf16.mxu0 %v3815
  %5509 = vmatpush1.bf16.msra.mxu0 %v3814
  %5510 = vmatprep.subr.bf16.mxu0 %v3817
  %5511 = vmatpush1.bf16.msra.mxu0 %v3816
  %5512 = vmatprep.subr.bf16.mxu0 %v3819
  %5513 = vmatpush1.bf16.msra.mxu0 %v3818
  %5514 = vmatprep.subr.bf16.mxu0 %v3821
  %5515 = vmatpush1.bf16.msra.mxu0 %v3820
  %5516 = vmatprep.subr.bf16.mxu0 %v3823
  %5517 = vmatpush1.bf16.msra.mxu0 %v3822
  %5518 = vmatprep.subr.bf16.mxu0 %v3825
  %5519 = vmatpush1.bf16.msra.mxu0 %v3824
  %5520 = vmatprep.subr.bf16.mxu0 %v3827
  %5521 = vmatpush1.bf16.msra.mxu0 %v3826
  %5522 = vmatprep.subr.bf16.mxu0 %v3829
  %5523 = vmatpush1.bf16.msra.mxu0 %v3828
  %5524 = vmatprep.subr.bf16.mxu0 %v3831
  %5525 = vmatpush1.bf16.msra.mxu0 %v3830
  %5526 = vmatprep.subr.bf16.mxu0 %v3833
  %5527 = vmatpush1.bf16.msra.mxu0 %v3832
  %5528 = vmatprep.subr.bf16.mxu0 %v3835
  %5529 = vmatpush1.bf16.msra.mxu0 %v3834
  %5530 = vmatprep.subr.bf16.mxu0 %v3837
  %5531 = vmatpush1.bf16.msra.mxu0 %v3836
  %5532 = vmatprep.subr.bf16.mxu0 %v3839
  %5533 = vmatpush1.bf16.msra.mxu0 %v3838
  %5534 = vmatprep.mubr.bf16.mxu0 %v939
  %5535 = vmatmul.mubr.bf16.gmra.mrb[0].mxu0 %v938
  %v5536 = vpop.f32.mrb[0].mxu0
  %v5537 = vadd.f32 %v5496, %v5536
  %v5538 = vpop.f32.mrb[0].mxu0
  %v5539 = vadd.f32 %v5498, %v5538
  %v5540 = vpop.f32.mrb[0].mxu0
  %v5541 = vpop.f32.mrb[0].mxu0
  %5542 = vdwg.mxu0
  %5543 = vmatprep.subr.bf16.mxu0 %v3841
  %5544 = vmatpush1.bf16.msra.mxu0 %v3840
  %5545 = vmatprep.subr.bf16.mxu0 %v3843
  %5546 = vmatpush1.bf16.msra.mxu0 %v3842
  %5547 = vmatprep.subr.bf16.mxu0 %v3845
  %5548 = vmatpush1.bf16.msra.mxu0 %v3844
  %5549 = vmatprep.subr.bf16.mxu0 %v3847
  %5550 = vmatpush1.bf16.msra.mxu0 %v3846
  %5551 = vmatprep.subr.bf16.mxu0 %v3849
  %5552 = vmatpush1.bf16.msra.mxu0 %v3848
  %5553 = vmatprep.subr.bf16.mxu0 %v3851
  %5554 = vmatpush1.bf16.msra.mxu0 %v3850
  %5555 = vmatprep.subr.bf16.mxu0 %v3853
  %5556 = vmatpush1.bf16.msra.mxu0 %v3852
  %5557 = vmatprep.subr.bf16.mxu0 %v3855
  %5558 = vmatpush1.bf16.msra.mxu0 %v3854
  %5559 = vmatprep.subr.bf16.mxu0 %v3857
  %5560 = vmatpush1.bf16.msra.mxu0 %v3856
  %5561 = vmatprep.subr.bf16.mxu0 %v3859
  %5562 = vmatpush1.bf16.msra.mxu0 %v3858
  %5563 = vmatprep.subr.bf16.mxu0 %v3861
  %5564 = vmatpush1.bf16.msra.mxu0 %v3860
  %5565 = vmatprep.subr.bf16.mxu0 %v3863
  %5566 = vmatpush1.bf16.msra.mxu0 %v3862
  %5567 = vmatprep.subr.bf16.mxu0 %v3865
  %5568 = vmatpush1.bf16.msra.mxu0 %v3864
  %5569 = vmatprep.subr.bf16.mxu0 %v3867
  %5570 = vmatpush1.bf16.msra.mxu0 %v3866
  %5571 = vmatprep.subr.bf16.mxu0 %v3869
  %5572 = vmatpush1.bf16.msra.mxu0 %v3868
  %5573 = vmatprep.subr.bf16.mxu0 %v3871
  %5574 = vmatpush1.bf16.msra.mxu0 %v3870
  %5575 = vmatprep.mubr.bf16.mxu0 %v941
  %5576 = vmatmul.mubr.bf16.gmra.mrb[0].mxu0 %v940
  %v5577 = vpop.f32.mrb[0].mxu0
  %v5578 = vadd.f32 %v5537, %v5577
  %v5579 = vpop.f32.mrb[0].mxu0
  %v5580 = vadd.f32 %v5539, %v5579
  %v5581 = vpop.f32.mrb[0].mxu0
  %v5582 = vpop.f32.mrb[0].mxu0
  %5583 = vdwg.mxu0
  %5584 = vmatprep.subr.bf16.mxu0 %v3873
  %5585 = vmatpush1.bf16.msra.mxu0 %v3872
  %5586 = vmatprep.subr.bf16.mxu0 %v3875
  %5587 = vmatpush1.bf16.msra.mxu0 %v3874
  %5588 = vmatprep.subr.bf16.mxu0 %v3877
  %5589 = vmatpush1.bf16.msra.mxu0 %v3876
  %5590 = vmatprep.subr.bf16.mxu0 %v3879
  %5591 = vmatpush1.bf16.msra.mxu0 %v3878
  %5592 = vmatprep.subr.bf16.mxu0 %v3881
  %5593 = vmatpush1.bf16.msra.mxu0 %v3880
  %5594 = vmatprep.subr.bf16.mxu0 %v3883
  %5595 = vmatpush1.bf16.msra.mxu0 %v3882
  %5596 = vmatprep.subr.bf16.mxu0 %v3885
  %5597 = vmatpush1.bf16.msra.mxu0 %v3884
  %5598 = vmatprep.subr.bf16.mxu0 %v3887
  %5599 = vmatpush1.bf16.msra.mxu0 %v3886
  %5600 = vmatprep.subr.bf16.mxu0 %v3889
  %5601 = vmatpush1.bf16.msra.mxu0 %v3888
  %5602 = vmatprep.subr.bf16.mxu0 %v3891
  %5603 = vmatpush1.bf16.msra.mxu0 %v3890
  %5604 = vmatprep.subr.bf16.mxu0 %v3893
  %5605 = vmatpush1.bf16.msra.mxu0 %v3892
  %5606 = vmatprep.subr.bf16.mxu0 %v3895
  %5607 = vmatpush1.bf16.msra.mxu0 %v3894
  %5608 = vmatprep.subr.bf16.mxu0 %v3897
  %5609 = vmatpush1.bf16.msra.mxu0 %v3896
  %5610 = vmatprep.subr.bf16.mxu0 %v3899
  %5611 = vmatpush1.bf16.msra.mxu0 %v3898
  %5612 = vmatprep.subr.bf16.mxu0 %v3901
  %5613 = vmatpush1.bf16.msra.mxu0 %v3900
  %5614 = vmatprep.subr.bf16.mxu0 %v3903
  %5615 = vmatpush1.bf16.msra.mxu0 %v3902
  %5616 = vmatprep.mubr.bf16.mxu0 %v943
  %5617 = vmatmul.mubr.bf16.gmra.mrb[0].mxu0 %v942
  %v5618 = vpop.f32.mrb[0].mxu0
  %v5619 = vadd.f32 %v5578, %v5618
  %v5620 = vpop.f32.mrb[0].mxu0
  %v5621 = vadd.f32 %v5580, %v5620
  %v5622 = vpop.f32.mrb[0].mxu0
  %v5623 = vpop.f32.mrb[0].mxu0
  %5624 = vdwg.mxu0
  %5625 = vmatprep.subr.bf16.mxu0 %v3905
  %5626 = vmatpush1.bf16.msra.mxu0 %v3904
  %5627 = vmatprep.subr.bf16.mxu0 %v3907
  %5628 = vmatpush1.bf16.msra.mxu0 %v3906
  %5629 = vmatprep.subr.bf16.mxu0 %v3909
  %5630 = vmatpush1.bf16.msra.mxu0 %v3908
  %5631 = vmatprep.subr.bf16.mxu0 %v3911
  %5632 = vmatpush1.bf16.msra.mxu0 %v3910
  %5633 = vmatprep.subr.bf16.mxu0 %v3913
  %5634 = vmatpush1.bf16.msra.mxu0 %v3912
  %5635 = vmatprep.subr.bf16.mxu0 %v3915
  %5636 = vmatpush1.bf16.msra.mxu0 %v3914
  %5637 = vmatprep.subr.bf16.mxu0 %v3917
  %5638 = vmatpush1.bf16.msra.mxu0 %v3916
  %5639 = vmatprep.subr.bf16.mxu0 %v3919
  %5640 = vmatpush1.bf16.msra.mxu0 %v3918
  %5641 = vmatprep.subr.bf16.mxu0 %v3921
  %5642 = vmatpush1.bf16.msra.mxu0 %v3920
  %5643 = vmatprep.subr.bf16.mxu0 %v3923
  %5644 = vmatpush1.bf16.msra.mxu0 %v3922
  %5645 = vmatprep.subr.bf16.mxu0 %v3925
  %5646 = vmatpush1.bf16.msra.mxu0 %v3924
  %5647 = vmatprep.subr.bf16.mxu0 %v3927
  %5648 = vmatpush1.bf16.msra.mxu0 %v3926
  %5649 = vmatprep.subr.bf16.mxu0 %v3929
  %5650 = vmatpush1.bf16.msra.mxu0 %v3928
  %5651 = vmatprep.subr.bf16.mxu0 %v3931
  %5652 = vmatpush1.bf16.msra.mxu0 %v3930
  %5653 = vmatprep.subr.bf16.mxu0 %v3933
  %5654 = vmatpush1.bf16.msra.mxu0 %v3932
  %5655 = vmatprep.subr.bf16.mxu0 %v3935
  %5656 = vmatpush1.bf16.msra.mxu0 %v3934
  %5657 = vmatprep.mubr.bf16.mxu0 %v945
  %5658 = vmatmul.mubr.bf16.gmra.mrb[0].mxu0 %v944
  %v5659 = vpop.f32.mrb[0].mxu0
  %v5660 = vadd.f32 %v5619, %v5659
  %v5661 = vpop.f32.mrb[0].mxu0
  %v5662 = vadd.f32 %v5621, %v5661
  %v5663 = vpop.f32.mrb[0].mxu0
  %v5664 = vpop.f32.mrb[0].mxu0
  %5665 = vdwg.mxu0
  %5666 = vmatprep.subr.bf16.mxu0 %v3937
  %5667 = vmatpush1.bf16.msra.mxu0 %v3936
  %5668 = vmatprep.subr.bf16.mxu0 %v3939
  %5669 = vmatpush1.bf16.msra.mxu0 %v3938
  %5670 = vmatprep.subr.bf16.mxu0 %v3941
  %5671 = vmatpush1.bf16.msra.mxu0 %v3940
  %5672 = vmatprep.subr.bf16.mxu0 %v3943
  %5673 = vmatpush1.bf16.msra.mxu0 %v3942
  %5674 = vmatprep.subr.bf16.mxu0 %v3945
  %5675 = vmatpush1.bf16.msra.mxu0 %v3944
  %5676 = vmatprep.subr.bf16.mxu0 %v3947
  %5677 = vmatpush1.bf16.msra.mxu0 %v3946
  %5678 = vmatprep.subr.bf16.mxu0 %v3949
  %5679 = vmatpush1.bf16.msra.mxu0 %v3948
  %5680 = vmatprep.subr.bf16.mxu0 %v3951
  %5681 = vmatpush1.bf16.msra.mxu0 %v3950
  %5682 = vmatprep.subr.bf16.mxu0 %v3953
  %5683 = vmatpush1.bf16.msra.mxu0 %v3952
  %5684 = vmatprep.subr.bf16.mxu0 %v3955
  %5685 = vmatpush1.bf16.msra.mxu0 %v3954
  %5686 = vmatprep.subr.bf16.mxu0 %v3957
  %5687 = vmatpush1.bf16.msra.mxu0 %v3956
  %5688 = vmatprep.subr.bf16.mxu0 %v3959
  %5689 = vmatpush1.bf16.msra.mxu0 %v3958
  %5690 = vmatprep.subr.bf16.mxu0 %v3961
  %5691 = vmatpush1.bf16.msra.mxu0 %v3960
  %5692 = vmatprep.subr.bf16.mxu0 %v3963
  %5693 = vmatpush1.bf16.msra.mxu0 %v3962
  %5694 = vmatprep.subr.bf16.mxu0 %v3965
  %5695 = vmatpush1.bf16.msra.mxu0 %v3964
  %5696 = vmatprep.subr.bf16.mxu0 %v3967
  %5697 = vmatpush1.bf16.msra.mxu0 %v3966
  %5698 = vmatprep.mubr.bf16.mxu0 %v947
  %5699 = vmatmul.mubr.bf16.gmra.mrb[0].mxu0 %v946
  %v5700 = vpop.f32.mrb[0].mxu0
  %v5701 = vadd.f32 %v5660, %v5700
  %v5702 = vpop.f32.mrb[0].mxu0
  %v5703 = vadd.f32 %v5662, %v5702
  %v5704 = vpop.f32.mrb[0].mxu0
  %v5705 = vpop.f32.mrb[0].mxu0
  %5706 = vdwg.mxu0
  %5707 = vmatprep.subr.bf16.mxu0 %v3969
  %5708 = vmatpush1.bf16.msra.mxu0 %v3968
  %5709 = vmatprep.subr.bf16.mxu0 %v3971
  %5710 = vmatpush1.bf16.msra.mxu0 %v3970
  %5711 = vmatprep.subr.bf16.mxu0 %v3973
  %5712 = vmatpush1.bf16.msra.mxu0 %v3972
  %5713 = vmatprep.subr.bf16.mxu0 %v3975
  %5714 = vmatpush1.bf16.msra.mxu0 %v3974
  %5715 = vmatprep.subr.bf16.mxu0 %v3977
  %5716 = vmatpush1.bf16.msra.mxu0 %v3976
  %5717 = vmatprep.subr.bf16.mxu0 %v3979
  %5718 = vmatpush1.bf16.msra.mxu0 %v3978
  %5719 = vmatprep.subr.bf16.mxu0 %v3981
  %5720 = vmatpush1.bf16.msra.mxu0 %v3980
  %5721 = vmatprep.subr.bf16.mxu0 %v3983
  %5722 = vmatpush1.bf16.msra.mxu0 %v3982
  %5723 = vmatprep.subr.bf16.mxu0 %v3985
  %5724 = vmatpush1.bf16.msra.mxu0 %v3984
  %5725 = vmatprep.subr.bf16.mxu0 %v3987
  %5726 = vmatpush1.bf16.msra.mxu0 %v3986
  %5727 = vmatprep.subr.bf16.mxu0 %v3989
  %5728 = vmatpush1.bf16.msra.mxu0 %v3988
  %5729 = vmatprep.subr.bf16.mxu0 %v3991
  %5730 = vmatpush1.bf16.msra.mxu0 %v3990
  %5731 = vmatprep.subr.bf16.mxu0 %v3993
  %5732 = vmatpush1.bf16.msra.mxu0 %v3992
  %5733 = vmatprep.subr.bf16.mxu0 %v3995
  %5734 = vmatpush1.bf16.msra.mxu0 %v3994
  %5735 = vmatprep.subr.bf16.mxu0 %v3997
  %5736 = vmatpush1.bf16.msra.mxu0 %v3996
  %5737 = vmatprep.subr.bf16.mxu0 %v3999
  %5738 = vmatpush1.bf16.msra.mxu0 %v3998
  %5739 = vmatprep.mubr.bf16.mxu0 %v949
  %5740 = vmatmul.mubr.bf16.gmra.mrb[0].mxu0 %v948
  %v5741 = vpop.f32.mrb[0].mxu0
  %v5742 = vadd.f32 %v5701, %v5741
  %v5743 = vpop.f32.mrb[0].mxu0
  %v5744 = vadd.f32 %v5703, %v5743
  %v5745 = vpop.f32.mrb[0].mxu0
  %v5746 = vpop.f32.mrb[0].mxu0
  %5747 = vdwg.mxu0
  %5748 = vmatprep.subr.bf16.mxu0 %v4001
  %5749 = vmatpush1.bf16.msra.mxu0 %v4000
  %5750 = vmatprep.subr.bf16.mxu0 %v4003
  %5751 = vmatpush1.bf16.msra.mxu0 %v4002
  %5752 = vmatprep.subr.bf16.mxu0 %v4005
  %5753 = vmatpush1.bf16.msra.mxu0 %v4004
  %5754 = vmatprep.subr.bf16.mxu0 %v4007
  %5755 = vmatpush1.bf16.msra.mxu0 %v4006
  %5756 = vmatprep.subr.bf16.mxu0 %v4009
  %5757 = vmatpush1.bf16.msra.mxu0 %v4008
  %5758 = vmatprep.subr.bf16.mxu0 %v4011
  %5759 = vmatpush1.bf16.msra.mxu0 %v4010
  %5760 = vmatprep.subr.bf16.mxu0 %v4013
  %5761 = vmatpush1.bf16.msra.mxu0 %v4012
  %5762 = vmatprep.subr.bf16.mxu0 %v4015
  %5763 = vmatpush1.bf16.msra.mxu0 %v4014
  %5764 = vmatprep.subr.bf16.mxu0 %v4017
  %5765 = vmatpush1.bf16.msra.mxu0 %v4016
  %5766 = vmatprep.subr.bf16.mxu0 %v4019
  %5767 = vmatpush1.bf16.msra.mxu0 %v4018
  %5768 = vmatprep.subr.bf16.mxu0 %v4021
  %5769 = vmatpush1.bf16.msra.mxu0 %v4020
  %5770 = vmatprep.subr.bf16.mxu0 %v4023
  %5771 = vmatpush1.bf16.msra.mxu0 %v4022
  %5772 = vmatprep.subr.bf16.mxu0 %v4025
  %5773 = vmatpush1.bf16.msra.mxu0 %v4024
  %5774 = vmatprep.subr.bf16.mxu0 %v4027
  %5775 = vmatpush1.bf16.msra.mxu0 %v4026
  %5776 = vmatprep.subr.bf16.mxu0 %v4029
  %5777 = vmatpush1.bf16.msra.mxu0 %v4028
  %5778 = vmatprep.subr.bf16.mxu0 %v4031
  %5779 = vmatpush1.bf16.msra.mxu0 %v4030
  %5780 = vmatprep.mubr.bf16.mxu0 %v951
  %5781 = vmatmul.mubr.bf16.gmra.mrb[0].mxu0 %v950
  %v5782 = vpop.f32.mrb[0].mxu0
  %v5783 = vadd.f32 %v5742, %v5782
  %v5784 = vpop.f32.mrb[0].mxu0
  %v5785 = vadd.f32 %v5744, %v5784
  %v5786 = vpop.f32.mrb[0].mxu0
  %v5787 = vpop.f32.mrb[0].mxu0
  %5788 = vdwg.mxu0
  %5789 = vmatprep.subr.bf16.mxu0 %v4033
  %5790 = vmatpush1.bf16.msra.mxu0 %v4032
  %5791 = vmatprep.subr.bf16.mxu0 %v4035
  %5792 = vmatpush1.bf16.msra.mxu0 %v4034
  %5793 = vmatprep.subr.bf16.mxu0 %v4037
  %5794 = vmatpush1.bf16.msra.mxu0 %v4036
  %5795 = vmatprep.subr.bf16.mxu0 %v4039
  %5796 = vmatpush1.bf16.msra.mxu0 %v4038
  %5797 = vmatprep.subr.bf16.mxu0 %v4041
  %5798 = vmatpush1.bf16.msra.mxu0 %v4040
  %5799 = vmatprep.subr.bf16.mxu0 %v4043
  %5800 = vmatpush1.bf16.msra.mxu0 %v4042
  %5801 = vmatprep.subr.bf16.mxu0 %v4045
  %5802 = vmatpush1.bf16.msra.mxu0 %v4044
  %5803 = vmatprep.subr.bf16.mxu0 %v4047
  %5804 = vmatpush1.bf16.msra.mxu0 %v4046
  %5805 = vmatprep.subr.bf16.mxu0 %v4049
  %5806 = vmatpush1.bf16.msra.mxu0 %v4048
  %5807 = vmatprep.subr.bf16.mxu0 %v4051
  %5808 = vmatpush1.bf16.msra.mxu0 %v4050
  %5809 = vmatprep.subr.bf16.mxu0 %v4053
  %5810 = vmatpush1.bf16.msra.mxu0 %v4052
  %5811 = vmatprep.subr.bf16.mxu0 %v4055
  %5812 = vmatpush1.bf16.msra.mxu0 %v4054
  %5813 = vmatprep.subr.bf16.mxu0 %v4057
  %5814 = vmatpush1.bf16.msra.mxu0 %v4056
  %5815 = vmatprep.subr.bf16.mxu0 %v4059
  %5816 = vmatpush1.bf16.msra.mxu0 %v4058
  %5817 = vmatprep.subr.bf16.mxu0 %v4061
  %5818 = vmatpush1.bf16.msra.mxu0 %v4060
  %5819 = vmatprep.subr.bf16.mxu0 %v4063
  %5820 = vmatpush1.bf16.msra.mxu0 %v4062
  %5821 = vmatprep.mubr.bf16.mxu0 %v953
  %5822 = vmatmul.mubr.bf16.gmra.mrb[0].mxu0 %v952
  %v5823 = vpop.f32.mrb[0].mxu0
  %v5824 = vadd.f32 %v5783, %v5823
  %v5825 = vpop.f32.mrb[0].mxu0
  %v5826 = vadd.f32 %v5785, %v5825
  %v5827 = vpop.f32.mrb[0].mxu0
  %v5828 = vpop.f32.mrb[0].mxu0
  %5829 = vdwg.mxu0
  %5830 = vmatprep.subr.bf16.mxu0 %v4065
  %5831 = vmatpush1.bf16.msra.mxu0 %v4064
  %5832 = vmatprep.subr.bf16.mxu0 %v4067
  %5833 = vmatpush1.bf16.msra.mxu0 %v4066
  %5834 = vmatprep.subr.bf16.mxu0 %v4069
  %5835 = vmatpush1.bf16.msra.mxu0 %v4068
  %5836 = vmatprep.subr.bf16.mxu0 %v4071
  %5837 = vmatpush1.bf16.msra.mxu0 %v4070
  %5838 = vmatprep.subr.bf16.mxu0 %v4073
  %5839 = vmatpush1.bf16.msra.mxu0 %v4072
  %5840 = vmatprep.subr.bf16.mxu0 %v4075
  %5841 = vmatpush1.bf16.msra.mxu0 %v4074
  %5842 = vmatprep.subr.bf16.mxu0 %v4077
  %5843 = vmatpush1.bf16.msra.mxu0 %v4076
  %5844 = vmatprep.subr.bf16.mxu0 %v4079
  %5845 = vmatpush1.bf16.msra.mxu0 %v4078
  %5846 = vmatprep.subr.bf16.mxu0 %v4081
  %5847 = vmatpush1.bf16.msra.mxu0 %v4080
  %5848 = vmatprep.subr.bf16.mxu0 %v4083
  %5849 = vmatpush1.bf16.msra.mxu0 %v4082
  %5850 = vmatprep.subr.bf16.mxu0 %v4085
  %5851 = vmatpush1.bf16.msra.mxu0 %v4084
  %5852 = vmatprep.subr.bf16.mxu0 %v4087
  %5853 = vmatpush1.bf16.msra.mxu0 %v4086
  %5854 = vmatprep.subr.bf16.mxu0 %v4089
  %5855 = vmatpush1.bf16.msra.mxu0 %v4088
  %5856 = vmatprep.subr.bf16.mxu0 %v4091
  %5857 = vmatpush1.bf16.msra.mxu0 %v4090
  %5858 = vmatprep.subr.bf16.mxu0 %v4093
  %5859 = vmatpush1.bf16.msra.mxu0 %v4092
  %5860 = vmatprep.subr.bf16.mxu0 %v4095
  %5861 = vmatpush1.bf16.msra.mxu0 %v4094
  %5862 = vmatprep.mubr.bf16.mxu0 %v955
  %5863 = vmatmul.mubr.bf16.gmra.mrb[0].mxu0 %v954
  %v5864 = vpop.f32.mrb[0].mxu0
  %v5865 = vadd.f32 %v5824, %v5864
  %v5866 = vpop.f32.mrb[0].mxu0
  %v5867 = vadd.f32 %v5826, %v5866
  %v5868 = vpop.f32.mrb[0].mxu0
  %v5869 = vpop.f32.mrb[0].mxu0
  %5870 = vdwg.mxu0
  %5871 = vmatprep.subr.bf16.mxu0 %v4097
  %5872 = vmatpush1.bf16.msra.mxu0 %v4096
  %5873 = vmatprep.subr.bf16.mxu0 %v4099
  %5874 = vmatpush1.bf16.msra.mxu0 %v4098
  %5875 = vmatprep.subr.bf16.mxu0 %v4101
  %5876 = vmatpush1.bf16.msra.mxu0 %v4100
  %5877 = vmatprep.subr.bf16.mxu0 %v4103
  %5878 = vmatpush1.bf16.msra.mxu0 %v4102
  %5879 = vmatprep.subr.bf16.mxu0 %v4105
  %5880 = vmatpush1.bf16.msra.mxu0 %v4104
  %5881 = vmatprep.subr.bf16.mxu0 %v4107
  %5882 = vmatpush1.bf16.msra.mxu0 %v4106
  %5883 = vmatprep.subr.bf16.mxu0 %v4109
  %5884 = vmatpush1.bf16.msra.mxu0 %v4108
  %5885 = vmatprep.subr.bf16.mxu0 %v4111
  %5886 = vmatpush1.bf16.msra.mxu0 %v4110
  %5887 = vmatprep.subr.bf16.mxu0 %v4113
  %5888 = vmatpush1.bf16.msra.mxu0 %v4112
  %5889 = vmatprep.subr.bf16.mxu0 %v4115
  %5890 = vmatpush1.bf16.msra.mxu0 %v4114
  %5891 = vmatprep.subr.bf16.mxu0 %v4117
  %5892 = vmatpush1.bf16.msra.mxu0 %v4116
  %5893 = vmatprep.subr.bf16.mxu0 %v4119
  %5894 = vmatpush1.bf16.msra.mxu0 %v4118
  %5895 = vmatprep.subr.bf16.mxu0 %v4121
  %5896 = vmatpush1.bf16.msra.mxu0 %v4120
  %5897 = vmatprep.subr.bf16.mxu0 %v4123
  %5898 = vmatpush1.bf16.msra.mxu0 %v4122
  %5899 = vmatprep.subr.bf16.mxu0 %v4125
  %5900 = vmatpush1.bf16.msra.mxu0 %v4124
  %5901 = vmatprep.subr.bf16.mxu0 %v4127
  %5902 = vmatpush1.bf16.msra.mxu0 %v4126
  %5903 = vmatprep.mubr.bf16.mxu0 %v957
  %5904 = vmatmul.mubr.bf16.gmra.mrb[0].mxu0 %v956
  %v5905 = vpop.f32.mrb[0].mxu0
  %v5906 = vadd.f32 %v5865, %v5905
  %v5907 = vpop.f32.mrb[0].mxu0
  %v5908 = vadd.f32 %v5867, %v5907
  %v5909 = vpop.f32.mrb[0].mxu0
  %v5910 = vpop.f32.mrb[0].mxu0
  %5911 = vdwg.mxu0
  %5912 = vmatprep.subr.bf16.mxu0 %v4129
  %5913 = vmatpush1.bf16.msra.mxu0 %v4128
  %5914 = vmatprep.subr.bf16.mxu0 %v4131
  %5915 = vmatpush1.bf16.msra.mxu0 %v4130
  %5916 = vmatprep.subr.bf16.mxu0 %v4133
  %5917 = vmatpush1.bf16.msra.mxu0 %v4132
  %5918 = vmatprep.subr.bf16.mxu0 %v4135
  %5919 = vmatpush1.bf16.msra.mxu0 %v4134
  %5920 = vmatprep.subr.bf16.mxu0 %v4137
  %5921 = vmatpush1.bf16.msra.mxu0 %v4136
  %5922 = vmatprep.subr.bf16.mxu0 %v4139
  %5923 = vmatpush1.bf16.msra.mxu0 %v4138
  %5924 = vmatprep.subr.bf16.mxu0 %v4141
  %5925 = vmatpush1.bf16.msra.mxu0 %v4140
  %5926 = vmatprep.subr.bf16.mxu0 %v4143
  %5927 = vmatpush1.bf16.msra.mxu0 %v4142
  %5928 = vmatprep.subr.bf16.mxu0 0
  %5929 = vmatpush1.bf16.msra.mxu0 0
  %5930 = vmatprep.subr.bf16.mxu0 0
  %5931 = vmatpush1.bf16.msra.mxu0 0
  %5932 = vmatprep.subr.bf16.mxu0 0
  %5933 = vmatpush1.bf16.msra.mxu0 0
  %5934 = vmatprep.subr.bf16.mxu0 0
  %5935 = vmatpush1.bf16.msra.mxu0 0
  %5936 = vmatprep.subr.bf16.mxu0 0
  %5937 = vmatpush1.bf16.msra.mxu0 0
  %5938 = vmatprep.subr.bf16.mxu0 0
  %5939 = vmatpush1.bf16.msra.mxu0 0
  %5940 = vmatprep.subr.bf16.mxu0 0
  %5941 = vmatpush1.bf16.msra.mxu0 0
  %5942 = vmatprep.subr.bf16.mxu0 0
  %5943 = vmatpush1.bf16.msra.mxu0 0
  %5944 = vmatprep.mubr.bf16.mxu0 0
  %5945 = vmatmul.mubr.bf16.gmra.mrb[0].mxu0 %v958
  %v5946 = vpop.f32.mrb[0].mxu0
  %v5947 = vadd.f32 %v5906, %v5946
  %v5948 = vpop.f32.mrb[0].mxu0
  %v5949 = vadd.f32 %v5908, %v5948
  %v5950 = vpop.f32.mrb[0].mxu0
  %v5951 = vpop.f32.mrb[0].mxu0
  %5952 = vdwg.mxu0
  %5953 = vst [vmem:[%s3] sm:$0xff] %v5947
  %5954 = vst [vmem:[%s3 + $0x8] sm:$0xff] %v5949
  // Predicated region
  $region14: #{mnist_conv_forward.12} parent=0 // pred_check
    _
  $region15: #{mnist_conv_forward.12} parent=0 // pred_check_branch
    %5956 = sbr.rel (0) target = $region17
  $region16: #{mnist_conv_forward.12} parent=0 // pred_region
    _
  $region17: #{mnist_conv_forward.12} parent=0 // pred_fallthru
    _
  // Predicated region
  $region18: #{mnist_conv_forward.12} parent=0 // pred_check
    _
  $region19: #{mnist_conv_forward.12} parent=0 // pred_check_branch
    %5958 = sbr.rel (0) target = $region21
  $region20: #{mnist_conv_forward.12} parent=0 // pred_region
    _
  $region21: #{mnist_conv_forward.12} parent=0 // pred_fallthru
    _

// kernel: mnist_conv_forward.13
$region0: #{mnist_conv_forward.13}
  #allocation0 [shape = 'u32[]', space=smem, size = 0x4, offset = 0x4, fixed_abs, tag = 'smem constant byte address 0x4 - core index']
  #allocation1 [shape = 'u32[144,128]{1,0:T(1,128)}', space=vmem, size = 0x12000, scoped, tag = 'internal scratch']
  #allocation2 [shape = 'f32[2,256]{1,0:T(2,128)}', space=vmem, size = 0x800, scoped, tag = 'scratch operand']
  %s0 = inlined_call_operand.vmem [shape: f32[4,2,256], index: 0, kind: input, shape index: {}]
  %s1 = inlined_call_operand.vmem [shape: f32[4,2,256], index: 1, kind: output, shape index: {}]
  %s2 = sld [smem:[#allocation0]]
  $region41: #{mnist_conv_forward.13} parent=0
    _
  %s4 = ssub.s32 1, %s2
  %s5 = scalar_select 0, %s4, %s2
  loop: start=0, step=1, limit=6
  $region2: #{mnist_conv_forward.13} parent=0 // loop_pre_header
    _
  $region3: #{mnist_conv_forward.13} parent=0 // loop_header
    %s7 = sphi 0, %s11
    %p8 = scmp.ge.s32.totalorder %s7, 6
    %s14 = sphi 0, %s26
    %s15 = sphi 0, %s22
    %s16 = sphi 0, %s14
    %s17 = sphi 0, %s15
    %s18 = sphi 0, %s16
    %s19 = sphi 0, %s17
    %s31 = sphi 0, %s33
    %s34 = sphi 0, %s31
    %s35 = sphi 0, %s34
    %s51 = sphi 0, %s35
    %s59 = sphi 0, %s61
    %s62 = sphi 0, %s59
    %s63 = sphi 0, %s62
    %s79 = sphi 0, %s63
  $region4: #{mnist_conv_forward.13} parent=0 // loop_header_branch
    %10 = sbr.rel (%p8) target = $region8
  $region5: #{mnist_conv_forward.13} parent=0 // loop_body
    %s12 = ssub.s32 %s7, 1
    %s13 = ssub.s32 %s7, 2
    %s20 = sadd.s32 1, %s15
    %p21 = scmp.ge.s32.totalorder %s20, 4
    %s22 = scalar_select %p21, 0, %s20
    %s23 = sadd.s32 1, %s14
    %s24 = scalar_select %p21, %s23, %s14
    %p25 = scmp.ge.s32.totalorder %s24, 1
    %s26 = scalar_select %p25, 0, %s24
    %s27 = ssub.s32 %s15, %s22
    %s28 = ssub.s32 %s14, %s26
    %s29 = sor.u32 %s27, %s28
    %p30 = scmp.eq.s32.totalorder %s29, 0
    %s32 = sadd.s32 %s31, 1
    %s33 = scalar_select %p30, %s31, %s32
    %p36 = pneg %p30
    %p37 = scmp.eq.s32.totalorder %s7, 3
    %p38 = por %p36, %p37
    %p39 = scmp.ne.s32.totalorder %s31, %s34
    %p40 = scmp.eq.s32.totalorder %s7, 0
    %p41 = por %p39, %p40
    %p42 = scmp.ne.s32.totalorder %s31, %s34
    %p43 = scmp.eq.s32.totalorder %s12, 3
    %p44 = por %p42, %p43
    %p45 = scmp.ne.s32.totalorder %s34, %s35
    %p46 = scmp.eq.s32.totalorder %s12, 0
    %p47 = por %p45, %p46
    %p48 = scmp.ne.s32.totalorder %s34, %s35
    %p49 = scmp.eq.s32.totalorder %s13, 3
    %p50 = por %p48, %p49
    %p52 = scmp.ne.s32.totalorder %s35, %s51
    %p53 = scmp.eq.s32.totalorder %s13, 0
    %p54 = por %p52, %p53
    %s55 = ssub.s32 %s15, %s22
    %s56 = ssub.s32 %s14, %s26
    %s57 = sor.u32 %s55, %s56
    %p58 = scmp.eq.s32.totalorder %s57, 0
    %s60 = sadd.s32 %s59, 1
    %s61 = scalar_select %p58, %s59, %s60
    %p64 = pneg %p58
    %p65 = scmp.eq.s32.totalorder %s7, 3
    %p66 = por %p64, %p65
    %p67 = scmp.ne.s32.totalorder %s59, %s62
    %p68 = scmp.eq.s32.totalorder %s7, 0
    %p69 = por %p67, %p68
    %p70 = scmp.ne.s32.totalorder %s59, %s62
    %p71 = scmp.eq.s32.totalorder %s12, 3
    %p72 = por %p70, %p71
    %p73 = scmp.ne.s32.totalorder %s62, %s63
    %p74 = scmp.eq.s32.totalorder %s12, 0
    %p75 = por %p73, %p74
    %p76 = scmp.ne.s32.totalorder %s62, %s63
    %p77 = scmp.eq.s32.totalorder %s13, 3
    %p78 = por %p76, %p77
    %p80 = scmp.ne.s32.totalorder %s63, %s79
    %p81 = scmp.eq.s32.totalorder %s13, 0
    %p82 = por %p80, %p81
    %p83 = scmp.le.s32.totalorder 1, %s7
    %p84 = scmp.lt.s32.totalorder %s7, 5
    %p85 = pnand %p83, %p84
    %p86 = pneg %p85
    // Predicated region
    $region9: #{mnist_conv_forward.13} parent=5 // pred_check
      _
    $region10: #{mnist_conv_forward.13} parent=5 // pred_check_branch
      %88 = sbr.rel (%p85) target = $region12
    $region11: #{mnist_conv_forward.13} parent=5 // pred_region
      %s89 = ssub.s32 %s7, 1
    $region12: #{mnist_conv_forward.13} parent=5 // pred_fallthru
      _
    %p90 = scmp.lt.s32.totalorder %s7, 4
    // Predicated region
    $region13: #{mnist_conv_forward.13} parent=5 // pred_check
      %p91 = pneg %p90
    $region14: #{mnist_conv_forward.13} parent=5 // pred_check_branch
      %93 = sbr.rel (%p91) target = $region16
    $region15: #{mnist_conv_forward.13} parent=5 // pred_region
      // Predicated region
      $region17: #{mnist_conv_forward.13} parent=15 // pred_check
        %p94 = pneg %p41
      $region18: #{mnist_conv_forward.13} parent=15 // pred_check_branch
        %96 = sbr.rel (%p94) target = $region20
      $region19: #{mnist_conv_forward.13} parent=15 // pred_region
        %s97 = smul.u32 2, %s14
        %p98 = scmp.lt.s32.totalorder %s15, 3
        %s99 = scalar_select %p98, %s15, 3
        %p100 = scmp.lt.s32.totalorder %s97, 1
        %s101 = scalar_select %p100, %s97, 1
        %s102 = smul.addr %s99, 2
        %s103 = sadd.s32 %s101, %s102
        %s104 = smul.addr %s103, 2
        %s105 = scalar_lea.vmem %s0, %s104
        %s106 = smul.u32 2, %s14
      $region20: #{mnist_conv_forward.13} parent=15 // pred_fallthru
        _
    $region16: #{mnist_conv_forward.13} parent=5 // pred_fallthru
      _
    %p107 = scmp.le.s32.totalorder 1, %s7
    %p108 = scmp.lt.s32.totalorder %s7, 5
    %p109 = pnand %p107, %p108
    %p110 = pneg %p109
    // Predicated region
    $region21: #{mnist_conv_forward.13} parent=5 // pred_check
      _
    $region22: #{mnist_conv_forward.13} parent=5 // pred_check_branch
      %112 = sbr.rel (%p109) target = $region24
    $region23: #{mnist_conv_forward.13} parent=5 // pred_region
      %s113 = ssub.s32 %s7, 1
      %s114 = smul.u32 2, %s16
      %p115 = scmp.lt.s32.totalorder %s17, 3
      %s116 = scalar_select %p115, %s17, 3
      %p117 = scmp.lt.s32.totalorder %s114, 1
      %s118 = scalar_select %p117, %s114, 1
      %s119 = smul.addr %s116, 2
      %s120 = sadd.s32 %s118, %s119
      %s121 = smul.addr %s120, 2
      %s122 = scalar_lea.vmem %s0, %s121
      %p123 = pneg %p47
      %p124 = pneg %p44
      %p125 = pneg %p75
      %p126 = pneg %p72
      %s127 = smul.u32 2, %s16
      %p128 = scmp.lt.s32.totalorder %s17, 3
      %s129 = scalar_select %p128, %s17, 3
      %p130 = scmp.lt.s32.totalorder %s127, 1
      %s131 = scalar_select %p130, %s127, 1
      %s132 = smul.addr %s129, 2
      %s133 = sadd.s32 %s131, %s132
      %s134 = smul.addr %s133, 2
      %s135 = scalar_lea.vmem %s1, %s134
      %s136 = smul.u32 2, %s16
      %p137 = scmp.lt.s32.totalorder %s17, 3
      %s138 = scalar_select %p137, %s17, 3
      %p139 = scmp.lt.s32.totalorder %s136, 1
      %s140 = scalar_select %p139, %s136, 1
      %s141 = smul.addr %s138, 2
      %s142 = sadd.s32 %s140, %s141
      %s143 = smul.addr %s142, 2
      %s144 = scalar_lea.vmem %s0, %s143
      %s145 = smul.u32 2, %s16
      %s146 = smul.u32 2, %s16
      %p147 = scmp.lt.s32.totalorder %s17, 3
      %s148 = scalar_select %p147, %s17, 3
      %p149 = scmp.lt.s32.totalorder %s146, 1
      %s150 = scalar_select %p149, %s146, 1
      %s151 = smul.addr %s148, 2
      %s152 = sadd.s32 %s150, %s151
      %s153 = smul.addr %s152, 2
      %s154 = scalar_lea.vmem %s1, %s153
      %s155 = smul.u32 2, %s16
      %p156 = scmp.eq.s32.totalorder %s17, 0
      // Predicated region
      $region25: #{mnist_conv_forward.13} parent=23 // pred_check
        %p157 = pneg %p156
      $region26: #{mnist_conv_forward.13} parent=23 // pred_check_branch
        %159 = sbr.rel (%p157) target = $region28
      $region27: #{mnist_conv_forward.13} parent=23 // pred_region
        %160 = vst [vmem:[#allocation2] sm:$0xf] 0.0
      $region28: #{mnist_conv_forward.13} parent=23 // pred_fallthru
        _
      %v161 = vld [vmem:[#allocation2] sm:$0xf]
      %v162 = vld [vmem:[%s144] sm:$0xf]
      %v163 = vadd.f32 %v161, %v162
      %vm164 = vcmp.gt.f32.partialorder %v163, 0.5
      %v165 = vsel %vm164, 1, 0
      %v166 = vcvt.s32.f32 %v165
      %167 = vst [vmem:[%s154] sm:$0xf] %v166
      %v168 = vsub.f32 1.0, %v166
      %v169 = vmul.f32 %v168, 0.2
      %v170 = vmul.f32 %v163, %v169
      %171 = vst [vmem:[#allocation2] sm:$0xf] %v170
      %s172 = smul.u32 2, %s16
      %p173 = scmp.lt.s32.totalorder %s17, 3
      %s174 = scalar_select %p173, %s17, 3
      %p175 = scmp.lt.s32.totalorder %s172, 1
      %s176 = scalar_select %p175, %s172, 1
      %s177 = smul.addr %s174, 2
      %s178 = sadd.s32 %s176, %s177
      %s179 = smul.addr %s178, 2
      %s180 = scalar_lea.vmem %s1, %s179
      // Predicated region
      $region29: #{mnist_conv_forward.13} parent=23 // pred_check
        %p181 = pneg %p72
      $region30: #{mnist_conv_forward.13} parent=23 // pred_check_branch
        %183 = sbr.rel (%p181) target = $region32
      $region31: #{mnist_conv_forward.13} parent=23 // pred_region
        %s184 = smul.u32 2, %s16
      $region32: #{mnist_conv_forward.13} parent=23 // pred_fallthru
        _
    $region24: #{mnist_conv_forward.13} parent=5 // pred_fallthru
      _
    %p185 = scmp.le.s32.totalorder 2, %s7
    // Predicated region
    $region33: #{mnist_conv_forward.13} parent=5 // pred_check
      %p186 = pneg %p185
    $region34: #{mnist_conv_forward.13} parent=5 // pred_check_branch
      %188 = sbr.rel (%p186) target = $region36
    $region35: #{mnist_conv_forward.13} parent=5 // pred_region
      %s189 = ssub.s32 %s7, 2
      // Predicated region
      $region37: #{mnist_conv_forward.13} parent=35 // pred_check
        %p190 = pneg %p78
      $region38: #{mnist_conv_forward.13} parent=35 // pred_check_branch
        %192 = sbr.rel (%p190) target = $region40
      $region39: #{mnist_conv_forward.13} parent=35 // pred_region
        %s193 = smul.u32 2, %s18
        %p194 = scmp.lt.s32.totalorder %s19, 3
        %s195 = scalar_select %p194, %s19, 3
        %p196 = scmp.lt.s32.totalorder %s193, 1
        %s197 = scalar_select %p196, %s193, 1
        %s198 = smul.addr %s195, 2
        %s199 = sadd.s32 %s197, %s198
        %s200 = smul.addr %s199, 2
        %s201 = scalar_lea.vmem %s1, %s200
      $region40: #{mnist_conv_forward.13} parent=35 // pred_fallthru
        _
    $region36: #{mnist_conv_forward.13} parent=5 // pred_fallthru
      _
  $region6: #{mnist_conv_forward.13} parent=0 // loop_footer
    %s11 = sadd.s32 1, %s7
  $region7: #{mnist_conv_forward.13} parent=0 // loop_footer_branch
    %6 = sbr.rel target = $region3
  $region8: #{mnist_conv_forward.13} parent=0 // loop_exit
    _

// kernel: mnist_conv_forward.15
$region0: #{mnist_conv_forward.15}
  #allocation0 [shape = 'u32[]', space=smem, size = 0x4, offset = 0x4, fixed_abs, tag = 'smem constant byte address 0x4 - core index']
  #allocation1 [shape = 'u32[144,128]{1,0:T(1,128)}', space=vmem, size = 0x12000, scoped, tag = 'internal scratch']
  #allocation2 [shape = 'f32[2,128]{1,0:T(2,128)}', space=vmem, size = 0x400, scoped, tag = 'scratch operand']
  %s0 = inlined_call_operand.vmem [shape: f32[4,2,128], index: 0, kind: input, shape index: {}]
  %s1 = inlined_call_operand.vmem [shape: f32[4,2,128], index: 1, kind: output, shape index: {}]
  %s2 = sld [smem:[#allocation0]]
  $region41: #{mnist_conv_forward.15} parent=0
    _
  %s4 = ssub.s32 1, %s2
  %s5 = scalar_select 0, %s4, %s2
  loop: start=0, step=1, limit=6
  $region2: #{mnist_conv_forward.15} parent=0 // loop_pre_header
    _
  $region3: #{mnist_conv_forward.15} parent=0 // loop_header
    %s7 = sphi 0, %s11
    %p8 = scmp.ge.s32.totalorder %s7, 6
    %s14 = sphi 0, %s26
    %s15 = sphi 0, %s22
    %s16 = sphi 0, %s14
    %s17 = sphi 0, %s15
    %s18 = sphi 0, %s16
    %s19 = sphi 0, %s17
    %s31 = sphi 0, %s33
    %s34 = sphi 0, %s31
    %s35 = sphi 0, %s34
    %s51 = sphi 0, %s35
    %s59 = sphi 0, %s61
    %s62 = sphi 0, %s59
    %s63 = sphi 0, %s62
    %s79 = sphi 0, %s63
  $region4: #{mnist_conv_forward.15} parent=0 // loop_header_branch
    %10 = sbr.rel (%p8) target = $region8
  $region5: #{mnist_conv_forward.15} parent=0 // loop_body
    %s12 = ssub.s32 %s7, 1
    %s13 = ssub.s32 %s7, 2
    %s20 = sadd.s32 1, %s15
    %p21 = scmp.ge.s32.totalorder %s20, 4
    %s22 = scalar_select %p21, 0, %s20
    %s23 = sadd.s32 1, %s14
    %s24 = scalar_select %p21, %s23, %s14
    %p25 = scmp.ge.s32.totalorder %s24, 1
    %s26 = scalar_select %p25, 0, %s24
    %s27 = ssub.s32 %s15, %s22
    %s28 = ssub.s32 %s14, %s26
    %s29 = sor.u32 %s27, %s28
    %p30 = scmp.eq.s32.totalorder %s29, 0
    %s32 = sadd.s32 %s31, 1
    %s33 = scalar_select %p30, %s31, %s32
    %p36 = pneg %p30
    %p37 = scmp.eq.s32.totalorder %s7, 3
    %p38 = por %p36, %p37
    %p39 = scmp.ne.s32.totalorder %s31, %s34
    %p40 = scmp.eq.s32.totalorder %s7, 0
    %p41 = por %p39, %p40
    %p42 = scmp.ne.s32.totalorder %s31, %s34
    %p43 = scmp.eq.s32.totalorder %s12, 3
    %p44 = por %p42, %p43
    %p45 = scmp.ne.s32.totalorder %s34, %s35
    %p46 = scmp.eq.s32.totalorder %s12, 0
    %p47 = por %p45, %p46
    %p48 = scmp.ne.s32.totalorder %s34, %s35
    %p49 = scmp.eq.s32.totalorder %s13, 3
    %p50 = por %p48, %p49
    %p52 = scmp.ne.s32.totalorder %s35, %s51
    %p53 = scmp.eq.s32.totalorder %s13, 0
    %p54 = por %p52, %p53
    %s55 = ssub.s32 %s15, %s22
    %s56 = ssub.s32 %s14, %s26
    %s57 = sor.u32 %s55, %s56
    %p58 = scmp.eq.s32.totalorder %s57, 0
    %s60 = sadd.s32 %s59, 1
    %s61 = scalar_select %p58, %s59, %s60
    %p64 = pneg %p58
    %p65 = scmp.eq.s32.totalorder %s7, 3
    %p66 = por %p64, %p65
    %p67 = scmp.ne.s32.totalorder %s59, %s62
    %p68 = scmp.eq.s32.totalorder %s7, 0
    %p69 = por %p67, %p68
    %p70 = scmp.ne.s32.totalorder %s59, %s62
    %p71 = scmp.eq.s32.totalorder %s12, 3
    %p72 = por %p70, %p71
    %p73 = scmp.ne.s32.totalorder %s62, %s63
    %p74 = scmp.eq.s32.totalorder %s12, 0
    %p75 = por %p73, %p74
    %p76 = scmp.ne.s32.totalorder %s62, %s63
    %p77 = scmp.eq.s32.totalorder %s13, 3
    %p78 = por %p76, %p77
    %p80 = scmp.ne.s32.totalorder %s63, %s79
    %p81 = scmp.eq.s32.totalorder %s13, 0
    %p82 = por %p80, %p81
    %p83 = scmp.le.s32.totalorder 1, %s7
    %p84 = scmp.lt.s32.totalorder %s7, 5
    %p85 = pnand %p83, %p84
    %p86 = pneg %p85
    // Predicated region
    $region9: #{mnist_conv_forward.15} parent=5 // pred_check
      _
    $region10: #{mnist_conv_forward.15} parent=5 // pred_check_branch
      %88 = sbr.rel (%p85) target = $region12
    $region11: #{mnist_conv_forward.15} parent=5 // pred_region
      %s89 = ssub.s32 %s7, 1
    $region12: #{mnist_conv_forward.15} parent=5 // pred_fallthru
      _
    %p90 = scmp.lt.s32.totalorder %s7, 4
    // Predicated region
    $region13: #{mnist_conv_forward.15} parent=5 // pred_check
      %p91 = pneg %p90
    $region14: #{mnist_conv_forward.15} parent=5 // pred_check_branch
      %93 = sbr.rel (%p91) target = $region16
    $region15: #{mnist_conv_forward.15} parent=5 // pred_region
      // Predicated region
      $region17: #{mnist_conv_forward.15} parent=15 // pred_check
        %p94 = pneg %p41
      $region18: #{mnist_conv_forward.15} parent=15 // pred_check_branch
        %96 = sbr.rel (%p94) target = $region20
      $region19: #{mnist_conv_forward.15} parent=15 // pred_region
        %p97 = scmp.lt.s32.totalorder %s15, 3
        %s98 = scalar_select %p97, %s15, 3
        %p99 = scmp.lt.s32.totalorder %s14, 0
        %s100 = scalar_select %p99, %s14, 0
        %s101 = sadd.s32 %s100, %s98
        %s102 = smul.addr %s101, 2
        %s103 = scalar_lea.vmem %s0, %s102
      $region20: #{mnist_conv_forward.15} parent=15 // pred_fallthru
        _
    $region16: #{mnist_conv_forward.15} parent=5 // pred_fallthru
      _
    %p104 = scmp.le.s32.totalorder 1, %s7
    %p105 = scmp.lt.s32.totalorder %s7, 5
    %p106 = pnand %p104, %p105
    %p107 = pneg %p106
    // Predicated region
    $region21: #{mnist_conv_forward.15} parent=5 // pred_check
      _
    $region22: #{mnist_conv_forward.15} parent=5 // pred_check_branch
      %109 = sbr.rel (%p106) target = $region24
    $region23: #{mnist_conv_forward.15} parent=5 // pred_region
      %s110 = ssub.s32 %s7, 1
      %p111 = scmp.lt.s32.totalorder %s17, 3
      %s112 = scalar_select %p111, %s17, 3
      %p113 = scmp.lt.s32.totalorder %s16, 0
      %s114 = scalar_select %p113, %s16, 0
      %s115 = sadd.s32 %s114, %s112
      %s116 = smul.addr %s115, 2
      %s117 = scalar_lea.vmem %s0, %s116
      %p118 = pneg %p47
      %p119 = pneg %p44
      %p120 = pneg %p75
      %p121 = pneg %p72
      %p122 = scmp.lt.s32.totalorder %s17, 3
      %s123 = scalar_select %p122, %s17, 3
      %p124 = scmp.lt.s32.totalorder %s16, 0
      %s125 = scalar_select %p124, %s16, 0
      %s126 = sadd.s32 %s125, %s123
      %s127 = smul.addr %s126, 2
      %s128 = scalar_lea.vmem %s1, %s127
      %p129 = scmp.lt.s32.totalorder %s17, 3
      %s130 = scalar_select %p129, %s17, 3
      %p131 = scmp.lt.s32.totalorder %s16, 0
      %s132 = scalar_select %p131, %s16, 0
      %s133 = sadd.s32 %s132, %s130
      %s134 = smul.addr %s133, 2
      %s135 = scalar_lea.vmem %s0, %s134
      %p136 = scmp.lt.s32.totalorder %s17, 3
      %s137 = scalar_select %p136, %s17, 3
      %p138 = scmp.lt.s32.totalorder %s16, 0
      %s139 = scalar_select %p138, %s16, 0
      %s140 = sadd.s32 %s139, %s137
      %s141 = smul.addr %s140, 2
      %s142 = scalar_lea.vmem %s1, %s141
      %p143 = scmp.eq.s32.totalorder %s17, 0
      // Predicated region
      $region25: #{mnist_conv_forward.15} parent=23 // pred_check
        %p144 = pneg %p143
      $region26: #{mnist_conv_forward.15} parent=23 // pred_check_branch
        %146 = sbr.rel (%p144) target = $region28
      $region27: #{mnist_conv_forward.15} parent=23 // pred_region
        %147 = vst [vmem:[#allocation2] sm:$0x3] 0.0
      $region28: #{mnist_conv_forward.15} parent=23 // pred_fallthru
        _
      %v148 = vld [vmem:[#allocation2] sm:$0x3]
      %v149 = vld [vmem:[%s135] sm:$0x3]
      %v150 = vadd.f32 %v148, %v149
      %vm151 = vcmp.gt.f32.partialorder %v150, 0.5
      %v152 = vsel %vm151, 1, 0
      %v153 = vcvt.s32.f32 %v152
      %154 = vst [vmem:[%s142] sm:$0x3] %v153
      %v155 = vsub.f32 1.0, %v153
      %v156 = vmul.f32 %v155, 0.2
      %v157 = vmul.f32 %v150, %v156
      %158 = vst [vmem:[#allocation2] sm:$0x3] %v157
      %p159 = scmp.lt.s32.totalorder %s17, 3
      %s160 = scalar_select %p159, %s17, 3
      %p161 = scmp.lt.s32.totalorder %s16, 0
      %s162 = scalar_select %p161, %s16, 0
      %s163 = sadd.s32 %s162, %s160
      %s164 = smul.addr %s163, 2
      %s165 = scalar_lea.vmem %s1, %s164
      // Predicated region
      $region29: #{mnist_conv_forward.15} parent=23 // pred_check
        %p166 = pneg %p72
      $region30: #{mnist_conv_forward.15} parent=23 // pred_check_branch
        %168 = sbr.rel (%p166) target = $region32
      $region31: #{mnist_conv_forward.15} parent=23 // pred_region
        _
      $region32: #{mnist_conv_forward.15} parent=23 // pred_fallthru
        _
    $region24: #{mnist_conv_forward.15} parent=5 // pred_fallthru
      _
    %p169 = scmp.le.s32.totalorder 2, %s7
    // Predicated region
    $region33: #{mnist_conv_forward.15} parent=5 // pred_check
      %p170 = pneg %p169
    $region34: #{mnist_conv_forward.15} parent=5 // pred_check_branch
      %172 = sbr.rel (%p170) target = $region36
    $region35: #{mnist_conv_forward.15} parent=5 // pred_region
      %s173 = ssub.s32 %s7, 2
      // Predicated region
      $region37: #{mnist_conv_forward.15} parent=35 // pred_check
        %p174 = pneg %p78
      $region38: #{mnist_conv_forward.15} parent=35 // pred_check_branch
        %176 = sbr.rel (%p174) target = $region40
      $region39: #{mnist_conv_forward.15} parent=35 // pred_region
        %p177 = scmp.lt.s32.totalorder %s19, 3
        %s178 = scalar_select %p177, %s19, 3
        %p179 = scmp.lt.s32.totalorder %s18, 0
        %s180 = scalar_select %p179, %s18, 0
        %s181 = sadd.s32 %s180, %s178
        %s182 = smul.addr %s181, 2
        %s183 = scalar_lea.vmem %s1, %s182
      $region40: #{mnist_conv_forward.15} parent=35 // pred_fallthru
        _
    $region36: #{mnist_conv_forward.15} parent=5 // pred_fallthru
      _
  $region6: #{mnist_conv_forward.15} parent=0 // loop_footer
    %s11 = sadd.s32 1, %s7
  $region7: #{mnist_conv_forward.15} parent=0 // loop_footer_branch
    %6 = sbr.rel target = $region3
  $region8: #{mnist_conv_forward.15} parent=0 // loop_exit
    _

// kernel: mnist_conv_forward.14
$region0: #{mnist_conv_forward.14}
  #allocation0 [shape = 'u32[]', space=smem, size = 0x4, offset = 0x4, fixed_abs, tag = 'smem constant byte address 0x4 - core index']
  #allocation1 [shape = 'u32[144,128]{1,0:T(1,128)}', space=vmem, size = 0x12000, scoped, tag = 'internal scratch']
  %s0 = inlined_call_operand.vmem [shape: bf16[8,256], index: 0, kind: input, shape index: {}]
  %s1 = inlined_call_operand.vmem [shape: bf16[256,128], index: 1, kind: input, shape index: {}]
  %s2 = inlined_call_operand.vmem [shape: f32[1,128], index: 2, kind: input, shape index: {}]
  %s3 = inlined_call_operand.vmem [shape: f32[8,128], index: 3, kind: output, shape index: {}]
  %s4 = sld [smem:[#allocation0]]
  $region22: #{mnist_conv_forward.14} parent=0
    _
  %s6 = ssub.s32 1, %s4
  %s7 = scalar_select 0, %s6, %s4
  // Predicated region
  $region2: #{mnist_conv_forward.14} parent=0 // pred_check
    _
  $region3: #{mnist_conv_forward.14} parent=0 // pred_check_branch
    %9 = sbr.rel (0) target = $region5
  $region4: #{mnist_conv_forward.14} parent=0 // pred_region
    _
  $region5: #{mnist_conv_forward.14} parent=0 // pred_fallthru
    _
  // Predicated region
  $region6: #{mnist_conv_forward.14} parent=0 // pred_check
    _
  $region7: #{mnist_conv_forward.14} parent=0 // pred_check_branch
    %11 = sbr.rel (0) target = $region9
  $region8: #{mnist_conv_forward.14} parent=0 // pred_region
    _
  $region9: #{mnist_conv_forward.14} parent=0 // pred_fallthru
    _
  // Predicated region
  $region10: #{mnist_conv_forward.14} parent=0 // pred_check
    _
  $region11: #{mnist_conv_forward.14} parent=0 // pred_check_branch
    %13 = sbr.rel (0) target = $region13
  $region12: #{mnist_conv_forward.14} parent=0 // pred_region
    _
  $region13: #{mnist_conv_forward.14} parent=0 // pred_fallthru
    _
  %v15 = vld [vmem:[%s0] sm:$0xff]
  %v16 = vld [vmem:[%s1] sm:$0xf]
  %v17 = vld [vmem:[%s1 + $0x4] sm:$0xf]
  %v18 = vld [vmem:[%s1 + $0x8] sm:$0xf]
  %v19 = vld [vmem:[%s1 + $0xc] sm:$0xf]
  %v20 = vld [vmem:[%s1 + $0x10] sm:$0xf]
  %v21 = vld [vmem:[%s1 + $0x14] sm:$0xf]
  %v22 = vld [vmem:[%s1 + $0x18] sm:$0xf]
  %v23 = vld [vmem:[%s1 + $0x1c] sm:$0xf]
  %v24 = vld [vmem:[%s1 + $0x20] sm:$0xf]
  %v25 = vld [vmem:[%s1 + $0x24] sm:$0xf]
  %v26 = vld [vmem:[%s1 + $0x28] sm:$0xf]
  %v27 = vld [vmem:[%s1 + $0x2c] sm:$0xf]
  %v28 = vld [vmem:[%s1 + $0x30] sm:$0xf]
  %v29 = vld [vmem:[%s1 + $0x34] sm:$0xf]
  %v30 = vld [vmem:[%s1 + $0x38] sm:$0xf]
  %v31 = vld [vmem:[%s1 + $0x3c] sm:$0xf]
  %v32 = vld [vmem:[%s1 + $0x40] sm:$0xf]
  %v33 = vld [vmem:[%s1 + $0x44] sm:$0xf]
  %v34 = vld [vmem:[%s1 + $0x48] sm:$0xf]
  %v35 = vld [vmem:[%s1 + $0x4c] sm:$0xf]
  %v36 = vld [vmem:[%s1 + $0x50] sm:$0xf]
  %v37 = vld [vmem:[%s1 + $0x54] sm:$0xf]
  %v38 = vld [vmem:[%s1 + $0x58] sm:$0xf]
  %v39 = vld [vmem:[%s1 + $0x5c] sm:$0xf]
  %v40 = vld [vmem:[%s1 + $0x60] sm:$0xf]
  %v41 = vld [vmem:[%s1 + $0x64] sm:$0xf]
  %v42 = vld [vmem:[%s1 + $0x68] sm:$0xf]
  %v43 = vld [vmem:[%s1 + $0x6c] sm:$0xf]
  %v44 = vld [vmem:[%s1 + $0x70] sm:$0xf]
  %v45 = vld [vmem:[%s1 + $0x74] sm:$0xf]
  %v46 = vld [vmem:[%s1 + $0x78] sm:$0xf]
  %v47 = vld [vmem:[%s1 + $0x7c] sm:$0xf]
  %v48 = vld [vmem:[%s2] sm:$0x1]
  %v50 = vlaneseq
  %v51 = vshrl.u32 %v50, 7
  %v52 = vsub.s32 0, %v51
  %v53 = vrot.slane %v48, %v52
  %v56 = vunpack.c.l.b16 %v15
  %v57 = vunpack.c.h.b16 %v15
  %v58 = vpack.c.b16 %v56, %v56
  %v59 = vpack.c.b16 %v57, %v57
  %v94 = vunpack.c.l.b16 %v16
  %v95 = vunpack.c.l.b16 %v17
  %v96 = vunpack.c.l.b16 %v18
  %v97 = vunpack.c.l.b16 %v19
  %v98 = vunpack.c.l.b16 %v20
  %v99 = vunpack.c.l.b16 %v21
  %v100 = vunpack.c.l.b16 %v22
  %v101 = vunpack.c.l.b16 %v23
  %v102 = vunpack.c.l.b16 %v24
  %v103 = vunpack.c.l.b16 %v25
  %v104 = vunpack.c.l.b16 %v26
  %v105 = vunpack.c.l.b16 %v27
  %v106 = vunpack.c.l.b16 %v28
  %v107 = vunpack.c.l.b16 %v29
  %v108 = vunpack.c.l.b16 %v30
  %v109 = vunpack.c.l.b16 %v31
  %v110 = vunpack.c.l.b16 %v32
  %v111 = vunpack.c.l.b16 %v33
  %v112 = vunpack.c.l.b16 %v34
  %v113 = vunpack.c.l.b16 %v35
  %v114 = vunpack.c.l.b16 %v36
  %v115 = vunpack.c.l.b16 %v37
  %v116 = vunpack.c.l.b16 %v38
  %v117 = vunpack.c.l.b16 %v39
  %v118 = vunpack.c.l.b16 %v40
  %v119 = vunpack.c.l.b16 %v41
  %v120 = vunpack.c.l.b16 %v42
  %v121 = vunpack.c.l.b16 %v43
  %v122 = vunpack.c.l.b16 %v44
  %v123 = vunpack.c.l.b16 %v45
  %v124 = vunpack.c.l.b16 %v46
  %v125 = vunpack.c.l.b16 %v47
  %v126 = vpack.c.b16 %v95, %v94
  %v127 = vpack.c.b16 %v97, %v96
  %v128 = vpack.c.b16 %v99, %v98
  %v129 = vpack.c.b16 %v101, %v100
  %v130 = vpack.c.b16 %v103, %v102
  %v131 = vpack.c.b16 %v105, %v104
  %v132 = vpack.c.b16 %v107, %v106
  %v133 = vpack.c.b16 %v109, %v108
  %v134 = vpack.c.b16 %v111, %v110
  %v135 = vpack.c.b16 %v113, %v112
  %v136 = vpack.c.b16 %v115, %v114
  %v137 = vpack.c.b16 %v117, %v116
  %v138 = vpack.c.b16 %v119, %v118
  %v139 = vpack.c.b16 %v121, %v120
  %v140 = vpack.c.b16 %v123, %v122
  %v141 = vpack.c.b16 %v125, %v124
  %158 = vmatprep.subr.bf16.mxu0 0
  %159 = vmatpush1.bf16.msra.mxu0 %v126
  %160 = vmatprep.subr.bf16.mxu0 0
  %161 = vmatpush1.bf16.msra.mxu0 %v127
  %162 = vmatprep.subr.bf16.mxu0 0
  %163 = vmatpush1.bf16.msra.mxu0 %v128
  %164 = vmatprep.subr.bf16.mxu0 0
  %165 = vmatpush1.bf16.msra.mxu0 %v129
  %166 = vmatprep.subr.bf16.mxu0 0
  %167 = vmatpush1.bf16.msra.mxu0 %v130
  %168 = vmatprep.subr.bf16.mxu0 0
  %169 = vmatpush1.bf16.msra.mxu0 %v131
  %170 = vmatprep.subr.bf16.mxu0 0
  %171 = vmatpush1.bf16.msra.mxu0 %v132
  %172 = vmatprep.subr.bf16.mxu0 0
  %173 = vmatpush1.bf16.msra.mxu0 %v133
  %174 = vmatprep.subr.bf16.mxu0 0
  %175 = vmatpush1.bf16.msra.mxu0 %v134
  %176 = vmatprep.subr.bf16.mxu0 0
  %177 = vmatpush1.bf16.msra.mxu0 %v135
  %178 = vmatprep.subr.bf16.mxu0 0
  %179 = vmatpush1.bf16.msra.mxu0 %v136
  %180 = vmatprep.subr.bf16.mxu0 0
  %181 = vmatpush1.bf16.msra.mxu0 %v137
  %182 = vmatprep.subr.bf16.mxu0 0
  %183 = vmatpush1.bf16.msra.mxu0 %v138
  %184 = vmatprep.subr.bf16.mxu0 0
  %185 = vmatpush1.bf16.msra.mxu0 %v139
  %186 = vmatprep.subr.bf16.mxu0 0
  %187 = vmatpush1.bf16.msra.mxu0 %v140
  %188 = vmatprep.subr.bf16.mxu0 0
  %189 = vmatpush1.bf16.msra.mxu0 %v141
  %190 = vmatprep.mubr.bf16.mxu0 %v59
  %191 = vmatmul.mubr.bf16.gmra.mrb[0].mxu0 %v58
  %v192 = vpop.f32.mrb[0].mxu0
  %v193 = vadd.f32 %v53, %v192
  %v194 = vpop.f32.mrb[0].mxu0
  %v195 = vpop.f32.mrb[0].mxu0
  %v196 = vpop.f32.mrb[0].mxu0
  %197 = vdwg.mxu0
  %198 = vst [vmem:[%s3] sm:$0xff] %v193
  // Predicated region
  $region14: #{mnist_conv_forward.14} parent=0 // pred_check
    _
  $region15: #{mnist_conv_forward.14} parent=0 // pred_check_branch
    %200 = sbr.rel (0) target = $region17
  $region16: #{mnist_conv_forward.14} parent=0 // pred_region
    _
  $region17: #{mnist_conv_forward.14} parent=0 // pred_fallthru
    _
  // Predicated region
  $region18: #{mnist_conv_forward.14} parent=0 // pred_check
    _
  $region19: #{mnist_conv_forward.14} parent=0 // pred_check_branch
    %202 = sbr.rel (0) target = $region21
  $region20: #{mnist_conv_forward.14} parent=0 // pred_region
    _
  $region21: #{mnist_conv_forward.14} parent=0 // pred_fallthru
    _

</llo_original>
